<compile_context>
chip_gen: v7x
topology: tpu7x:2x2x1
jax: 0.10.0
libtpu: 0.0.40
codegen_flags: <defaults>
</compile_context>

<pallas_src>
import functools
import math

import jax
import jax.numpy as jnp
import numpy as np
from jax.experimental import pallas as pl
from jax.experimental.pallas import tpu as pltpu

BN_EPS = 1e-5
LANE = 128


def _round_up(x, m):
    return (x + m - 1) // m * m


def _cdiv(a, b):
    return (a + b - 1) // b


def _tpu_vmem_capacity():
    try:
        return int(pltpu.get_tpu_info().vmem_capacity_bytes)
    except Exception:
        return 64 * 1024 * 1024          # v7x per-core capacity == safe lower bound


VMEM_CAP_BYTES = _tpu_vmem_capacity()
# Scoped-VMEM ceiling handed to Mosaic: above the 16/32 MiB defaults, below the
# physical capacity of every generation (64 MiB v7x, 128 MiB v5e/v6e).
VMEM_LIMIT_BYTES = min(VMEM_CAP_BYTES * 3 // 4, 100 * 1024 * 1024)
# Budget used when choosing tile sizes (headroom for double buffers, Mosaic
# internal scratch and (8,128) rounding).
_TILE_BUDGET = int(VMEM_LIMIT_BYTES * 0.6)


# ------------------------------ Pallas kernels -------------------------------


def _matmul_bias_kernel(x_ref, w_ref, b_ref, o_ref):
    # (tm, K) @ (K, No) + (1, No)   -- bf16 MXU operands, f32 accumulation.
    o_ref[...] = (jnp.dot(x_ref[...], w_ref[...],
                          preferred_element_type=jnp.float32)
                  + b_ref[...]).astype(o_ref.dtype)


def _conv_tap_relu_stats_kernel(xc_ref, xh_ref, w_ref, b_ref, y_ref, st_ref,
                                *, d, th, W, H):
    """One (image, row-tile) step of 3x3 dilated conv + bias + ReLU plus
    per-tile partial BatchNorm statistics (sum, sum of squares).

    The 3 column(kx)-shifted views of the halo'd window are concatenated along
    lanes once, so the tap reduction is 3 MXU dots with K = 3*Cin_p (fills the
    256-deep MXU on v6e/v7x; on v5e it simply becomes 3 K-passes) instead of 9
    dots with K = Cin_p, and far fewer per-tap relayout copies.
    """
    hb = pl.program_id(1)
    cin_p = xc_ref.shape[-1]
    cout_p = y_ref.shape[-1]

    # (th + 2d)-row window: this tile plus a 2d-row halo from the next tile.
    xwin = jnp.concatenate([xc_ref[0], xh_ref[0]], axis=0)  # (th+2d, W+2d, Cin_p)

    # kx-shifted views, lane-concatenated, flattened to rows.
    wide = jnp.concatenate(
        [xwin[:, kx * d:kx * d + W, :] for kx in range(3)], axis=-1)
    wide = wide.reshape((th + 2 * d) * W, 3 * cin_p)

    acc = jnp.zeros((th * W, cout_p), jnp.float32)
    for ky in range(3):
        acc = acc + jnp.dot(wide[ky * d * W:ky * d * W + th * W, :], w_ref[ky],
                            preferred_element_type=jnp.float32)

    y = jnp.maximum(acc + b_ref[...], 0.0)                  # conv + bias + ReLU
    y_ref[...] = y.reshape(1, th, W, cout_p).astype(y_ref.dtype)

    # Partial BN statistics.  Only the last row-tile can contain padded rows
    # (>= H), so interior tiles skip the iota/where mask entirely.
    last = pl.num_programs(1) - 1

    @pl.when(hb < last)
    def _():
        st_ref[0, 0, 0:1, :] = jnp.sum(y, axis=0, keepdims=True)
        st_ref[0, 0, 1:2, :] = jnp.sum(y * y, axis=0, keepdims=True)

    @pl.when(hb == last)
    def _():
        flat = jax.lax.broadcasted_iota(jnp.int32, (th * W, cout_p), 0)
        ym = jnp.where(flat < (H - hb * th) * W, y, 0.0)
        st_ref[0, 0, 0:1, :] = jnp.sum(ym, axis=0, keepdims=True)
        st_ref[0, 0, 1:2, :] = jnp.sum(ym * ym, axis=0, keepdims=True)


def _scale_shift_kernel(y_ref, sc_ref, sh_ref, o_ref):
    # BatchNorm normalization folded to a single FMA:  y * scale + shift.
    cp = y_ref.shape[-1]
    o_ref[...] = (y_ref[...] * sc_ref[...].reshape(1, 1, 1, cp)
                  + sh_ref[...].reshape(1, 1, 1, cp)).astype(o_ref.dtype)


# ------------------------------ tile-size picking -----------------------------


def _pick_th(H, W, Cin_p, Cout_p, d):
    """Largest output-row tile that (a) is a multiple of 8 and 2*d (required by
    the 2d-row halo BlockSpec) and (b) keeps the per-step working set --
    double-buffered input+halo+output blocks, resident weights, and the
    in-kernel temporaries -- inside the per-generation VMEM budget."""
    step = 8 * 2 * d // math.gcd(8, 2 * d)
    W2 = W + 2 * d

    def tile_bytes(t):
        inp = 2 * (t + 2 * d) * W2 * Cin_p * 2               # cur + halo, 2 bufs
        wgt = 2 * 9 * Cin_p * Cout_p * 2 + 4 * Cout_p * 4    # weights + bias
        out = 2 * (t * W * Cout_p * 2 + 2 * Cout_p * 4)      # y (bf16) + stats
        tmp = ((t + 2 * d) * W2 * Cin_p * 2                  # halo concat copy
               + 2 * (t + 2 * d) * W * 3 * Cin_p * 2         # K-wide operand
               + 2 * t * W * Cout_p * 4)                     # f32 acc + pre-cast y
        return inp + wgt + out + tmp

    cap = max(step, _round_up(min(H, 512), step))
    t = step
    while t + step <= cap and tile_bytes(t + step) <= _TILE_BUDGET:
        t += step
    return t


def _pick_tm(M, K, N_out):
    def tile_bytes(t):
        return (2 * t * K * 2 + 2 * t * N_out * 2
                + 2 * K * N_out * 2 + t * N_out * 4)
    tm = 256
    while tm < 4096 and tile_bytes(tm * 2) <= _TILE_BUDGET:
        tm *= 2
    return min(tm, _round_up(M, 8))


# ------------------------------- JAX wrappers ---------------------------------


def _conv_transpose_2x2(x_nhwc, w_tconv, b_tconv):
    """ConvTranspose2d(Cin, Cup, kernel=2, stride=2) as a row-tiled matmul.

    Returns (N, 2H, 2W, Cup_p) bf16 with output channels zero-padded to Cup_p;
    the zero channels stay inert because downstream conv weights are laid out
    around them (no channel-slice copy)."""
    N, H, W, Cin = x_nhwc.shape
    Cup = w_tconv.shape[1]
    Cin_p = _round_up(Cin, LANE)
    Cup_p = _round_up(Cup, LANE)
    M = N * H * W
    tm = _pick_tm(M, Cin_p, 4 * Cup_p)
    Mp = _round_up(M, tm)

    x2 = jnp.pad(x_nhwc.reshape(M, Cin).astype(jnp.bfloat16),
                 ((0, Mp - M), (0, Cin_p - Cin)))
    # torch weight (Cin, Cup, 2, 2) -> (Cin, ky, kx, Cup) -> (Cin_p, 4*Cup_p)
    w = jnp.transpose(w_tconv, (0, 2, 3, 1))
    w = jnp.pad(w, ((0, Cin_p - Cin), (0, 0), (0, 0), (0, Cup_p - Cup)))
    w = w.reshape(Cin_p, 4 * Cup_p).astype(jnp.bfloat16)
    b = jnp.tile(jnp.pad(b_tconv, (0, Cup_p - Cup)), 4)
    b = b.reshape(1, 4 * Cup_p).astype(jnp.float32)

    y = pl.pallas_call(
        _matmul_bias_kernel,
        grid=(Mp // tm,),
        in_specs=[
            pl.BlockSpec((tm, Cin_p), lambda i: (i, 0)),
            pl.BlockSpec((Cin_p, 4 * Cup_p), lambda i: (0, 0)),   # resident
            pl.BlockSpec((1, 4 * Cup_p), lambda i: (0, 0)),       # resident
        ],
        out_specs=pl.BlockSpec((tm, 4 * Cup_p), lambda i: (i, 0)),
        out_shape=jax.ShapeDtypeStruct((Mp, 4 * Cup_p), jnp.bfloat16),
        compiler_params=pltpu.CompilerParams(
            dimension_semantics=("parallel",),
            vmem_limit_bytes=VMEM_LIMIT_BYTES),
        cost_estimate=pl.CostEstimate(
            flops=2 * Mp * Cin_p * 4 * Cup_p,
            transcendentals=0,
            bytes_accessed=(x2.size * 2 + w.size * 2 + b.size * 4
                            + Mp * 4 * Cup_p * 2)),
    )(x2, w, b)

    # 2x2 pixel shuffle, done entirely in bf16 (half the HBM traffic of f32).
    # TODO(synk): fold this shuffle + the skip concat into conv1's input
    # BlockSpecs (two input streams, split-K) to remove this XLA copy too.
    y = y[:M].reshape(N, H, W, 2, 2, Cup_p)
    y = y.transpose(0, 1, 3, 2, 4, 5).reshape(N, 2 * H, 2 * W, Cup_p)
    return y, Cup, Cup_p


def _conv_bn_stats(x_nhwc, w_oihw, b, gamma, beta, dilation, *,
                   in_scale=None, in_shift=None):
    """dilated_conv pass 1: Conv3x3(pad=d, dil=d) + bias + ReLU and
    training-mode BatchNorm batch statistics folded to (scale, shift).

    The normalization itself is NOT applied here: the caller either folds
    (scale, shift) into the next conv's input prep (fused by XLA with its
    pad / bf16 cast -> zero extra HBM passes) or runs `_apply_bn` once for the
    final block.  `in_scale`/`in_shift` apply the previous block's BatchNorm to
    the input BEFORE the conv zero-padding, so padding is still zero in the
    normalized domain.  x_nhwc may carry zero-padded channels; any channels
    beyond the weight's real Cin get zero weights and are inert.

    Returns y_raw (N, Hb*th, W, Cout_p) bf16, scale/shift (Cout_p,) f32, meta.
    """
    N, H, W, Cin = x_nhwc.shape
    Cout, Cin_w = w_oihw.shape[0], w_oihw.shape[1]
    d = dilation
    Cin_p = _round_up(Cin, LANE)
    Cout_p = _round_up(Cout, LANE)
    th = _pick_th(H, W, Cin_p, Cout_p, d)
    Hb = _cdiv(H, th)
    W2 = W + 2 * d

    # Input prep: (optional folded-BN FMA) -> bf16 -> zero pad (conv padding d,
    # channels to Cin_p, rows to Hb*th + 2d so the halo read is in bounds).
    # XLA fuses slice + FMA + pad + cast into a single pass over the activation.
    x = x_nhwc
    if in_scale is not None:
        x = (x.astype(jnp.float32) * in_scale.reshape(1, 1, 1, -1)
             + in_shift.reshape(1, 1, 1, -1))
    xp = jnp.pad(x.astype(jnp.bfloat16),
                 ((0, 0), (d, Hb * th + d - H), (d, d), (0, Cin_p - Cin)))

    # (Cout, Cin, 3, 3) -> (ky, kx, Cin, Cout) -> (3, 3*Cin_p, Cout_p), bf16,
    # matching the lane-concatenated kx layout of the kernel's wide operand.
    w = jnp.transpose(w_oihw, (2, 3, 1, 0))
    w = jnp.pad(w, ((0, 0), (0, 0), (0, Cin_p - Cin_w), (0, Cout_p - Cout)))
    w = w.reshape(3, 3 * Cin_p, Cout_p).astype(jnp.bfloat16)
    b_p = jnp.pad(b, (0, Cout_p - Cout)).reshape(1, Cout_p).astype(jnp.float32)

    hs = th // (2 * d)      # th is a multiple of 2d by construction
    conv_kernel = functools.partial(
        _conv_tap_relu_stats_kernel, d=d, th=th, W=W, H=H)
    y, stats = pl.pallas_call(
        conv_kernel,
        grid=(N, Hb),
        in_specs=[
            pl.BlockSpec((1, th, W2, Cin_p), lambda n, h: (n, h, 0, 0)),
            # 2d-row halo of the next tile (not a full duplicate tile read).
            pl.BlockSpec((1, 2 * d, W2, Cin_p),
                         lambda n, h: (n, (h + 1) * hs, 0, 0)),
            # TODO(synk): mark the two resident operands below with
            # pipeline_mode=pl.Buffered(1) once that option is stable in the
            # deployed jax, to drop their second VMEM buffer (matters for
            # Cin=Cout=512 on v7x's 64 MiB VMEM).
            pl.BlockSpec((3, 3 * Cin_p, Cout_p), lambda n, h: (0, 0, 0)),
            pl.BlockSpec((1, Cout_p), lambda n, h: (0, 0)),
        ],
        out_specs=[
            pl.BlockSpec((1, th, W, Cout_p), lambda n, h: (n, h, 0, 0)),
            pl.BlockSpec((1, 1, 2, Cout_p), lambda n, h: (n, h, 0, 0)),
        ],
        out_shape=[
            jax.ShapeDtypeStruct((N, Hb * th, W, Cout_p), jnp.bfloat16),
            jax.ShapeDtypeStruct((N, Hb, 2, Cout_p), jnp.float32),
        ],
        compiler_params=pltpu.CompilerParams(
            dimension_semantics=("parallel", "parallel"),
            vmem_limit_bytes=VMEM_LIMIT_BYTES),
        cost_estimate=pl.CostEstimate(
            flops=2 * N * Hb * th * W * 9 * Cin_p * Cout_p,
            transcendentals=0,
            bytes_accessed=(xp.size * 2 + w.size * 2
                            + N * Hb * th * W * Cout_p * 2
                            + N * Hb * 2 * Cout_p * 4)),
    )(xp, xp, w, b_p)

    # Finalize training-mode BatchNorm: merge per-tile partials (tiny, in JAX).
    # TODO(synk): switch to a Welford / two-pass merge if tolerances tighten;
    # single-pass E[y^2]-mean^2 in f32 is fine at the current tolerance.
    cnt = jnp.float32(N * H * W)
    mean = jnp.sum(stats[:, :, 0, :], axis=(0, 1)) / cnt
    var = jnp.maximum(jnp.sum(stats[:, :, 1, :], axis=(0, 1)) / cnt
                      - mean * mean, 0.0)
    gamma_p = jnp.pad(gamma, (0, Cout_p - Cout))
    beta_p = jnp.pad(beta, (0, Cout_p - Cout))
    scale = gamma_p * jax.lax.rsqrt(var + BN_EPS)
    shift = beta_p - mean * scale

    meta = dict(H=H, W=W, th=th, Hb=Hb, Cout=Cout, Cout_p=Cout_p)
    return y, scale, shift, meta


def _apply_bn(y, scale, shift, meta):
    """Final BatchNorm normalization y*scale + shift.  Only the last block
    needs this as a standalone pass (earlier blocks fold it into the next
    conv's input prep).  Uses whole-image blocks when they fit VMEM."""
    N, Hp, W, Cout_p = y.shape
    th = meta["th"]
    full = 2 * Hp * W * Cout_p * (2 + 4) + 4 * Cout_p * 4
    rows = Hp if full <= _TILE_BUDGET else th
    return pl.pallas_call(
        _scale_shift_kernel,
        grid=(N, Hp // rows),
        in_specs=[
            pl.BlockSpec((1, rows, W, Cout_p), lambda n, h: (n, h, 0, 0)),
            pl.BlockSpec((1, Cout_p), lambda n, h: (0, 0)),            # resident
            pl.BlockSpec((1, Cout_p), lambda n, h: (0, 0)),            # resident
        ],
        out_specs=pl.BlockSpec((1, rows, W, Cout_p), lambda n, h: (n, h, 0, 0)),
        out_shape=jax.ShapeDtypeStruct((N, Hp, W, Cout_p), jnp.float32),
        compiler_params=pltpu.CompilerParams(
            dimension_semantics=("parallel", "parallel"),
            vmem_limit_bytes=VMEM_LIMIT_BYTES),
    )(y, scale.reshape(1, Cout_p).astype(jnp.float32),
      shift.reshape(1, Cout_p).astype(jnp.float32))


def conv_up_block(x, x_skip, params, dilation=1):
    """ConvUpBlock.forward.  x, x_skip, output are NCHW f32 (PyTorch layout).

    Dropout2d(p=0.0) in the module defaults is the identity -> no kernel.
    TODO(synk): layers with tiny real channel counts (< 128) could fall back to
    an XLA conv instead of padding channels to a full lane (128).
    """
    x_nhwc = jnp.transpose(x, (0, 2, 3, 1))

    # self.up = ConvTranspose2d(Cin, Cin//2, 2, stride=2) -> bf16, Cup_p chans.
    yu, cup, cup_p = _conv_transpose_2x2(x_nhwc, params["w_up"], params["b_up"])

    # Reflect-pad the skip on right/bottom (F.pad(..., 'reflect')), cast bf16,
    # concat on channels.  yu's zero channels [cup, cup_p) stay in place and
    # conv1's weight is expanded to that layout (no channel-slice copy).
    sk = jnp.transpose(x_skip, (0, 2, 3, 1))
    h_diff = yu.shape[1] - sk.shape[1]
    w_diff = yu.shape[2] - sk.shape[2]
    sk = jnp.pad(sk, ((0, 0), (0, h_diff), (0, w_diff), (0, 0)), mode="reflect")
    xc = jnp.concatenate([yu, sk.astype(jnp.bfloat16)], axis=-1)

    w1 = params["w1"]
    c_skip = sk.shape[-1]
    w1e = jnp.zeros((w1.shape[0], cup_p + c_skip, 3, 3), w1.dtype)
    w1e = w1e.at[:, :cup].set(w1[:, :cup])
    w1e = w1e.at[:, cup_p:].set(w1[:, cup:])

    # conv1: conv + ReLU + BN statistics only; its normalization is folded
    # into conv2's input prep (saves an activation-sized HBM round trip).
    y1, sc1, sh1, m1 = _conv_bn_stats(xc, w1e, params["b1"],
                                      params["g1"], params["bt1"], dilation)
    # conv2: input = BN1(y1) applied on the fly, fused with pad + bf16 cast.
    y2, sc2, sh2, m2 = _conv_bn_stats(y1[:, :m1["H"]], params["w2"],
                                      params["b2"], params["g2"],
                                      params["bt2"], dilation,
                                      in_scale=sc1, in_shift=sh1)
    out = _apply_bn(y2, sc2, sh2, m2)
    out = out[:, :m2["H"], :, :m2["Cout"]]
    return jnp.transpose(out, (0, 3, 1, 2))                 # NHWC -> NCHW


# ----------------------------- pure-JAX reference -----------------------------


def _reference(x, x_skip, params, dilation=1, eps=BN_EPS):
    w_up, b_up = params["w_up"], params["b_up"]
    N, Cin, H, W = x.shape
    Cup = w_up.shape[1]
    y = jnp.einsum("ncij,cdab->ndiajb", x, w_up,
                   precision=jax.lax.Precision.HIGHEST)
    y = y.reshape(N, Cup, 2 * H, 2 * W) + b_up[None, :, None, None]
    Hd = y.shape[2] - x_skip.shape[2]
    Wd = y.shape[3] - x_skip.shape[3]
    sk = jnp.pad(x_skip, ((0, 0), (0, 0), (0, Hd), (0, Wd)), mode="reflect")
    z = jnp.concatenate([y, sk], axis=1)

    def block(z, w, b, g, bt):
        c = jax.lax.conv_general_dilated(
            z, w, (1, 1), ((dilation, dilation), (dilation, dilation)),
            rhs_dilation=(dilation, dilation),
            dimension_numbers=("NCHW", "OIHW", "NCHW"),
            precision=jax.lax.Precision.HIGHEST,
        ) + b[None, :, None, None]
        c = jnp.maximum(c, 0.0)
        m = jnp.mean(c, axis=(0, 2, 3), keepdims=True)
        v = jnp.mean((c - m) ** 2, axis=(0, 2, 3), keepdims=True)
        return (c - m) * jax.lax.rsqrt(v + eps) * g[None, :, None, None] \
            + bt[None, :, None, None]

    z = block(z, params["w1"], params["b1"], params["g1"], params["bt1"])
    z = block(z, params["w2"], params["b2"], params["g2"], params["bt2"])
    return z


# ------------------------------------ main ------------------------------------

if __name__ == "__main__":
    key = jax.random.PRNGKey(0)
    ks = jax.random.split(key, 8)

    in_channel, out_channel, dilation = 8, 4, 1
    c_half = in_channel // 2
    c1_in = c_half + out_channel

    # small deterministic inputs: x is the coarse feature map, x_skip the skip.
    x = jax.random.normal(ks[0], (2, in_channel, 8, 8), jnp.float32)
    x_skip = jax.random.normal(ks[1], (2, out_channel, 15, 15), jnp.float32)

    params = dict(
        # ConvTranspose2d(in, in//2, 2, stride=2): weight (in, in//2, 2, 2)
        w_up=0.1 * jax.random.normal(ks[2], (in_channel, c_half, 2, 2), jnp.float32),
        b_up=0.1 * jax.random.normal(ks[3], (c_half,), jnp.float32),
        # conv1: Conv2d(in//2 + out, out, 3)
        w1=0.1 * jax.random.normal(ks[4], (out_channel, c1_in, 3, 3), jnp.float32),
        b1=0.1 * jax.random.normal(ks[5], (out_channel,), jnp.float32),
        g1=jnp.ones((out_channel,), jnp.float32),      # BatchNorm default gamma
        bt1=jnp.zeros((out_channel,), jnp.float32),    # BatchNorm default beta
        # conv2: Conv2d(out, out, 3)
        w2=0.1 * jax.random.normal(ks[6], (out_channel, out_channel, 3, 3), jnp.float32),
        b2=0.1 * jax.random.normal(ks[7], (out_channel,), jnp.float32),
        g2=jnp.ones((out_channel,), jnp.float32),
        bt2=jnp.zeros((out_channel,), jnp.float32),
    )

    fwd = jax.jit(functools.partial(conv_up_block, dilation=dilation))
    out = jax.block_until_ready(fwd(x, x_skip, params))

    ref = jax.block_until_ready(_reference(x, x_skip, params, dilation=dilation))
    assert out.shape == ref.shape == (2, out_channel, 16, 16), out.shape
    # bf16 MXU operands AND bf16-stored intermediates (deconv output, conv1's
    # raw activations) vs. an all-f32 reference, amplified by two BatchNorm
    # normalizations -> tolerance 7.5e-2 on ~unit-scale outputs.
    err = float(np.max(np.abs(np.asarray(out) - np.asarray(ref))))
    assert np.allclose(np.asarray(out), np.asarray(ref), rtol=7.5e-2, atol=7.5e-2), (
        "max abs diff = %f" % err
    )

    print("KERNEL_OK")
</pallas_src>

<mosaic_0001>
module attributes {stable_mosaic.version = 11 : i64} {
  func.func @_matmul_bias_kernel(%arg0: i32, %arg1: memref<128x128xbf16, #tpu.memory_space<vmem>>, %arg2: memref<128x512xbf16, #tpu.memory_space<vmem>>, %arg3: memref<1x512xf32, #tpu.memory_space<vmem>>, %arg4: memref<128x512xbf16, #tpu.memory_space<vmem>>) attributes {dimension_semantics = [#tpu.dimension_semantics<parallel>], iteration_bounds = array<i64: 1>, scalar_prefetch = 0 : i64, scratch_operands = 0 : i64, tpu.core_type = #tpu.core_type<tc>, window_params = [{transform_indices = @transform_0, window_bounds = array<i64: 128, 128>}, {pipeline_mode = #tpu.pipeline_mode<synchronous>, transform_indices = @transform_1, window_bounds = array<i64: 128, 512>}, {pipeline_mode = #tpu.pipeline_mode<synchronous>, transform_indices = @transform_2, window_bounds = array<i64: 1, 512>}, {transform_indices = @transform_3, window_bounds = array<i64: 128, 512>}]} {
    %c0 = arith.constant 0 : index
    %c0_0 = arith.constant 0 : index
    %0 = vector.load %arg1[%c0, %c0_0] : memref<128x128xbf16, #tpu.memory_space<vmem>>, vector<128x128xbf16>
    %c0_1 = arith.constant 0 : index
    %c0_2 = arith.constant 0 : index
    %1 = vector.load %arg2[%c0_1, %c0_2] : memref<128x512xbf16, #tpu.memory_space<vmem>>, vector<128x512xbf16>
    %cst = arith.constant dense<0.000000e+00> : vector<128x512xf32>
    %2 = tpu.matmul %0, %1, %cst {dimension_numbers = #tpu.dot_dimension_numbers<[1], [0], [0], [1], [0, 0, 1, 1], [], []>} : vector<128x128xbf16>, vector<128x512xbf16>, vector<128x512xf32> -> vector<128x512xf32>
    %c0_3 = arith.constant 0 : index
    %c0_4 = arith.constant 0 : index
    %3 = vector.load %arg3[%c0_3, %c0_4] : memref<1x512xf32, #tpu.memory_space<vmem>>, vector<1x512xf32>
    %4 = vector.broadcast %3 : vector<1x512xf32> to vector<128x512xf32>
    %5 = arith.addf %2, %4 : vector<128x512xf32>
    %6 = arith.truncf %5 : vector<128x512xf32> to vector<128x512xbf16>
    %c0_5 = arith.constant 0 : index
    %c0_6 = arith.constant 0 : index
    %7 = vector.load %arg4[%c0_5, %c0_6] : memref<128x512xbf16, #tpu.memory_space<vmem>>, vector<128x512xbf16>
    tpu.vector_store %arg4[%c0_5, %c0_6], %6 {strides = array<i32>} : memref<128x512xbf16, #tpu.memory_space<vmem>>, vector<128x512xbf16>,
    return
  }
  func.func @transform_0(%arg0: i32) -> (i32, i32) {
    %c0_i32 = arith.constant 0 : i32
    %c0_i32_0 = arith.constant 0 : i32
    return %arg0, %c0_i32 : i32, i32
  }
  func.func @transform_1(%arg0: i32) -> (i32, i32) {
    %c0_i32 = arith.constant 0 : i32
    %c0_i32_0 = arith.constant 0 : i32
    %c0_i32_1 = arith.constant 0 : i32
    return %c0_i32, %c0_i32_0 : i32, i32
  }
  func.func @transform_2(%arg0: i32) -> (i32, i32) {
    %c0_i32 = arith.constant 0 : i32
    %c0_i32_0 = arith.constant 0 : i32
    %c0_i32_1 = arith.constant 0 : i32
    return %c0_i32, %c0_i32_0 : i32, i32
  }
  func.func @transform_3(%arg0: i32) -> (i32, i32) {
    %c0_i32 = arith.constant 0 : i32
    %c0_i32_0 = arith.constant 0 : i32
    return %arg0, %c0_i32 : i32, i32
  }
}

module attributes {stable_mosaic.version = 11 : i64} {
  func.func @_conv_tap_relu_stats_kernel(%arg0: i32, %arg1: i32, %arg2: memref<1x16x18x256xbf16, #tpu.memory_space<vmem>>, %arg3: memref<1x2x18x256xbf16, #tpu.memory_space<vmem>>, %arg4: memref<3x768x128xbf16, #tpu.memory_space<vmem>>, %arg5: memref<1x128xf32, #tpu.memory_space<vmem>>, %arg6: memref<1x16x16x128xbf16, #tpu.memory_space<vmem>>, %arg7: memref<1x1x2x128xf32, #tpu.memory_space<vmem>>) attributes {dimension_semantics = [#tpu.dimension_semantics<parallel>, #tpu.dimension_semantics<parallel>], iteration_bounds = array<i64: 2, 1>, scalar_prefetch = 0 : i64, scratch_operands = 0 : i64, tpu.core_type = #tpu.core_type<tc>, window_params = [{transform_indices = @transform_0, window_bounds = array<i64: 1, 16, 18, 256>}, {transform_indices = @transform_1, window_bounds = array<i64: 1, 2, 18, 256>}, {pipeline_mode = #tpu.pipeline_mode<synchronous>, transform_indices = @transform_2, window_bounds = array<i64: 3, 768, 128>}, {pipeline_mode = #tpu.pipeline_mode<synchronous>, transform_indices = @transform_3, window_bounds = array<i64: 1, 128>}, {transform_indices = @transform_4, window_bounds = array<i64: 1, 16, 16, 128>}, {transform_indices = @transform_5, window_bounds = array<i64: 1, 1, 2, 128>}]} {
    %c0 = arith.constant 0 : index
    %c0_0 = arith.constant 0 : index
    %c0_1 = arith.constant 0 : index
    %c0_2 = arith.constant 0 : index
    %0 = vector.load %arg2[%c0, %c0_0, %c0_1, %c0_2] : memref<1x16x18x256xbf16, #tpu.memory_space<vmem>>, vector<1x16x18x256xbf16>
    %1 = vector.shape_cast %0 : vector<1x16x18x256xbf16> to vector<16x18x256xbf16>
    %c0_3 = arith.constant 0 : index
    %c0_4 = arith.constant 0 : index
    %c0_5 = arith.constant 0 : index
    %c0_6 = arith.constant 0 : index
    %2 = vector.load %arg3[%c0_3, %c0_4, %c0_5, %c0_6] : memref<1x2x18x256xbf16, #tpu.memory_space<vmem>>, vector<1x2x18x256xbf16>
    %3 = vector.shape_cast %2 : vector<1x2x18x256xbf16> to vector<2x18x256xbf16>
    %4 = tpu.concatenate %1, %3 in 0 : vector<16x18x256xbf16>, vector<2x18x256xbf16> -> vector<18x18x256xbf16>
    %5 = vector.extract_strided_slice %4 {offsets = [0, 0, 0], sizes = [18, 16, 256], strides = [1, 1, 1]} : vector<18x18x256xbf16> to vector<18x16x256xbf16>
    %6 = vector.extract_strided_slice %4 {offsets = [0, 1, 0], sizes = [18, 16, 256], strides = [1, 1, 1]} : vector<18x18x256xbf16> to vector<18x16x256xbf16>
    %7 = vector.extract_strided_slice %4 {offsets = [0, 2, 0], sizes = [18, 16, 256], strides = [1, 1, 1]} : vector<18x18x256xbf16> to vector<18x16x256xbf16>
    %8 = tpu.concatenate %5, %6, %7 in 2 : vector<18x16x256xbf16>, vector<18x16x256xbf16>, vector<18x16x256xbf16> -> vector<18x16x768xbf16>
    %9 = vector.shape_cast %8 : vector<18x16x768xbf16> to vector<288x768xbf16>
    %cst = arith.constant 0.000000e+00 : f32
    %10 = vector.broadcast %cst : f32 to vector<256x128xf32>
    %11 = vector.extract_strided_slice %9 {offsets = [0, 0], sizes = [256, 768], strides = [1, 1]} : vector<288x768xbf16> to vector<256x768xbf16>
    %c0_7 = arith.constant 0 : index
    %c0_8 = arith.constant 0 : index
    %c0_9 = arith.constant 0 : index
    %12 = vector.load %arg4[%c0_7, %c0_8, %c0_9] : memref<3x768x128xbf16, #tpu.memory_space<vmem>>, vector<1x768x128xbf16>
    %13 = vector.shape_cast %12 : vector<1x768x128xbf16> to vector<768x128xbf16>
    %cst_10 = arith.constant dense<0.000000e+00> : vector<256x128xf32>
    %14 = tpu.matmul %11, %13, %cst_10 {dimension_numbers = #tpu.dot_dimension_numbers<[1], [0], [0], [1], [0, 0, 1, 1], [], []>} : vector<256x768xbf16>, vector<768x128xbf16>, vector<256x128xf32> -> vector<256x128xf32>
    %15 = arith.addf %10, %14 : vector<256x128xf32>
    %16 = vector.extract_strided_slice %9 {offsets = [16, 0], sizes = [256, 768], strides = [1, 1]} : vector<288x768xbf16> to vector<256x768xbf16>
    %c1 = arith.constant 1 : index
    %c0_11 = arith.constant 0 : index
    %c0_12 = arith.constant 0 : index
    %17 = vector.load %arg4[%c1, %c0_11, %c0_12] : memref<3x768x128xbf16, #tpu.memory_space<vmem>>, vector<1x768x128xbf16>
    %18 = vector.shape_cast %17 : vector<1x768x128xbf16> to vector<768x128xbf16>
    %cst_13 = arith.constant dense<0.000000e+00> : vector<256x128xf32>
    %19 = tpu.matmul %16, %18, %cst_13 {dimension_numbers = #tpu.dot_dimension_numbers<[1], [0], [0], [1], [0, 0, 1, 1], [], []>} : vector<256x768xbf16>, vector<768x128xbf16>, vector<256x128xf32> -> vector<256x128xf32>
    %20 = arith.addf %15, %19 : vector<256x128xf32>
    %21 = vector.extract_strided_slice %9 {offsets = [32, 0], sizes = [256, 768], strides = [1, 1]} : vector<288x768xbf16> to vector<256x768xbf16>
    %c2 = arith.constant 2 : index
    %c0_14 = arith.constant 0 : index
    %c0_15 = arith.constant 0 : index
    %22 = vector.load %arg4[%c2, %c0_14, %c0_15] : memref<3x768x128xbf16, #tpu.memory_space<vmem>>, vector<1x768x128xbf16>
    %23 = vector.shape_cast %22 : vector<1x768x128xbf16> to vector<768x128xbf16>
    %cst_16 = arith.constant dense<0.000000e+00> : vector<256x128xf32>
    %24 = tpu.matmul %21, %23, %cst_16 {dimension_numbers = #tpu.dot_dimension_numbers<[1], [0], [0], [1], [0, 0, 1, 1], [], []>} : vector<256x768xbf16>, vector<768x128xbf16>, vector<256x128xf32> -> vector<256x128xf32>
    %25 = arith.addf %20, %24 : vector<256x128xf32>
    %c0_17 = arith.constant 0 : index
    %c0_18 = arith.constant 0 : index
    %26 = vector.load %arg5[%c0_17, %c0_18] : memref<1x128xf32, #tpu.memory_space<vmem>>, vector<1x128xf32>
    %27 = vector.broadcast %26 : vector<1x128xf32> to vector<256x128xf32>
    %28 = arith.addf %25, %27 : vector<256x128xf32>
    %cst_19 = arith.constant 0.000000e+00 : f32
    %29 = vector.broadcast %cst_19 : f32 to vector<256x128xf32>
    %30 = arith.maximumf %28, %29 : vector<256x128xf32>
    %31 = vector.shape_cast %30 : vector<256x128xf32> to vector<1x16x16x128xf32>
    %32 = arith.truncf %31 : vector<1x16x16x128xf32> to vector<1x16x16x128xbf16>
    %c0_20 = arith.constant 0 : index
    %c0_21 = arith.constant 0 : index
    %c0_22 = arith.constant 0 : index
    %c0_23 = arith.constant 0 : index
    %33 = vector.load %arg6[%c0_20, %c0_21, %c0_22, %c0_23] : memref<1x16x16x128xbf16, #tpu.memory_space<vmem>>, vector<1x16x16x128xbf16>
    tpu.vector_store %arg6[%c0_20, %c0_21, %c0_22, %c0_23], %32 {strides = array<i32>} : memref<1x16x16x128xbf16, #tpu.memory_space<vmem>>, vector<1x16x16x128xbf16>,
    %c0_i32 = arith.constant 0 : i32
    %34 = arith.cmpi slt, %arg1, %c0_i32 : i32
    %35 = arith.extui %34 : i1 to i32
    %c0_i32_24 = arith.constant 0 : i32
    %36 = arith.cmpi ne, %35, %c0_i32_24 : i32
    scf.if %36 {
      %cst_27 = arith.constant dense<0.000000e+00> : vector<128xf32>
      %40 = vector.multi_reduction <add>, %30, %cst_27 [0] : vector<256x128xf32> to vector<128xf32>
      %41 = vector.shape_cast %40 : vector<128xf32> to vector<1x128xf32>
      %c0_28 = arith.constant 0 : index
      %c0_29 = arith.constant 0 : index
      %c0_30 = arith.constant 0 : index
      %c0_31 = arith.constant 0 : index
      %42 = vector.load %arg7[%c0_28, %c0_29, %c0_30, %c0_31] : memref<1x1x2x128xf32, #tpu.memory_space<vmem>>, vector<1x1x1x128xf32>
      %43 = vector.shape_cast %42 : vector<1x1x1x128xf32> to vector<1x128xf32>
      %44 = vector.shape_cast %41 : vector<1x128xf32> to vector<1x1x1x128xf32>
      tpu.vector_store %arg7[%c0_28, %c0_29, %c0_30, %c0_31], %44 {strides = array<i32>} : memref<1x1x2x128xf32, #tpu.memory_space<vmem>>, vector<1x1x1x128xf32>,
      %45 = arith.mulf %30, %30 : vector<256x128xf32>
      %cst_32 = arith.constant dense<0.000000e+00> : vector<128xf32>
      %46 = vector.multi_reduction <add>, %45, %cst_32 [0] : vector<256x128xf32> to vector<128xf32>
      %47 = vector.shape_cast %46 : vector<128xf32> to vector<1x128xf32>
      %c0_33 = arith.constant 0 : index
      %c0_34 = arith.constant 0 : index
      %c1_35 = arith.constant 1 : index
      %c0_36 = arith.constant 0 : index
      %48 = vector.load %arg7[%c0_33, %c0_34, %c1_35, %c0_36] : memref<1x1x2x128xf32, #tpu.memory_space<vmem>>, vector<1x1x1x128xf32>
      %49 = vector.shape_cast %48 : vector<1x1x1x128xf32> to vector<1x128xf32>
      %50 = vector.shape_cast %47 : vector<1x128xf32> to vector<1x1x1x128xf32>
      tpu.vector_store %arg7[%c0_33, %c0_34, %c1_35, %c0_36], %50 {strides = array<i32>} : memref<1x1x2x128xf32, #tpu.memory_space<vmem>>, vector<1x1x1x128xf32>,
    } else {
    }
    %c0_i32_25 = arith.constant 0 : i32
    %37 = arith.cmpi eq, %arg1, %c0_i32_25 : i32
    %38 = arith.extui %37 : i1 to i32
    %c0_i32_26 = arith.constant 0 : i32
    %39 = arith.cmpi ne, %38, %c0_i32_26 : i32
    scf.if %39 {
      %40 = tpu.iota {dimensions = array<i32: 0>} : vector<256x128xi32>
      %c16_i32 = arith.constant 16 : i32
      %41 = arith.muli %arg1, %c16_i32 : i32
      %c16_i32_27 = arith.constant 16 : i32
      %42 = arith.subi %c16_i32_27, %41 : i32
      %c16_i32_28 = arith.constant 16 : i32
      %43 = arith.muli %42, %c16_i32_28 : i32
      %44 = vector.broadcast %43 : i32 to vector<256x128xi32>
      %45 = arith.cmpi slt, %40, %44 : vector<256x128xi32>
      %cst_29 = arith.constant 0.000000e+00 : f32
      %46 = vector.broadcast %cst_29 : f32 to vector<256x128xf32>
      %47 = arith.select %45, %30, %46 : vector<256x128xi1>, vector<256x128xf32>
      %cst_30 = arith.constant dense<0.000000e+00> : vector<128xf32>
      %48 = vector.multi_reduction <add>, %47, %cst_30 [0] : vector<256x128xf32> to vector<128xf32>
      %49 = vector.shape_cast %48 : vector<128xf32> to vector<1x128xf32>
      %c0_31 = arith.constant 0 : index
      %c0_32 = arith.constant 0 : index
      %c0_33 = arith.constant 0 : index
      %c0_34 = arith.constant 0 : index
      %50 = vector.load %arg7[%c0_31, %c0_32, %c0_33, %c0_34] : memref<1x1x2x128xf32, #tpu.memory_space<vmem>>, vector<1x1x1x128xf32>
      %51 = vector.shape_cast %50 : vector<1x1x1x128xf32> to vector<1x128xf32>
      %52 = vector.shape_cast %49 : vector<1x128xf32> to vector<1x1x1x128xf32>
      tpu.vector_store %arg7[%c0_31, %c0_32, %c0_33, %c0_34], %52 {strides = array<i32>} : memref<1x1x2x128xf32, #tpu.memory_space<vmem>>, vector<1x1x1x128xf32>,
      %53 = arith.mulf %47, %47 : vector<256x128xf32>
      %cst_35 = arith.constant dense<0.000000e+00> : vector<128xf32>
      %54 = vector.multi_reduction <add>, %53, %cst_35 [0] : vector<256x128xf32> to vector<128xf32>
      %55 = vector.shape_cast %54 : vector<128xf32> to vector<1x128xf32>
      %c0_36 = arith.constant 0 : index
      %c0_37 = arith.constant 0 : index
      %c1_38 = arith.constant 1 : index
      %c0_39 = arith.constant 0 : index
      %56 = vector.load %arg7[%c0_36, %c0_37, %c1_38, %c0_39] : memref<1x1x2x128xf32, #tpu.memory_space<vmem>>, vector<1x1x1x128xf32>
      %57 = vector.shape_cast %56 : vector<1x1x1x128xf32> to vector<1x128xf32>
      %58 = vector.shape_cast %55 : vector<1x128xf32> to vector<1x1x1x128xf32>
      tpu.vector_store %arg7[%c0_36, %c0_37, %c1_38, %c0_39], %58 {strides = array<i32>} : memref<1x1x2x128xf32, #tpu.memory_space<vmem>>, vector<1x1x1x128xf32>,
    } else {
    }
    return
  }
  func.func @transform_0(%arg0: i32, %arg1: i32) -> (i32, i32, i32, i32) {
    %c0_i32 = arith.constant 0 : i32
    %c0_i32_0 = arith.constant 0 : i32
    %c0_i32_1 = arith.constant 0 : i32
    return %arg0, %arg1, %c0_i32, %c0_i32_0 : i32, i32, i32, i32
  }
  func.func @transform_1(%arg0: i32, %arg1: i32) -> (i32, i32, i32, i32) {
    %c1_i32 = arith.constant 1 : i32
    %0 = arith.addi %arg1, %c1_i32 : i32
    %c8_i32 = arith.constant 8 : i32
    %1 = arith.muli %0, %c8_i32 : i32
    %c0_i32 = arith.constant 0 : i32
    %c0_i32_0 = arith.constant 0 : i32
    %c0_i32_1 = arith.constant 0 : i32
    return %arg0, %1, %c0_i32, %c0_i32_0 : i32, i32, i32, i32
  }
  func.func @transform_2(%arg0: i32, %arg1: i32) -> (i32, i32, i32) {
    %c0_i32 = arith.constant 0 : i32
    %c0_i32_0 = arith.constant 0 : i32
    %c0_i32_1 = arith.constant 0 : i32
    %c0_i32_2 = arith.constant 0 : i32
    return %c0_i32, %c0_i32_0, %c0_i32_1 : i32, i32, i32
  }
  func.func @transform_3(%arg0: i32, %arg1: i32) -> (i32, i32) {
    %c0_i32 = arith.constant 0 : i32
    %c0_i32_0 = arith.constant 0 : i32
    %c0_i32_1 = arith.constant 0 : i32
    return %c0_i32, %c0_i32_0 : i32, i32
  }
  func.func @transform_4(%arg0: i32, %arg1: i32) -> (i32, i32, i32, i32) {
    %c0_i32 = arith.constant 0 : i32
    %c0_i32_0 = arith.constant 0 : i32
    %c0_i32_1 = arith.constant 0 : i32
    return %arg0, %arg1, %c0_i32, %c0_i32_0 : i32, i32, i32, i32
  }
  func.func @transform_5(%arg0: i32, %arg1: i32) -> (i32, i32, i32, i32) {
    %c0_i32 = arith.constant 0 : i32
    %c0_i32_0 = arith.constant 0 : i32
    %c0_i32_1 = arith.constant 0 : i32
    return %arg0, %arg1, %c0_i32, %c0_i32_0 : i32, i32, i32, i32
  }
}

module attributes {stable_mosaic.version = 11 : i64} {
  func.func @_conv_tap_relu_stats_kernel(%arg0: i32, %arg1: i32, %arg2: memref<1x16x18x128xbf16, #tpu.memory_space<vmem>>, %arg3: memref<1x2x18x128xbf16, #tpu.memory_space<vmem>>, %arg4: memref<3x384x128xbf16, #tpu.memory_space<vmem>>, %arg5: memref<1x128xf32, #tpu.memory_space<vmem>>, %arg6: memref<1x16x16x128xbf16, #tpu.memory_space<vmem>>, %arg7: memref<1x1x2x128xf32, #tpu.memory_space<vmem>>) attributes {dimension_semantics = [#tpu.dimension_semantics<parallel>, #tpu.dimension_semantics<parallel>], iteration_bounds = array<i64: 2, 1>, scalar_prefetch = 0 : i64, scratch_operands = 0 : i64, tpu.core_type = #tpu.core_type<tc>, window_params = [{transform_indices = @transform_0, window_bounds = array<i64: 1, 16, 18, 128>}, {transform_indices = @transform_1, window_bounds = array<i64: 1, 2, 18, 128>}, {pipeline_mode = #tpu.pipeline_mode<synchronous>, transform_indices = @transform_2, window_bounds = array<i64: 3, 384, 128>}, {pipeline_mode = #tpu.pipeline_mode<synchronous>, transform_indices = @transform_3, window_bounds = array<i64: 1, 128>}, {transform_indices = @transform_4, window_bounds = array<i64: 1, 16, 16, 128>}, {transform_indices = @transform_5, window_bounds = array<i64: 1, 1, 2, 128>}]} {
    %c0 = arith.constant 0 : index
    %c0_0 = arith.constant 0 : index
    %c0_1 = arith.constant 0 : index
    %c0_2 = arith.constant 0 : index
    %0 = vector.load %arg2[%c0, %c0_0, %c0_1, %c0_2] : memref<1x16x18x128xbf16, #tpu.memory_space<vmem>>, vector<1x16x18x128xbf16>
    %1 = vector.shape_cast %0 : vector<1x16x18x128xbf16> to vector<16x18x128xbf16>
    %c0_3 = arith.constant 0 : index
    %c0_4 = arith.constant 0 : index
    %c0_5 = arith.constant 0 : index
    %c0_6 = arith.constant 0 : index
    %2 = vector.load %arg3[%c0_3, %c0_4, %c0_5, %c0_6] : memref<1x2x18x128xbf16, #tpu.memory_space<vmem>>, vector<1x2x18x128xbf16>
    %3 = vector.shape_cast %2 : vector<1x2x18x128xbf16> to vector<2x18x128xbf16>
    %4 = tpu.concatenate %1, %3 in 0 : vector<16x18x128xbf16>, vector<2x18x128xbf16> -> vector<18x18x128xbf16>
    %5 = vector.extract_strided_slice %4 {offsets = [0, 0, 0], sizes = [18, 16, 128], strides = [1, 1, 1]} : vector<18x18x128xbf16> to vector<18x16x128xbf16>
    %6 = vector.extract_strided_slice %4 {offsets = [0, 1, 0], sizes = [18, 16, 128], strides = [1, 1, 1]} : vector<18x18x128xbf16> to vector<18x16x128xbf16>
    %7 = vector.extract_strided_slice %4 {offsets = [0, 2, 0], sizes = [18, 16, 128], strides = [1, 1, 1]} : vector<18x18x128xbf16> to vector<18x16x128xbf16>
    %8 = tpu.concatenate %5, %6, %7 in 2 : vector<18x16x128xbf16>, vector<18x16x128xbf16>, vector<18x16x128xbf16> -> vector<18x16x384xbf16>
    %9 = vector.shape_cast %8 : vector<18x16x384xbf16> to vector<288x384xbf16>
    %cst = arith.constant 0.000000e+00 : f32
    %10 = vector.broadcast %cst : f32 to vector<256x128xf32>
    %11 = vector.extract_strided_slice %9 {offsets = [0, 0], sizes = [256, 384], strides = [1, 1]} : vector<288x384xbf16> to vector<256x384xbf16>
    %c0_7 = arith.constant 0 : index
    %c0_8 = arith.constant 0 : index
    %c0_9 = arith.constant 0 : index
    %12 = vector.load %arg4[%c0_7, %c0_8, %c0_9] : memref<3x384x128xbf16, #tpu.memory_space<vmem>>, vector<1x384x128xbf16>
    %13 = vector.shape_cast %12 : vector<1x384x128xbf16> to vector<384x128xbf16>
    %cst_10 = arith.constant dense<0.000000e+00> : vector<256x128xf32>
    %14 = tpu.matmul %11, %13, %cst_10 {dimension_numbers = #tpu.dot_dimension_numbers<[1], [0], [0], [1], [0, 0, 1, 1], [], []>} : vector<256x384xbf16>, vector<384x128xbf16>, vector<256x128xf32> -> vector<256x128xf32>
    %15 = arith.addf %10, %14 : vector<256x128xf32>
    %16 = vector.extract_strided_slice %9 {offsets = [16, 0], sizes = [256, 384], strides = [1, 1]} : vector<288x384xbf16> to vector<256x384xbf16>
    %c1 = arith.constant 1 : index
    %c0_11 = arith.constant 0 : index
    %c0_12 = arith.constant 0 : index
    %17 = vector.load %arg4[%c1, %c0_11, %c0_12] : memref<3x384x128xbf16, #tpu.memory_space<vmem>>, vector<1x384x128xbf16>
    %18 = vector.shape_cast %17 : vector<1x384x128xbf16> to vector<384x128xbf16>
    %cst_13 = arith.constant dense<0.000000e+00> : vector<256x128xf32>
    %19 = tpu.matmul %16, %18, %cst_13 {dimension_numbers = #tpu.dot_dimension_numbers<[1], [0], [0], [1], [0, 0, 1, 1], [], []>} : vector<256x384xbf16>, vector<384x128xbf16>, vector<256x128xf32> -> vector<256x128xf32>
    %20 = arith.addf %15, %19 : vector<256x128xf32>
    %21 = vector.extract_strided_slice %9 {offsets = [32, 0], sizes = [256, 384], strides = [1, 1]} : vector<288x384xbf16> to vector<256x384xbf16>
    %c2 = arith.constant 2 : index
    %c0_14 = arith.constant 0 : index
    %c0_15 = arith.constant 0 : index
    %22 = vector.load %arg4[%c2, %c0_14, %c0_15] : memref<3x384x128xbf16, #tpu.memory_space<vmem>>, vector<1x384x128xbf16>
    %23 = vector.shape_cast %22 : vector<1x384x128xbf16> to vector<384x128xbf16>
    %cst_16 = arith.constant dense<0.000000e+00> : vector<256x128xf32>
    %24 = tpu.matmul %21, %23, %cst_16 {dimension_numbers = #tpu.dot_dimension_numbers<[1], [0], [0], [1], [0, 0, 1, 1], [], []>} : vector<256x384xbf16>, vector<384x128xbf16>, vector<256x128xf32> -> vector<256x128xf32>
    %25 = arith.addf %20, %24 : vector<256x128xf32>
    %c0_17 = arith.constant 0 : index
    %c0_18 = arith.constant 0 : index
    %26 = vector.load %arg5[%c0_17, %c0_18] : memref<1x128xf32, #tpu.memory_space<vmem>>, vector<1x128xf32>
    %27 = vector.broadcast %26 : vector<1x128xf32> to vector<256x128xf32>
    %28 = arith.addf %25, %27 : vector<256x128xf32>
    %cst_19 = arith.constant 0.000000e+00 : f32
    %29 = vector.broadcast %cst_19 : f32 to vector<256x128xf32>
    %30 = arith.maximumf %28, %29 : vector<256x128xf32>
    %31 = vector.shape_cast %30 : vector<256x128xf32> to vector<1x16x16x128xf32>
    %32 = arith.truncf %31 : vector<1x16x16x128xf32> to vector<1x16x16x128xbf16>
    %c0_20 = arith.constant 0 : index
    %c0_21 = arith.constant 0 : index
    %c0_22 = arith.constant 0 : index
    %c0_23 = arith.constant 0 : index
    %33 = vector.load %arg6[%c0_20, %c0_21, %c0_22, %c0_23] : memref<1x16x16x128xbf16, #tpu.memory_space<vmem>>, vector<1x16x16x128xbf16>
    tpu.vector_store %arg6[%c0_20, %c0_21, %c0_22, %c0_23], %32 {strides = array<i32>} : memref<1x16x16x128xbf16, #tpu.memory_space<vmem>>, vector<1x16x16x128xbf16>,
    %c0_i32 = arith.constant 0 : i32
    %34 = arith.cmpi slt, %arg1, %c0_i32 : i32
    %35 = arith.extui %34 : i1 to i32
    %c0_i32_24 = arith.constant 0 : i32
    %36 = arith.cmpi ne, %35, %c0_i32_24 : i32
    scf.if %36 {
      %cst_27 = arith.constant dense<0.000000e+00> : vector<128xf32>
      %40 = vector.multi_reduction <add>, %30, %cst_27 [0] : vector<256x128xf32> to vector<128xf32>
      %41 = vector.shape_cast %40 : vector<128xf32> to vector<1x128xf32>
      %c0_28 = arith.constant 0 : index
      %c0_29 = arith.constant 0 : index
      %c0_30 = arith.constant 0 : index
      %c0_31 = arith.constant 0 : index
      %42 = vector.load %arg7[%c0_28, %c0_29, %c0_30, %c0_31] : memref<1x1x2x128xf32, #tpu.memory_space<vmem>>, vector<1x1x1x128xf32>
      %43 = vector.shape_cast %42 : vector<1x1x1x128xf32> to vector<1x128xf32>
      %44 = vector.shape_cast %41 : vector<1x128xf32> to vector<1x1x1x128xf32>
      tpu.vector_store %arg7[%c0_28, %c0_29, %c0_30, %c0_31], %44 {strides = array<i32>} : memref<1x1x2x128xf32, #tpu.memory_space<vmem>>, vector<1x1x1x128xf32>,
      %45 = arith.mulf %30, %30 : vector<256x128xf32>
      %cst_32 = arith.constant dense<0.000000e+00> : vector<128xf32>
      %46 = vector.multi_reduction <add>, %45, %cst_32 [0] : vector<256x128xf32> to vector<128xf32>
      %47 = vector.shape_cast %46 : vector<128xf32> to vector<1x128xf32>
      %c0_33 = arith.constant 0 : index
      %c0_34 = arith.constant 0 : index
      %c1_35 = arith.constant 1 : index
      %c0_36 = arith.constant 0 : index
      %48 = vector.load %arg7[%c0_33, %c0_34, %c1_35, %c0_36] : memref<1x1x2x128xf32, #tpu.memory_space<vmem>>, vector<1x1x1x128xf32>
      %49 = vector.shape_cast %48 : vector<1x1x1x128xf32> to vector<1x128xf32>
      %50 = vector.shape_cast %47 : vector<1x128xf32> to vector<1x1x1x128xf32>
      tpu.vector_store %arg7[%c0_33, %c0_34, %c1_35, %c0_36], %50 {strides = array<i32>} : memref<1x1x2x128xf32, #tpu.memory_space<vmem>>, vector<1x1x1x128xf32>,
    } else {
    }
    %c0_i32_25 = arith.constant 0 : i32
    %37 = arith.cmpi eq, %arg1, %c0_i32_25 : i32
    %38 = arith.extui %37 : i1 to i32
    %c0_i32_26 = arith.constant 0 : i32
    %39 = arith.cmpi ne, %38, %c0_i32_26 : i32
    scf.if %39 {
      %40 = tpu.iota {dimensions = array<i32: 0>} : vector<256x128xi32>
      %c16_i32 = arith.constant 16 : i32
      %41 = arith.muli %arg1, %c16_i32 : i32
      %c16_i32_27 = arith.constant 16 : i32
      %42 = arith.subi %c16_i32_27, %41 : i32
      %c16_i32_28 = arith.constant 16 : i32
      %43 = arith.muli %42, %c16_i32_28 : i32
      %44 = vector.broadcast %43 : i32 to vector<256x128xi32>
      %45 = arith.cmpi slt, %40, %44 : vector<256x128xi32>
      %cst_29 = arith.constant 0.000000e+00 : f32
      %46 = vector.broadcast %cst_29 : f32 to vector<256x128xf32>
      %47 = arith.select %45, %30, %46 : vector<256x128xi1>, vector<256x128xf32>
      %cst_30 = arith.constant dense<0.000000e+00> : vector<128xf32>
      %48 = vector.multi_reduction <add>, %47, %cst_30 [0] : vector<256x128xf32> to vector<128xf32>
      %49 = vector.shape_cast %48 : vector<128xf32> to vector<1x128xf32>
      %c0_31 = arith.constant 0 : index
      %c0_32 = arith.constant 0 : index
      %c0_33 = arith.constant 0 : index
      %c0_34 = arith.constant 0 : index
      %50 = vector.load %arg7[%c0_31, %c0_32, %c0_33, %c0_34] : memref<1x1x2x128xf32, #tpu.memory_space<vmem>>, vector<1x1x1x128xf32>
      %51 = vector.shape_cast %50 : vector<1x1x1x128xf32> to vector<1x128xf32>
      %52 = vector.shape_cast %49 : vector<1x128xf32> to vector<1x1x1x128xf32>
      tpu.vector_store %arg7[%c0_31, %c0_32, %c0_33, %c0_34], %52 {strides = array<i32>} : memref<1x1x2x128xf32, #tpu.memory_space<vmem>>, vector<1x1x1x128xf32>,
      %53 = arith.mulf %47, %47 : vector<256x128xf32>
      %cst_35 = arith.constant dense<0.000000e+00> : vector<128xf32>
      %54 = vector.multi_reduction <add>, %53, %cst_35 [0] : vector<256x128xf32> to vector<128xf32>
      %55 = vector.shape_cast %54 : vector<128xf32> to vector<1x128xf32>
      %c0_36 = arith.constant 0 : index
      %c0_37 = arith.constant 0 : index
      %c1_38 = arith.constant 1 : index
      %c0_39 = arith.constant 0 : index
      %56 = vector.load %arg7[%c0_36, %c0_37, %c1_38, %c0_39] : memref<1x1x2x128xf32, #tpu.memory_space<vmem>>, vector<1x1x1x128xf32>
      %57 = vector.shape_cast %56 : vector<1x1x1x128xf32> to vector<1x128xf32>
      %58 = vector.shape_cast %55 : vector<1x128xf32> to vector<1x1x1x128xf32>
      tpu.vector_store %arg7[%c0_36, %c0_37, %c1_38, %c0_39], %58 {strides = array<i32>} : memref<1x1x2x128xf32, #tpu.memory_space<vmem>>, vector<1x1x1x128xf32>,
    } else {
    }
    return
  }
  func.func @transform_0(%arg0: i32, %arg1: i32) -> (i32, i32, i32, i32) {
    %c0_i32 = arith.constant 0 : i32
    %c0_i32_0 = arith.constant 0 : i32
    %c0_i32_1 = arith.constant 0 : i32
    return %arg0, %arg1, %c0_i32, %c0_i32_0 : i32, i32, i32, i32
  }
  func.func @transform_1(%arg0: i32, %arg1: i32) -> (i32, i32, i32, i32) {
    %c1_i32 = arith.constant 1 : i32
    %0 = arith.addi %arg1, %c1_i32 : i32
    %c8_i32 = arith.constant 8 : i32
    %1 = arith.muli %0, %c8_i32 : i32
    %c0_i32 = arith.constant 0 : i32
    %c0_i32_0 = arith.constant 0 : i32
    %c0_i32_1 = arith.constant 0 : i32
    return %arg0, %1, %c0_i32, %c0_i32_0 : i32, i32, i32, i32
  }
  func.func @transform_2(%arg0: i32, %arg1: i32) -> (i32, i32, i32) {
    %c0_i32 = arith.constant 0 : i32
    %c0_i32_0 = arith.constant 0 : i32
    %c0_i32_1 = arith.constant 0 : i32
    %c0_i32_2 = arith.constant 0 : i32
    return %c0_i32, %c0_i32_0, %c0_i32_1 : i32, i32, i32
  }
  func.func @transform_3(%arg0: i32, %arg1: i32) -> (i32, i32) {
    %c0_i32 = arith.constant 0 : i32
    %c0_i32_0 = arith.constant 0 : i32
    %c0_i32_1 = arith.constant 0 : i32
    return %c0_i32, %c0_i32_0 : i32, i32
  }
  func.func @transform_4(%arg0: i32, %arg1: i32) -> (i32, i32, i32, i32) {
    %c0_i32 = arith.constant 0 : i32
    %c0_i32_0 = arith.constant 0 : i32
    %c0_i32_1 = arith.constant 0 : i32
    return %arg0, %arg1, %c0_i32, %c0_i32_0 : i32, i32, i32, i32
  }
  func.func @transform_5(%arg0: i32, %arg1: i32) -> (i32, i32, i32, i32) {
    %c0_i32 = arith.constant 0 : i32
    %c0_i32_0 = arith.constant 0 : i32
    %c0_i32_1 = arith.constant 0 : i32
    return %arg0, %arg1, %c0_i32, %c0_i32_0 : i32, i32, i32, i32
  }
}

module attributes {stable_mosaic.version = 11 : i64} {
  func.func @_scale_shift_kernel(%arg0: i32, %arg1: i32, %arg2: memref<1x16x16x128xbf16, #tpu.memory_space<vmem>>, %arg3: memref<1x128xf32, #tpu.memory_space<vmem>>, %arg4: memref<1x128xf32, #tpu.memory_space<vmem>>, %arg5: memref<1x16x16x128xf32, #tpu.memory_space<vmem>>) attributes {dimension_semantics = [#tpu.dimension_semantics<parallel>, #tpu.dimension_semantics<parallel>], iteration_bounds = array<i64: 2, 1>, scalar_prefetch = 0 : i64, scratch_operands = 0 : i64, tpu.core_type = #tpu.core_type<tc>, window_params = [{transform_indices = @transform_0, window_bounds = array<i64: 1, 16, 16, 128>}, {pipeline_mode = #tpu.pipeline_mode<synchronous>, transform_indices = @transform_1, window_bounds = array<i64: 1, 128>}, {pipeline_mode = #tpu.pipeline_mode<synchronous>, transform_indices = @transform_2, window_bounds = array<i64: 1, 128>}, {transform_indices = @transform_3, window_bounds = array<i64: 1, 16, 16, 128>}]} {
    %c0 = arith.constant 0 : index
    %c0_0 = arith.constant 0 : index
    %c0_1 = arith.constant 0 : index
    %c0_2 = arith.constant 0 : index
    %0 = vector.load %arg2[%c0, %c0_0, %c0_1, %c0_2] : memref<1x16x16x128xbf16, #tpu.memory_space<vmem>>, vector<1x16x16x128xbf16>
    %c0_3 = arith.constant 0 : index
    %c0_4 = arith.constant 0 : index
    %1 = vector.load %arg3[%c0_3, %c0_4] : memref<1x128xf32, #tpu.memory_space<vmem>>, vector<1x128xf32>
    %2 = vector.shape_cast %1 : vector<1x128xf32> to vector<1x1x1x128xf32>
    %3 = arith.extf %0 : vector<1x16x16x128xbf16> to vector<1x16x16x128xf32>
    %4 = vector.broadcast %2 : vector<1x1x1x128xf32> to vector<1x16x16x128xf32>
    %5 = arith.mulf %3, %4 : vector<1x16x16x128xf32>
    %c0_5 = arith.constant 0 : index
    %c0_6 = arith.constant 0 : index
    %6 = vector.load %arg4[%c0_5, %c0_6] : memref<1x128xf32, #tpu.memory_space<vmem>>, vector<1x128xf32>
    %7 = vector.shape_cast %6 : vector<1x128xf32> to vector<1x1x1x128xf32>
    %8 = vector.broadcast %7 : vector<1x1x1x128xf32> to vector<1x16x16x128xf32>
    %9 = arith.addf %5, %8 : vector<1x16x16x128xf32>
    %c0_7 = arith.constant 0 : index
    %c0_8 = arith.constant 0 : index
    %c0_9 = arith.constant 0 : index
    %c0_10 = arith.constant 0 : index
    %10 = vector.load %arg5[%c0_7, %c0_8, %c0_9, %c0_10] : memref<1x16x16x128xf32, #tpu.memory_space<vmem>>, vector<1x16x16x128xf32>
    tpu.vector_store %arg5[%c0_7, %c0_8, %c0_9, %c0_10], %9 {strides = array<i32>} : memref<1x16x16x128xf32, #tpu.memory_space<vmem>>, vector<1x16x16x128xf32>,
    return
  }
  func.func @transform_0(%arg0: i32, %arg1: i32) -> (i32, i32, i32, i32) {
    %c0_i32 = arith.constant 0 : i32
    %c0_i32_0 = arith.constant 0 : i32
    %c0_i32_1 = arith.constant 0 : i32
    return %arg0, %arg1, %c0_i32, %c0_i32_0 : i32, i32, i32, i32
  }
  func.func @transform_1(%arg0: i32, %arg1: i32) -> (i32, i32) {
    %c0_i32 = arith.constant 0 : i32
    %c0_i32_0 = arith.constant 0 : i32
    %c0_i32_1 = arith.constant 0 : i32
    return %c0_i32, %c0_i32_0 : i32, i32
  }
  func.func @transform_2(%arg0: i32, %arg1: i32) -> (i32, i32) {
    %c0_i32 = arith.constant 0 : i32
    %c0_i32_0 = arith.constant 0 : i32
    %c0_i32_1 = arith.constant 0 : i32
    return %c0_i32, %c0_i32_0 : i32, i32
  }
  func.func @transform_3(%arg0: i32, %arg1: i32) -> (i32, i32, i32, i32) {
    %c0_i32 = arith.constant 0 : i32
    %c0_i32_0 = arith.constant 0 : i32
    %c0_i32_1 = arith.constant 0 : i32
    return %arg0, %arg1, %c0_i32, %c0_i32_0 : i32, i32, i32, i32
  }
}

</mosaic_0001>

<llo_original>
// kernel: tile.8
$region0: #{tile.8}
  #allocation0 [shape = 's32[1]{0}', space=sflag, size = 0x4, scoped, tag = 'scoped memory for tile.8']
  %s0 = inlined_call_operand.vmem [shape: f32[128], index: 0, kind: input, shape index: {}]
  %s1 = inlined_call_operand.vmem [shape: f32[4,128], index: 1, kind: output, shape index: {}]
  // Predicated region
  $region2: #{tile.8} parent=0 // pred_check
    _
  $region3: #{tile.8} parent=0 // pred_check_branch
    %3 = sbr.rel (0) target = $region5
  $region4: #{tile.8} parent=0 // pred_region
    _
  $region5: #{tile.8} parent=0 // pred_fallthru
    _
  %v4 = vld [vmem:[%s0] ss:$0 sm:$0xff]
  %5 = vst [vmem:[%s1] sm:$0xf] %v4

// kernel: conv_up_block.4
$region0: #{conv_up_block.4}
  #allocation0 [shape = 'u32[]', space=smem, size = 0x4, offset = 0x4, fixed_abs, tag = 'smem constant byte address 0x4 - core index']
  #allocation1 [shape = 'u32[144,128]{1,0:T(1,128)}', space=vmem, size = 0x12000, scoped, tag = 'internal scratch']
  %s0 = inlined_call_operand.vmem [shape: bf16[128,128], index: 0, kind: input, shape index: {}]
  %s1 = inlined_call_operand.vmem [shape: bf16[128,512], index: 1, kind: input, shape index: {}]
  %s2 = inlined_call_operand.vmem [shape: f32[1,512], index: 2, kind: input, shape index: {}]
  %s3 = inlined_call_operand.vmem [shape: bf16[128,512], index: 3, kind: output, shape index: {}]
  %s4 = sld [smem:[#allocation0]]
  $region22: #{conv_up_block.4} parent=0
    _
  %s6 = ssub.s32 1, %s4
  %s7 = scalar_select 0, %s6, %s4
  // Predicated region
  $region2: #{conv_up_block.4} parent=0 // pred_check
    _
  $region3: #{conv_up_block.4} parent=0 // pred_check_branch
    %9 = sbr.rel (0) target = $region5
  $region4: #{conv_up_block.4} parent=0 // pred_region
    _
  $region5: #{conv_up_block.4} parent=0 // pred_fallthru
    _
  // Predicated region
  $region6: #{conv_up_block.4} parent=0 // pred_check
    _
  $region7: #{conv_up_block.4} parent=0 // pred_check_branch
    %11 = sbr.rel (0) target = $region9
  $region8: #{conv_up_block.4} parent=0 // pred_region
    _
  $region9: #{conv_up_block.4} parent=0 // pred_fallthru
    _
  // Predicated region
  $region10: #{conv_up_block.4} parent=0 // pred_check
    _
  $region11: #{conv_up_block.4} parent=0 // pred_check_branch
    %13 = sbr.rel (0) target = $region13
  $region12: #{conv_up_block.4} parent=0 // pred_region
    _
  $region13: #{conv_up_block.4} parent=0 // pred_fallthru
    _
  %v15 = vld [vmem:[%s0] sm:$0xf]
  %v16 = vld [vmem:[%s0 + $0x4] sm:$0xf]
  %v17 = vld [vmem:[%s0 + $0x8] sm:$0xf]
  %v18 = vld [vmem:[%s0 + $0xc] sm:$0xf]
  %v19 = vld [vmem:[%s0 + $0x10] sm:$0xf]
  %v20 = vld [vmem:[%s0 + $0x14] sm:$0xf]
  %v21 = vld [vmem:[%s0 + $0x18] sm:$0xf]
  %v22 = vld [vmem:[%s0 + $0x1c] sm:$0xf]
  %v23 = vld [vmem:[%s0 + $0x20] sm:$0xf]
  %v24 = vld [vmem:[%s0 + $0x24] sm:$0xf]
  %v25 = vld [vmem:[%s0 + $0x28] sm:$0xf]
  %v26 = vld [vmem:[%s0 + $0x2c] sm:$0xf]
  %v27 = vld [vmem:[%s0 + $0x30] sm:$0xf]
  %v28 = vld [vmem:[%s0 + $0x34] sm:$0xf]
  %v29 = vld [vmem:[%s0 + $0x38] sm:$0xf]
  %v30 = vld [vmem:[%s0 + $0x3c] sm:$0xf]
  %v31 = vld [vmem:[%s1] sm:$0xff]
  %v32 = vld [vmem:[%s1 + $0x8] sm:$0xff]
  %v33 = vld [vmem:[%s1 + $0x10] sm:$0xff]
  %v34 = vld [vmem:[%s1 + $0x18] sm:$0xff]
  %v35 = vld [vmem:[%s1 + $0x20] sm:$0xff]
  %v36 = vld [vmem:[%s1 + $0x28] sm:$0xff]
  %v37 = vld [vmem:[%s1 + $0x30] sm:$0xff]
  %v38 = vld [vmem:[%s1 + $0x38] sm:$0xff]
  %v39 = vld [vmem:[%s1 + $0x40] sm:$0xff]
  %v40 = vld [vmem:[%s1 + $0x48] sm:$0xff]
  %v41 = vld [vmem:[%s1 + $0x50] sm:$0xff]
  %v42 = vld [vmem:[%s1 + $0x58] sm:$0xff]
  %v43 = vld [vmem:[%s1 + $0x60] sm:$0xff]
  %v44 = vld [vmem:[%s1 + $0x68] sm:$0xff]
  %v45 = vld [vmem:[%s1 + $0x70] sm:$0xff]
  %v46 = vld [vmem:[%s1 + $0x78] sm:$0xff]
  %v47 = vld [vmem:[%s1 + $0x80] sm:$0xff]
  %v48 = vld [vmem:[%s1 + $0x88] sm:$0xff]
  %v49 = vld [vmem:[%s1 + $0x90] sm:$0xff]
  %v50 = vld [vmem:[%s1 + $0x98] sm:$0xff]
  %v51 = vld [vmem:[%s1 + $0xa0] sm:$0xff]
  %v52 = vld [vmem:[%s1 + $0xa8] sm:$0xff]
  %v53 = vld [vmem:[%s1 + $0xb0] sm:$0xff]
  %v54 = vld [vmem:[%s1 + $0xb8] sm:$0xff]
  %v55 = vld [vmem:[%s1 + $0xc0] sm:$0xff]
  %v56 = vld [vmem:[%s1 + $0xc8] sm:$0xff]
  %v57 = vld [vmem:[%s1 + $0xd0] sm:$0xff]
  %v58 = vld [vmem:[%s1 + $0xd8] sm:$0xff]
  %v59 = vld [vmem:[%s1 + $0xe0] sm:$0xff]
  %v60 = vld [vmem:[%s1 + $0xe8] sm:$0xff]
  %v61 = vld [vmem:[%s1 + $0xf0] sm:$0xff]
  %v62 = vld [vmem:[%s1 + $0xf8] sm:$0xff]
  %v63 = vld [vmem:[%s2] sm:$0xf]
  %v65 = vlaneseq
  %v66 = vshrl.u32 %v65, 7
  %v67 = vsub.s32 0, %v66
  %v68 = vrot.slane %v63, %v67
  %v69 = vlaneseq
  %v70 = vshrl.u32 %v69, 7
  %v71 = vsub.s32 1, %v70
  %v72 = vrot.slane %v63, %v71
  %v73 = vlaneseq
  %v74 = vshrl.u32 %v73, 7
  %v75 = vsub.s32 2, %v74
  %v76 = vrot.slane %v63, %v75
  %v77 = vlaneseq
  %v78 = vshrl.u32 %v77, 7
  %v79 = vsub.s32 3, %v78
  %v80 = vrot.slane %v63, %v79
  %v101 = vunpack.c.l.b16 %v15
  %v102 = vunpack.c.l.b16 %v16
  %v103 = vunpack.c.l.b16 %v17
  %v104 = vunpack.c.l.b16 %v18
  %v105 = vunpack.c.l.b16 %v19
  %v106 = vunpack.c.l.b16 %v20
  %v107 = vunpack.c.l.b16 %v21
  %v108 = vunpack.c.l.b16 %v22
  %v109 = vunpack.c.l.b16 %v23
  %v110 = vunpack.c.l.b16 %v24
  %v111 = vunpack.c.l.b16 %v25
  %v112 = vunpack.c.l.b16 %v26
  %v113 = vunpack.c.l.b16 %v27
  %v114 = vunpack.c.l.b16 %v28
  %v115 = vunpack.c.l.b16 %v29
  %v116 = vunpack.c.l.b16 %v30
  %v117 = vpack.c.b16 %v102, %v101
  %v118 = vpack.c.b16 %v104, %v103
  %v119 = vpack.c.b16 %v106, %v105
  %v120 = vpack.c.b16 %v108, %v107
  %v121 = vpack.c.b16 %v110, %v109
  %v122 = vpack.c.b16 %v112, %v111
  %v123 = vpack.c.b16 %v114, %v113
  %v124 = vpack.c.b16 %v116, %v115
  %v165 = vunpack.c.l.b16 %v31
  %v166 = vunpack.c.h.b16 %v31
  %v167 = vunpack.c.l.b16 %v32
  %v168 = vunpack.c.h.b16 %v32
  %v169 = vunpack.c.l.b16 %v33
  %v170 = vunpack.c.h.b16 %v33
  %v171 = vunpack.c.l.b16 %v34
  %v172 = vunpack.c.h.b16 %v34
  %v173 = vunpack.c.l.b16 %v35
  %v174 = vunpack.c.h.b16 %v35
  %v175 = vunpack.c.l.b16 %v36
  %v176 = vunpack.c.h.b16 %v36
  %v177 = vunpack.c.l.b16 %v37
  %v178 = vunpack.c.h.b16 %v37
  %v179 = vunpack.c.l.b16 %v38
  %v180 = vunpack.c.h.b16 %v38
  %v181 = vunpack.c.l.b16 %v39
  %v182 = vunpack.c.h.b16 %v39
  %v183 = vunpack.c.l.b16 %v40
  %v184 = vunpack.c.h.b16 %v40
  %v185 = vunpack.c.l.b16 %v41
  %v186 = vunpack.c.h.b16 %v41
  %v187 = vunpack.c.l.b16 %v42
  %v188 = vunpack.c.h.b16 %v42
  %v189 = vunpack.c.l.b16 %v43
  %v190 = vunpack.c.h.b16 %v43
  %v191 = vunpack.c.l.b16 %v44
  %v192 = vunpack.c.h.b16 %v44
  %v193 = vunpack.c.l.b16 %v45
  %v194 = vunpack.c.h.b16 %v45
  %v195 = vunpack.c.l.b16 %v46
  %v196 = vunpack.c.h.b16 %v46
  %v197 = vunpack.c.l.b16 %v47
  %v198 = vunpack.c.h.b16 %v47
  %v199 = vunpack.c.l.b16 %v48
  %v200 = vunpack.c.h.b16 %v48
  %v201 = vunpack.c.l.b16 %v49
  %v202 = vunpack.c.h.b16 %v49
  %v203 = vunpack.c.l.b16 %v50
  %v204 = vunpack.c.h.b16 %v50
  %v205 = vunpack.c.l.b16 %v51
  %v206 = vunpack.c.h.b16 %v51
  %v207 = vunpack.c.l.b16 %v52
  %v208 = vunpack.c.h.b16 %v52
  %v209 = vunpack.c.l.b16 %v53
  %v210 = vunpack.c.h.b16 %v53
  %v211 = vunpack.c.l.b16 %v54
  %v212 = vunpack.c.h.b16 %v54
  %v213 = vunpack.c.l.b16 %v55
  %v214 = vunpack.c.h.b16 %v55
  %v215 = vunpack.c.l.b16 %v56
  %v216 = vunpack.c.h.b16 %v56
  %v217 = vunpack.c.l.b16 %v57
  %v218 = vunpack.c.h.b16 %v57
  %v219 = vunpack.c.l.b16 %v58
  %v220 = vunpack.c.h.b16 %v58
  %v221 = vunpack.c.l.b16 %v59
  %v222 = vunpack.c.h.b16 %v59
  %v223 = vunpack.c.l.b16 %v60
  %v224 = vunpack.c.h.b16 %v60
  %v225 = vunpack.c.l.b16 %v61
  %v226 = vunpack.c.h.b16 %v61
  %v227 = vunpack.c.l.b16 %v62
  %v228 = vunpack.c.h.b16 %v62
  %v229 = vpack.c.b16 %v169, %v165
  %v230 = vpack.c.b16 %v170, %v166
  %v231 = vpack.c.b16 %v171, %v167
  %v232 = vpack.c.b16 %v172, %v168
  %v233 = vpack.c.b16 %v177, %v173
  %v234 = vpack.c.b16 %v178, %v174
  %v235 = vpack.c.b16 %v179, %v175
  %v236 = vpack.c.b16 %v180, %v176
  %v237 = vpack.c.b16 %v185, %v181
  %v238 = vpack.c.b16 %v186, %v182
  %v239 = vpack.c.b16 %v187, %v183
  %v240 = vpack.c.b16 %v188, %v184
  %v241 = vpack.c.b16 %v193, %v189
  %v242 = vpack.c.b16 %v194, %v190
  %v243 = vpack.c.b16 %v195, %v191
  %v244 = vpack.c.b16 %v196, %v192
  %v245 = vpack.c.b16 %v201, %v197
  %v246 = vpack.c.b16 %v202, %v198
  %v247 = vpack.c.b16 %v203, %v199
  %v248 = vpack.c.b16 %v204, %v200
  %v249 = vpack.c.b16 %v209, %v205
  %v250 = vpack.c.b16 %v210, %v206
  %v251 = vpack.c.b16 %v211, %v207
  %v252 = vpack.c.b16 %v212, %v208
  %v253 = vpack.c.b16 %v217, %v213
  %v254 = vpack.c.b16 %v218, %v214
  %v255 = vpack.c.b16 %v219, %v215
  %v256 = vpack.c.b16 %v220, %v216
  %v257 = vpack.c.b16 %v225, %v221
  %v258 = vpack.c.b16 %v226, %v222
  %v259 = vpack.c.b16 %v227, %v223
  %v260 = vpack.c.b16 %v228, %v224
  %293 = vmatprep.subr.bf16.mxu0 %v230
  %294 = vmatpush1.bf16.msra.mxu0 %v229
  %295 = vmatprep.subr.bf16.mxu0 %v234
  %296 = vmatpush1.bf16.msra.mxu0 %v233
  %297 = vmatprep.subr.bf16.mxu0 %v238
  %298 = vmatpush1.bf16.msra.mxu0 %v237
  %299 = vmatprep.subr.bf16.mxu0 %v242
  %300 = vmatpush1.bf16.msra.mxu0 %v241
  %301 = vmatprep.subr.bf16.mxu0 %v246
  %302 = vmatpush1.bf16.msra.mxu0 %v245
  %303 = vmatprep.subr.bf16.mxu0 %v250
  %304 = vmatpush1.bf16.msra.mxu0 %v249
  %305 = vmatprep.subr.bf16.mxu0 %v254
  %306 = vmatpush1.bf16.msra.mxu0 %v253
  %307 = vmatprep.subr.bf16.mxu0 %v258
  %308 = vmatpush1.bf16.msra.mxu0 %v257
  %309 = vmatprep.subr.bf16.mxu0 0
  %310 = vmatpush1.bf16.msra.mxu0 0
  %311 = vmatprep.subr.bf16.mxu0 0
  %312 = vmatpush1.bf16.msra.mxu0 0
  %313 = vmatprep.subr.bf16.mxu0 0
  %314 = vmatpush1.bf16.msra.mxu0 0
  %315 = vmatprep.subr.bf16.mxu0 0
  %316 = vmatpush1.bf16.msra.mxu0 0
  %317 = vmatprep.subr.bf16.mxu0 0
  %318 = vmatpush1.bf16.msra.mxu0 0
  %319 = vmatprep.subr.bf16.mxu0 0
  %320 = vmatpush1.bf16.msra.mxu0 0
  %321 = vmatprep.subr.bf16.mxu0 0
  %322 = vmatpush1.bf16.msra.mxu0 0
  %323 = vmatprep.subr.bf16.mxu0 0
  %324 = vmatpush1.bf16.msra.mxu0 0
  %325 = vmatprep.mubr.bf16.mxu0 0
  %326 = vmatmul.mubr.bf16.gmra.mrb[0].mxu0 %v117
  %v327 = vpop.f32.mrb[0].mxu0
  %v328 = vadd.f32 %v68, %v327
  %v329 = vpop.f32.mrb[0].mxu0
  %v330 = vadd.f32 %v72, %v329
  %v331 = vpop.f32.mrb[0].mxu0
  %v332 = vadd.f32 %v68, %v331
  %v333 = vpop.f32.mrb[0].mxu0
  %v334 = vadd.f32 %v72, %v333
  %335 = vmatprep.mubr.bf16.mxu0 0
  %336 = vmatmul.mubr.bf16.gmra.mrb[0].mxu0 %v118
  %v337 = vpop.f32.mrb[0].mxu0
  %v338 = vadd.f32 %v68, %v337
  %v339 = vpop.f32.mrb[0].mxu0
  %v340 = vadd.f32 %v72, %v339
  %v341 = vpop.f32.mrb[0].mxu0
  %v342 = vadd.f32 %v68, %v341
  %v343 = vpop.f32.mrb[0].mxu0
  %v344 = vadd.f32 %v72, %v343
  %345 = vmatprep.mubr.bf16.mxu0 0
  %346 = vmatmul.mubr.bf16.gmra.mrb[0].mxu0 %v119
  %v347 = vpop.f32.mrb[0].mxu0
  %v348 = vadd.f32 %v68, %v347
  %v349 = vpop.f32.mrb[0].mxu0
  %v350 = vadd.f32 %v72, %v349
  %v351 = vpop.f32.mrb[0].mxu0
  %v352 = vadd.f32 %v68, %v351
  %v353 = vpop.f32.mrb[0].mxu0
  %v354 = vadd.f32 %v72, %v353
  %355 = vmatprep.mubr.bf16.mxu0 0
  %356 = vmatmul.mubr.bf16.gmra.mrb[0].mxu0 %v120
  %v357 = vpop.f32.mrb[0].mxu0
  %v358 = vadd.f32 %v68, %v357
  %v359 = vpop.f32.mrb[0].mxu0
  %v360 = vadd.f32 %v72, %v359
  %v361 = vpop.f32.mrb[0].mxu0
  %v362 = vadd.f32 %v68, %v361
  %v363 = vpop.f32.mrb[0].mxu0
  %v364 = vadd.f32 %v72, %v363
  %365 = vmatprep.mubr.bf16.mxu0 0
  %366 = vmatmul.mubr.bf16.gmra.mrb[0].mxu0 %v121
  %v367 = vpop.f32.mrb[0].mxu0
  %v368 = vadd.f32 %v68, %v367
  %v369 = vpop.f32.mrb[0].mxu0
  %v370 = vadd.f32 %v72, %v369
  %v371 = vpop.f32.mrb[0].mxu0
  %v372 = vadd.f32 %v68, %v371
  %v373 = vpop.f32.mrb[0].mxu0
  %v374 = vadd.f32 %v72, %v373
  %375 = vmatprep.mubr.bf16.mxu0 0
  %376 = vmatmul.mubr.bf16.gmra.mrb[0].mxu0 %v122
  %v377 = vpop.f32.mrb[0].mxu0
  %v378 = vadd.f32 %v68, %v377
  %v379 = vpop.f32.mrb[0].mxu0
  %v380 = vadd.f32 %v72, %v379
  %v381 = vpop.f32.mrb[0].mxu0
  %v382 = vadd.f32 %v68, %v381
  %v383 = vpop.f32.mrb[0].mxu0
  %v384 = vadd.f32 %v72, %v383
  %385 = vmatprep.mubr.bf16.mxu0 0
  %386 = vmatmul.mubr.bf16.gmra.mrb[0].mxu0 %v123
  %v387 = vpop.f32.mrb[0].mxu0
  %v388 = vadd.f32 %v68, %v387
  %v389 = vpop.f32.mrb[0].mxu0
  %v390 = vadd.f32 %v72, %v389
  %v391 = vpop.f32.mrb[0].mxu0
  %v392 = vadd.f32 %v68, %v391
  %v393 = vpop.f32.mrb[0].mxu0
  %v394 = vadd.f32 %v72, %v393
  %395 = vmatprep.mubr.bf16.mxu0 0
  %396 = vmatmul.mubr.bf16.gmra.mrb[0].mxu0 %v124
  %v397 = vpop.f32.mrb[0].mxu0
  %v398 = vadd.f32 %v68, %v397
  %v399 = vpop.f32.mrb[0].mxu0
  %v400 = vadd.f32 %v72, %v399
  %v401 = vpop.f32.mrb[0].mxu0
  %v402 = vadd.f32 %v68, %v401
  %v403 = vpop.f32.mrb[0].mxu0
  %v404 = vadd.f32 %v72, %v403
  %405 = vdwg.mxu0
  %406 = vmatprep.subr.bf16.mxu0 %v232
  %407 = vmatpush1.bf16.msra.mxu0 %v231
  %408 = vmatprep.subr.bf16.mxu0 %v236
  %409 = vmatpush1.bf16.msra.mxu0 %v235
  %410 = vmatprep.subr.bf16.mxu0 %v240
  %411 = vmatpush1.bf16.msra.mxu0 %v239
  %412 = vmatprep.subr.bf16.mxu0 %v244
  %413 = vmatpush1.bf16.msra.mxu0 %v243
  %414 = vmatprep.subr.bf16.mxu0 %v248
  %415 = vmatpush1.bf16.msra.mxu0 %v247
  %416 = vmatprep.subr.bf16.mxu0 %v252
  %417 = vmatpush1.bf16.msra.mxu0 %v251
  %418 = vmatprep.subr.bf16.mxu0 %v256
  %419 = vmatpush1.bf16.msra.mxu0 %v255
  %420 = vmatprep.subr.bf16.mxu0 %v260
  %421 = vmatpush1.bf16.msra.mxu0 %v259
  %422 = vmatprep.subr.bf16.mxu0 0
  %423 = vmatpush1.bf16.msra.mxu0 0
  %424 = vmatprep.subr.bf16.mxu0 0
  %425 = vmatpush1.bf16.msra.mxu0 0
  %426 = vmatprep.subr.bf16.mxu0 0
  %427 = vmatpush1.bf16.msra.mxu0 0
  %428 = vmatprep.subr.bf16.mxu0 0
  %429 = vmatpush1.bf16.msra.mxu0 0
  %430 = vmatprep.subr.bf16.mxu0 0
  %431 = vmatpush1.bf16.msra.mxu0 0
  %432 = vmatprep.subr.bf16.mxu0 0
  %433 = vmatpush1.bf16.msra.mxu0 0
  %434 = vmatprep.subr.bf16.mxu0 0
  %435 = vmatpush1.bf16.msra.mxu0 0
  %436 = vmatprep.subr.bf16.mxu0 0
  %437 = vmatpush1.bf16.msra.mxu0 0
  %438 = vmatprep.mubr.bf16.mxu0 0
  %439 = vmatmul.mubr.bf16.gmra.mrb[0].mxu0 %v117
  %v440 = vpop.f32.mrb[0].mxu0
  %v441 = vadd.f32 %v76, %v440
  %v442 = vpop.f32.mrb[0].mxu0
  %v443 = vadd.f32 %v80, %v442
  %v444 = vpop.f32.mrb[0].mxu0
  %v445 = vadd.f32 %v76, %v444
  %v446 = vpop.f32.mrb[0].mxu0
  %v447 = vadd.f32 %v80, %v446
  %448 = vmatprep.mubr.bf16.mxu0 0
  %449 = vmatmul.mubr.bf16.gmra.mrb[0].mxu0 %v118
  %v450 = vpop.f32.mrb[0].mxu0
  %v451 = vadd.f32 %v76, %v450
  %v452 = vpop.f32.mrb[0].mxu0
  %v453 = vadd.f32 %v80, %v452
  %v454 = vpop.f32.mrb[0].mxu0
  %v455 = vadd.f32 %v76, %v454
  %v456 = vpop.f32.mrb[0].mxu0
  %v457 = vadd.f32 %v80, %v456
  %458 = vmatprep.mubr.bf16.mxu0 0
  %459 = vmatmul.mubr.bf16.gmra.mrb[0].mxu0 %v119
  %v460 = vpop.f32.mrb[0].mxu0
  %v461 = vadd.f32 %v76, %v460
  %v462 = vpop.f32.mrb[0].mxu0
  %v463 = vadd.f32 %v80, %v462
  %v464 = vpop.f32.mrb[0].mxu0
  %v465 = vadd.f32 %v76, %v464
  %v466 = vpop.f32.mrb[0].mxu0
  %v467 = vadd.f32 %v80, %v466
  %468 = vmatprep.mubr.bf16.mxu0 0
  %469 = vmatmul.mubr.bf16.gmra.mrb[0].mxu0 %v120
  %v470 = vpop.f32.mrb[0].mxu0
  %v471 = vadd.f32 %v76, %v470
  %v472 = vpop.f32.mrb[0].mxu0
  %v473 = vadd.f32 %v80, %v472
  %v474 = vpop.f32.mrb[0].mxu0
  %v475 = vadd.f32 %v76, %v474
  %v476 = vpop.f32.mrb[0].mxu0
  %v477 = vadd.f32 %v80, %v476
  %478 = vmatprep.mubr.bf16.mxu0 0
  %479 = vmatmul.mubr.bf16.gmra.mrb[0].mxu0 %v121
  %v480 = vpop.f32.mrb[0].mxu0
  %v481 = vadd.f32 %v76, %v480
  %v482 = vpop.f32.mrb[0].mxu0
  %v483 = vadd.f32 %v80, %v482
  %v484 = vpop.f32.mrb[0].mxu0
  %v485 = vadd.f32 %v76, %v484
  %v486 = vpop.f32.mrb[0].mxu0
  %v487 = vadd.f32 %v80, %v486
  %488 = vmatprep.mubr.bf16.mxu0 0
  %489 = vmatmul.mubr.bf16.gmra.mrb[0].mxu0 %v122
  %v490 = vpop.f32.mrb[0].mxu0
  %v491 = vadd.f32 %v76, %v490
  %v492 = vpop.f32.mrb[0].mxu0
  %v493 = vadd.f32 %v80, %v492
  %v494 = vpop.f32.mrb[0].mxu0
  %v495 = vadd.f32 %v76, %v494
  %v496 = vpop.f32.mrb[0].mxu0
  %v497 = vadd.f32 %v80, %v496
  %498 = vmatprep.mubr.bf16.mxu0 0
  %499 = vmatmul.mubr.bf16.gmra.mrb[0].mxu0 %v123
  %v500 = vpop.f32.mrb[0].mxu0
  %v501 = vadd.f32 %v76, %v500
  %v502 = vpop.f32.mrb[0].mxu0
  %v503 = vadd.f32 %v80, %v502
  %v504 = vpop.f32.mrb[0].mxu0
  %v505 = vadd.f32 %v76, %v504
  %v506 = vpop.f32.mrb[0].mxu0
  %v507 = vadd.f32 %v80, %v506
  %508 = vmatprep.mubr.bf16.mxu0 0
  %509 = vmatmul.mubr.bf16.gmra.mrb[0].mxu0 %v124
  %v510 = vpop.f32.mrb[0].mxu0
  %v511 = vadd.f32 %v76, %v510
  %v512 = vpop.f32.mrb[0].mxu0
  %v513 = vadd.f32 %v80, %v512
  %v514 = vpop.f32.mrb[0].mxu0
  %v515 = vadd.f32 %v76, %v514
  %v516 = vpop.f32.mrb[0].mxu0
  %v517 = vadd.f32 %v80, %v516
  %518 = vdwg.mxu0
  %v519 = vpack.c.bf16 %v332, %v328
  %v520 = vpack.c.bf16 %v334, %v330
  %v521 = vpack.c.bf16 %v445, %v441
  %v522 = vpack.c.bf16 %v447, %v443
  %v523 = vpack.c.bf16 %v342, %v338
  %v524 = vpack.c.bf16 %v344, %v340
  %v525 = vpack.c.bf16 %v455, %v451
  %v526 = vpack.c.bf16 %v457, %v453
  %v527 = vpack.c.bf16 %v352, %v348
  %v528 = vpack.c.bf16 %v354, %v350
  %v529 = vpack.c.bf16 %v465, %v461
  %v530 = vpack.c.bf16 %v467, %v463
  %v531 = vpack.c.bf16 %v362, %v358
  %v532 = vpack.c.bf16 %v364, %v360
  %v533 = vpack.c.bf16 %v475, %v471
  %v534 = vpack.c.bf16 %v477, %v473
  %v535 = vpack.c.bf16 %v372, %v368
  %v536 = vpack.c.bf16 %v374, %v370
  %v537 = vpack.c.bf16 %v485, %v481
  %v538 = vpack.c.bf16 %v487, %v483
  %v539 = vpack.c.bf16 %v382, %v378
  %v540 = vpack.c.bf16 %v384, %v380
  %v541 = vpack.c.bf16 %v495, %v491
  %v542 = vpack.c.bf16 %v497, %v493
  %v543 = vpack.c.bf16 %v392, %v388
  %v544 = vpack.c.bf16 %v394, %v390
  %v545 = vpack.c.bf16 %v505, %v501
  %v546 = vpack.c.bf16 %v507, %v503
  %v547 = vpack.c.bf16 %v402, %v398
  %v548 = vpack.c.bf16 %v404, %v400
  %v549 = vpack.c.bf16 %v515, %v511
  %v550 = vpack.c.bf16 %v517, %v513
  %v583 = vunpack.c.l.b16 %v519
  %v584 = vunpack.c.l.b16 %v520
  %v585 = vunpack.c.l.b16 %v521
  %v586 = vunpack.c.l.b16 %v522
  %v587 = vunpack.c.h.b16 %v519
  %v588 = vunpack.c.h.b16 %v520
  %v589 = vunpack.c.h.b16 %v521
  %v590 = vunpack.c.h.b16 %v522
  %v591 = vunpack.c.l.b16 %v523
  %v592 = vunpack.c.l.b16 %v524
  %v593 = vunpack.c.l.b16 %v525
  %v594 = vunpack.c.l.b16 %v526
  %v595 = vunpack.c.h.b16 %v523
  %v596 = vunpack.c.h.b16 %v524
  %v597 = vunpack.c.h.b16 %v525
  %v598 = vunpack.c.h.b16 %v526
  %v599 = vunpack.c.l.b16 %v527
  %v600 = vunpack.c.l.b16 %v528
  %v601 = vunpack.c.l.b16 %v529
  %v602 = vunpack.c.l.b16 %v530
  %v603 = vunpack.c.h.b16 %v527
  %v604 = vunpack.c.h.b16 %v528
  %v605 = vunpack.c.h.b16 %v529
  %v606 = vunpack.c.h.b16 %v530
  %v607 = vunpack.c.l.b16 %v531
  %v608 = vunpack.c.l.b16 %v532
  %v609 = vunpack.c.l.b16 %v533
  %v610 = vunpack.c.l.b16 %v534
  %v611 = vunpack.c.h.b16 %v531
  %v612 = vunpack.c.h.b16 %v532
  %v613 = vunpack.c.h.b16 %v533
  %v614 = vunpack.c.h.b16 %v534
  %v615 = vunpack.c.l.b16 %v535
  %v616 = vunpack.c.l.b16 %v536
  %v617 = vunpack.c.l.b16 %v537
  %v618 = vunpack.c.l.b16 %v538
  %v619 = vunpack.c.h.b16 %v535
  %v620 = vunpack.c.h.b16 %v536
  %v621 = vunpack.c.h.b16 %v537
  %v622 = vunpack.c.h.b16 %v538
  %v623 = vunpack.c.l.b16 %v539
  %v624 = vunpack.c.l.b16 %v540
  %v625 = vunpack.c.l.b16 %v541
  %v626 = vunpack.c.l.b16 %v542
  %v627 = vunpack.c.h.b16 %v539
  %v628 = vunpack.c.h.b16 %v540
  %v629 = vunpack.c.h.b16 %v541
  %v630 = vunpack.c.h.b16 %v542
  %v631 = vunpack.c.l.b16 %v543
  %v632 = vunpack.c.l.b16 %v544
  %v633 = vunpack.c.l.b16 %v545
  %v634 = vunpack.c.l.b16 %v546
  %v635 = vunpack.c.h.b16 %v543
  %v636 = vunpack.c.h.b16 %v544
  %v637 = vunpack.c.h.b16 %v545
  %v638 = vunpack.c.h.b16 %v546
  %v639 = vunpack.c.l.b16 %v547
  %v640 = vunpack.c.l.b16 %v548
  %v641 = vunpack.c.l.b16 %v549
  %v642 = vunpack.c.l.b16 %v550
  %v643 = vunpack.c.h.b16 %v547
  %v644 = vunpack.c.h.b16 %v548
  %v645 = vunpack.c.h.b16 %v549
  %v646 = vunpack.c.h.b16 %v550
  %v647 = vpack.c.b16 %v584, %v583
  %v648 = vpack.c.b16 %v586, %v585
  %v649 = vpack.c.b16 %v588, %v587
  %v650 = vpack.c.b16 %v590, %v589
  %v651 = vpack.c.b16 %v592, %v591
  %v652 = vpack.c.b16 %v594, %v593
  %v653 = vpack.c.b16 %v596, %v595
  %v654 = vpack.c.b16 %v598, %v597
  %v655 = vpack.c.b16 %v600, %v599
  %v656 = vpack.c.b16 %v602, %v601
  %v657 = vpack.c.b16 %v604, %v603
  %v658 = vpack.c.b16 %v606, %v605
  %v659 = vpack.c.b16 %v608, %v607
  %v660 = vpack.c.b16 %v610, %v609
  %v661 = vpack.c.b16 %v612, %v611
  %v662 = vpack.c.b16 %v614, %v613
  %v663 = vpack.c.b16 %v616, %v615
  %v664 = vpack.c.b16 %v618, %v617
  %v665 = vpack.c.b16 %v620, %v619
  %v666 = vpack.c.b16 %v622, %v621
  %v667 = vpack.c.b16 %v624, %v623
  %v668 = vpack.c.b16 %v626, %v625
  %v669 = vpack.c.b16 %v628, %v627
  %v670 = vpack.c.b16 %v630, %v629
  %v671 = vpack.c.b16 %v632, %v631
  %v672 = vpack.c.b16 %v634, %v633
  %v673 = vpack.c.b16 %v636, %v635
  %v674 = vpack.c.b16 %v638, %v637
  %v675 = vpack.c.b16 %v640, %v639
  %v676 = vpack.c.b16 %v642, %v641
  %v677 = vpack.c.b16 %v644, %v643
  %v678 = vpack.c.b16 %v646, %v645
  %711 = vst [vmem:[%s3] sm:$0xff] %v647
  %712 = vst [vmem:[%s3 + $0x8] sm:$0xff] %v648
  %713 = vst [vmem:[%s3 + $0x10] sm:$0xff] %v649
  %714 = vst [vmem:[%s3 + $0x18] sm:$0xff] %v650
  %715 = vst [vmem:[%s3 + $0x20] sm:$0xff] %v651
  %716 = vst [vmem:[%s3 + $0x28] sm:$0xff] %v652
  %717 = vst [vmem:[%s3 + $0x30] sm:$0xff] %v653
  %718 = vst [vmem:[%s3 + $0x38] sm:$0xff] %v654
  %719 = vst [vmem:[%s3 + $0x40] sm:$0xff] %v655
  %720 = vst [vmem:[%s3 + $0x48] sm:$0xff] %v656
  %721 = vst [vmem:[%s3 + $0x50] sm:$0xff] %v657
  %722 = vst [vmem:[%s3 + $0x58] sm:$0xff] %v658
  %723 = vst [vmem:[%s3 + $0x60] sm:$0xff] %v659
  %724 = vst [vmem:[%s3 + $0x68] sm:$0xff] %v660
  %725 = vst [vmem:[%s3 + $0x70] sm:$0xff] %v661
  %726 = vst [vmem:[%s3 + $0x78] sm:$0xff] %v662
  %727 = vst [vmem:[%s3 + $0x80] sm:$0xff] %v663
  %728 = vst [vmem:[%s3 + $0x88] sm:$0xff] %v664
  %729 = vst [vmem:[%s3 + $0x90] sm:$0xff] %v665
  %730 = vst [vmem:[%s3 + $0x98] sm:$0xff] %v666
  %731 = vst [vmem:[%s3 + $0xa0] sm:$0xff] %v667
  %732 = vst [vmem:[%s3 + $0xa8] sm:$0xff] %v668
  %733 = vst [vmem:[%s3 + $0xb0] sm:$0xff] %v669
  %734 = vst [vmem:[%s3 + $0xb8] sm:$0xff] %v670
  %735 = vst [vmem:[%s3 + $0xc0] sm:$0xff] %v671
  %736 = vst [vmem:[%s3 + $0xc8] sm:$0xff] %v672
  %737 = vst [vmem:[%s3 + $0xd0] sm:$0xff] %v673
  %738 = vst [vmem:[%s3 + $0xd8] sm:$0xff] %v674
  %739 = vst [vmem:[%s3 + $0xe0] sm:$0xff] %v675
  %740 = vst [vmem:[%s3 + $0xe8] sm:$0xff] %v676
  %741 = vst [vmem:[%s3 + $0xf0] sm:$0xff] %v677
  %742 = vst [vmem:[%s3 + $0xf8] sm:$0xff] %v678
  // Predicated region
  $region14: #{conv_up_block.4} parent=0 // pred_check
    _
  $region15: #{conv_up_block.4} parent=0 // pred_check_branch
    %744 = sbr.rel (0) target = $region17
  $region16: #{conv_up_block.4} parent=0 // pred_region
    _
  $region17: #{conv_up_block.4} parent=0 // pred_fallthru
    _
  // Predicated region
  $region18: #{conv_up_block.4} parent=0 // pred_check
    _
  $region19: #{conv_up_block.4} parent=0 // pred_check_branch
    %746 = sbr.rel (0) target = $region21
  $region20: #{conv_up_block.4} parent=0 // pred_region
    _
  $region21: #{conv_up_block.4} parent=0 // pred_fallthru
    _

// kernel: conv_up_block.7
$region0: #{conv_up_block.7}
  #allocation0 [shape = 'u32[]', space=smem, size = 0x4, offset = 0x4, fixed_abs, tag = 'smem constant byte address 0x4 - core index']
  #allocation1 [shape = 'u32[144,128]{1,0:T(1,128)}', space=vmem, size = 0x12000, scoped, tag = 'internal scratch']
  %s0 = inlined_call_operand.vmem [shape: bf16[2,16,16,128], index: 0, kind: input, shape index: {}]
  %s1 = inlined_call_operand.vmem [shape: f32[1,128], index: 1, kind: input, shape index: {}]
  %s2 = inlined_call_operand.vmem [shape: f32[1,128], index: 2, kind: input, shape index: {}]
  %s3 = inlined_call_operand.vmem [shape: f32[2,16,16,128], index: 3, kind: output, shape index: {}]
  %s4 = sld [smem:[#allocation0]]
  $region45: #{conv_up_block.7} parent=0
    _
  %s6 = ssub.s32 1, %s4
  %s7 = scalar_select 0, %s6, %s4
  loop: start=0, step=1, limit=4
  $region2: #{conv_up_block.7} parent=0 // loop_pre_header
    _
  $region3: #{conv_up_block.7} parent=0 // loop_header
    %s9 = sphi 0, %s13
    %p10 = scmp.ge.s32.totalorder %s9, 4
    %s16 = sphi 0, %s28
    %s17 = sphi 0, %s24
    %s18 = sphi 0, %s16
    %s19 = sphi 0, %s17
    %s20 = sphi 0, %s18
    %s21 = sphi 0, %s19
    %s33 = sphi 0, %s35
    %s36 = sphi 0, %s33
    %s37 = sphi 0, %s36
    %s53 = sphi 0, %s37
    %s57 = sphi 0, %s57
    %s59 = sphi 0, %s57
    %s60 = sphi 0, %s59
    %s74 = sphi 0, %s60
    %s78 = sphi 0, %s78
    %s80 = sphi 0, %s78
    %s81 = sphi 0, %s80
    %s95 = sphi 0, %s81
    %s103 = sphi 0, %s105
    %s106 = sphi 0, %s103
    %s107 = sphi 0, %s106
    %s123 = sphi 0, %s107
  $region4: #{conv_up_block.7} parent=0 // loop_header_branch
    %12 = sbr.rel (%p10) target = $region8
  $region5: #{conv_up_block.7} parent=0 // loop_body
    %s14 = ssub.s32 %s9, 1
    %s15 = ssub.s32 %s9, 2
    %s22 = sadd.s32 1, %s17
    %p23 = scmp.ge.s32.totalorder %s22, 1
    %s24 = scalar_select %p23, 0, %s22
    %s25 = sadd.s32 1, %s16
    %s26 = scalar_select %p23, %s25, %s16
    %p27 = scmp.ge.s32.totalorder %s26, 2
    %s28 = scalar_select %p27, 0, %s26
    %s29 = ssub.s32 %s16, %s28
    %s30 = ssub.s32 %s17, %s24
    %s31 = sor.u32 %s29, %s30
    %p32 = scmp.eq.s32.totalorder %s31, 0
    %s34 = sadd.s32 %s33, 1
    %s35 = scalar_select %p32, %s33, %s34
    %p38 = pneg %p32
    %p39 = scmp.eq.s32.totalorder %s9, 1
    %p40 = por %p38, %p39
    %p41 = scmp.ne.s32.totalorder %s33, %s36
    %p42 = scmp.eq.s32.totalorder %s9, 0
    %p43 = por %p41, %p42
    %p44 = scmp.ne.s32.totalorder %s33, %s36
    %p45 = scmp.eq.s32.totalorder %s14, 1
    %p46 = por %p44, %p45
    %p47 = scmp.ne.s32.totalorder %s36, %s37
    %p48 = scmp.eq.s32.totalorder %s14, 0
    %p49 = por %p47, %p48
    %p50 = scmp.ne.s32.totalorder %s36, %s37
    %p51 = scmp.eq.s32.totalorder %s15, 1
    %p52 = por %p50, %p51
    %p54 = scmp.ne.s32.totalorder %s37, %s53
    %p55 = scmp.eq.s32.totalorder %s15, 0
    %p56 = por %p54, %p55
    %s58 = sadd.s32 %s57, 1
    %p61 = scmp.eq.s32.totalorder %s9, 1
    %p62 = scmp.ne.s32.totalorder %s57, %s59
    %p63 = scmp.eq.s32.totalorder %s9, 0
    %p64 = por %p62, %p63
    %p65 = scmp.ne.s32.totalorder %s57, %s59
    %p66 = scmp.eq.s32.totalorder %s14, 1
    %p67 = por %p65, %p66
    %p68 = scmp.ne.s32.totalorder %s59, %s60
    %p69 = scmp.eq.s32.totalorder %s14, 0
    %p70 = por %p68, %p69
    %p71 = scmp.ne.s32.totalorder %s59, %s60
    %p72 = scmp.eq.s32.totalorder %s15, 1
    %p73 = por %p71, %p72
    %p75 = scmp.ne.s32.totalorder %s60, %s74
    %p76 = scmp.eq.s32.totalorder %s15, 0
    %p77 = por %p75, %p76
    %s79 = sadd.s32 %s78, 1
    %p82 = scmp.eq.s32.totalorder %s9, 1
    %p83 = scmp.ne.s32.totalorder %s78, %s80
    %p84 = scmp.eq.s32.totalorder %s9, 0
    %p85 = por %p83, %p84
    %p86 = scmp.ne.s32.totalorder %s78, %s80
    %p87 = scmp.eq.s32.totalorder %s14, 1
    %p88 = por %p86, %p87
    %p89 = scmp.ne.s32.totalorder %s80, %s81
    %p90 = scmp.eq.s32.totalorder %s14, 0
    %p91 = por %p89, %p90
    %p92 = scmp.ne.s32.totalorder %s80, %s81
    %p93 = scmp.eq.s32.totalorder %s15, 1
    %p94 = por %p92, %p93
    %p96 = scmp.ne.s32.totalorder %s81, %s95
    %p97 = scmp.eq.s32.totalorder %s15, 0
    %p98 = por %p96, %p97
    %s99 = ssub.s32 %s16, %s28
    %s100 = ssub.s32 %s17, %s24
    %s101 = sor.u32 %s99, %s100
    %p102 = scmp.eq.s32.totalorder %s101, 0
    %s104 = sadd.s32 %s103, 1
    %s105 = scalar_select %p102, %s103, %s104
    %p108 = pneg %p102
    %p109 = scmp.eq.s32.totalorder %s9, 1
    %p110 = por %p108, %p109
    %p111 = scmp.ne.s32.totalorder %s103, %s106
    %p112 = scmp.eq.s32.totalorder %s9, 0
    %p113 = por %p111, %p112
    %p114 = scmp.ne.s32.totalorder %s103, %s106
    %p115 = scmp.eq.s32.totalorder %s14, 1
    %p116 = por %p114, %p115
    %p117 = scmp.ne.s32.totalorder %s106, %s107
    %p118 = scmp.eq.s32.totalorder %s14, 0
    %p119 = por %p117, %p118
    %p120 = scmp.ne.s32.totalorder %s106, %s107
    %p121 = scmp.eq.s32.totalorder %s15, 1
    %p122 = por %p120, %p121
    %p124 = scmp.ne.s32.totalorder %s107, %s123
    %p125 = scmp.eq.s32.totalorder %s15, 0
    %p126 = por %p124, %p125
    %p127 = scmp.le.s32.totalorder 1, %s9
    %p128 = scmp.lt.s32.totalorder %s9, 3
    %p129 = pnand %p127, %p128
    %p130 = pneg %p129
    // Predicated region
    $region9: #{conv_up_block.7} parent=5 // pred_check
      _
    $region10: #{conv_up_block.7} parent=5 // pred_check_branch
      %132 = sbr.rel (%p129) target = $region12
    $region11: #{conv_up_block.7} parent=5 // pred_region
      %s133 = ssub.s32 %s9, 1
      // Predicated region
      $region13: #{conv_up_block.7} parent=11 // pred_check
        %p134 = pneg %p70
      $region14: #{conv_up_block.7} parent=11 // pred_check_branch
        %136 = sbr.rel (%p134) target = $region16
      $region15: #{conv_up_block.7} parent=11 // pred_region
        _
      $region16: #{conv_up_block.7} parent=11 // pred_fallthru
        _
      // Predicated region
      $region17: #{conv_up_block.7} parent=11 // pred_check
        %p137 = pneg %p91
      $region18: #{conv_up_block.7} parent=11 // pred_check_branch
        %139 = sbr.rel (%p137) target = $region20
      $region19: #{conv_up_block.7} parent=11 // pred_region
        _
      $region20: #{conv_up_block.7} parent=11 // pred_fallthru
        _
    $region12: #{conv_up_block.7} parent=5 // pred_fallthru
      _
    %p140 = scmp.lt.s32.totalorder %s9, 2
    // Predicated region
    $region21: #{conv_up_block.7} parent=5 // pred_check
      %p141 = pneg %p140
    $region22: #{conv_up_block.7} parent=5 // pred_check_branch
      %143 = sbr.rel (%p141) target = $region24
    $region23: #{conv_up_block.7} parent=5 // pred_region
      // Predicated region
      $region25: #{conv_up_block.7} parent=23 // pred_check
        %p144 = pneg %p43
      $region26: #{conv_up_block.7} parent=23 // pred_check_branch
        %146 = sbr.rel (%p144) target = $region28
      $region27: #{conv_up_block.7} parent=23 // pred_region
        %s147 = smul.u32 16, %s17
        %p148 = scmp.lt.s32.totalorder %s16, 1
        %s149 = scalar_select %p148, %s16, 1
        %p150 = scmp.lt.s32.totalorder %s147, 15
        %s151 = scalar_select %p150, %s147, 15
        %s152 = smul.addr %s151, 2
        %s153 = smul.addr %s149, 32
        %s154 = sadd.s32 %s152, %s153
        %s155 = smul.addr %s154, 4
        %s156 = scalar_lea.vmem %s0, %s155
        %s157 = smul.u32 16, %s17
      $region28: #{conv_up_block.7} parent=23 // pred_fallthru
        _
    $region24: #{conv_up_block.7} parent=5 // pred_fallthru
      _
    %p158 = scmp.le.s32.totalorder 1, %s9
    %p159 = scmp.lt.s32.totalorder %s9, 3
    %p160 = pnand %p158, %p159
    %p161 = pneg %p160
    // Predicated region
    $region29: #{conv_up_block.7} parent=5 // pred_check
      _
    $region30: #{conv_up_block.7} parent=5 // pred_check_branch
      %163 = sbr.rel (%p160) target = $region32
    $region31: #{conv_up_block.7} parent=5 // pred_region
      %s164 = ssub.s32 %s9, 1
      %s165 = smul.u32 16, %s19
      %p166 = scmp.lt.s32.totalorder %s18, 1
      %s167 = scalar_select %p166, %s18, 1
      %p168 = scmp.lt.s32.totalorder %s165, 15
      %s169 = scalar_select %p168, %s165, 15
      %s170 = smul.addr %s169, 2
      %s171 = smul.addr %s167, 32
      %s172 = sadd.s32 %s170, %s171
      %s173 = smul.addr %s172, 4
      %s174 = scalar_lea.vmem %s0, %s173
      %p175 = pneg %p49
      %p176 = pneg %p46
      %p177 = pneg %p70
      %p178 = pneg %p67
      %p179 = pneg %p91
      %p180 = pneg %p88
      %p181 = pneg %p119
      %p182 = pneg %p116
      %s183 = smul.u32 16, %s19
      %p184 = scmp.lt.s32.totalorder %s18, 1
      %s185 = scalar_select %p184, %s18, 1
      %p186 = scmp.lt.s32.totalorder %s183, 15
      %s187 = scalar_select %p186, %s183, 15
      %s188 = smul.addr %s187, 2
      %s189 = smul.addr %s185, 32
      %s190 = sadd.s32 %s188, %s189
      %s191 = smul.addr %s190, 8
      %s192 = scalar_lea.vmem %s3, %s191
      %s193 = smul.u32 16, %s19
      %p194 = scmp.lt.s32.totalorder %s18, 1
      %s195 = scalar_select %p194, %s18, 1
      %p196 = scmp.lt.s32.totalorder %s193, 15
      %s197 = scalar_select %p196, %s193, 15
      %s198 = smul.addr %s197, 2
      %s199 = smul.addr %s195, 32
      %s200 = sadd.s32 %s198, %s199
      %s201 = smul.addr %s200, 4
      %s202 = scalar_lea.vmem %s0, %s201
      %s203 = smul.u32 16, %s19
      %s204 = smul.u32 16, %s19
      %p205 = scmp.lt.s32.totalorder %s18, 1
      %s206 = scalar_select %p205, %s18, 1
      %p207 = scmp.lt.s32.totalorder %s204, 15
      %s208 = scalar_select %p207, %s204, 15
      %s209 = smul.addr %s208, 2
      %s210 = smul.addr %s206, 32
      %s211 = sadd.s32 %s209, %s210
      %s212 = smul.addr %s211, 8
      %s213 = scalar_lea.vmem %s3, %s212
      %s214 = smul.u32 16, %s19
      %v215 = vld [vmem:[%s202] sm:$0xf]
      %v216 = vld [vmem:[%s202 + $0x4] sm:$0xf]
      %v217 = vld [vmem:[%s202 + $0x8] sm:$0xf]
      %v218 = vld [vmem:[%s202 + $0xc] sm:$0xf]
      %v219 = vld [vmem:[%s202 + $0x10] sm:$0xf]
      %v220 = vld [vmem:[%s202 + $0x14] sm:$0xf]
      %v221 = vld [vmem:[%s202 + $0x18] sm:$0xf]
      %v222 = vld [vmem:[%s202 + $0x1c] sm:$0xf]
      %v223 = vld [vmem:[%s202 + $0x20] sm:$0xf]
      %v224 = vld [vmem:[%s202 + $0x24] sm:$0xf]
      %v225 = vld [vmem:[%s202 + $0x28] sm:$0xf]
      %v226 = vld [vmem:[%s202 + $0x2c] sm:$0xf]
      %v227 = vld [vmem:[%s202 + $0x30] sm:$0xf]
      %v228 = vld [vmem:[%s202 + $0x34] sm:$0xf]
      %v229 = vld [vmem:[%s202 + $0x38] sm:$0xf]
      %v230 = vld [vmem:[%s202 + $0x3c] sm:$0xf]
      %v231 = vld [vmem:[%s202 + $0x40] sm:$0xf]
      %v232 = vld [vmem:[%s202 + $0x44] sm:$0xf]
      %v233 = vld [vmem:[%s202 + $0x48] sm:$0xf]
      %v234 = vld [vmem:[%s202 + $0x4c] sm:$0xf]
      %v235 = vld [vmem:[%s202 + $0x50] sm:$0xf]
      %v236 = vld [vmem:[%s202 + $0x54] sm:$0xf]
      %v237 = vld [vmem:[%s202 + $0x58] sm:$0xf]
      %v238 = vld [vmem:[%s202 + $0x5c] sm:$0xf]
      %v239 = vld [vmem:[%s202 + $0x60] sm:$0xf]
      %v240 = vld [vmem:[%s202 + $0x64] sm:$0xf]
      %v241 = vld [vmem:[%s202 + $0x68] sm:$0xf]
      %v242 = vld [vmem:[%s202 + $0x6c] sm:$0xf]
      %v243 = vld [vmem:[%s202 + $0x70] sm:$0xf]
      %v244 = vld [vmem:[%s202 + $0x74] sm:$0xf]
      %v245 = vld [vmem:[%s202 + $0x78] sm:$0xf]
      %v246 = vld [vmem:[%s202 + $0x7c] sm:$0xf]
      %v247 = vld [vmem:[%s1] sm:$0x1]
      %v248 = vunpack.c.l.bf16 %v215
      %v249 = vunpack.c.l.bf16 %v216
      %v250 = vunpack.c.l.bf16 %v217
      %v251 = vunpack.c.l.bf16 %v218
      %v252 = vunpack.c.l.bf16 %v219
      %v253 = vunpack.c.l.bf16 %v220
      %v254 = vunpack.c.l.bf16 %v221
      %v255 = vunpack.c.l.bf16 %v222
      %v256 = vunpack.c.l.bf16 %v223
      %v257 = vunpack.c.l.bf16 %v224
      %v258 = vunpack.c.l.bf16 %v225
      %v259 = vunpack.c.l.bf16 %v226
      %v260 = vunpack.c.l.bf16 %v227
      %v261 = vunpack.c.l.bf16 %v228
      %v262 = vunpack.c.l.bf16 %v229
      %v263 = vunpack.c.l.bf16 %v230
      %v264 = vunpack.c.l.bf16 %v231
      %v265 = vunpack.c.l.bf16 %v232
      %v266 = vunpack.c.l.bf16 %v233
      %v267 = vunpack.c.l.bf16 %v234
      %v268 = vunpack.c.l.bf16 %v235
      %v269 = vunpack.c.l.bf16 %v236
      %v270 = vunpack.c.l.bf16 %v237
      %v271 = vunpack.c.l.bf16 %v238
      %v272 = vunpack.c.l.bf16 %v239
      %v273 = vunpack.c.l.bf16 %v240
      %v274 = vunpack.c.l.bf16 %v241
      %v275 = vunpack.c.l.bf16 %v242
      %v276 = vunpack.c.l.bf16 %v243
      %v277 = vunpack.c.l.bf16 %v244
      %v278 = vunpack.c.l.bf16 %v245
      %v279 = vunpack.c.l.bf16 %v246
      %v281 = vlaneseq
      %v282 = vshrl.u32 %v281, 7
      %v283 = vsub.s32 0, %v282
      %v284 = vrot.slane %v247, %v283
      %v286 = vmul.f32 %v248, %v284
      %v287 = vmul.f32 %v249, %v284
      %v288 = vmul.f32 %v250, %v284
      %v289 = vmul.f32 %v251, %v284
      %v290 = vmul.f32 %v252, %v284
      %v291 = vmul.f32 %v253, %v284
      %v292 = vmul.f32 %v254, %v284
      %v293 = vmul.f32 %v255, %v284
      %v294 = vmul.f32 %v256, %v284
      %v295 = vmul.f32 %v257, %v284
      %v296 = vmul.f32 %v258, %v284
      %v297 = vmul.f32 %v259, %v284
      %v298 = vmul.f32 %v260, %v284
      %v299 = vmul.f32 %v261, %v284
      %v300 = vmul.f32 %v262, %v284
      %v301 = vmul.f32 %v263, %v284
      %v302 = vmul.f32 %v264, %v284
      %v303 = vmul.f32 %v265, %v284
      %v304 = vmul.f32 %v266, %v284
      %v305 = vmul.f32 %v267, %v284
      %v306 = vmul.f32 %v268, %v284
      %v307 = vmul.f32 %v269, %v284
      %v308 = vmul.f32 %v270, %v284
      %v309 = vmul.f32 %v271, %v284
      %v310 = vmul.f32 %v272, %v284
      %v311 = vmul.f32 %v273, %v284
      %v312 = vmul.f32 %v274, %v284
      %v313 = vmul.f32 %v275, %v284
      %v314 = vmul.f32 %v276, %v284
      %v315 = vmul.f32 %v277, %v284
      %v316 = vmul.f32 %v278, %v284
      %v317 = vmul.f32 %v279, %v284
      %v318 = vld [vmem:[%s2] sm:$0x1]
      %v320 = vlaneseq
      %v321 = vshrl.u32 %v320, 7
      %v322 = vsub.s32 0, %v321
      %v323 = vrot.slane %v318, %v322
      %v325 = vadd.f32 %v286, %v323
      %v326 = vadd.f32 %v287, %v323
      %v327 = vadd.f32 %v288, %v323
      %v328 = vadd.f32 %v289, %v323
      %v329 = vadd.f32 %v290, %v323
      %v330 = vadd.f32 %v291, %v323
      %v331 = vadd.f32 %v292, %v323
      %v332 = vadd.f32 %v293, %v323
      %v333 = vadd.f32 %v294, %v323
      %v334 = vadd.f32 %v295, %v323
      %v335 = vadd.f32 %v296, %v323
      %v336 = vadd.f32 %v297, %v323
      %v337 = vadd.f32 %v298, %v323
      %v338 = vadd.f32 %v299, %v323
      %v339 = vadd.f32 %v300, %v323
      %v340 = vadd.f32 %v301, %v323
      %v341 = vadd.f32 %v302, %v323
      %v342 = vadd.f32 %v303, %v323
      %v343 = vadd.f32 %v304, %v323
      %v344 = vadd.f32 %v305, %v323
      %v345 = vadd.f32 %v306, %v323
      %v346 = vadd.f32 %v307, %v323
      %v347 = vadd.f32 %v308, %v323
      %v348 = vadd.f32 %v309, %v323
      %v349 = vadd.f32 %v310, %v323
      %v350 = vadd.f32 %v311, %v323
      %v351 = vadd.f32 %v312, %v323
      %v352 = vadd.f32 %v313, %v323
      %v353 = vadd.f32 %v314, %v323
      %v354 = vadd.f32 %v315, %v323
      %v355 = vadd.f32 %v316, %v323
      %v356 = vadd.f32 %v317, %v323
      %357 = vst [vmem:[%s213] sm:$0xff] %v325
      %358 = vst [vmem:[%s213 + $0x8] sm:$0xff] %v326
      %359 = vst [vmem:[%s213 + $0x10] sm:$0xff] %v327
      %360 = vst [vmem:[%s213 + $0x18] sm:$0xff] %v328
      %361 = vst [vmem:[%s213 + $0x20] sm:$0xff] %v329
      %362 = vst [vmem:[%s213 + $0x28] sm:$0xff] %v330
      %363 = vst [vmem:[%s213 + $0x30] sm:$0xff] %v331
      %364 = vst [vmem:[%s213 + $0x38] sm:$0xff] %v332
      %365 = vst [vmem:[%s213 + $0x40] sm:$0xff] %v333
      %366 = vst [vmem:[%s213 + $0x48] sm:$0xff] %v334
      %367 = vst [vmem:[%s213 + $0x50] sm:$0xff] %v335
      %368 = vst [vmem:[%s213 + $0x58] sm:$0xff] %v336
      %369 = vst [vmem:[%s213 + $0x60] sm:$0xff] %v337
      %370 = vst [vmem:[%s213 + $0x68] sm:$0xff] %v338
      %371 = vst [vmem:[%s213 + $0x70] sm:$0xff] %v339
      %372 = vst [vmem:[%s213 + $0x78] sm:$0xff] %v340
      %373 = vst [vmem:[%s213 + $0x80] sm:$0xff] %v341
      %374 = vst [vmem:[%s213 + $0x88] sm:$0xff] %v342
      %375 = vst [vmem:[%s213 + $0x90] sm:$0xff] %v343
      %376 = vst [vmem:[%s213 + $0x98] sm:$0xff] %v344
      %377 = vst [vmem:[%s213 + $0xa0] sm:$0xff] %v345
      %378 = vst [vmem:[%s213 + $0xa8] sm:$0xff] %v346
      %379 = vst [vmem:[%s213 + $0xb0] sm:$0xff] %v347
      %380 = vst [vmem:[%s213 + $0xb8] sm:$0xff] %v348
      %381 = vst [vmem:[%s213 + $0xc0] sm:$0xff] %v349
      %382 = vst [vmem:[%s213 + $0xc8] sm:$0xff] %v350
      %383 = vst [vmem:[%s213 + $0xd0] sm:$0xff] %v351
      %384 = vst [vmem:[%s213 + $0xd8] sm:$0xff] %v352
      %385 = vst [vmem:[%s213 + $0xe0] sm:$0xff] %v353
      %386 = vst [vmem:[%s213 + $0xe8] sm:$0xff] %v354
      %387 = vst [vmem:[%s213 + $0xf0] sm:$0xff] %v355
      %388 = vst [vmem:[%s213 + $0xf8] sm:$0xff] %v356
      %s389 = smul.u32 16, %s19
      %p390 = scmp.lt.s32.totalorder %s18, 1
      %s391 = scalar_select %p390, %s18, 1
      %p392 = scmp.lt.s32.totalorder %s389, 15
      %s393 = scalar_select %p392, %s389, 15
      %s394 = smul.addr %s393, 2
      %s395 = smul.addr %s391, 32
      %s396 = sadd.s32 %s394, %s395
      %s397 = smul.addr %s396, 8
      %s398 = scalar_lea.vmem %s3, %s397
      // Predicated region
      $region33: #{conv_up_block.7} parent=31 // pred_check
        %p399 = pneg %p116
      $region34: #{conv_up_block.7} parent=31 // pred_check_branch
        %401 = sbr.rel (%p399) target = $region36
      $region35: #{conv_up_block.7} parent=31 // pred_region
        %s402 = smul.u32 16, %s19
      $region36: #{conv_up_block.7} parent=31 // pred_fallthru
        _
    $region32: #{conv_up_block.7} parent=5 // pred_fallthru
      _
    %p403 = scmp.le.s32.totalorder 2, %s9
    // Predicated region
    $region37: #{conv_up_block.7} parent=5 // pred_check
      %p404 = pneg %p403
    $region38: #{conv_up_block.7} parent=5 // pred_check_branch
      %406 = sbr.rel (%p404) target = $region40
    $region39: #{conv_up_block.7} parent=5 // pred_region
      %s407 = ssub.s32 %s9, 2
      // Predicated region
      $region41: #{conv_up_block.7} parent=39 // pred_check
        %p408 = pneg %p122
      $region42: #{conv_up_block.7} parent=39 // pred_check_branch
        %410 = sbr.rel (%p408) target = $region44
      $region43: #{conv_up_block.7} parent=39 // pred_region
        %s411 = smul.u32 16, %s21
        %p412 = scmp.lt.s32.totalorder %s20, 1
        %s413 = scalar_select %p412, %s20, 1
        %p414 = scmp.lt.s32.totalorder %s411, 15
        %s415 = scalar_select %p414, %s411, 15
        %s416 = smul.addr %s415, 2
        %s417 = smul.addr %s413, 32
        %s418 = sadd.s32 %s416, %s417
        %s419 = smul.addr %s418, 8
        %s420 = scalar_lea.vmem %s3, %s419
      $region44: #{conv_up_block.7} parent=39 // pred_fallthru
        _
    $region40: #{conv_up_block.7} parent=5 // pred_fallthru
      _
  $region6: #{conv_up_block.7} parent=0 // loop_footer
    %s13 = sadd.s32 1, %s9
  $region7: #{conv_up_block.7} parent=0 // loop_footer_branch
    %8 = sbr.rel target = $region3
  $region8: #{conv_up_block.7} parent=0 // loop_exit
    _

// kernel: conv_up_block.5
$region0: #{conv_up_block.5}
  #allocation0 [shape = 'u32[]', space=smem, size = 0x4, offset = 0x4, fixed_abs, tag = 'smem constant byte address 0x4 - core index']
  #allocation1 [shape = 'u32[144,128]{1,0:T(1,128)}', space=vmem, size = 0x12000, scoped, tag = 'internal scratch']
  %s0 = inlined_call_operand.vmem [shape: bf16[2,18,18,256], index: 0, kind: input, shape index: {}, may-alias: {0,1}]
  %s1 = inlined_call_operand.vmem [shape: bf16[2,18,18,256], index: 1, kind: input, shape index: {}, may-alias: {0,1}]
  %s2 = inlined_call_operand.vmem [shape: bf16[3,768,128], index: 2, kind: input, shape index: {}]
  %s3 = inlined_call_operand.vmem [shape: f32[1,128], index: 3, kind: input, shape index: {}]
  %s4 = inlined_call_operand.vmem [shape: bf16[2,16,16,128], index: 4, kind: output, shape index: {0}]
  %s5 = inlined_call_operand.vmem [shape: f32[2,1,2,128], index: 5, kind: output, shape index: {1}]
  %6 = xla_tuple %s4, %s5
  %s7 = sld [smem:[#allocation0]]
  $region65: #{conv_up_block.5} parent=0
    _
  %s9 = ssub.s32 1, %s7
  %s10 = scalar_select 0, %s9, %s7
  loop: start=0, step=1, limit=4
  $region2: #{conv_up_block.5} parent=0 // loop_pre_header
    _
  $region3: #{conv_up_block.5} parent=0 // loop_header
    %s12 = sphi 0, %s16
    %p13 = scmp.ge.s32.totalorder %s12, 4
    %s19 = sphi 0, %s31
    %s20 = sphi 0, %s27
    %s21 = sphi 0, %s19
    %s22 = sphi 0, %s20
    %s23 = sphi 0, %s21
    %s24 = sphi 0, %s22
    %s36 = sphi 0, %s38
    %s39 = sphi 0, %s36
    %s40 = sphi 0, %s39
    %s56 = sphi 0, %s40
    %s68 = sphi 0, %s70
    %s71 = sphi 0, %s68
    %s72 = sphi 0, %s71
    %s88 = sphi 0, %s72
    %s92 = sphi 0, %s92
    %s94 = sphi 0, %s92
    %s95 = sphi 0, %s94
    %s109 = sphi 0, %s95
    %s113 = sphi 0, %s113
    %s115 = sphi 0, %s113
    %s116 = sphi 0, %s115
    %s130 = sphi 0, %s116
    %s138 = sphi 0, %s140
    %s141 = sphi 0, %s138
    %s142 = sphi 0, %s141
    %s158 = sphi 0, %s142
    %s166 = sphi 0, %s168
    %s169 = sphi 0, %s166
    %s170 = sphi 0, %s169
    %s186 = sphi 0, %s170
  $region4: #{conv_up_block.5} parent=0 // loop_header_branch
    %15 = sbr.rel (%p13) target = $region8
  $region5: #{conv_up_block.5} parent=0 // loop_body
    %s17 = ssub.s32 %s12, 1
    %s18 = ssub.s32 %s12, 2
    %s25 = sadd.s32 1, %s20
    %p26 = scmp.ge.s32.totalorder %s25, 1
    %s27 = scalar_select %p26, 0, %s25
    %s28 = sadd.s32 1, %s19
    %s29 = scalar_select %p26, %s28, %s19
    %p30 = scmp.ge.s32.totalorder %s29, 2
    %s31 = scalar_select %p30, 0, %s29
    %s32 = ssub.s32 %s19, %s31
    %s33 = ssub.s32 %s20, %s27
    %s34 = sor.u32 %s32, %s33
    %p35 = scmp.eq.s32.totalorder %s34, 0
    %s37 = sadd.s32 %s36, 1
    %s38 = scalar_select %p35, %s36, %s37
    %p41 = pneg %p35
    %p42 = scmp.eq.s32.totalorder %s12, 1
    %p43 = por %p41, %p42
    %p44 = scmp.ne.s32.totalorder %s36, %s39
    %p45 = scmp.eq.s32.totalorder %s12, 0
    %p46 = por %p44, %p45
    %p47 = scmp.ne.s32.totalorder %s36, %s39
    %p48 = scmp.eq.s32.totalorder %s17, 1
    %p49 = por %p47, %p48
    %p50 = scmp.ne.s32.totalorder %s39, %s40
    %p51 = scmp.eq.s32.totalorder %s17, 0
    %p52 = por %p50, %p51
    %p53 = scmp.ne.s32.totalorder %s39, %s40
    %p54 = scmp.eq.s32.totalorder %s18, 1
    %p55 = por %p53, %p54
    %p57 = scmp.ne.s32.totalorder %s40, %s56
    %p58 = scmp.eq.s32.totalorder %s18, 0
    %p59 = por %p57, %p58
    %s60 = sadd.s32 %s20, 1
    %s61 = smul.u32 %s60, 8
    %s62 = sadd.s32 %s27, 1
    %s63 = smul.u32 %s62, 8
    %s64 = ssub.s32 %s19, %s31
    %s65 = ssub.s32 %s61, %s63
    %s66 = sor.u32 %s64, %s65
    %p67 = scmp.eq.s32.totalorder %s66, 0
    %s69 = sadd.s32 %s68, 1
    %s70 = scalar_select %p67, %s68, %s69
    %p73 = pneg %p67
    %p74 = scmp.eq.s32.totalorder %s12, 1
    %p75 = por %p73, %p74
    %p76 = scmp.ne.s32.totalorder %s68, %s71
    %p77 = scmp.eq.s32.totalorder %s12, 0
    %p78 = por %p76, %p77
    %p79 = scmp.ne.s32.totalorder %s68, %s71
    %p80 = scmp.eq.s32.totalorder %s17, 1
    %p81 = por %p79, %p80
    %p82 = scmp.ne.s32.totalorder %s71, %s72
    %p83 = scmp.eq.s32.totalorder %s17, 0
    %p84 = por %p82, %p83
    %p85 = scmp.ne.s32.totalorder %s71, %s72
    %p86 = scmp.eq.s32.totalorder %s18, 1
    %p87 = por %p85, %p86
    %p89 = scmp.ne.s32.totalorder %s72, %s88
    %p90 = scmp.eq.s32.totalorder %s18, 0
    %p91 = por %p89, %p90
    %s93 = sadd.s32 %s92, 1
    %p96 = scmp.eq.s32.totalorder %s12, 1
    %p97 = scmp.ne.s32.totalorder %s92, %s94
    %p98 = scmp.eq.s32.totalorder %s12, 0
    %p99 = por %p97, %p98
    %p100 = scmp.ne.s32.totalorder %s92, %s94
    %p101 = scmp.eq.s32.totalorder %s17, 1
    %p102 = por %p100, %p101
    %p103 = scmp.ne.s32.totalorder %s94, %s95
    %p104 = scmp.eq.s32.totalorder %s17, 0
    %p105 = por %p103, %p104
    %p106 = scmp.ne.s32.totalorder %s94, %s95
    %p107 = scmp.eq.s32.totalorder %s18, 1
    %p108 = por %p106, %p107
    %p110 = scmp.ne.s32.totalorder %s95, %s109
    %p111 = scmp.eq.s32.totalorder %s18, 0
    %p112 = por %p110, %p111
    %s114 = sadd.s32 %s113, 1
    %p117 = scmp.eq.s32.totalorder %s12, 1
    %p118 = scmp.ne.s32.totalorder %s113, %s115
    %p119 = scmp.eq.s32.totalorder %s12, 0
    %p120 = por %p118, %p119
    %p121 = scmp.ne.s32.totalorder %s113, %s115
    %p122 = scmp.eq.s32.totalorder %s17, 1
    %p123 = por %p121, %p122
    %p124 = scmp.ne.s32.totalorder %s115, %s116
    %p125 = scmp.eq.s32.totalorder %s17, 0
    %p126 = por %p124, %p125
    %p127 = scmp.ne.s32.totalorder %s115, %s116
    %p128 = scmp.eq.s32.totalorder %s18, 1
    %p129 = por %p127, %p128
    %p131 = scmp.ne.s32.totalorder %s116, %s130
    %p132 = scmp.eq.s32.totalorder %s18, 0
    %p133 = por %p131, %p132
    %s134 = ssub.s32 %s19, %s31
    %s135 = ssub.s32 %s20, %s27
    %s136 = sor.u32 %s134, %s135
    %p137 = scmp.eq.s32.totalorder %s136, 0
    %s139 = sadd.s32 %s138, 1
    %s140 = scalar_select %p137, %s138, %s139
    %p143 = pneg %p137
    %p144 = scmp.eq.s32.totalorder %s12, 1
    %p145 = por %p143, %p144
    %p146 = scmp.ne.s32.totalorder %s138, %s141
    %p147 = scmp.eq.s32.totalorder %s12, 0
    %p148 = por %p146, %p147
    %p149 = scmp.ne.s32.totalorder %s138, %s141
    %p150 = scmp.eq.s32.totalorder %s17, 1
    %p151 = por %p149, %p150
    %p152 = scmp.ne.s32.totalorder %s141, %s142
    %p153 = scmp.eq.s32.totalorder %s17, 0
    %p154 = por %p152, %p153
    %p155 = scmp.ne.s32.totalorder %s141, %s142
    %p156 = scmp.eq.s32.totalorder %s18, 1
    %p157 = por %p155, %p156
    %p159 = scmp.ne.s32.totalorder %s142, %s158
    %p160 = scmp.eq.s32.totalorder %s18, 0
    %p161 = por %p159, %p160
    %s162 = ssub.s32 %s19, %s31
    %s163 = ssub.s32 %s20, %s27
    %s164 = sor.u32 %s162, %s163
    %p165 = scmp.eq.s32.totalorder %s164, 0
    %s167 = sadd.s32 %s166, 1
    %s168 = scalar_select %p165, %s166, %s167
    %p171 = pneg %p165
    %p172 = scmp.eq.s32.totalorder %s12, 1
    %p173 = por %p171, %p172
    %p174 = scmp.ne.s32.totalorder %s166, %s169
    %p175 = scmp.eq.s32.totalorder %s12, 0
    %p176 = por %p174, %p175
    %p177 = scmp.ne.s32.totalorder %s166, %s169
    %p178 = scmp.eq.s32.totalorder %s17, 1
    %p179 = por %p177, %p178
    %p180 = scmp.ne.s32.totalorder %s169, %s170
    %p181 = scmp.eq.s32.totalorder %s17, 0
    %p182 = por %p180, %p181
    %p183 = scmp.ne.s32.totalorder %s169, %s170
    %p184 = scmp.eq.s32.totalorder %s18, 1
    %p185 = por %p183, %p184
    %p187 = scmp.ne.s32.totalorder %s170, %s186
    %p188 = scmp.eq.s32.totalorder %s18, 0
    %p189 = por %p187, %p188
    %p190 = scmp.le.s32.totalorder 1, %s12
    %p191 = scmp.lt.s32.totalorder %s12, 3
    %p192 = pnand %p190, %p191
    %p193 = pneg %p192
    // Predicated region
    $region9: #{conv_up_block.5} parent=5 // pred_check
      _
    $region10: #{conv_up_block.5} parent=5 // pred_check_branch
      %195 = sbr.rel (%p192) target = $region12
    $region11: #{conv_up_block.5} parent=5 // pred_region
      %s196 = ssub.s32 %s12, 1
      // Predicated region
      $region13: #{conv_up_block.5} parent=11 // pred_check
        %p197 = pneg %p105
      $region14: #{conv_up_block.5} parent=11 // pred_check_branch
        %199 = sbr.rel (%p197) target = $region16
      $region15: #{conv_up_block.5} parent=11 // pred_region
        _
      $region16: #{conv_up_block.5} parent=11 // pred_fallthru
        _
      // Predicated region
      $region17: #{conv_up_block.5} parent=11 // pred_check
        %p200 = pneg %p126
      $region18: #{conv_up_block.5} parent=11 // pred_check_branch
        %202 = sbr.rel (%p200) target = $region20
      $region19: #{conv_up_block.5} parent=11 // pred_region
        _
      $region20: #{conv_up_block.5} parent=11 // pred_fallthru
        _
    $region12: #{conv_up_block.5} parent=5 // pred_fallthru
      _
    %p203 = scmp.lt.s32.totalorder %s12, 2
    // Predicated region
    $region21: #{conv_up_block.5} parent=5 // pred_check
      %p204 = pneg %p203
    $region22: #{conv_up_block.5} parent=5 // pred_check_branch
      %206 = sbr.rel (%p204) target = $region24
    $region23: #{conv_up_block.5} parent=5 // pred_region
      // Predicated region
      $region25: #{conv_up_block.5} parent=23 // pred_check
        %p207 = pneg %p46
      $region26: #{conv_up_block.5} parent=23 // pred_check_branch
        %209 = sbr.rel (%p207) target = $region28
      $region27: #{conv_up_block.5} parent=23 // pred_region
        %s210 = smul.u32 16, %s20
        %s211 = ssub.s32 18, %s210
        %p212 = scmp.lt.s32.totalorder %s211, 16
        %s213 = scalar_select %p212, %s211, 16
        %s214 = smul.u32 64, %s213
        %s215 = smul.u32 %s214, 3
        %s216 = smul.u32 %s215, 2
        %p217 = scmp.lt.s32.totalorder %s19, 1
        %s218 = scalar_select %p217, %s19, 1
        %p219 = scmp.lt.s32.totalorder %s210, 17
        %s220 = scalar_select %p219, %s210, 17
        %s221 = smul.addr %s220, 6
        %s222 = smul.addr %s218, 108
        %s223 = sadd.s32 %s221, %s222
        %s224 = smul.addr %s223, 4
        %s225 = scalar_lea.vmem %s0, %s224
        %s226 = smul.u32 16, %s20
        %s227 = ssub.s32 18, %s226
        %p228 = scmp.lt.s32.totalorder %s227, 16
        %s229 = scalar_select %p228, %s227, 16
        %s230 = smul.u32 64, %s229
        %s231 = smul.u32 %s230, 3
        %s232 = smul.u32 %s231, 2
      $region28: #{conv_up_block.5} parent=23 // pred_fallthru
        _
      // Predicated region
      $region29: #{conv_up_block.5} parent=23 // pred_check
        %p233 = pneg %p78
      $region30: #{conv_up_block.5} parent=23 // pred_check_branch
        %235 = sbr.rel (%p233) target = $region32
      $region31: #{conv_up_block.5} parent=23 // pred_region
        %s236 = sadd.s32 %s20, 1
        %s237 = smul.u32 %s236, 8
        %s238 = smul.u32 2, %s237
        %p239 = scmp.lt.s32.totalorder %s19, 1
        %s240 = scalar_select %p239, %s19, 1
        %p241 = scmp.lt.s32.totalorder %s238, 17
        %s242 = scalar_select %p241, %s238, 17
        %s243 = smul.addr %s242, 6
        %s244 = smul.addr %s240, 108
        %s245 = sadd.s32 %s243, %s244
        %s246 = smul.addr %s245, 4
        %s247 = scalar_lea.vmem %s1, %s246
        %s248 = sadd.s32 %s20, 1
        %s249 = smul.u32 %s248, 8
        %s250 = smul.u32 2, %s249
      $region32: #{conv_up_block.5} parent=23 // pred_fallthru
        _
    $region24: #{conv_up_block.5} parent=5 // pred_fallthru
      _
    %p251 = scmp.le.s32.totalorder 1, %s12
    %p252 = scmp.lt.s32.totalorder %s12, 3
    %p253 = pnand %p251, %p252
    %p254 = pneg %p253
    // Predicated region
    $region33: #{conv_up_block.5} parent=5 // pred_check
      _
    $region34: #{conv_up_block.5} parent=5 // pred_check_branch
      %256 = sbr.rel (%p253) target = $region36
    $region35: #{conv_up_block.5} parent=5 // pred_region
      %s257 = ssub.s32 %s12, 1
      %s258 = smul.u32 16, %s22
      %s259 = ssub.s32 18, %s258
      %p260 = scmp.lt.s32.totalorder %s259, 16
      %s261 = scalar_select %p260, %s259, 16
      %s262 = smul.u32 64, %s261
      %s263 = smul.u32 %s262, 3
      %s264 = smul.u32 %s263, 2
      %p265 = scmp.lt.s32.totalorder %s21, 1
      %s266 = scalar_select %p265, %s21, 1
      %p267 = scmp.lt.s32.totalorder %s258, 17
      %s268 = scalar_select %p267, %s258, 17
      %s269 = smul.addr %s268, 6
      %s270 = smul.addr %s266, 108
      %s271 = sadd.s32 %s269, %s270
      %s272 = smul.addr %s271, 4
      %s273 = scalar_lea.vmem %s0, %s272
      %p274 = pneg %p52
      %p275 = pneg %p49
      %s276 = sadd.s32 %s22, 1
      %s277 = smul.u32 %s276, 8
      %s278 = smul.u32 2, %s277
      %p279 = scmp.lt.s32.totalorder %s21, 1
      %s280 = scalar_select %p279, %s21, 1
      %p281 = scmp.lt.s32.totalorder %s278, 17
      %s282 = scalar_select %p281, %s278, 17
      %s283 = smul.addr %s282, 6
      %s284 = smul.addr %s280, 108
      %s285 = sadd.s32 %s283, %s284
      %s286 = smul.addr %s285, 4
      %s287 = scalar_lea.vmem %s1, %s286
      %p288 = pneg %p84
      %p289 = pneg %p81
      %p290 = pneg %p105
      %p291 = pneg %p102
      %p292 = pneg %p126
      %p293 = pneg %p123
      %p294 = pneg %p154
      %p295 = pneg %p151
      %s296 = smul.u32 16, %s22
      %p297 = scmp.lt.s32.totalorder %s21, 1
      %s298 = scalar_select %p297, %s21, 1
      %p299 = scmp.lt.s32.totalorder %s296, 15
      %s300 = scalar_select %p299, %s296, 15
      %s301 = smul.addr %s300, 2
      %s302 = smul.addr %s298, 32
      %s303 = sadd.s32 %s301, %s302
      %s304 = smul.addr %s303, 4
      %s305 = scalar_lea.vmem %s4, %s304
      %p306 = pneg %p182
      %p307 = pneg %p179
      %p308 = scmp.lt.s32.totalorder %s21, 1
      %s309 = scalar_select %p308, %s21, 1
      %p310 = scmp.lt.s32.totalorder %s22, 0
      %s311 = scalar_select %p310, %s22, 0
      %s312 = sadd.s32 %s311, %s309
      %s313 = smul.addr %s312, 2
      %s314 = scalar_lea.vmem %s5, %s313
      %s315 = smul.u32 16, %s22
      %s316 = ssub.s32 18, %s315
      %p317 = scmp.lt.s32.totalorder %s316, 16
      %s318 = scalar_select %p317, %s316, 16
      %s319 = smul.u32 64, %s318
      %s320 = smul.u32 %s319, 3
      %s321 = smul.u32 %s320, 2
      %p322 = scmp.lt.s32.totalorder %s21, 1
      %s323 = scalar_select %p322, %s21, 1
      %p324 = scmp.lt.s32.totalorder %s315, 17
      %s325 = scalar_select %p324, %s315, 17
      %s326 = smul.addr %s325, 6
      %s327 = smul.addr %s323, 108
      %s328 = sadd.s32 %s326, %s327
      %s329 = smul.addr %s328, 4
      %s330 = scalar_lea.vmem %s0, %s329
      %s331 = smul.u32 16, %s22
      %s332 = ssub.s32 18, %s331
      %p333 = scmp.lt.s32.totalorder %s332, 16
      %s334 = scalar_select %p333, %s332, 16
      %s335 = smul.u32 64, %s334
      %s336 = smul.u32 %s335, 3
      %s337 = smul.u32 %s336, 2
      %s338 = sadd.s32 %s22, 1
      %s339 = smul.u32 %s338, 8
      %s340 = smul.u32 2, %s339
      %p341 = scmp.lt.s32.totalorder %s21, 1
      %s342 = scalar_select %p341, %s21, 1
      %p343 = scmp.lt.s32.totalorder %s340, 17
      %s344 = scalar_select %p343, %s340, 17
      %s345 = smul.addr %s344, 6
      %s346 = smul.addr %s342, 108
      %s347 = sadd.s32 %s345, %s346
      %s348 = smul.addr %s347, 4
      %s349 = scalar_lea.vmem %s1, %s348
      %s350 = sadd.s32 %s22, 1
      %s351 = smul.u32 %s350, 8
      %s352 = smul.u32 2, %s351
      %s353 = smul.u32 16, %s22
      %p354 = scmp.lt.s32.totalorder %s21, 1
      %s355 = scalar_select %p354, %s21, 1
      %p356 = scmp.lt.s32.totalorder %s353, 15
      %s357 = scalar_select %p356, %s353, 15
      %s358 = smul.addr %s357, 2
      %s359 = smul.addr %s355, 32
      %s360 = sadd.s32 %s358, %s359
      %s361 = smul.addr %s360, 4
      %s362 = scalar_lea.vmem %s4, %s361
      %s363 = smul.u32 16, %s22
      %p364 = scmp.lt.s32.totalorder %s21, 1
      %s365 = scalar_select %p364, %s21, 1
      %p366 = scmp.lt.s32.totalorder %s22, 0
      %s367 = scalar_select %p366, %s22, 0
      %s368 = sadd.s32 %s367, %s365
      %s369 = smul.addr %s368, 2
      %s370 = scalar_lea.vmem %s5, %s369
      %v372 = vld [vmem:[%s330] sm:$0xff]
      %v373 = vld [vmem:[%s330 + $0x8] sm:$0xff]
      %v374 = vld [vmem:[%s330 + $0x10] sm:$0x11]
      %v375 = vld [vmem:[%s330 + $0x18] sm:$0xff]
      %v376 = vld [vmem:[%s330 + $0x20] sm:$0xff]
      %v377 = vld [vmem:[%s330 + $0x28] sm:$0x11]
      %v378 = vld [vmem:[%s330 + $0x30] sm:$0xff]
      %v379 = vld [vmem:[%s330 + $0x38] sm:$0xff]
      %v380 = vld [vmem:[%s330 + $0x40] sm:$0x11]
      %v381 = vld [vmem:[%s330 + $0x48] sm:$0xff]
      %v382 = vld [vmem:[%s330 + $0x50] sm:$0xff]
      %v383 = vld [vmem:[%s330 + $0x58] sm:$0x11]
      %v384 = vld [vmem:[%s330 + $0x60] sm:$0xff]
      %v385 = vld [vmem:[%s330 + $0x68] sm:$0xff]
      %v386 = vld [vmem:[%s330 + $0x70] sm:$0x11]
      %v387 = vld [vmem:[%s330 + $0x78] sm:$0xff]
      %v388 = vld [vmem:[%s330 + $0x80] sm:$0xff]
      %v389 = vld [vmem:[%s330 + $0x88] sm:$0x11]
      %v390 = vld [vmem:[%s330 + $0x90] sm:$0xff]
      %v391 = vld [vmem:[%s330 + $0x98] sm:$0xff]
      %v392 = vld [vmem:[%s330 + $0xa0] sm:$0x11]
      %v393 = vld [vmem:[%s330 + $0xa8] sm:$0xff]
      %v394 = vld [vmem:[%s330 + $0xb0] sm:$0xff]
      %v395 = vld [vmem:[%s330 + $0xb8] sm:$0x11]
      %v396 = vld [vmem:[%s330 + $0xc0] sm:$0xff]
      %v397 = vld [vmem:[%s330 + $0xc8] sm:$0xff]
      %v398 = vld [vmem:[%s330 + $0xd0] sm:$0x11]
      %v399 = vld [vmem:[%s330 + $0xd8] sm:$0xff]
      %v400 = vld [vmem:[%s330 + $0xe0] sm:$0xff]
      %v401 = vld [vmem:[%s330 + $0xe8] sm:$0x11]
      %v402 = vld [vmem:[%s330 + $0xf0] sm:$0xff]
      %v403 = vld [vmem:[%s330 + $0xf8] sm:$0xff]
      %v404 = vld [vmem:[%s330 + $0x100] sm:$0x11]
      %v405 = vld [vmem:[%s330 + $0x108] sm:$0xff]
      %v406 = vld [vmem:[%s330 + $0x110] sm:$0xff]
      %v407 = vld [vmem:[%s330 + $0x118] sm:$0x11]
      %v408 = vld [vmem:[%s330 + $0x120] sm:$0xff]
      %v409 = vld [vmem:[%s330 + $0x128] sm:$0xff]
      %v410 = vld [vmem:[%s330 + $0x130] sm:$0x11]
      %v411 = vld [vmem:[%s330 + $0x138] sm:$0xff]
      %v412 = vld [vmem:[%s330 + $0x140] sm:$0xff]
      %v413 = vld [vmem:[%s330 + $0x148] sm:$0x11]
      %v414 = vld [vmem:[%s330 + $0x150] sm:$0xff]
      %v415 = vld [vmem:[%s330 + $0x158] sm:$0xff]
      %v416 = vld [vmem:[%s330 + $0x160] sm:$0x11]
      %v417 = vld [vmem:[%s330 + $0x168] sm:$0xff]
      %v418 = vld [vmem:[%s330 + $0x170] sm:$0xff]
      %v419 = vld [vmem:[%s330 + $0x178] sm:$0x11]
      %v420 = vld [vmem:[%s349] sm:$0xff]
      %v421 = vld [vmem:[%s349 + $0x8] sm:$0xff]
      %v422 = vld [vmem:[%s349 + $0x10] sm:$0x11]
      %v423 = vld [vmem:[%s349 + $0x18] sm:$0xff]
      %v424 = vld [vmem:[%s349 + $0x20] sm:$0xff]
      %v425 = vld [vmem:[%s349 + $0x28] sm:$0x11]
      %v462 = vunpack.c.l.b16 %v372
      %v463 = vunpack.c.h.b16 %v372
      %v464 = vunpack.c.l.b16 %v373
      %v465 = vunpack.c.h.b16 %v373
      %v466 = vunpack.c.l.b16 %v375
      %v467 = vunpack.c.h.b16 %v375
      %v468 = vunpack.c.l.b16 %v376
      %v469 = vunpack.c.h.b16 %v376
      %v470 = vunpack.c.l.b16 %v378
      %v471 = vunpack.c.h.b16 %v378
      %v472 = vunpack.c.l.b16 %v379
      %v473 = vunpack.c.h.b16 %v379
      %v474 = vunpack.c.l.b16 %v381
      %v475 = vunpack.c.h.b16 %v381
      %v476 = vunpack.c.l.b16 %v382
      %v477 = vunpack.c.h.b16 %v382
      %v478 = vunpack.c.l.b16 %v384
      %v479 = vunpack.c.h.b16 %v384
      %v480 = vunpack.c.l.b16 %v385
      %v481 = vunpack.c.h.b16 %v385
      %v482 = vunpack.c.l.b16 %v387
      %v483 = vunpack.c.h.b16 %v387
      %v484 = vunpack.c.l.b16 %v388
      %v485 = vunpack.c.h.b16 %v388
      %v486 = vunpack.c.l.b16 %v390
      %v487 = vunpack.c.h.b16 %v390
      %v488 = vunpack.c.l.b16 %v391
      %v489 = vunpack.c.h.b16 %v391
      %v490 = vunpack.c.l.b16 %v393
      %v491 = vunpack.c.h.b16 %v393
      %v492 = vunpack.c.l.b16 %v394
      %v493 = vunpack.c.h.b16 %v394
      %v494 = vunpack.c.l.b16 %v396
      %v495 = vunpack.c.h.b16 %v396
      %v496 = vunpack.c.l.b16 %v397
      %v497 = vunpack.c.h.b16 %v397
      %v498 = vunpack.c.l.b16 %v399
      %v499 = vunpack.c.h.b16 %v399
      %v500 = vunpack.c.l.b16 %v400
      %v501 = vunpack.c.h.b16 %v400
      %v502 = vunpack.c.l.b16 %v402
      %v503 = vunpack.c.h.b16 %v402
      %v504 = vunpack.c.l.b16 %v403
      %v505 = vunpack.c.h.b16 %v403
      %v506 = vunpack.c.l.b16 %v405
      %v507 = vunpack.c.h.b16 %v405
      %v508 = vunpack.c.l.b16 %v406
      %v509 = vunpack.c.h.b16 %v406
      %v510 = vunpack.c.l.b16 %v408
      %v511 = vunpack.c.h.b16 %v408
      %v512 = vunpack.c.l.b16 %v409
      %v513 = vunpack.c.h.b16 %v409
      %v514 = vunpack.c.l.b16 %v411
      %v515 = vunpack.c.h.b16 %v411
      %v516 = vunpack.c.l.b16 %v412
      %v517 = vunpack.c.h.b16 %v412
      %v518 = vunpack.c.l.b16 %v414
      %v519 = vunpack.c.h.b16 %v414
      %v520 = vunpack.c.l.b16 %v415
      %v521 = vunpack.c.h.b16 %v415
      %v522 = vunpack.c.l.b16 %v417
      %v523 = vunpack.c.h.b16 %v417
      %v524 = vunpack.c.l.b16 %v418
      %v525 = vunpack.c.h.b16 %v418
      %v526 = vunpack.c.l.b16 %v420
      %v527 = vunpack.c.h.b16 %v420
      %v528 = vunpack.c.l.b16 %v421
      %v529 = vunpack.c.h.b16 %v421
      %v530 = vunpack.c.l.b16 %v423
      %v531 = vunpack.c.h.b16 %v423
      %v532 = vunpack.c.l.b16 %v424
      %v533 = vunpack.c.h.b16 %v424
      %v534 = vpack.c.b16 %v464, %v462
      %v535 = vpack.c.b16 %v465, %v463
      %v536 = vpack.c.b16 %v468, %v466
      %v537 = vpack.c.b16 %v469, %v467
      %v538 = vpack.c.b16 %v472, %v470
      %v539 = vpack.c.b16 %v473, %v471
      %v540 = vpack.c.b16 %v476, %v474
      %v541 = vpack.c.b16 %v477, %v475
      %v542 = vpack.c.b16 %v480, %v478
      %v543 = vpack.c.b16 %v481, %v479
      %v544 = vpack.c.b16 %v484, %v482
      %v545 = vpack.c.b16 %v485, %v483
      %v546 = vpack.c.b16 %v488, %v486
      %v547 = vpack.c.b16 %v489, %v487
      %v548 = vpack.c.b16 %v492, %v490
      %v549 = vpack.c.b16 %v493, %v491
      %v550 = vpack.c.b16 %v496, %v494
      %v551 = vpack.c.b16 %v497, %v495
      %v552 = vpack.c.b16 %v500, %v498
      %v553 = vpack.c.b16 %v501, %v499
      %v554 = vpack.c.b16 %v504, %v502
      %v555 = vpack.c.b16 %v505, %v503
      %v556 = vpack.c.b16 %v508, %v506
      %v557 = vpack.c.b16 %v509, %v507
      %v558 = vpack.c.b16 %v512, %v510
      %v559 = vpack.c.b16 %v513, %v511
      %v560 = vpack.c.b16 %v516, %v514
      %v561 = vpack.c.b16 %v517, %v515
      %v562 = vpack.c.b16 %v520, %v518
      %v563 = vpack.c.b16 %v521, %v519
      %v564 = vpack.c.b16 %v524, %v522
      %v565 = vpack.c.b16 %v525, %v523
      %v566 = vpack.c.b16 %v528, %v526
      %v567 = vpack.c.b16 %v529, %v527
      %v568 = vpack.c.b16 %v532, %v530
      %v569 = vpack.c.b16 %v533, %v531
      %v624 = vunpack.c.l.b16 %v374
      %v625 = vunpack.c.h.b16 %v374
      %v626 = vunpack.c.l.b16 %v377
      %v627 = vunpack.c.h.b16 %v377
      %v628 = vunpack.c.l.b16 %v380
      %v629 = vunpack.c.h.b16 %v380
      %v630 = vunpack.c.l.b16 %v383
      %v631 = vunpack.c.h.b16 %v383
      %v632 = vunpack.c.l.b16 %v386
      %v633 = vunpack.c.h.b16 %v386
      %v634 = vunpack.c.l.b16 %v389
      %v635 = vunpack.c.h.b16 %v389
      %v636 = vunpack.c.l.b16 %v392
      %v637 = vunpack.c.h.b16 %v392
      %v638 = vunpack.c.l.b16 %v395
      %v639 = vunpack.c.h.b16 %v395
      %v640 = vunpack.c.l.b16 %v398
      %v641 = vunpack.c.h.b16 %v398
      %v642 = vunpack.c.l.b16 %v401
      %v643 = vunpack.c.h.b16 %v401
      %v644 = vunpack.c.l.b16 %v404
      %v645 = vunpack.c.h.b16 %v404
      %v646 = vunpack.c.l.b16 %v407
      %v647 = vunpack.c.h.b16 %v407
      %v648 = vunpack.c.l.b16 %v410
      %v649 = vunpack.c.h.b16 %v410
      %v650 = vunpack.c.l.b16 %v413
      %v651 = vunpack.c.h.b16 %v413
      %v652 = vunpack.c.l.b16 %v416
      %v653 = vunpack.c.h.b16 %v416
      %v654 = vunpack.c.l.b16 %v419
      %v655 = vunpack.c.h.b16 %v419
      %v656 = vunpack.c.l.b16 %v422
      %v657 = vunpack.c.h.b16 %v422
      %v658 = vunpack.c.l.b16 %v425
      %v659 = vunpack.c.h.b16 %v425
      %v660 = vpack.c.b16 %v624, %v624
      %v661 = vpack.c.b16 %v625, %v625
      %v662 = vpack.c.b16 %v626, %v626
      %v663 = vpack.c.b16 %v627, %v627
      %v664 = vpack.c.b16 %v628, %v628
      %v665 = vpack.c.b16 %v629, %v629
      %v666 = vpack.c.b16 %v630, %v630
      %v667 = vpack.c.b16 %v631, %v631
      %v668 = vpack.c.b16 %v632, %v632
      %v669 = vpack.c.b16 %v633, %v633
      %v670 = vpack.c.b16 %v634, %v634
      %v671 = vpack.c.b16 %v635, %v635
      %v672 = vpack.c.b16 %v636, %v636
      %v673 = vpack.c.b16 %v637, %v637
      %v674 = vpack.c.b16 %v638, %v638
      %v675 = vpack.c.b16 %v639, %v639
      %v676 = vpack.c.b16 %v640, %v640
      %v677 = vpack.c.b16 %v641, %v641
      %v678 = vpack.c.b16 %v642, %v642
      %v679 = vpack.c.b16 %v643, %v643
      %v680 = vpack.c.b16 %v644, %v644
      %v681 = vpack.c.b16 %v645, %v645
      %v682 = vpack.c.b16 %v646, %v646
      %v683 = vpack.c.b16 %v647, %v647
      %v684 = vpack.c.b16 %v648, %v648
      %v685 = vpack.c.b16 %v649, %v649
      %v686 = vpack.c.b16 %v650, %v650
      %v687 = vpack.c.b16 %v651, %v651
      %v688 = vpack.c.b16 %v652, %v652
      %v689 = vpack.c.b16 %v653, %v653
      %v690 = vpack.c.b16 %v654, %v654
      %v691 = vpack.c.b16 %v655, %v655
      %v692 = vpack.c.b16 %v656, %v656
      %v693 = vpack.c.b16 %v657, %v657
      %v694 = vpack.c.b16 %v658, %v658
      %v695 = vpack.c.b16 %v659, %v659
      %vm696 = vsmask.f32 7424
      %v698 = vshrl.u32 %v534, 16
      %v700 = vshll.u32 %v534, 16
      %v702 = vrot.slane %v700, 1
      %v703 = vor.u32 %v698, %v702
      %v705 = vshll.u32 %v660, 16
      %v707 = vrot.slane %v705, 1
      %v708 = vsel %vm696, %v703, %v707
      %v710 = vshrl.u32 %v535, 16
      %v712 = vshll.u32 %v535, 16
      %v714 = vrot.slane %v712, 1
      %v715 = vor.u32 %v710, %v714
      %v717 = vshll.u32 %v661, 16
      %v719 = vrot.slane %v717, 1
      %v720 = vsel %vm696, %v715, %v719
      %v722 = vshrl.u32 %v536, 16
      %v724 = vshll.u32 %v536, 16
      %v726 = vrot.slane %v724, 1
      %v727 = vor.u32 %v722, %v726
      %v729 = vshll.u32 %v662, 16
      %v731 = vrot.slane %v729, 1
      %v732 = vsel %vm696, %v727, %v731
      %v734 = vshrl.u32 %v537, 16
      %v736 = vshll.u32 %v537, 16
      %v738 = vrot.slane %v736, 1
      %v739 = vor.u32 %v734, %v738
      %v741 = vshll.u32 %v663, 16
      %v743 = vrot.slane %v741, 1
      %v744 = vsel %vm696, %v739, %v743
      %v746 = vshrl.u32 %v538, 16
      %v748 = vshll.u32 %v538, 16
      %v750 = vrot.slane %v748, 1
      %v751 = vor.u32 %v746, %v750
      %v753 = vshll.u32 %v664, 16
      %v755 = vrot.slane %v753, 1
      %v756 = vsel %vm696, %v751, %v755
      %v758 = vshrl.u32 %v539, 16
      %v760 = vshll.u32 %v539, 16
      %v762 = vrot.slane %v760, 1
      %v763 = vor.u32 %v758, %v762
      %v765 = vshll.u32 %v665, 16
      %v767 = vrot.slane %v765, 1
      %v768 = vsel %vm696, %v763, %v767
      %v770 = vshrl.u32 %v540, 16
      %v772 = vshll.u32 %v540, 16
      %v774 = vrot.slane %v772, 1
      %v775 = vor.u32 %v770, %v774
      %v777 = vshll.u32 %v666, 16
      %v779 = vrot.slane %v777, 1
      %v780 = vsel %vm696, %v775, %v779
      %v782 = vshrl.u32 %v541, 16
      %v784 = vshll.u32 %v541, 16
      %v786 = vrot.slane %v784, 1
      %v787 = vor.u32 %v782, %v786
      %v789 = vshll.u32 %v667, 16
      %v791 = vrot.slane %v789, 1
      %v792 = vsel %vm696, %v787, %v791
      %v794 = vshrl.u32 %v542, 16
      %v796 = vshll.u32 %v542, 16
      %v798 = vrot.slane %v796, 1
      %v799 = vor.u32 %v794, %v798
      %v801 = vshll.u32 %v668, 16
      %v803 = vrot.slane %v801, 1
      %v804 = vsel %vm696, %v799, %v803
      %v806 = vshrl.u32 %v543, 16
      %v808 = vshll.u32 %v543, 16
      %v810 = vrot.slane %v808, 1
      %v811 = vor.u32 %v806, %v810
      %v813 = vshll.u32 %v669, 16
      %v815 = vrot.slane %v813, 1
      %v816 = vsel %vm696, %v811, %v815
      %v818 = vshrl.u32 %v544, 16
      %v820 = vshll.u32 %v544, 16
      %v822 = vrot.slane %v820, 1
      %v823 = vor.u32 %v818, %v822
      %v825 = vshll.u32 %v670, 16
      %v827 = vrot.slane %v825, 1
      %v828 = vsel %vm696, %v823, %v827
      %v830 = vshrl.u32 %v545, 16
      %v832 = vshll.u32 %v545, 16
      %v834 = vrot.slane %v832, 1
      %v835 = vor.u32 %v830, %v834
      %v837 = vshll.u32 %v671, 16
      %v839 = vrot.slane %v837, 1
      %v840 = vsel %vm696, %v835, %v839
      %v842 = vshrl.u32 %v546, 16
      %v844 = vshll.u32 %v546, 16
      %v846 = vrot.slane %v844, 1
      %v847 = vor.u32 %v842, %v846
      %v849 = vshll.u32 %v672, 16
      %v851 = vrot.slane %v849, 1
      %v852 = vsel %vm696, %v847, %v851
      %v854 = vshrl.u32 %v547, 16
      %v856 = vshll.u32 %v547, 16
      %v858 = vrot.slane %v856, 1
      %v859 = vor.u32 %v854, %v858
      %v861 = vshll.u32 %v673, 16
      %v863 = vrot.slane %v861, 1
      %v864 = vsel %vm696, %v859, %v863
      %v866 = vshrl.u32 %v548, 16
      %v868 = vshll.u32 %v548, 16
      %v870 = vrot.slane %v868, 1
      %v871 = vor.u32 %v866, %v870
      %v873 = vshll.u32 %v674, 16
      %v875 = vrot.slane %v873, 1
      %v876 = vsel %vm696, %v871, %v875
      %v878 = vshrl.u32 %v549, 16
      %v880 = vshll.u32 %v549, 16
      %v882 = vrot.slane %v880, 1
      %v883 = vor.u32 %v878, %v882
      %v885 = vshll.u32 %v675, 16
      %v887 = vrot.slane %v885, 1
      %v888 = vsel %vm696, %v883, %v887
      %v890 = vshrl.u32 %v550, 16
      %v892 = vshll.u32 %v550, 16
      %v894 = vrot.slane %v892, 1
      %v895 = vor.u32 %v890, %v894
      %v897 = vshll.u32 %v676, 16
      %v899 = vrot.slane %v897, 1
      %v900 = vsel %vm696, %v895, %v899
      %v902 = vshrl.u32 %v551, 16
      %v904 = vshll.u32 %v551, 16
      %v906 = vrot.slane %v904, 1
      %v907 = vor.u32 %v902, %v906
      %v909 = vshll.u32 %v677, 16
      %v911 = vrot.slane %v909, 1
      %v912 = vsel %vm696, %v907, %v911
      %v914 = vshrl.u32 %v552, 16
      %v916 = vshll.u32 %v552, 16
      %v918 = vrot.slane %v916, 1
      %v919 = vor.u32 %v914, %v918
      %v921 = vshll.u32 %v678, 16
      %v923 = vrot.slane %v921, 1
      %v924 = vsel %vm696, %v919, %v923
      %v926 = vshrl.u32 %v553, 16
      %v928 = vshll.u32 %v553, 16
      %v930 = vrot.slane %v928, 1
      %v931 = vor.u32 %v926, %v930
      %v933 = vshll.u32 %v679, 16
      %v935 = vrot.slane %v933, 1
      %v936 = vsel %vm696, %v931, %v935
      %v938 = vshrl.u32 %v554, 16
      %v940 = vshll.u32 %v554, 16
      %v942 = vrot.slane %v940, 1
      %v943 = vor.u32 %v938, %v942
      %v945 = vshll.u32 %v680, 16
      %v947 = vrot.slane %v945, 1
      %v948 = vsel %vm696, %v943, %v947
      %v950 = vshrl.u32 %v555, 16
      %v952 = vshll.u32 %v555, 16
      %v954 = vrot.slane %v952, 1
      %v955 = vor.u32 %v950, %v954
      %v957 = vshll.u32 %v681, 16
      %v959 = vrot.slane %v957, 1
      %v960 = vsel %vm696, %v955, %v959
      %v962 = vshrl.u32 %v556, 16
      %v964 = vshll.u32 %v556, 16
      %v966 = vrot.slane %v964, 1
      %v967 = vor.u32 %v962, %v966
      %v969 = vshll.u32 %v682, 16
      %v971 = vrot.slane %v969, 1
      %v972 = vsel %vm696, %v967, %v971
      %v974 = vshrl.u32 %v557, 16
      %v976 = vshll.u32 %v557, 16
      %v978 = vrot.slane %v976, 1
      %v979 = vor.u32 %v974, %v978
      %v981 = vshll.u32 %v683, 16
      %v983 = vrot.slane %v981, 1
      %v984 = vsel %vm696, %v979, %v983
      %v986 = vshrl.u32 %v558, 16
      %v988 = vshll.u32 %v558, 16
      %v990 = vrot.slane %v988, 1
      %v991 = vor.u32 %v986, %v990
      %v993 = vshll.u32 %v684, 16
      %v995 = vrot.slane %v993, 1
      %v996 = vsel %vm696, %v991, %v995
      %v998 = vshrl.u32 %v559, 16
      %v1000 = vshll.u32 %v559, 16
      %v1002 = vrot.slane %v1000, 1
      %v1003 = vor.u32 %v998, %v1002
      %v1005 = vshll.u32 %v685, 16
      %v1007 = vrot.slane %v1005, 1
      %v1008 = vsel %vm696, %v1003, %v1007
      %v1010 = vshrl.u32 %v560, 16
      %v1012 = vshll.u32 %v560, 16
      %v1014 = vrot.slane %v1012, 1
      %v1015 = vor.u32 %v1010, %v1014
      %v1017 = vshll.u32 %v686, 16
      %v1019 = vrot.slane %v1017, 1
      %v1020 = vsel %vm696, %v1015, %v1019
      %v1022 = vshrl.u32 %v561, 16
      %v1024 = vshll.u32 %v561, 16
      %v1026 = vrot.slane %v1024, 1
      %v1027 = vor.u32 %v1022, %v1026
      %v1029 = vshll.u32 %v687, 16
      %v1031 = vrot.slane %v1029, 1
      %v1032 = vsel %vm696, %v1027, %v1031
      %v1034 = vshrl.u32 %v562, 16
      %v1036 = vshll.u32 %v562, 16
      %v1038 = vrot.slane %v1036, 1
      %v1039 = vor.u32 %v1034, %v1038
      %v1041 = vshll.u32 %v688, 16
      %v1043 = vrot.slane %v1041, 1
      %v1044 = vsel %vm696, %v1039, %v1043
      %v1046 = vshrl.u32 %v563, 16
      %v1048 = vshll.u32 %v563, 16
      %v1050 = vrot.slane %v1048, 1
      %v1051 = vor.u32 %v1046, %v1050
      %v1053 = vshll.u32 %v689, 16
      %v1055 = vrot.slane %v1053, 1
      %v1056 = vsel %vm696, %v1051, %v1055
      %v1058 = vshrl.u32 %v564, 16
      %v1060 = vshll.u32 %v564, 16
      %v1062 = vrot.slane %v1060, 1
      %v1063 = vor.u32 %v1058, %v1062
      %v1065 = vshll.u32 %v690, 16
      %v1067 = vrot.slane %v1065, 1
      %v1068 = vsel %vm696, %v1063, %v1067
      %v1070 = vshrl.u32 %v565, 16
      %v1072 = vshll.u32 %v565, 16
      %v1074 = vrot.slane %v1072, 1
      %v1075 = vor.u32 %v1070, %v1074
      %v1077 = vshll.u32 %v691, 16
      %v1079 = vrot.slane %v1077, 1
      %v1080 = vsel %vm696, %v1075, %v1079
      %v1082 = vshrl.u32 %v566, 16
      %v1084 = vshll.u32 %v566, 16
      %v1086 = vrot.slane %v1084, 1
      %v1087 = vor.u32 %v1082, %v1086
      %v1089 = vshll.u32 %v692, 16
      %v1091 = vrot.slane %v1089, 1
      %v1092 = vsel %vm696, %v1087, %v1091
      %v1094 = vshrl.u32 %v567, 16
      %v1096 = vshll.u32 %v567, 16
      %v1098 = vrot.slane %v1096, 1
      %v1099 = vor.u32 %v1094, %v1098
      %v1101 = vshll.u32 %v693, 16
      %v1103 = vrot.slane %v1101, 1
      %v1104 = vsel %vm696, %v1099, %v1103
      %v1106 = vshrl.u32 %v568, 16
      %v1108 = vshll.u32 %v568, 16
      %v1110 = vrot.slane %v1108, 1
      %v1111 = vor.u32 %v1106, %v1110
      %v1113 = vshll.u32 %v694, 16
      %v1115 = vrot.slane %v1113, 1
      %v1116 = vsel %vm696, %v1111, %v1115
      %v1118 = vshrl.u32 %v569, 16
      %v1120 = vshll.u32 %v569, 16
      %v1122 = vrot.slane %v1120, 1
      %v1123 = vor.u32 %v1118, %v1122
      %v1125 = vshll.u32 %v695, 16
      %v1127 = vrot.slane %v1125, 1
      %v1128 = vsel %vm696, %v1123, %v1127
      %vm1165 = vcmask 1046528
      %v1166 = vrot.slane %v534, 1
      %v1167 = vrot.slane %v660, 1
      %v1168 = vsel %vm1165, %v1166, %v1167
      %v1169 = vrot.slane %v535, 1
      %v1170 = vrot.slane %v661, 1
      %v1171 = vsel %vm1165, %v1169, %v1170
      %v1172 = vrot.slane %v536, 1
      %v1173 = vrot.slane %v662, 1
      %v1174 = vsel %vm1165, %v1172, %v1173
      %v1175 = vrot.slane %v537, 1
      %v1176 = vrot.slane %v663, 1
      %v1177 = vsel %vm1165, %v1175, %v1176
      %v1178 = vrot.slane %v538, 1
      %v1179 = vrot.slane %v664, 1
      %v1180 = vsel %vm1165, %v1178, %v1179
      %v1181 = vrot.slane %v539, 1
      %v1182 = vrot.slane %v665, 1
      %v1183 = vsel %vm1165, %v1181, %v1182
      %v1184 = vrot.slane %v540, 1
      %v1185 = vrot.slane %v666, 1
      %v1186 = vsel %vm1165, %v1184, %v1185
      %v1187 = vrot.slane %v541, 1
      %v1188 = vrot.slane %v667, 1
      %v1189 = vsel %vm1165, %v1187, %v1188
      %v1190 = vrot.slane %v542, 1
      %v1191 = vrot.slane %v668, 1
      %v1192 = vsel %vm1165, %v1190, %v1191
      %v1193 = vrot.slane %v543, 1
      %v1194 = vrot.slane %v669, 1
      %v1195 = vsel %vm1165, %v1193, %v1194
      %v1196 = vrot.slane %v544, 1
      %v1197 = vrot.slane %v670, 1
      %v1198 = vsel %vm1165, %v1196, %v1197
      %v1199 = vrot.slane %v545, 1
      %v1200 = vrot.slane %v671, 1
      %v1201 = vsel %vm1165, %v1199, %v1200
      %v1202 = vrot.slane %v546, 1
      %v1203 = vrot.slane %v672, 1
      %v1204 = vsel %vm1165, %v1202, %v1203
      %v1205 = vrot.slane %v547, 1
      %v1206 = vrot.slane %v673, 1
      %v1207 = vsel %vm1165, %v1205, %v1206
      %v1208 = vrot.slane %v548, 1
      %v1209 = vrot.slane %v674, 1
      %v1210 = vsel %vm1165, %v1208, %v1209
      %v1211 = vrot.slane %v549, 1
      %v1212 = vrot.slane %v675, 1
      %v1213 = vsel %vm1165, %v1211, %v1212
      %v1214 = vrot.slane %v550, 1
      %v1215 = vrot.slane %v676, 1
      %v1216 = vsel %vm1165, %v1214, %v1215
      %v1217 = vrot.slane %v551, 1
      %v1218 = vrot.slane %v677, 1
      %v1219 = vsel %vm1165, %v1217, %v1218
      %v1220 = vrot.slane %v552, 1
      %v1221 = vrot.slane %v678, 1
      %v1222 = vsel %vm1165, %v1220, %v1221
      %v1223 = vrot.slane %v553, 1
      %v1224 = vrot.slane %v679, 1
      %v1225 = vsel %vm1165, %v1223, %v1224
      %v1226 = vrot.slane %v554, 1
      %v1227 = vrot.slane %v680, 1
      %v1228 = vsel %vm1165, %v1226, %v1227
      %v1229 = vrot.slane %v555, 1
      %v1230 = vrot.slane %v681, 1
      %v1231 = vsel %vm1165, %v1229, %v1230
      %v1232 = vrot.slane %v556, 1
      %v1233 = vrot.slane %v682, 1
      %v1234 = vsel %vm1165, %v1232, %v1233
      %v1235 = vrot.slane %v557, 1
      %v1236 = vrot.slane %v683, 1
      %v1237 = vsel %vm1165, %v1235, %v1236
      %v1238 = vrot.slane %v558, 1
      %v1239 = vrot.slane %v684, 1
      %v1240 = vsel %vm1165, %v1238, %v1239
      %v1241 = vrot.slane %v559, 1
      %v1242 = vrot.slane %v685, 1
      %v1243 = vsel %vm1165, %v1241, %v1242
      %v1244 = vrot.slane %v560, 1
      %v1245 = vrot.slane %v686, 1
      %v1246 = vsel %vm1165, %v1244, %v1245
      %v1247 = vrot.slane %v561, 1
      %v1248 = vrot.slane %v687, 1
      %v1249 = vsel %vm1165, %v1247, %v1248
      %v1250 = vrot.slane %v562, 1
      %v1251 = vrot.slane %v688, 1
      %v1252 = vsel %vm1165, %v1250, %v1251
      %v1253 = vrot.slane %v563, 1
      %v1254 = vrot.slane %v689, 1
      %v1255 = vsel %vm1165, %v1253, %v1254
      %v1256 = vrot.slane %v564, 1
      %v1257 = vrot.slane %v690, 1
      %v1258 = vsel %vm1165, %v1256, %v1257
      %v1259 = vrot.slane %v565, 1
      %v1260 = vrot.slane %v691, 1
      %v1261 = vsel %vm1165, %v1259, %v1260
      %v1262 = vrot.slane %v566, 1
      %v1263 = vrot.slane %v692, 1
      %v1264 = vsel %vm1165, %v1262, %v1263
      %v1265 = vrot.slane %v567, 1
      %v1266 = vrot.slane %v693, 1
      %v1267 = vsel %vm1165, %v1265, %v1266
      %v1268 = vrot.slane %v568, 1
      %v1269 = vrot.slane %v694, 1
      %v1270 = vsel %vm1165, %v1268, %v1269
      %v1271 = vrot.slane %v569, 1
      %v1272 = vrot.slane %v695, 1
      %v1273 = vsel %vm1165, %v1271, %v1272
      %v1310 = vld [vmem:[%s2] sm:$0xf]
      %v1311 = vld [vmem:[%s2 + $0x4] sm:$0xf]
      %v1312 = vld [vmem:[%s2 + $0x8] sm:$0xf]
      %v1313 = vld [vmem:[%s2 + $0xc] sm:$0xf]
      %v1314 = vld [vmem:[%s2 + $0x10] sm:$0xf]
      %v1315 = vld [vmem:[%s2 + $0x14] sm:$0xf]
      %v1316 = vld [vmem:[%s2 + $0x18] sm:$0xf]
      %v1317 = vld [vmem:[%s2 + $0x1c] sm:$0xf]
      %v1318 = vld [vmem:[%s2 + $0x20] sm:$0xf]
      %v1319 = vld [vmem:[%s2 + $0x24] sm:$0xf]
      %v1320 = vld [vmem:[%s2 + $0x28] sm:$0xf]
      %v1321 = vld [vmem:[%s2 + $0x2c] sm:$0xf]
      %v1322 = vld [vmem:[%s2 + $0x30] sm:$0xf]
      %v1323 = vld [vmem:[%s2 + $0x34] sm:$0xf]
      %v1324 = vld [vmem:[%s2 + $0x38] sm:$0xf]
      %v1325 = vld [vmem:[%s2 + $0x3c] sm:$0xf]
      %v1326 = vld [vmem:[%s2 + $0x40] sm:$0xf]
      %v1327 = vld [vmem:[%s2 + $0x44] sm:$0xf]
      %v1328 = vld [vmem:[%s2 + $0x48] sm:$0xf]
      %v1329 = vld [vmem:[%s2 + $0x4c] sm:$0xf]
      %v1330 = vld [vmem:[%s2 + $0x50] sm:$0xf]
      %v1331 = vld [vmem:[%s2 + $0x54] sm:$0xf]
      %v1332 = vld [vmem:[%s2 + $0x58] sm:$0xf]
      %v1333 = vld [vmem:[%s2 + $0x5c] sm:$0xf]
      %v1334 = vld [vmem:[%s2 + $0x60] sm:$0xf]
      %v1335 = vld [vmem:[%s2 + $0x64] sm:$0xf]
      %v1336 = vld [vmem:[%s2 + $0x68] sm:$0xf]
      %v1337 = vld [vmem:[%s2 + $0x6c] sm:$0xf]
      %v1338 = vld [vmem:[%s2 + $0x70] sm:$0xf]
      %v1339 = vld [vmem:[%s2 + $0x74] sm:$0xf]
      %v1340 = vld [vmem:[%s2 + $0x78] sm:$0xf]
      %v1341 = vld [vmem:[%s2 + $0x7c] sm:$0xf]
      %v1342 = vld [vmem:[%s2 + $0x80] sm:$0xf]
      %v1343 = vld [vmem:[%s2 + $0x84] sm:$0xf]
      %v1344 = vld [vmem:[%s2 + $0x88] sm:$0xf]
      %v1345 = vld [vmem:[%s2 + $0x8c] sm:$0xf]
      %v1346 = vld [vmem:[%s2 + $0x90] sm:$0xf]
      %v1347 = vld [vmem:[%s2 + $0x94] sm:$0xf]
      %v1348 = vld [vmem:[%s2 + $0x98] sm:$0xf]
      %v1349 = vld [vmem:[%s2 + $0x9c] sm:$0xf]
      %v1350 = vld [vmem:[%s2 + $0xa0] sm:$0xf]
      %v1351 = vld [vmem:[%s2 + $0xa4] sm:$0xf]
      %v1352 = vld [vmem:[%s2 + $0xa8] sm:$0xf]
      %v1353 = vld [vmem:[%s2 + $0xac] sm:$0xf]
      %v1354 = vld [vmem:[%s2 + $0xb0] sm:$0xf]
      %v1355 = vld [vmem:[%s2 + $0xb4] sm:$0xf]
      %v1356 = vld [vmem:[%s2 + $0xb8] sm:$0xf]
      %v1357 = vld [vmem:[%s2 + $0xbc] sm:$0xf]
      %v1358 = vld [vmem:[%s2 + $0xc0] sm:$0xf]
      %v1359 = vld [vmem:[%s2 + $0xc4] sm:$0xf]
      %v1360 = vld [vmem:[%s2 + $0xc8] sm:$0xf]
      %v1361 = vld [vmem:[%s2 + $0xcc] sm:$0xf]
      %v1362 = vld [vmem:[%s2 + $0xd0] sm:$0xf]
      %v1363 = vld [vmem:[%s2 + $0xd4] sm:$0xf]
      %v1364 = vld [vmem:[%s2 + $0xd8] sm:$0xf]
      %v1365 = vld [vmem:[%s2 + $0xdc] sm:$0xf]
      %v1366 = vld [vmem:[%s2 + $0xe0] sm:$0xf]
      %v1367 = vld [vmem:[%s2 + $0xe4] sm:$0xf]
      %v1368 = vld [vmem:[%s2 + $0xe8] sm:$0xf]
      %v1369 = vld [vmem:[%s2 + $0xec] sm:$0xf]
      %v1370 = vld [vmem:[%s2 + $0xf0] sm:$0xf]
      %v1371 = vld [vmem:[%s2 + $0xf4] sm:$0xf]
      %v1372 = vld [vmem:[%s2 + $0xf8] sm:$0xf]
      %v1373 = vld [vmem:[%s2 + $0xfc] sm:$0xf]
      %v1374 = vld [vmem:[%s2 + $0x100] sm:$0xf]
      %v1375 = vld [vmem:[%s2 + $0x104] sm:$0xf]
      %v1376 = vld [vmem:[%s2 + $0x108] sm:$0xf]
      %v1377 = vld [vmem:[%s2 + $0x10c] sm:$0xf]
      %v1378 = vld [vmem:[%s2 + $0x110] sm:$0xf]
      %v1379 = vld [vmem:[%s2 + $0x114] sm:$0xf]
      %v1380 = vld [vmem:[%s2 + $0x118] sm:$0xf]
      %v1381 = vld [vmem:[%s2 + $0x11c] sm:$0xf]
      %v1382 = vld [vmem:[%s2 + $0x120] sm:$0xf]
      %v1383 = vld [vmem:[%s2 + $0x124] sm:$0xf]
      %v1384 = vld [vmem:[%s2 + $0x128] sm:$0xf]
      %v1385 = vld [vmem:[%s2 + $0x12c] sm:$0xf]
      %v1386 = vld [vmem:[%s2 + $0x130] sm:$0xf]
      %v1387 = vld [vmem:[%s2 + $0x134] sm:$0xf]
      %v1388 = vld [vmem:[%s2 + $0x138] sm:$0xf]
      %v1389 = vld [vmem:[%s2 + $0x13c] sm:$0xf]
      %v1390 = vld [vmem:[%s2 + $0x140] sm:$0xf]
      %v1391 = vld [vmem:[%s2 + $0x144] sm:$0xf]
      %v1392 = vld [vmem:[%s2 + $0x148] sm:$0xf]
      %v1393 = vld [vmem:[%s2 + $0x14c] sm:$0xf]
      %v1394 = vld [vmem:[%s2 + $0x150] sm:$0xf]
      %v1395 = vld [vmem:[%s2 + $0x154] sm:$0xf]
      %v1396 = vld [vmem:[%s2 + $0x158] sm:$0xf]
      %v1397 = vld [vmem:[%s2 + $0x15c] sm:$0xf]
      %v1398 = vld [vmem:[%s2 + $0x160] sm:$0xf]
      %v1399 = vld [vmem:[%s2 + $0x164] sm:$0xf]
      %v1400 = vld [vmem:[%s2 + $0x168] sm:$0xf]
      %v1401 = vld [vmem:[%s2 + $0x16c] sm:$0xf]
      %v1402 = vld [vmem:[%s2 + $0x170] sm:$0xf]
      %v1403 = vld [vmem:[%s2 + $0x174] sm:$0xf]
      %v1404 = vld [vmem:[%s2 + $0x178] sm:$0xf]
      %v1405 = vld [vmem:[%s2 + $0x17c] sm:$0xf]
      %s1406 = scalar_lea.vmem %s2, 384
      %v1407 = vld [vmem:[%s1406] sm:$0xf]
      %v1408 = vld [vmem:[%s1406 + $0x4] sm:$0xf]
      %v1409 = vld [vmem:[%s1406 + $0x8] sm:$0xf]
      %v1410 = vld [vmem:[%s1406 + $0xc] sm:$0xf]
      %v1411 = vld [vmem:[%s1406 + $0x10] sm:$0xf]
      %v1412 = vld [vmem:[%s1406 + $0x14] sm:$0xf]
      %v1413 = vld [vmem:[%s1406 + $0x18] sm:$0xf]
      %v1414 = vld [vmem:[%s1406 + $0x1c] sm:$0xf]
      %v1415 = vld [vmem:[%s1406 + $0x20] sm:$0xf]
      %v1416 = vld [vmem:[%s1406 + $0x24] sm:$0xf]
      %v1417 = vld [vmem:[%s1406 + $0x28] sm:$0xf]
      %v1418 = vld [vmem:[%s1406 + $0x2c] sm:$0xf]
      %v1419 = vld [vmem:[%s1406 + $0x30] sm:$0xf]
      %v1420 = vld [vmem:[%s1406 + $0x34] sm:$0xf]
      %v1421 = vld [vmem:[%s1406 + $0x38] sm:$0xf]
      %v1422 = vld [vmem:[%s1406 + $0x3c] sm:$0xf]
      %v1423 = vld [vmem:[%s1406 + $0x40] sm:$0xf]
      %v1424 = vld [vmem:[%s1406 + $0x44] sm:$0xf]
      %v1425 = vld [vmem:[%s1406 + $0x48] sm:$0xf]
      %v1426 = vld [vmem:[%s1406 + $0x4c] sm:$0xf]
      %v1427 = vld [vmem:[%s1406 + $0x50] sm:$0xf]
      %v1428 = vld [vmem:[%s1406 + $0x54] sm:$0xf]
      %v1429 = vld [vmem:[%s1406 + $0x58] sm:$0xf]
      %v1430 = vld [vmem:[%s1406 + $0x5c] sm:$0xf]
      %v1431 = vld [vmem:[%s1406 + $0x60] sm:$0xf]
      %v1432 = vld [vmem:[%s1406 + $0x64] sm:$0xf]
      %v1433 = vld [vmem:[%s1406 + $0x68] sm:$0xf]
      %v1434 = vld [vmem:[%s1406 + $0x6c] sm:$0xf]
      %v1435 = vld [vmem:[%s1406 + $0x70] sm:$0xf]
      %v1436 = vld [vmem:[%s1406 + $0x74] sm:$0xf]
      %v1437 = vld [vmem:[%s1406 + $0x78] sm:$0xf]
      %v1438 = vld [vmem:[%s1406 + $0x7c] sm:$0xf]
      %v1439 = vld [vmem:[%s1406 + $0x80] sm:$0xf]
      %v1440 = vld [vmem:[%s1406 + $0x84] sm:$0xf]
      %v1441 = vld [vmem:[%s1406 + $0x88] sm:$0xf]
      %v1442 = vld [vmem:[%s1406 + $0x8c] sm:$0xf]
      %v1443 = vld [vmem:[%s1406 + $0x90] sm:$0xf]
      %v1444 = vld [vmem:[%s1406 + $0x94] sm:$0xf]
      %v1445 = vld [vmem:[%s1406 + $0x98] sm:$0xf]
      %v1446 = vld [vmem:[%s1406 + $0x9c] sm:$0xf]
      %v1447 = vld [vmem:[%s1406 + $0xa0] sm:$0xf]
      %v1448 = vld [vmem:[%s1406 + $0xa4] sm:$0xf]
      %v1449 = vld [vmem:[%s1406 + $0xa8] sm:$0xf]
      %v1450 = vld [vmem:[%s1406 + $0xac] sm:$0xf]
      %v1451 = vld [vmem:[%s1406 + $0xb0] sm:$0xf]
      %v1452 = vld [vmem:[%s1406 + $0xb4] sm:$0xf]
      %v1453 = vld [vmem:[%s1406 + $0xb8] sm:$0xf]
      %v1454 = vld [vmem:[%s1406 + $0xbc] sm:$0xf]
      %v1455 = vld [vmem:[%s1406 + $0xc0] sm:$0xf]
      %v1456 = vld [vmem:[%s1406 + $0xc4] sm:$0xf]
      %v1457 = vld [vmem:[%s1406 + $0xc8] sm:$0xf]
      %v1458 = vld [vmem:[%s1406 + $0xcc] sm:$0xf]
      %v1459 = vld [vmem:[%s1406 + $0xd0] sm:$0xf]
      %v1460 = vld [vmem:[%s1406 + $0xd4] sm:$0xf]
      %v1461 = vld [vmem:[%s1406 + $0xd8] sm:$0xf]
      %v1462 = vld [vmem:[%s1406 + $0xdc] sm:$0xf]
      %v1463 = vld [vmem:[%s1406 + $0xe0] sm:$0xf]
      %v1464 = vld [vmem:[%s1406 + $0xe4] sm:$0xf]
      %v1465 = vld [vmem:[%s1406 + $0xe8] sm:$0xf]
      %v1466 = vld [vmem:[%s1406 + $0xec] sm:$0xf]
      %v1467 = vld [vmem:[%s1406 + $0xf0] sm:$0xf]
      %v1468 = vld [vmem:[%s1406 + $0xf4] sm:$0xf]
      %v1469 = vld [vmem:[%s1406 + $0xf8] sm:$0xf]
      %v1470 = vld [vmem:[%s1406 + $0xfc] sm:$0xf]
      %v1471 = vld [vmem:[%s1406 + $0x100] sm:$0xf]
      %v1472 = vld [vmem:[%s1406 + $0x104] sm:$0xf]
      %v1473 = vld [vmem:[%s1406 + $0x108] sm:$0xf]
      %v1474 = vld [vmem:[%s1406 + $0x10c] sm:$0xf]
      %v1475 = vld [vmem:[%s1406 + $0x110] sm:$0xf]
      %v1476 = vld [vmem:[%s1406 + $0x114] sm:$0xf]
      %v1477 = vld [vmem:[%s1406 + $0x118] sm:$0xf]
      %v1478 = vld [vmem:[%s1406 + $0x11c] sm:$0xf]
      %v1479 = vld [vmem:[%s1406 + $0x120] sm:$0xf]
      %v1480 = vld [vmem:[%s1406 + $0x124] sm:$0xf]
      %v1481 = vld [vmem:[%s1406 + $0x128] sm:$0xf]
      %v1482 = vld [vmem:[%s1406 + $0x12c] sm:$0xf]
      %v1483 = vld [vmem:[%s1406 + $0x130] sm:$0xf]
      %v1484 = vld [vmem:[%s1406 + $0x134] sm:$0xf]
      %v1485 = vld [vmem:[%s1406 + $0x138] sm:$0xf]
      %v1486 = vld [vmem:[%s1406 + $0x13c] sm:$0xf]
      %v1487 = vld [vmem:[%s1406 + $0x140] sm:$0xf]
      %v1488 = vld [vmem:[%s1406 + $0x144] sm:$0xf]
      %v1489 = vld [vmem:[%s1406 + $0x148] sm:$0xf]
      %v1490 = vld [vmem:[%s1406 + $0x14c] sm:$0xf]
      %v1491 = vld [vmem:[%s1406 + $0x150] sm:$0xf]
      %v1492 = vld [vmem:[%s1406 + $0x154] sm:$0xf]
      %v1493 = vld [vmem:[%s1406 + $0x158] sm:$0xf]
      %v1494 = vld [vmem:[%s1406 + $0x15c] sm:$0xf]
      %v1495 = vld [vmem:[%s1406 + $0x160] sm:$0xf]
      %v1496 = vld [vmem:[%s1406 + $0x164] sm:$0xf]
      %v1497 = vld [vmem:[%s1406 + $0x168] sm:$0xf]
      %v1498 = vld [vmem:[%s1406 + $0x16c] sm:$0xf]
      %v1499 = vld [vmem:[%s1406 + $0x170] sm:$0xf]
      %v1500 = vld [vmem:[%s1406 + $0x174] sm:$0xf]
      %v1501 = vld [vmem:[%s1406 + $0x178] sm:$0xf]
      %v1502 = vld [vmem:[%s1406 + $0x17c] sm:$0xf]
      %v1599 = vunpack.c.l.b16 %v1407
      %v1600 = vunpack.c.l.b16 %v1408
      %v1601 = vunpack.c.l.b16 %v1409
      %v1602 = vunpack.c.l.b16 %v1410
      %v1603 = vunpack.c.l.b16 %v1411
      %v1604 = vunpack.c.l.b16 %v1412
      %v1605 = vunpack.c.l.b16 %v1413
      %v1606 = vunpack.c.l.b16 %v1414
      %v1607 = vunpack.c.l.b16 %v1415
      %v1608 = vunpack.c.l.b16 %v1416
      %v1609 = vunpack.c.l.b16 %v1417
      %v1610 = vunpack.c.l.b16 %v1418
      %v1611 = vunpack.c.l.b16 %v1419
      %v1612 = vunpack.c.l.b16 %v1420
      %v1613 = vunpack.c.l.b16 %v1421
      %v1614 = vunpack.c.l.b16 %v1422
      %v1615 = vunpack.c.l.b16 %v1423
      %v1616 = vunpack.c.l.b16 %v1424
      %v1617 = vunpack.c.l.b16 %v1425
      %v1618 = vunpack.c.l.b16 %v1426
      %v1619 = vunpack.c.l.b16 %v1427
      %v1620 = vunpack.c.l.b16 %v1428
      %v1621 = vunpack.c.l.b16 %v1429
      %v1622 = vunpack.c.l.b16 %v1430
      %v1623 = vunpack.c.l.b16 %v1431
      %v1624 = vunpack.c.l.b16 %v1432
      %v1625 = vunpack.c.l.b16 %v1433
      %v1626 = vunpack.c.l.b16 %v1434
      %v1627 = vunpack.c.l.b16 %v1435
      %v1628 = vunpack.c.l.b16 %v1436
      %v1629 = vunpack.c.l.b16 %v1437
      %v1630 = vunpack.c.l.b16 %v1438
      %v1631 = vunpack.c.l.b16 %v1439
      %v1632 = vunpack.c.l.b16 %v1440
      %v1633 = vunpack.c.l.b16 %v1441
      %v1634 = vunpack.c.l.b16 %v1442
      %v1635 = vunpack.c.l.b16 %v1443
      %v1636 = vunpack.c.l.b16 %v1444
      %v1637 = vunpack.c.l.b16 %v1445
      %v1638 = vunpack.c.l.b16 %v1446
      %v1639 = vunpack.c.l.b16 %v1447
      %v1640 = vunpack.c.l.b16 %v1448
      %v1641 = vunpack.c.l.b16 %v1449
      %v1642 = vunpack.c.l.b16 %v1450
      %v1643 = vunpack.c.l.b16 %v1451
      %v1644 = vunpack.c.l.b16 %v1452
      %v1645 = vunpack.c.l.b16 %v1453
      %v1646 = vunpack.c.l.b16 %v1454
      %v1647 = vunpack.c.l.b16 %v1455
      %v1648 = vunpack.c.l.b16 %v1456
      %v1649 = vunpack.c.l.b16 %v1457
      %v1650 = vunpack.c.l.b16 %v1458
      %v1651 = vunpack.c.l.b16 %v1459
      %v1652 = vunpack.c.l.b16 %v1460
      %v1653 = vunpack.c.l.b16 %v1461
      %v1654 = vunpack.c.l.b16 %v1462
      %v1655 = vunpack.c.l.b16 %v1463
      %v1656 = vunpack.c.l.b16 %v1464
      %v1657 = vunpack.c.l.b16 %v1465
      %v1658 = vunpack.c.l.b16 %v1466
      %v1659 = vunpack.c.l.b16 %v1467
      %v1660 = vunpack.c.l.b16 %v1468
      %v1661 = vunpack.c.l.b16 %v1469
      %v1662 = vunpack.c.l.b16 %v1470
      %v1663 = vunpack.c.l.b16 %v1471
      %v1664 = vunpack.c.l.b16 %v1472
      %v1665 = vunpack.c.l.b16 %v1473
      %v1666 = vunpack.c.l.b16 %v1474
      %v1667 = vunpack.c.l.b16 %v1475
      %v1668 = vunpack.c.l.b16 %v1476
      %v1669 = vunpack.c.l.b16 %v1477
      %v1670 = vunpack.c.l.b16 %v1478
      %v1671 = vunpack.c.l.b16 %v1479
      %v1672 = vunpack.c.l.b16 %v1480
      %v1673 = vunpack.c.l.b16 %v1481
      %v1674 = vunpack.c.l.b16 %v1482
      %v1675 = vunpack.c.l.b16 %v1483
      %v1676 = vunpack.c.l.b16 %v1484
      %v1677 = vunpack.c.l.b16 %v1485
      %v1678 = vunpack.c.l.b16 %v1486
      %v1679 = vunpack.c.l.b16 %v1487
      %v1680 = vunpack.c.l.b16 %v1488
      %v1681 = vunpack.c.l.b16 %v1489
      %v1682 = vunpack.c.l.b16 %v1490
      %v1683 = vunpack.c.l.b16 %v1491
      %v1684 = vunpack.c.l.b16 %v1492
      %v1685 = vunpack.c.l.b16 %v1493
      %v1686 = vunpack.c.l.b16 %v1494
      %v1687 = vunpack.c.l.b16 %v1495
      %v1688 = vunpack.c.l.b16 %v1496
      %v1689 = vunpack.c.l.b16 %v1497
      %v1690 = vunpack.c.l.b16 %v1498
      %v1691 = vunpack.c.l.b16 %v1499
      %v1692 = vunpack.c.l.b16 %v1500
      %v1693 = vunpack.c.l.b16 %v1501
      %v1694 = vunpack.c.l.b16 %v1502
      %v1695 = vpack.c.b16 %v1600, %v1599
      %v1696 = vpack.c.b16 %v1602, %v1601
      %v1697 = vpack.c.b16 %v1604, %v1603
      %v1698 = vpack.c.b16 %v1606, %v1605
      %v1699 = vpack.c.b16 %v1608, %v1607
      %v1700 = vpack.c.b16 %v1610, %v1609
      %v1701 = vpack.c.b16 %v1612, %v1611
      %v1702 = vpack.c.b16 %v1614, %v1613
      %v1703 = vpack.c.b16 %v1616, %v1615
      %v1704 = vpack.c.b16 %v1618, %v1617
      %v1705 = vpack.c.b16 %v1620, %v1619
      %v1706 = vpack.c.b16 %v1622, %v1621
      %v1707 = vpack.c.b16 %v1624, %v1623
      %v1708 = vpack.c.b16 %v1626, %v1625
      %v1709 = vpack.c.b16 %v1628, %v1627
      %v1710 = vpack.c.b16 %v1630, %v1629
      %v1711 = vpack.c.b16 %v1632, %v1631
      %v1712 = vpack.c.b16 %v1634, %v1633
      %v1713 = vpack.c.b16 %v1636, %v1635
      %v1714 = vpack.c.b16 %v1638, %v1637
      %v1715 = vpack.c.b16 %v1640, %v1639
      %v1716 = vpack.c.b16 %v1642, %v1641
      %v1717 = vpack.c.b16 %v1644, %v1643
      %v1718 = vpack.c.b16 %v1646, %v1645
      %v1719 = vpack.c.b16 %v1648, %v1647
      %v1720 = vpack.c.b16 %v1650, %v1649
      %v1721 = vpack.c.b16 %v1652, %v1651
      %v1722 = vpack.c.b16 %v1654, %v1653
      %v1723 = vpack.c.b16 %v1656, %v1655
      %v1724 = vpack.c.b16 %v1658, %v1657
      %v1725 = vpack.c.b16 %v1660, %v1659
      %v1726 = vpack.c.b16 %v1662, %v1661
      %v1727 = vpack.c.b16 %v1664, %v1663
      %v1728 = vpack.c.b16 %v1666, %v1665
      %v1729 = vpack.c.b16 %v1668, %v1667
      %v1730 = vpack.c.b16 %v1670, %v1669
      %v1731 = vpack.c.b16 %v1672, %v1671
      %v1732 = vpack.c.b16 %v1674, %v1673
      %v1733 = vpack.c.b16 %v1676, %v1675
      %v1734 = vpack.c.b16 %v1678, %v1677
      %v1735 = vpack.c.b16 %v1680, %v1679
      %v1736 = vpack.c.b16 %v1682, %v1681
      %v1737 = vpack.c.b16 %v1684, %v1683
      %v1738 = vpack.c.b16 %v1686, %v1685
      %v1739 = vpack.c.b16 %v1688, %v1687
      %v1740 = vpack.c.b16 %v1690, %v1689
      %v1741 = vpack.c.b16 %v1692, %v1691
      %v1742 = vpack.c.b16 %v1694, %v1693
      %1791 = vmatprep.subr.bf16.mxu0 0
      %1792 = vmatpush1.bf16.msra.mxu0 %v1695
      %1793 = vmatprep.subr.bf16.mxu0 0
      %1794 = vmatpush1.bf16.msra.mxu0 %v1696
      %1795 = vmatprep.subr.bf16.mxu0 0
      %1796 = vmatpush1.bf16.msra.mxu0 %v1697
      %1797 = vmatprep.subr.bf16.mxu0 0
      %1798 = vmatpush1.bf16.msra.mxu0 %v1698
      %1799 = vmatprep.subr.bf16.mxu0 0
      %1800 = vmatpush1.bf16.msra.mxu0 %v1699
      %1801 = vmatprep.subr.bf16.mxu0 0
      %1802 = vmatpush1.bf16.msra.mxu0 %v1700
      %1803 = vmatprep.subr.bf16.mxu0 0
      %1804 = vmatpush1.bf16.msra.mxu0 %v1701
      %1805 = vmatprep.subr.bf16.mxu0 0
      %1806 = vmatpush1.bf16.msra.mxu0 %v1702
      %1807 = vmatprep.subr.bf16.mxu0 0
      %1808 = vmatpush1.bf16.msra.mxu0 %v1703
      %1809 = vmatprep.subr.bf16.mxu0 0
      %1810 = vmatpush1.bf16.msra.mxu0 %v1704
      %1811 = vmatprep.subr.bf16.mxu0 0
      %1812 = vmatpush1.bf16.msra.mxu0 %v1705
      %1813 = vmatprep.subr.bf16.mxu0 0
      %1814 = vmatpush1.bf16.msra.mxu0 %v1706
      %1815 = vmatprep.subr.bf16.mxu0 0
      %1816 = vmatpush1.bf16.msra.mxu0 %v1707
      %1817 = vmatprep.subr.bf16.mxu0 0
      %1818 = vmatpush1.bf16.msra.mxu0 %v1708
      %1819 = vmatprep.subr.bf16.mxu0 0
      %1820 = vmatpush1.bf16.msra.mxu0 %v1709
      %1821 = vmatprep.subr.bf16.mxu0 0
      %1822 = vmatpush1.bf16.msra.mxu0 %v1710
      %1823 = vmatprep.mubr.bf16.mxu0 %v537
      %1824 = vmatmul.mubr.bf16.gmra.mrb[0].mxu0 %v536
      %v1825 = vpop.f32.mrb[0].mxu0
      %v1826 = vadd.f32 0.0, %v1825
      %v1827 = vpop.f32.mrb[0].mxu0
      %v1828 = vpop.f32.mrb[0].mxu0
      %v1829 = vadd.f32 0.0, %v1828
      %v1830 = vpop.f32.mrb[0].mxu0
      %1831 = vmatprep.mubr.bf16.mxu0 %v539
      %1832 = vmatmul.mubr.bf16.gmra.mrb[0].mxu0 %v538
      %v1833 = vpop.f32.mrb[0].mxu0
      %v1834 = vadd.f32 0.0, %v1833
      %v1835 = vpop.f32.mrb[0].mxu0
      %v1836 = vpop.f32.mrb[0].mxu0
      %v1837 = vadd.f32 0.0, %v1836
      %v1838 = vpop.f32.mrb[0].mxu0
      %1839 = vmatprep.mubr.bf16.mxu0 %v541
      %1840 = vmatmul.mubr.bf16.gmra.mrb[0].mxu0 %v540
      %v1841 = vpop.f32.mrb[0].mxu0
      %v1842 = vadd.f32 0.0, %v1841
      %v1843 = vpop.f32.mrb[0].mxu0
      %v1844 = vpop.f32.mrb[0].mxu0
      %v1845 = vadd.f32 0.0, %v1844
      %v1846 = vpop.f32.mrb[0].mxu0
      %1847 = vmatprep.mubr.bf16.mxu0 %v543
      %1848 = vmatmul.mubr.bf16.gmra.mrb[0].mxu0 %v542
      %v1849 = vpop.f32.mrb[0].mxu0
      %v1850 = vadd.f32 0.0, %v1849
      %v1851 = vpop.f32.mrb[0].mxu0
      %v1852 = vpop.f32.mrb[0].mxu0
      %v1853 = vadd.f32 0.0, %v1852
      %v1854 = vpop.f32.mrb[0].mxu0
      %1855 = vmatprep.mubr.bf16.mxu0 %v545
      %1856 = vmatmul.mubr.bf16.gmra.mrb[0].mxu0 %v544
      %v1857 = vpop.f32.mrb[0].mxu0
      %v1858 = vadd.f32 0.0, %v1857
      %v1859 = vpop.f32.mrb[0].mxu0
      %v1860 = vpop.f32.mrb[0].mxu0
      %v1861 = vadd.f32 0.0, %v1860
      %v1862 = vpop.f32.mrb[0].mxu0
      %1863 = vmatprep.mubr.bf16.mxu0 %v547
      %1864 = vmatmul.mubr.bf16.gmra.mrb[0].mxu0 %v546
      %v1865 = vpop.f32.mrb[0].mxu0
      %v1866 = vadd.f32 0.0, %v1865
      %v1867 = vpop.f32.mrb[0].mxu0
      %v1868 = vpop.f32.mrb[0].mxu0
      %v1869 = vadd.f32 0.0, %v1868
      %v1870 = vpop.f32.mrb[0].mxu0
      %1871 = vmatprep.mubr.bf16.mxu0 %v549
      %1872 = vmatmul.mubr.bf16.gmra.mrb[0].mxu0 %v548
      %v1873 = vpop.f32.mrb[0].mxu0
      %v1874 = vadd.f32 0.0, %v1873
      %v1875 = vpop.f32.mrb[0].mxu0
      %v1876 = vpop.f32.mrb[0].mxu0
      %v1877 = vadd.f32 0.0, %v1876
      %v1878 = vpop.f32.mrb[0].mxu0
      %1879 = vmatprep.mubr.bf16.mxu0 %v551
      %1880 = vmatmul.mubr.bf16.gmra.mrb[0].mxu0 %v550
      %v1881 = vpop.f32.mrb[0].mxu0
      %v1882 = vadd.f32 0.0, %v1881
      %v1883 = vpop.f32.mrb[0].mxu0
      %v1884 = vpop.f32.mrb[0].mxu0
      %v1885 = vadd.f32 0.0, %v1884
      %v1886 = vpop.f32.mrb[0].mxu0
      %1887 = vmatprep.mubr.bf16.mxu0 %v553
      %1888 = vmatmul.mubr.bf16.gmra.mrb[0].mxu0 %v552
      %v1889 = vpop.f32.mrb[0].mxu0
      %v1890 = vadd.f32 0.0, %v1889
      %v1891 = vpop.f32.mrb[0].mxu0
      %v1892 = vpop.f32.mrb[0].mxu0
      %v1893 = vadd.f32 0.0, %v1892
      %v1894 = vpop.f32.mrb[0].mxu0
      %1895 = vmatprep.mubr.bf16.mxu0 %v555
      %1896 = vmatmul.mubr.bf16.gmra.mrb[0].mxu0 %v554
      %v1897 = vpop.f32.mrb[0].mxu0
      %v1898 = vadd.f32 0.0, %v1897
      %v1899 = vpop.f32.mrb[0].mxu0
      %v1900 = vpop.f32.mrb[0].mxu0
      %v1901 = vadd.f32 0.0, %v1900
      %v1902 = vpop.f32.mrb[0].mxu0
      %1903 = vmatprep.mubr.bf16.mxu0 %v557
      %1904 = vmatmul.mubr.bf16.gmra.mrb[0].mxu0 %v556
      %v1905 = vpop.f32.mrb[0].mxu0
      %v1906 = vadd.f32 0.0, %v1905
      %v1907 = vpop.f32.mrb[0].mxu0
      %v1908 = vpop.f32.mrb[0].mxu0
      %v1909 = vadd.f32 0.0, %v1908
      %v1910 = vpop.f32.mrb[0].mxu0
      %1911 = vmatprep.mubr.bf16.mxu0 %v559
      %1912 = vmatmul.mubr.bf16.gmra.mrb[0].mxu0 %v558
      %v1913 = vpop.f32.mrb[0].mxu0
      %v1914 = vadd.f32 0.0, %v1913
      %v1915 = vpop.f32.mrb[0].mxu0
      %v1916 = vpop.f32.mrb[0].mxu0
      %v1917 = vadd.f32 0.0, %v1916
      %v1918 = vpop.f32.mrb[0].mxu0
      %1919 = vmatprep.mubr.bf16.mxu0 %v561
      %1920 = vmatmul.mubr.bf16.gmra.mrb[0].mxu0 %v560
      %v1921 = vpop.f32.mrb[0].mxu0
      %v1922 = vadd.f32 0.0, %v1921
      %v1923 = vpop.f32.mrb[0].mxu0
      %v1924 = vpop.f32.mrb[0].mxu0
      %v1925 = vadd.f32 0.0, %v1924
      %v1926 = vpop.f32.mrb[0].mxu0
      %1927 = vmatprep.mubr.bf16.mxu0 %v563
      %1928 = vmatmul.mubr.bf16.gmra.mrb[0].mxu0 %v562
      %v1929 = vpop.f32.mrb[0].mxu0
      %v1930 = vadd.f32 0.0, %v1929
      %v1931 = vpop.f32.mrb[0].mxu0
      %v1932 = vpop.f32.mrb[0].mxu0
      %v1933 = vadd.f32 0.0, %v1932
      %v1934 = vpop.f32.mrb[0].mxu0
      %1935 = vmatprep.mubr.bf16.mxu0 %v565
      %1936 = vmatmul.mubr.bf16.gmra.mrb[0].mxu0 %v564
      %v1937 = vpop.f32.mrb[0].mxu0
      %v1938 = vadd.f32 0.0, %v1937
      %v1939 = vpop.f32.mrb[0].mxu0
      %v1940 = vpop.f32.mrb[0].mxu0
      %v1941 = vadd.f32 0.0, %v1940
      %v1942 = vpop.f32.mrb[0].mxu0
      %1943 = vmatprep.mubr.bf16.mxu0 %v567
      %1944 = vmatmul.mubr.bf16.gmra.mrb[0].mxu0 %v566
      %v1945 = vpop.f32.mrb[0].mxu0
      %v1946 = vadd.f32 0.0, %v1945
      %v1947 = vpop.f32.mrb[0].mxu0
      %v1948 = vpop.f32.mrb[0].mxu0
      %v1949 = vadd.f32 0.0, %v1948
      %v1950 = vpop.f32.mrb[0].mxu0
      %1951 = vdwg.mxu0
      %1952 = vmatprep.subr.bf16.mxu0 0
      %1953 = vmatpush1.bf16.msra.mxu0 %v1711
      %1954 = vmatprep.subr.bf16.mxu0 0
      %1955 = vmatpush1.bf16.msra.mxu0 %v1712
      %1956 = vmatprep.subr.bf16.mxu0 0
      %1957 = vmatpush1.bf16.msra.mxu0 %v1713
      %1958 = vmatprep.subr.bf16.mxu0 0
      %1959 = vmatpush1.bf16.msra.mxu0 %v1714
      %1960 = vmatprep.subr.bf16.mxu0 0
      %1961 = vmatpush1.bf16.msra.mxu0 %v1715
      %1962 = vmatprep.subr.bf16.mxu0 0
      %1963 = vmatpush1.bf16.msra.mxu0 %v1716
      %1964 = vmatprep.subr.bf16.mxu0 0
      %1965 = vmatpush1.bf16.msra.mxu0 %v1717
      %1966 = vmatprep.subr.bf16.mxu0 0
      %1967 = vmatpush1.bf16.msra.mxu0 %v1718
      %1968 = vmatprep.subr.bf16.mxu0 0
      %1969 = vmatpush1.bf16.msra.mxu0 %v1719
      %1970 = vmatprep.subr.bf16.mxu0 0
      %1971 = vmatpush1.bf16.msra.mxu0 %v1720
      %1972 = vmatprep.subr.bf16.mxu0 0
      %1973 = vmatpush1.bf16.msra.mxu0 %v1721
      %1974 = vmatprep.subr.bf16.mxu0 0
      %1975 = vmatpush1.bf16.msra.mxu0 %v1722
      %1976 = vmatprep.subr.bf16.mxu0 0
      %1977 = vmatpush1.bf16.msra.mxu0 %v1723
      %1978 = vmatprep.subr.bf16.mxu0 0
      %1979 = vmatpush1.bf16.msra.mxu0 %v1724
      %1980 = vmatprep.subr.bf16.mxu0 0
      %1981 = vmatpush1.bf16.msra.mxu0 %v1725
      %1982 = vmatprep.subr.bf16.mxu0 0
      %1983 = vmatpush1.bf16.msra.mxu0 %v1726
      %1984 = vmatprep.mubr.bf16.mxu0 %v744
      %1985 = vmatmul.mubr.bf16.gmra.mrb[0].mxu0 %v732
      %v1986 = vpop.f32.mrb[0].mxu0
      %v1987 = vadd.f32 %v1826, %v1986
      %v1988 = vpop.f32.mrb[0].mxu0
      %v1989 = vpop.f32.mrb[0].mxu0
      %v1990 = vadd.f32 %v1829, %v1989
      %v1991 = vpop.f32.mrb[0].mxu0
      %1992 = vmatprep.mubr.bf16.mxu0 %v768
      %1993 = vmatmul.mubr.bf16.gmra.mrb[0].mxu0 %v756
      %v1994 = vpop.f32.mrb[0].mxu0
      %v1995 = vadd.f32 %v1834, %v1994
      %v1996 = vpop.f32.mrb[0].mxu0
      %v1997 = vpop.f32.mrb[0].mxu0
      %v1998 = vadd.f32 %v1837, %v1997
      %v1999 = vpop.f32.mrb[0].mxu0
      %2000 = vmatprep.mubr.bf16.mxu0 %v792
      %2001 = vmatmul.mubr.bf16.gmra.mrb[0].mxu0 %v780
      %v2002 = vpop.f32.mrb[0].mxu0
      %v2003 = vadd.f32 %v1842, %v2002
      %v2004 = vpop.f32.mrb[0].mxu0
      %v2005 = vpop.f32.mrb[0].mxu0
      %v2006 = vadd.f32 %v1845, %v2005
      %v2007 = vpop.f32.mrb[0].mxu0
      %2008 = vmatprep.mubr.bf16.mxu0 %v816
      %2009 = vmatmul.mubr.bf16.gmra.mrb[0].mxu0 %v804
      %v2010 = vpop.f32.mrb[0].mxu0
      %v2011 = vadd.f32 %v1850, %v2010
      %v2012 = vpop.f32.mrb[0].mxu0
      %v2013 = vpop.f32.mrb[0].mxu0
      %v2014 = vadd.f32 %v1853, %v2013
      %v2015 = vpop.f32.mrb[0].mxu0
      %2016 = vmatprep.mubr.bf16.mxu0 %v840
      %2017 = vmatmul.mubr.bf16.gmra.mrb[0].mxu0 %v828
      %v2018 = vpop.f32.mrb[0].mxu0
      %v2019 = vadd.f32 %v1858, %v2018
      %v2020 = vpop.f32.mrb[0].mxu0
      %v2021 = vpop.f32.mrb[0].mxu0
      %v2022 = vadd.f32 %v1861, %v2021
      %v2023 = vpop.f32.mrb[0].mxu0
      %2024 = vmatprep.mubr.bf16.mxu0 %v864
      %2025 = vmatmul.mubr.bf16.gmra.mrb[0].mxu0 %v852
      %v2026 = vpop.f32.mrb[0].mxu0
      %v2027 = vadd.f32 %v1866, %v2026
      %v2028 = vpop.f32.mrb[0].mxu0
      %v2029 = vpop.f32.mrb[0].mxu0
      %v2030 = vadd.f32 %v1869, %v2029
      %v2031 = vpop.f32.mrb[0].mxu0
      %2032 = vmatprep.mubr.bf16.mxu0 %v888
      %2033 = vmatmul.mubr.bf16.gmra.mrb[0].mxu0 %v876
      %v2034 = vpop.f32.mrb[0].mxu0
      %v2035 = vadd.f32 %v1874, %v2034
      %v2036 = vpop.f32.mrb[0].mxu0
      %v2037 = vpop.f32.mrb[0].mxu0
      %v2038 = vadd.f32 %v1877, %v2037
      %v2039 = vpop.f32.mrb[0].mxu0
      %2040 = vmatprep.mubr.bf16.mxu0 %v912
      %2041 = vmatmul.mubr.bf16.gmra.mrb[0].mxu0 %v900
      %v2042 = vpop.f32.mrb[0].mxu0
      %v2043 = vadd.f32 %v1882, %v2042
      %v2044 = vpop.f32.mrb[0].mxu0
      %v2045 = vpop.f32.mrb[0].mxu0
      %v2046 = vadd.f32 %v1885, %v2045
      %v2047 = vpop.f32.mrb[0].mxu0
      %2048 = vmatprep.mubr.bf16.mxu0 %v936
      %2049 = vmatmul.mubr.bf16.gmra.mrb[0].mxu0 %v924
      %v2050 = vpop.f32.mrb[0].mxu0
      %v2051 = vadd.f32 %v1890, %v2050
      %v2052 = vpop.f32.mrb[0].mxu0
      %v2053 = vpop.f32.mrb[0].mxu0
      %v2054 = vadd.f32 %v1893, %v2053
      %v2055 = vpop.f32.mrb[0].mxu0
      %2056 = vmatprep.mubr.bf16.mxu0 %v960
      %2057 = vmatmul.mubr.bf16.gmra.mrb[0].mxu0 %v948
      %v2058 = vpop.f32.mrb[0].mxu0
      %v2059 = vadd.f32 %v1898, %v2058
      %v2060 = vpop.f32.mrb[0].mxu0
      %v2061 = vpop.f32.mrb[0].mxu0
      %v2062 = vadd.f32 %v1901, %v2061
      %v2063 = vpop.f32.mrb[0].mxu0
      %2064 = vmatprep.mubr.bf16.mxu0 %v984
      %2065 = vmatmul.mubr.bf16.gmra.mrb[0].mxu0 %v972
      %v2066 = vpop.f32.mrb[0].mxu0
      %v2067 = vadd.f32 %v1906, %v2066
      %v2068 = vpop.f32.mrb[0].mxu0
      %v2069 = vpop.f32.mrb[0].mxu0
      %v2070 = vadd.f32 %v1909, %v2069
      %v2071 = vpop.f32.mrb[0].mxu0
      %2072 = vmatprep.mubr.bf16.mxu0 %v1008
      %2073 = vmatmul.mubr.bf16.gmra.mrb[0].mxu0 %v996
      %v2074 = vpop.f32.mrb[0].mxu0
      %v2075 = vadd.f32 %v1914, %v2074
      %v2076 = vpop.f32.mrb[0].mxu0
      %v2077 = vpop.f32.mrb[0].mxu0
      %v2078 = vadd.f32 %v1917, %v2077
      %v2079 = vpop.f32.mrb[0].mxu0
      %2080 = vmatprep.mubr.bf16.mxu0 %v1032
      %2081 = vmatmul.mubr.bf16.gmra.mrb[0].mxu0 %v1020
      %v2082 = vpop.f32.mrb[0].mxu0
      %v2083 = vadd.f32 %v1922, %v2082
      %v2084 = vpop.f32.mrb[0].mxu0
      %v2085 = vpop.f32.mrb[0].mxu0
      %v2086 = vadd.f32 %v1925, %v2085
      %v2087 = vpop.f32.mrb[0].mxu0
      %2088 = vmatprep.mubr.bf16.mxu0 %v1056
      %2089 = vmatmul.mubr.bf16.gmra.mrb[0].mxu0 %v1044
      %v2090 = vpop.f32.mrb[0].mxu0
      %v2091 = vadd.f32 %v1930, %v2090
      %v2092 = vpop.f32.mrb[0].mxu0
      %v2093 = vpop.f32.mrb[0].mxu0
      %v2094 = vadd.f32 %v1933, %v2093
      %v2095 = vpop.f32.mrb[0].mxu0
      %2096 = vmatprep.mubr.bf16.mxu0 %v1080
      %2097 = vmatmul.mubr.bf16.gmra.mrb[0].mxu0 %v1068
      %v2098 = vpop.f32.mrb[0].mxu0
      %v2099 = vadd.f32 %v1938, %v2098
      %v2100 = vpop.f32.mrb[0].mxu0
      %v2101 = vpop.f32.mrb[0].mxu0
      %v2102 = vadd.f32 %v1941, %v2101
      %v2103 = vpop.f32.mrb[0].mxu0
      %2104 = vmatprep.mubr.bf16.mxu0 %v1104
      %2105 = vmatmul.mubr.bf16.gmra.mrb[0].mxu0 %v1092
      %v2106 = vpop.f32.mrb[0].mxu0
      %v2107 = vadd.f32 %v1946, %v2106
      %v2108 = vpop.f32.mrb[0].mxu0
      %v2109 = vpop.f32.mrb[0].mxu0
      %v2110 = vadd.f32 %v1949, %v2109
      %v2111 = vpop.f32.mrb[0].mxu0
      %2112 = vdwg.mxu0
      %2113 = vmatprep.subr.bf16.mxu0 0
      %2114 = vmatpush1.bf16.msra.mxu0 %v1727
      %2115 = vmatprep.subr.bf16.mxu0 0
      %2116 = vmatpush1.bf16.msra.mxu0 %v1728
      %2117 = vmatprep.subr.bf16.mxu0 0
      %2118 = vmatpush1.bf16.msra.mxu0 %v1729
      %2119 = vmatprep.subr.bf16.mxu0 0
      %2120 = vmatpush1.bf16.msra.mxu0 %v1730
      %2121 = vmatprep.subr.bf16.mxu0 0
      %2122 = vmatpush1.bf16.msra.mxu0 %v1731
      %2123 = vmatprep.subr.bf16.mxu0 0
      %2124 = vmatpush1.bf16.msra.mxu0 %v1732
      %2125 = vmatprep.subr.bf16.mxu0 0
      %2126 = vmatpush1.bf16.msra.mxu0 %v1733
      %2127 = vmatprep.subr.bf16.mxu0 0
      %2128 = vmatpush1.bf16.msra.mxu0 %v1734
      %2129 = vmatprep.subr.bf16.mxu0 0
      %2130 = vmatpush1.bf16.msra.mxu0 %v1735
      %2131 = vmatprep.subr.bf16.mxu0 0
      %2132 = vmatpush1.bf16.msra.mxu0 %v1736
      %2133 = vmatprep.subr.bf16.mxu0 0
      %2134 = vmatpush1.bf16.msra.mxu0 %v1737
      %2135 = vmatprep.subr.bf16.mxu0 0
      %2136 = vmatpush1.bf16.msra.mxu0 %v1738
      %2137 = vmatprep.subr.bf16.mxu0 0
      %2138 = vmatpush1.bf16.msra.mxu0 %v1739
      %2139 = vmatprep.subr.bf16.mxu0 0
      %2140 = vmatpush1.bf16.msra.mxu0 %v1740
      %2141 = vmatprep.subr.bf16.mxu0 0
      %2142 = vmatpush1.bf16.msra.mxu0 %v1741
      %2143 = vmatprep.subr.bf16.mxu0 0
      %2144 = vmatpush1.bf16.msra.mxu0 %v1742
      %2145 = vmatprep.mubr.bf16.mxu0 %v1177
      %2146 = vmatmul.mubr.bf16.gmra.mrb[0].mxu0 %v1174
      %v2147 = vpop.f32.mrb[0].mxu0
      %v2148 = vadd.f32 %v1987, %v2147
      %v2149 = vpop.f32.mrb[0].mxu0
      %v2150 = vpop.f32.mrb[0].mxu0
      %v2151 = vadd.f32 %v1990, %v2150
      %v2152 = vpop.f32.mrb[0].mxu0
      %2153 = vmatprep.mubr.bf16.mxu0 %v1183
      %2154 = vmatmul.mubr.bf16.gmra.mrb[0].mxu0 %v1180
      %v2155 = vpop.f32.mrb[0].mxu0
      %v2156 = vadd.f32 %v1995, %v2155
      %v2157 = vpop.f32.mrb[0].mxu0
      %v2158 = vpop.f32.mrb[0].mxu0
      %v2159 = vadd.f32 %v1998, %v2158
      %v2160 = vpop.f32.mrb[0].mxu0
      %2161 = vmatprep.mubr.bf16.mxu0 %v1189
      %2162 = vmatmul.mubr.bf16.gmra.mrb[0].mxu0 %v1186
      %v2163 = vpop.f32.mrb[0].mxu0
      %v2164 = vadd.f32 %v2003, %v2163
      %v2165 = vpop.f32.mrb[0].mxu0
      %v2166 = vpop.f32.mrb[0].mxu0
      %v2167 = vadd.f32 %v2006, %v2166
      %v2168 = vpop.f32.mrb[0].mxu0
      %2169 = vmatprep.mubr.bf16.mxu0 %v1195
      %2170 = vmatmul.mubr.bf16.gmra.mrb[0].mxu0 %v1192
      %v2171 = vpop.f32.mrb[0].mxu0
      %v2172 = vadd.f32 %v2011, %v2171
      %v2173 = vpop.f32.mrb[0].mxu0
      %v2174 = vpop.f32.mrb[0].mxu0
      %v2175 = vadd.f32 %v2014, %v2174
      %v2176 = vpop.f32.mrb[0].mxu0
      %2177 = vmatprep.mubr.bf16.mxu0 %v1201
      %2178 = vmatmul.mubr.bf16.gmra.mrb[0].mxu0 %v1198
      %v2179 = vpop.f32.mrb[0].mxu0
      %v2180 = vadd.f32 %v2019, %v2179
      %v2181 = vpop.f32.mrb[0].mxu0
      %v2182 = vpop.f32.mrb[0].mxu0
      %v2183 = vadd.f32 %v2022, %v2182
      %v2184 = vpop.f32.mrb[0].mxu0
      %2185 = vmatprep.mubr.bf16.mxu0 %v1207
      %2186 = vmatmul.mubr.bf16.gmra.mrb[0].mxu0 %v1204
      %v2187 = vpop.f32.mrb[0].mxu0
      %v2188 = vadd.f32 %v2027, %v2187
      %v2189 = vpop.f32.mrb[0].mxu0
      %v2190 = vpop.f32.mrb[0].mxu0
      %v2191 = vadd.f32 %v2030, %v2190
      %v2192 = vpop.f32.mrb[0].mxu0
      %2193 = vmatprep.mubr.bf16.mxu0 %v1213
      %2194 = vmatmul.mubr.bf16.gmra.mrb[0].mxu0 %v1210
      %v2195 = vpop.f32.mrb[0].mxu0
      %v2196 = vadd.f32 %v2035, %v2195
      %v2197 = vpop.f32.mrb[0].mxu0
      %v2198 = vpop.f32.mrb[0].mxu0
      %v2199 = vadd.f32 %v2038, %v2198
      %v2200 = vpop.f32.mrb[0].mxu0
      %2201 = vmatprep.mubr.bf16.mxu0 %v1219
      %2202 = vmatmul.mubr.bf16.gmra.mrb[0].mxu0 %v1216
      %v2203 = vpop.f32.mrb[0].mxu0
      %v2204 = vadd.f32 %v2043, %v2203
      %v2205 = vpop.f32.mrb[0].mxu0
      %v2206 = vpop.f32.mrb[0].mxu0
      %v2207 = vadd.f32 %v2046, %v2206
      %v2208 = vpop.f32.mrb[0].mxu0
      %2209 = vmatprep.mubr.bf16.mxu0 %v1225
      %2210 = vmatmul.mubr.bf16.gmra.mrb[0].mxu0 %v1222
      %v2211 = vpop.f32.mrb[0].mxu0
      %v2212 = vadd.f32 %v2051, %v2211
      %v2213 = vpop.f32.mrb[0].mxu0
      %v2214 = vpop.f32.mrb[0].mxu0
      %v2215 = vadd.f32 %v2054, %v2214
      %v2216 = vpop.f32.mrb[0].mxu0
      %2217 = vmatprep.mubr.bf16.mxu0 %v1231
      %2218 = vmatmul.mubr.bf16.gmra.mrb[0].mxu0 %v1228
      %v2219 = vpop.f32.mrb[0].mxu0
      %v2220 = vadd.f32 %v2059, %v2219
      %v2221 = vpop.f32.mrb[0].mxu0
      %v2222 = vpop.f32.mrb[0].mxu0
      %v2223 = vadd.f32 %v2062, %v2222
      %v2224 = vpop.f32.mrb[0].mxu0
      %2225 = vmatprep.mubr.bf16.mxu0 %v1237
      %2226 = vmatmul.mubr.bf16.gmra.mrb[0].mxu0 %v1234
      %v2227 = vpop.f32.mrb[0].mxu0
      %v2228 = vadd.f32 %v2067, %v2227
      %v2229 = vpop.f32.mrb[0].mxu0
      %v2230 = vpop.f32.mrb[0].mxu0
      %v2231 = vadd.f32 %v2070, %v2230
      %v2232 = vpop.f32.mrb[0].mxu0
      %2233 = vmatprep.mubr.bf16.mxu0 %v1243
      %2234 = vmatmul.mubr.bf16.gmra.mrb[0].mxu0 %v1240
      %v2235 = vpop.f32.mrb[0].mxu0
      %v2236 = vadd.f32 %v2075, %v2235
      %v2237 = vpop.f32.mrb[0].mxu0
      %v2238 = vpop.f32.mrb[0].mxu0
      %v2239 = vadd.f32 %v2078, %v2238
      %v2240 = vpop.f32.mrb[0].mxu0
      %2241 = vmatprep.mubr.bf16.mxu0 %v1249
      %2242 = vmatmul.mubr.bf16.gmra.mrb[0].mxu0 %v1246
      %v2243 = vpop.f32.mrb[0].mxu0
      %v2244 = vadd.f32 %v2083, %v2243
      %v2245 = vpop.f32.mrb[0].mxu0
      %v2246 = vpop.f32.mrb[0].mxu0
      %v2247 = vadd.f32 %v2086, %v2246
      %v2248 = vpop.f32.mrb[0].mxu0
      %2249 = vmatprep.mubr.bf16.mxu0 %v1255
      %2250 = vmatmul.mubr.bf16.gmra.mrb[0].mxu0 %v1252
      %v2251 = vpop.f32.mrb[0].mxu0
      %v2252 = vadd.f32 %v2091, %v2251
      %v2253 = vpop.f32.mrb[0].mxu0
      %v2254 = vpop.f32.mrb[0].mxu0
      %v2255 = vadd.f32 %v2094, %v2254
      %v2256 = vpop.f32.mrb[0].mxu0
      %2257 = vmatprep.mubr.bf16.mxu0 %v1261
      %2258 = vmatmul.mubr.bf16.gmra.mrb[0].mxu0 %v1258
      %v2259 = vpop.f32.mrb[0].mxu0
      %v2260 = vadd.f32 %v2099, %v2259
      %v2261 = vpop.f32.mrb[0].mxu0
      %v2262 = vpop.f32.mrb[0].mxu0
      %v2263 = vadd.f32 %v2102, %v2262
      %v2264 = vpop.f32.mrb[0].mxu0
      %2265 = vmatprep.mubr.bf16.mxu0 %v1267
      %2266 = vmatmul.mubr.bf16.gmra.mrb[0].mxu0 %v1264
      %v2267 = vpop.f32.mrb[0].mxu0
      %v2268 = vadd.f32 %v2107, %v2267
      %v2269 = vpop.f32.mrb[0].mxu0
      %v2270 = vpop.f32.mrb[0].mxu0
      %v2271 = vadd.f32 %v2110, %v2270
      %v2272 = vpop.f32.mrb[0].mxu0
      %2273 = vdwg.mxu0
      %v2370 = vunpack.c.l.b16 %v1310
      %v2371 = vunpack.c.l.b16 %v1311
      %v2372 = vunpack.c.l.b16 %v1312
      %v2373 = vunpack.c.l.b16 %v1313
      %v2374 = vunpack.c.l.b16 %v1314
      %v2375 = vunpack.c.l.b16 %v1315
      %v2376 = vunpack.c.l.b16 %v1316
      %v2377 = vunpack.c.l.b16 %v1317
      %v2378 = vunpack.c.l.b16 %v1318
      %v2379 = vunpack.c.l.b16 %v1319
      %v2380 = vunpack.c.l.b16 %v1320
      %v2381 = vunpack.c.l.b16 %v1321
      %v2382 = vunpack.c.l.b16 %v1322
      %v2383 = vunpack.c.l.b16 %v1323
      %v2384 = vunpack.c.l.b16 %v1324
      %v2385 = vunpack.c.l.b16 %v1325
      %v2386 = vunpack.c.l.b16 %v1326
      %v2387 = vunpack.c.l.b16 %v1327
      %v2388 = vunpack.c.l.b16 %v1328
      %v2389 = vunpack.c.l.b16 %v1329
      %v2390 = vunpack.c.l.b16 %v1330
      %v2391 = vunpack.c.l.b16 %v1331
      %v2392 = vunpack.c.l.b16 %v1332
      %v2393 = vunpack.c.l.b16 %v1333
      %v2394 = vunpack.c.l.b16 %v1334
      %v2395 = vunpack.c.l.b16 %v1335
      %v2396 = vunpack.c.l.b16 %v1336
      %v2397 = vunpack.c.l.b16 %v1337
      %v2398 = vunpack.c.l.b16 %v1338
      %v2399 = vunpack.c.l.b16 %v1339
      %v2400 = vunpack.c.l.b16 %v1340
      %v2401 = vunpack.c.l.b16 %v1341
      %v2402 = vunpack.c.l.b16 %v1342
      %v2403 = vunpack.c.l.b16 %v1343
      %v2404 = vunpack.c.l.b16 %v1344
      %v2405 = vunpack.c.l.b16 %v1345
      %v2406 = vunpack.c.l.b16 %v1346
      %v2407 = vunpack.c.l.b16 %v1347
      %v2408 = vunpack.c.l.b16 %v1348
      %v2409 = vunpack.c.l.b16 %v1349
      %v2410 = vunpack.c.l.b16 %v1350
      %v2411 = vunpack.c.l.b16 %v1351
      %v2412 = vunpack.c.l.b16 %v1352
      %v2413 = vunpack.c.l.b16 %v1353
      %v2414 = vunpack.c.l.b16 %v1354
      %v2415 = vunpack.c.l.b16 %v1355
      %v2416 = vunpack.c.l.b16 %v1356
      %v2417 = vunpack.c.l.b16 %v1357
      %v2418 = vunpack.c.l.b16 %v1358
      %v2419 = vunpack.c.l.b16 %v1359
      %v2420 = vunpack.c.l.b16 %v1360
      %v2421 = vunpack.c.l.b16 %v1361
      %v2422 = vunpack.c.l.b16 %v1362
      %v2423 = vunpack.c.l.b16 %v1363
      %v2424 = vunpack.c.l.b16 %v1364
      %v2425 = vunpack.c.l.b16 %v1365
      %v2426 = vunpack.c.l.b16 %v1366
      %v2427 = vunpack.c.l.b16 %v1367
      %v2428 = vunpack.c.l.b16 %v1368
      %v2429 = vunpack.c.l.b16 %v1369
      %v2430 = vunpack.c.l.b16 %v1370
      %v2431 = vunpack.c.l.b16 %v1371
      %v2432 = vunpack.c.l.b16 %v1372
      %v2433 = vunpack.c.l.b16 %v1373
      %v2434 = vunpack.c.l.b16 %v1374
      %v2435 = vunpack.c.l.b16 %v1375
      %v2436 = vunpack.c.l.b16 %v1376
      %v2437 = vunpack.c.l.b16 %v1377
      %v2438 = vunpack.c.l.b16 %v1378
      %v2439 = vunpack.c.l.b16 %v1379
      %v2440 = vunpack.c.l.b16 %v1380
      %v2441 = vunpack.c.l.b16 %v1381
      %v2442 = vunpack.c.l.b16 %v1382
      %v2443 = vunpack.c.l.b16 %v1383
      %v2444 = vunpack.c.l.b16 %v1384
      %v2445 = vunpack.c.l.b16 %v1385
      %v2446 = vunpack.c.l.b16 %v1386
      %v2447 = vunpack.c.l.b16 %v1387
      %v2448 = vunpack.c.l.b16 %v1388
      %v2449 = vunpack.c.l.b16 %v1389
      %v2450 = vunpack.c.l.b16 %v1390
      %v2451 = vunpack.c.l.b16 %v1391
      %v2452 = vunpack.c.l.b16 %v1392
      %v2453 = vunpack.c.l.b16 %v1393
      %v2454 = vunpack.c.l.b16 %v1394
      %v2455 = vunpack.c.l.b16 %v1395
      %v2456 = vunpack.c.l.b16 %v1396
      %v2457 = vunpack.c.l.b16 %v1397
      %v2458 = vunpack.c.l.b16 %v1398
      %v2459 = vunpack.c.l.b16 %v1399
      %v2460 = vunpack.c.l.b16 %v1400
      %v2461 = vunpack.c.l.b16 %v1401
      %v2462 = vunpack.c.l.b16 %v1402
      %v2463 = vunpack.c.l.b16 %v1403
      %v2464 = vunpack.c.l.b16 %v1404
      %v2465 = vunpack.c.l.b16 %v1405
      %v2466 = vpack.c.b16 %v2371, %v2370
      %v2467 = vpack.c.b16 %v2373, %v2372
      %v2468 = vpack.c.b16 %v2375, %v2374
      %v2469 = vpack.c.b16 %v2377, %v2376
      %v2470 = vpack.c.b16 %v2379, %v2378
      %v2471 = vpack.c.b16 %v2381, %v2380
      %v2472 = vpack.c.b16 %v2383, %v2382
      %v2473 = vpack.c.b16 %v2385, %v2384
      %v2474 = vpack.c.b16 %v2387, %v2386
      %v2475 = vpack.c.b16 %v2389, %v2388
      %v2476 = vpack.c.b16 %v2391, %v2390
      %v2477 = vpack.c.b16 %v2393, %v2392
      %v2478 = vpack.c.b16 %v2395, %v2394
      %v2479 = vpack.c.b16 %v2397, %v2396
      %v2480 = vpack.c.b16 %v2399, %v2398
      %v2481 = vpack.c.b16 %v2401, %v2400
      %v2482 = vpack.c.b16 %v2403, %v2402
      %v2483 = vpack.c.b16 %v2405, %v2404
      %v2484 = vpack.c.b16 %v2407, %v2406
      %v2485 = vpack.c.b16 %v2409, %v2408
      %v2486 = vpack.c.b16 %v2411, %v2410
      %v2487 = vpack.c.b16 %v2413, %v2412
      %v2488 = vpack.c.b16 %v2415, %v2414
      %v2489 = vpack.c.b16 %v2417, %v2416
      %v2490 = vpack.c.b16 %v2419, %v2418
      %v2491 = vpack.c.b16 %v2421, %v2420
      %v2492 = vpack.c.b16 %v2423, %v2422
      %v2493 = vpack.c.b16 %v2425, %v2424
      %v2494 = vpack.c.b16 %v2427, %v2426
      %v2495 = vpack.c.b16 %v2429, %v2428
      %v2496 = vpack.c.b16 %v2431, %v2430
      %v2497 = vpack.c.b16 %v2433, %v2432
      %v2498 = vpack.c.b16 %v2435, %v2434
      %v2499 = vpack.c.b16 %v2437, %v2436
      %v2500 = vpack.c.b16 %v2439, %v2438
      %v2501 = vpack.c.b16 %v2441, %v2440
      %v2502 = vpack.c.b16 %v2443, %v2442
      %v2503 = vpack.c.b16 %v2445, %v2444
      %v2504 = vpack.c.b16 %v2447, %v2446
      %v2505 = vpack.c.b16 %v2449, %v2448
      %v2506 = vpack.c.b16 %v2451, %v2450
      %v2507 = vpack.c.b16 %v2453, %v2452
      %v2508 = vpack.c.b16 %v2455, %v2454
      %v2509 = vpack.c.b16 %v2457, %v2456
      %v2510 = vpack.c.b16 %v2459, %v2458
      %v2511 = vpack.c.b16 %v2461, %v2460
      %v2512 = vpack.c.b16 %v2463, %v2462
      %v2513 = vpack.c.b16 %v2465, %v2464
      %2562 = vmatprep.subr.bf16.mxu0 0
      %2563 = vmatpush1.bf16.msra.mxu0 %v2466
      %2564 = vmatprep.subr.bf16.mxu0 0
      %2565 = vmatpush1.bf16.msra.mxu0 %v2467
      %2566 = vmatprep.subr.bf16.mxu0 0
      %2567 = vmatpush1.bf16.msra.mxu0 %v2468
      %2568 = vmatprep.subr.bf16.mxu0 0
      %2569 = vmatpush1.bf16.msra.mxu0 %v2469
      %2570 = vmatprep.subr.bf16.mxu0 0
      %2571 = vmatpush1.bf16.msra.mxu0 %v2470
      %2572 = vmatprep.subr.bf16.mxu0 0
      %2573 = vmatpush1.bf16.msra.mxu0 %v2471
      %2574 = vmatprep.subr.bf16.mxu0 0
      %2575 = vmatpush1.bf16.msra.mxu0 %v2472
      %2576 = vmatprep.subr.bf16.mxu0 0
      %2577 = vmatpush1.bf16.msra.mxu0 %v2473
      %2578 = vmatprep.subr.bf16.mxu0 0
      %2579 = vmatpush1.bf16.msra.mxu0 %v2474
      %2580 = vmatprep.subr.bf16.mxu0 0
      %2581 = vmatpush1.bf16.msra.mxu0 %v2475
      %2582 = vmatprep.subr.bf16.mxu0 0
      %2583 = vmatpush1.bf16.msra.mxu0 %v2476
      %2584 = vmatprep.subr.bf16.mxu0 0
      %2585 = vmatpush1.bf16.msra.mxu0 %v2477
      %2586 = vmatprep.subr.bf16.mxu0 0
      %2587 = vmatpush1.bf16.msra.mxu0 %v2478
      %2588 = vmatprep.subr.bf16.mxu0 0
      %2589 = vmatpush1.bf16.msra.mxu0 %v2479
      %2590 = vmatprep.subr.bf16.mxu0 0
      %2591 = vmatpush1.bf16.msra.mxu0 %v2480
      %2592 = vmatprep.subr.bf16.mxu0 0
      %2593 = vmatpush1.bf16.msra.mxu0 %v2481
      %2594 = vmatprep.mubr.bf16.mxu0 %v535
      %2595 = vmatmul.mubr.bf16.gmra.mrb[0].mxu0 %v534
      %v2596 = vpop.f32.mrb[0].mxu0
      %v2597 = vadd.f32 %v2148, %v2596
      %v2598 = vpop.f32.mrb[0].mxu0
      %v2599 = vpop.f32.mrb[0].mxu0
      %v2600 = vadd.f32 %v2151, %v2599
      %v2601 = vpop.f32.mrb[0].mxu0
      %2602 = vmatprep.mubr.bf16.mxu0 %v537
      %2603 = vmatmul.mubr.bf16.gmra.mrb[0].mxu0 %v536
      %v2604 = vpop.f32.mrb[0].mxu0
      %v2605 = vadd.f32 %v2156, %v2604
      %v2606 = vpop.f32.mrb[0].mxu0
      %v2607 = vpop.f32.mrb[0].mxu0
      %v2608 = vadd.f32 %v2159, %v2607
      %v2609 = vpop.f32.mrb[0].mxu0
      %2610 = vmatprep.mubr.bf16.mxu0 %v539
      %2611 = vmatmul.mubr.bf16.gmra.mrb[0].mxu0 %v538
      %v2612 = vpop.f32.mrb[0].mxu0
      %v2613 = vadd.f32 %v2164, %v2612
      %v2614 = vpop.f32.mrb[0].mxu0
      %v2615 = vpop.f32.mrb[0].mxu0
      %v2616 = vadd.f32 %v2167, %v2615
      %v2617 = vpop.f32.mrb[0].mxu0
      %2618 = vmatprep.mubr.bf16.mxu0 %v541
      %2619 = vmatmul.mubr.bf16.gmra.mrb[0].mxu0 %v540
      %v2620 = vpop.f32.mrb[0].mxu0
      %v2621 = vadd.f32 %v2172, %v2620
      %v2622 = vpop.f32.mrb[0].mxu0
      %v2623 = vpop.f32.mrb[0].mxu0
      %v2624 = vadd.f32 %v2175, %v2623
      %v2625 = vpop.f32.mrb[0].mxu0
      %2626 = vmatprep.mubr.bf16.mxu0 %v543
      %2627 = vmatmul.mubr.bf16.gmra.mrb[0].mxu0 %v542
      %v2628 = vpop.f32.mrb[0].mxu0
      %v2629 = vadd.f32 %v2180, %v2628
      %v2630 = vpop.f32.mrb[0].mxu0
      %v2631 = vpop.f32.mrb[0].mxu0
      %v2632 = vadd.f32 %v2183, %v2631
      %v2633 = vpop.f32.mrb[0].mxu0
      %2634 = vmatprep.mubr.bf16.mxu0 %v545
      %2635 = vmatmul.mubr.bf16.gmra.mrb[0].mxu0 %v544
      %v2636 = vpop.f32.mrb[0].mxu0
      %v2637 = vadd.f32 %v2188, %v2636
      %v2638 = vpop.f32.mrb[0].mxu0
      %v2639 = vpop.f32.mrb[0].mxu0
      %v2640 = vadd.f32 %v2191, %v2639
      %v2641 = vpop.f32.mrb[0].mxu0
      %2642 = vmatprep.mubr.bf16.mxu0 %v547
      %2643 = vmatmul.mubr.bf16.gmra.mrb[0].mxu0 %v546
      %v2644 = vpop.f32.mrb[0].mxu0
      %v2645 = vadd.f32 %v2196, %v2644
      %v2646 = vpop.f32.mrb[0].mxu0
      %v2647 = vpop.f32.mrb[0].mxu0
      %v2648 = vadd.f32 %v2199, %v2647
      %v2649 = vpop.f32.mrb[0].mxu0
      %2650 = vmatprep.mubr.bf16.mxu0 %v549
      %2651 = vmatmul.mubr.bf16.gmra.mrb[0].mxu0 %v548
      %v2652 = vpop.f32.mrb[0].mxu0
      %v2653 = vadd.f32 %v2204, %v2652
      %v2654 = vpop.f32.mrb[0].mxu0
      %v2655 = vpop.f32.mrb[0].mxu0
      %v2656 = vadd.f32 %v2207, %v2655
      %v2657 = vpop.f32.mrb[0].mxu0
      %2658 = vmatprep.mubr.bf16.mxu0 %v551
      %2659 = vmatmul.mubr.bf16.gmra.mrb[0].mxu0 %v550
      %v2660 = vpop.f32.mrb[0].mxu0
      %v2661 = vadd.f32 %v2212, %v2660
      %v2662 = vpop.f32.mrb[0].mxu0
      %v2663 = vpop.f32.mrb[0].mxu0
      %v2664 = vadd.f32 %v2215, %v2663
      %v2665 = vpop.f32.mrb[0].mxu0
      %2666 = vmatprep.mubr.bf16.mxu0 %v553
      %2667 = vmatmul.mubr.bf16.gmra.mrb[0].mxu0 %v552
      %v2668 = vpop.f32.mrb[0].mxu0
      %v2669 = vadd.f32 %v2220, %v2668
      %v2670 = vpop.f32.mrb[0].mxu0
      %v2671 = vpop.f32.mrb[0].mxu0
      %v2672 = vadd.f32 %v2223, %v2671
      %v2673 = vpop.f32.mrb[0].mxu0
      %2674 = vmatprep.mubr.bf16.mxu0 %v555
      %2675 = vmatmul.mubr.bf16.gmra.mrb[0].mxu0 %v554
      %v2676 = vpop.f32.mrb[0].mxu0
      %v2677 = vadd.f32 %v2228, %v2676
      %v2678 = vpop.f32.mrb[0].mxu0
      %v2679 = vpop.f32.mrb[0].mxu0
      %v2680 = vadd.f32 %v2231, %v2679
      %v2681 = vpop.f32.mrb[0].mxu0
      %2682 = vmatprep.mubr.bf16.mxu0 %v557
      %2683 = vmatmul.mubr.bf16.gmra.mrb[0].mxu0 %v556
      %v2684 = vpop.f32.mrb[0].mxu0
      %v2685 = vadd.f32 %v2236, %v2684
      %v2686 = vpop.f32.mrb[0].mxu0
      %v2687 = vpop.f32.mrb[0].mxu0
      %v2688 = vadd.f32 %v2239, %v2687
      %v2689 = vpop.f32.mrb[0].mxu0
      %2690 = vmatprep.mubr.bf16.mxu0 %v559
      %2691 = vmatmul.mubr.bf16.gmra.mrb[0].mxu0 %v558
      %v2692 = vpop.f32.mrb[0].mxu0
      %v2693 = vadd.f32 %v2244, %v2692
      %v2694 = vpop.f32.mrb[0].mxu0
      %v2695 = vpop.f32.mrb[0].mxu0
      %v2696 = vadd.f32 %v2247, %v2695
      %v2697 = vpop.f32.mrb[0].mxu0
      %2698 = vmatprep.mubr.bf16.mxu0 %v561
      %2699 = vmatmul.mubr.bf16.gmra.mrb[0].mxu0 %v560
      %v2700 = vpop.f32.mrb[0].mxu0
      %v2701 = vadd.f32 %v2252, %v2700
      %v2702 = vpop.f32.mrb[0].mxu0
      %v2703 = vpop.f32.mrb[0].mxu0
      %v2704 = vadd.f32 %v2255, %v2703
      %v2705 = vpop.f32.mrb[0].mxu0
      %2706 = vmatprep.mubr.bf16.mxu0 %v563
      %2707 = vmatmul.mubr.bf16.gmra.mrb[0].mxu0 %v562
      %v2708 = vpop.f32.mrb[0].mxu0
      %v2709 = vadd.f32 %v2260, %v2708
      %v2710 = vpop.f32.mrb[0].mxu0
      %v2711 = vpop.f32.mrb[0].mxu0
      %v2712 = vadd.f32 %v2263, %v2711
      %v2713 = vpop.f32.mrb[0].mxu0
      %2714 = vmatprep.mubr.bf16.mxu0 %v565
      %2715 = vmatmul.mubr.bf16.gmra.mrb[0].mxu0 %v564
      %v2716 = vpop.f32.mrb[0].mxu0
      %v2717 = vadd.f32 %v2268, %v2716
      %v2718 = vpop.f32.mrb[0].mxu0
      %v2719 = vpop.f32.mrb[0].mxu0
      %v2720 = vadd.f32 %v2271, %v2719
      %v2721 = vpop.f32.mrb[0].mxu0
      %2722 = vdwg.mxu0
      %2723 = vmatprep.subr.bf16.mxu0 0
      %2724 = vmatpush1.bf16.msra.mxu0 %v2482
      %2725 = vmatprep.subr.bf16.mxu0 0
      %2726 = vmatpush1.bf16.msra.mxu0 %v2483
      %2727 = vmatprep.subr.bf16.mxu0 0
      %2728 = vmatpush1.bf16.msra.mxu0 %v2484
      %2729 = vmatprep.subr.bf16.mxu0 0
      %2730 = vmatpush1.bf16.msra.mxu0 %v2485
      %2731 = vmatprep.subr.bf16.mxu0 0
      %2732 = vmatpush1.bf16.msra.mxu0 %v2486
      %2733 = vmatprep.subr.bf16.mxu0 0
      %2734 = vmatpush1.bf16.msra.mxu0 %v2487
      %2735 = vmatprep.subr.bf16.mxu0 0
      %2736 = vmatpush1.bf16.msra.mxu0 %v2488
      %2737 = vmatprep.subr.bf16.mxu0 0
      %2738 = vmatpush1.bf16.msra.mxu0 %v2489
      %2739 = vmatprep.subr.bf16.mxu0 0
      %2740 = vmatpush1.bf16.msra.mxu0 %v2490
      %2741 = vmatprep.subr.bf16.mxu0 0
      %2742 = vmatpush1.bf16.msra.mxu0 %v2491
      %2743 = vmatprep.subr.bf16.mxu0 0
      %2744 = vmatpush1.bf16.msra.mxu0 %v2492
      %2745 = vmatprep.subr.bf16.mxu0 0
      %2746 = vmatpush1.bf16.msra.mxu0 %v2493
      %2747 = vmatprep.subr.bf16.mxu0 0
      %2748 = vmatpush1.bf16.msra.mxu0 %v2494
      %2749 = vmatprep.subr.bf16.mxu0 0
      %2750 = vmatpush1.bf16.msra.mxu0 %v2495
      %2751 = vmatprep.subr.bf16.mxu0 0
      %2752 = vmatpush1.bf16.msra.mxu0 %v2496
      %2753 = vmatprep.subr.bf16.mxu0 0
      %2754 = vmatpush1.bf16.msra.mxu0 %v2497
      %2755 = vmatprep.mubr.bf16.mxu0 %v720
      %2756 = vmatmul.mubr.bf16.gmra.mrb[0].mxu0 %v708
      %v2757 = vpop.f32.mrb[0].mxu0
      %v2758 = vadd.f32 %v2597, %v2757
      %v2759 = vpop.f32.mrb[0].mxu0
      %v2760 = vpop.f32.mrb[0].mxu0
      %v2761 = vadd.f32 %v2600, %v2760
      %v2762 = vpop.f32.mrb[0].mxu0
      %2763 = vmatprep.mubr.bf16.mxu0 %v744
      %2764 = vmatmul.mubr.bf16.gmra.mrb[0].mxu0 %v732
      %v2765 = vpop.f32.mrb[0].mxu0
      %v2766 = vadd.f32 %v2605, %v2765
      %v2767 = vpop.f32.mrb[0].mxu0
      %v2768 = vpop.f32.mrb[0].mxu0
      %v2769 = vadd.f32 %v2608, %v2768
      %v2770 = vpop.f32.mrb[0].mxu0
      %2771 = vmatprep.mubr.bf16.mxu0 %v768
      %2772 = vmatmul.mubr.bf16.gmra.mrb[0].mxu0 %v756
      %v2773 = vpop.f32.mrb[0].mxu0
      %v2774 = vadd.f32 %v2613, %v2773
      %v2775 = vpop.f32.mrb[0].mxu0
      %v2776 = vpop.f32.mrb[0].mxu0
      %v2777 = vadd.f32 %v2616, %v2776
      %v2778 = vpop.f32.mrb[0].mxu0
      %2779 = vmatprep.mubr.bf16.mxu0 %v792
      %2780 = vmatmul.mubr.bf16.gmra.mrb[0].mxu0 %v780
      %v2781 = vpop.f32.mrb[0].mxu0
      %v2782 = vadd.f32 %v2621, %v2781
      %v2783 = vpop.f32.mrb[0].mxu0
      %v2784 = vpop.f32.mrb[0].mxu0
      %v2785 = vadd.f32 %v2624, %v2784
      %v2786 = vpop.f32.mrb[0].mxu0
      %2787 = vmatprep.mubr.bf16.mxu0 %v816
      %2788 = vmatmul.mubr.bf16.gmra.mrb[0].mxu0 %v804
      %v2789 = vpop.f32.mrb[0].mxu0
      %v2790 = vadd.f32 %v2629, %v2789
      %v2791 = vpop.f32.mrb[0].mxu0
      %v2792 = vpop.f32.mrb[0].mxu0
      %v2793 = vadd.f32 %v2632, %v2792
      %v2794 = vpop.f32.mrb[0].mxu0
      %2795 = vmatprep.mubr.bf16.mxu0 %v840
      %2796 = vmatmul.mubr.bf16.gmra.mrb[0].mxu0 %v828
      %v2797 = vpop.f32.mrb[0].mxu0
      %v2798 = vadd.f32 %v2637, %v2797
      %v2799 = vpop.f32.mrb[0].mxu0
      %v2800 = vpop.f32.mrb[0].mxu0
      %v2801 = vadd.f32 %v2640, %v2800
      %v2802 = vpop.f32.mrb[0].mxu0
      %2803 = vmatprep.mubr.bf16.mxu0 %v864
      %2804 = vmatmul.mubr.bf16.gmra.mrb[0].mxu0 %v852
      %v2805 = vpop.f32.mrb[0].mxu0
      %v2806 = vadd.f32 %v2645, %v2805
      %v2807 = vpop.f32.mrb[0].mxu0
      %v2808 = vpop.f32.mrb[0].mxu0
      %v2809 = vadd.f32 %v2648, %v2808
      %v2810 = vpop.f32.mrb[0].mxu0
      %2811 = vmatprep.mubr.bf16.mxu0 %v888
      %2812 = vmatmul.mubr.bf16.gmra.mrb[0].mxu0 %v876
      %v2813 = vpop.f32.mrb[0].mxu0
      %v2814 = vadd.f32 %v2653, %v2813
      %v2815 = vpop.f32.mrb[0].mxu0
      %v2816 = vpop.f32.mrb[0].mxu0
      %v2817 = vadd.f32 %v2656, %v2816
      %v2818 = vpop.f32.mrb[0].mxu0
      %2819 = vmatprep.mubr.bf16.mxu0 %v912
      %2820 = vmatmul.mubr.bf16.gmra.mrb[0].mxu0 %v900
      %v2821 = vpop.f32.mrb[0].mxu0
      %v2822 = vadd.f32 %v2661, %v2821
      %v2823 = vpop.f32.mrb[0].mxu0
      %v2824 = vpop.f32.mrb[0].mxu0
      %v2825 = vadd.f32 %v2664, %v2824
      %v2826 = vpop.f32.mrb[0].mxu0
      %2827 = vmatprep.mubr.bf16.mxu0 %v936
      %2828 = vmatmul.mubr.bf16.gmra.mrb[0].mxu0 %v924
      %v2829 = vpop.f32.mrb[0].mxu0
      %v2830 = vadd.f32 %v2669, %v2829
      %v2831 = vpop.f32.mrb[0].mxu0
      %v2832 = vpop.f32.mrb[0].mxu0
      %v2833 = vadd.f32 %v2672, %v2832
      %v2834 = vpop.f32.mrb[0].mxu0
      %2835 = vmatprep.mubr.bf16.mxu0 %v960
      %2836 = vmatmul.mubr.bf16.gmra.mrb[0].mxu0 %v948
      %v2837 = vpop.f32.mrb[0].mxu0
      %v2838 = vadd.f32 %v2677, %v2837
      %v2839 = vpop.f32.mrb[0].mxu0
      %v2840 = vpop.f32.mrb[0].mxu0
      %v2841 = vadd.f32 %v2680, %v2840
      %v2842 = vpop.f32.mrb[0].mxu0
      %2843 = vmatprep.mubr.bf16.mxu0 %v984
      %2844 = vmatmul.mubr.bf16.gmra.mrb[0].mxu0 %v972
      %v2845 = vpop.f32.mrb[0].mxu0
      %v2846 = vadd.f32 %v2685, %v2845
      %v2847 = vpop.f32.mrb[0].mxu0
      %v2848 = vpop.f32.mrb[0].mxu0
      %v2849 = vadd.f32 %v2688, %v2848
      %v2850 = vpop.f32.mrb[0].mxu0
      %2851 = vmatprep.mubr.bf16.mxu0 %v1008
      %2852 = vmatmul.mubr.bf16.gmra.mrb[0].mxu0 %v996
      %v2853 = vpop.f32.mrb[0].mxu0
      %v2854 = vadd.f32 %v2693, %v2853
      %v2855 = vpop.f32.mrb[0].mxu0
      %v2856 = vpop.f32.mrb[0].mxu0
      %v2857 = vadd.f32 %v2696, %v2856
      %v2858 = vpop.f32.mrb[0].mxu0
      %2859 = vmatprep.mubr.bf16.mxu0 %v1032
      %2860 = vmatmul.mubr.bf16.gmra.mrb[0].mxu0 %v1020
      %v2861 = vpop.f32.mrb[0].mxu0
      %v2862 = vadd.f32 %v2701, %v2861
      %v2863 = vpop.f32.mrb[0].mxu0
      %v2864 = vpop.f32.mrb[0].mxu0
      %v2865 = vadd.f32 %v2704, %v2864
      %v2866 = vpop.f32.mrb[0].mxu0
      %2867 = vmatprep.mubr.bf16.mxu0 %v1056
      %2868 = vmatmul.mubr.bf16.gmra.mrb[0].mxu0 %v1044
      %v2869 = vpop.f32.mrb[0].mxu0
      %v2870 = vadd.f32 %v2709, %v2869
      %v2871 = vpop.f32.mrb[0].mxu0
      %v2872 = vpop.f32.mrb[0].mxu0
      %v2873 = vadd.f32 %v2712, %v2872
      %v2874 = vpop.f32.mrb[0].mxu0
      %2875 = vmatprep.mubr.bf16.mxu0 %v1080
      %2876 = vmatmul.mubr.bf16.gmra.mrb[0].mxu0 %v1068
      %v2877 = vpop.f32.mrb[0].mxu0
      %v2878 = vadd.f32 %v2717, %v2877
      %v2879 = vpop.f32.mrb[0].mxu0
      %v2880 = vpop.f32.mrb[0].mxu0
      %v2881 = vadd.f32 %v2720, %v2880
      %v2882 = vpop.f32.mrb[0].mxu0
      %2883 = vdwg.mxu0
      %2884 = vmatprep.subr.bf16.mxu0 0
      %2885 = vmatpush1.bf16.msra.mxu0 %v2498
      %2886 = vmatprep.subr.bf16.mxu0 0
      %2887 = vmatpush1.bf16.msra.mxu0 %v2499
      %2888 = vmatprep.subr.bf16.mxu0 0
      %2889 = vmatpush1.bf16.msra.mxu0 %v2500
      %2890 = vmatprep.subr.bf16.mxu0 0
      %2891 = vmatpush1.bf16.msra.mxu0 %v2501
      %2892 = vmatprep.subr.bf16.mxu0 0
      %2893 = vmatpush1.bf16.msra.mxu0 %v2502
      %2894 = vmatprep.subr.bf16.mxu0 0
      %2895 = vmatpush1.bf16.msra.mxu0 %v2503
      %2896 = vmatprep.subr.bf16.mxu0 0
      %2897 = vmatpush1.bf16.msra.mxu0 %v2504
      %2898 = vmatprep.subr.bf16.mxu0 0
      %2899 = vmatpush1.bf16.msra.mxu0 %v2505
      %2900 = vmatprep.subr.bf16.mxu0 0
      %2901 = vmatpush1.bf16.msra.mxu0 %v2506
      %2902 = vmatprep.subr.bf16.mxu0 0
      %2903 = vmatpush1.bf16.msra.mxu0 %v2507
      %2904 = vmatprep.subr.bf16.mxu0 0
      %2905 = vmatpush1.bf16.msra.mxu0 %v2508
      %2906 = vmatprep.subr.bf16.mxu0 0
      %2907 = vmatpush1.bf16.msra.mxu0 %v2509
      %2908 = vmatprep.subr.bf16.mxu0 0
      %2909 = vmatpush1.bf16.msra.mxu0 %v2510
      %2910 = vmatprep.subr.bf16.mxu0 0
      %2911 = vmatpush1.bf16.msra.mxu0 %v2511
      %2912 = vmatprep.subr.bf16.mxu0 0
      %2913 = vmatpush1.bf16.msra.mxu0 %v2512
      %2914 = vmatprep.subr.bf16.mxu0 0
      %2915 = vmatpush1.bf16.msra.mxu0 %v2513
      %2916 = vmatprep.mubr.bf16.mxu0 %v1171
      %2917 = vmatmul.mubr.bf16.gmra.mrb[0].mxu0 %v1168
      %v2918 = vpop.f32.mrb[0].mxu0
      %v2919 = vadd.f32 %v2758, %v2918
      %v2920 = vpop.f32.mrb[0].mxu0
      %v2921 = vpop.f32.mrb[0].mxu0
      %v2922 = vadd.f32 %v2761, %v2921
      %v2923 = vpop.f32.mrb[0].mxu0
      %2924 = vmatprep.mubr.bf16.mxu0 %v1177
      %2925 = vmatmul.mubr.bf16.gmra.mrb[0].mxu0 %v1174
      %v2926 = vpop.f32.mrb[0].mxu0
      %v2927 = vadd.f32 %v2766, %v2926
      %v2928 = vpop.f32.mrb[0].mxu0
      %v2929 = vpop.f32.mrb[0].mxu0
      %v2930 = vadd.f32 %v2769, %v2929
      %v2931 = vpop.f32.mrb[0].mxu0
      %2932 = vmatprep.mubr.bf16.mxu0 %v1183
      %2933 = vmatmul.mubr.bf16.gmra.mrb[0].mxu0 %v1180
      %v2934 = vpop.f32.mrb[0].mxu0
      %v2935 = vadd.f32 %v2774, %v2934
      %v2936 = vpop.f32.mrb[0].mxu0
      %v2937 = vpop.f32.mrb[0].mxu0
      %v2938 = vadd.f32 %v2777, %v2937
      %v2939 = vpop.f32.mrb[0].mxu0
      %2940 = vmatprep.mubr.bf16.mxu0 %v1189
      %2941 = vmatmul.mubr.bf16.gmra.mrb[0].mxu0 %v1186
      %v2942 = vpop.f32.mrb[0].mxu0
      %v2943 = vadd.f32 %v2782, %v2942
      %v2944 = vpop.f32.mrb[0].mxu0
      %v2945 = vpop.f32.mrb[0].mxu0
      %v2946 = vadd.f32 %v2785, %v2945
      %v2947 = vpop.f32.mrb[0].mxu0
      %2948 = vmatprep.mubr.bf16.mxu0 %v1195
      %2949 = vmatmul.mubr.bf16.gmra.mrb[0].mxu0 %v1192
      %v2950 = vpop.f32.mrb[0].mxu0
      %v2951 = vadd.f32 %v2790, %v2950
      %v2952 = vpop.f32.mrb[0].mxu0
      %v2953 = vpop.f32.mrb[0].mxu0
      %v2954 = vadd.f32 %v2793, %v2953
      %v2955 = vpop.f32.mrb[0].mxu0
      %2956 = vmatprep.mubr.bf16.mxu0 %v1201
      %2957 = vmatmul.mubr.bf16.gmra.mrb[0].mxu0 %v1198
      %v2958 = vpop.f32.mrb[0].mxu0
      %v2959 = vadd.f32 %v2798, %v2958
      %v2960 = vpop.f32.mrb[0].mxu0
      %v2961 = vpop.f32.mrb[0].mxu0
      %v2962 = vadd.f32 %v2801, %v2961
      %v2963 = vpop.f32.mrb[0].mxu0
      %2964 = vmatprep.mubr.bf16.mxu0 %v1207
      %2965 = vmatmul.mubr.bf16.gmra.mrb[0].mxu0 %v1204
      %v2966 = vpop.f32.mrb[0].mxu0
      %v2967 = vadd.f32 %v2806, %v2966
      %v2968 = vpop.f32.mrb[0].mxu0
      %v2969 = vpop.f32.mrb[0].mxu0
      %v2970 = vadd.f32 %v2809, %v2969
      %v2971 = vpop.f32.mrb[0].mxu0
      %2972 = vmatprep.mubr.bf16.mxu0 %v1213
      %2973 = vmatmul.mubr.bf16.gmra.mrb[0].mxu0 %v1210
      %v2974 = vpop.f32.mrb[0].mxu0
      %v2975 = vadd.f32 %v2814, %v2974
      %v2976 = vpop.f32.mrb[0].mxu0
      %v2977 = vpop.f32.mrb[0].mxu0
      %v2978 = vadd.f32 %v2817, %v2977
      %v2979 = vpop.f32.mrb[0].mxu0
      %2980 = vmatprep.mubr.bf16.mxu0 %v1219
      %2981 = vmatmul.mubr.bf16.gmra.mrb[0].mxu0 %v1216
      %v2982 = vpop.f32.mrb[0].mxu0
      %v2983 = vadd.f32 %v2822, %v2982
      %v2984 = vpop.f32.mrb[0].mxu0
      %v2985 = vpop.f32.mrb[0].mxu0
      %v2986 = vadd.f32 %v2825, %v2985
      %v2987 = vpop.f32.mrb[0].mxu0
      %2988 = vmatprep.mubr.bf16.mxu0 %v1225
      %2989 = vmatmul.mubr.bf16.gmra.mrb[0].mxu0 %v1222
      %v2990 = vpop.f32.mrb[0].mxu0
      %v2991 = vadd.f32 %v2830, %v2990
      %v2992 = vpop.f32.mrb[0].mxu0
      %v2993 = vpop.f32.mrb[0].mxu0
      %v2994 = vadd.f32 %v2833, %v2993
      %v2995 = vpop.f32.mrb[0].mxu0
      %2996 = vmatprep.mubr.bf16.mxu0 %v1231
      %2997 = vmatmul.mubr.bf16.gmra.mrb[0].mxu0 %v1228
      %v2998 = vpop.f32.mrb[0].mxu0
      %v2999 = vadd.f32 %v2838, %v2998
      %v3000 = vpop.f32.mrb[0].mxu0
      %v3001 = vpop.f32.mrb[0].mxu0
      %v3002 = vadd.f32 %v2841, %v3001
      %v3003 = vpop.f32.mrb[0].mxu0
      %3004 = vmatprep.mubr.bf16.mxu0 %v1237
      %3005 = vmatmul.mubr.bf16.gmra.mrb[0].mxu0 %v1234
      %v3006 = vpop.f32.mrb[0].mxu0
      %v3007 = vadd.f32 %v2846, %v3006
      %v3008 = vpop.f32.mrb[0].mxu0
      %v3009 = vpop.f32.mrb[0].mxu0
      %v3010 = vadd.f32 %v2849, %v3009
      %v3011 = vpop.f32.mrb[0].mxu0
      %3012 = vmatprep.mubr.bf16.mxu0 %v1243
      %3013 = vmatmul.mubr.bf16.gmra.mrb[0].mxu0 %v1240
      %v3014 = vpop.f32.mrb[0].mxu0
      %v3015 = vadd.f32 %v2854, %v3014
      %v3016 = vpop.f32.mrb[0].mxu0
      %v3017 = vpop.f32.mrb[0].mxu0
      %v3018 = vadd.f32 %v2857, %v3017
      %v3019 = vpop.f32.mrb[0].mxu0
      %3020 = vmatprep.mubr.bf16.mxu0 %v1249
      %3021 = vmatmul.mubr.bf16.gmra.mrb[0].mxu0 %v1246
      %v3022 = vpop.f32.mrb[0].mxu0
      %v3023 = vadd.f32 %v2862, %v3022
      %v3024 = vpop.f32.mrb[0].mxu0
      %v3025 = vpop.f32.mrb[0].mxu0
      %v3026 = vadd.f32 %v2865, %v3025
      %v3027 = vpop.f32.mrb[0].mxu0
      %3028 = vmatprep.mubr.bf16.mxu0 %v1255
      %3029 = vmatmul.mubr.bf16.gmra.mrb[0].mxu0 %v1252
      %v3030 = vpop.f32.mrb[0].mxu0
      %v3031 = vadd.f32 %v2870, %v3030
      %v3032 = vpop.f32.mrb[0].mxu0
      %v3033 = vpop.f32.mrb[0].mxu0
      %v3034 = vadd.f32 %v2873, %v3033
      %v3035 = vpop.f32.mrb[0].mxu0
      %3036 = vmatprep.mubr.bf16.mxu0 %v1261
      %3037 = vmatmul.mubr.bf16.gmra.mrb[0].mxu0 %v1258
      %v3038 = vpop.f32.mrb[0].mxu0
      %v3039 = vadd.f32 %v2878, %v3038
      %v3040 = vpop.f32.mrb[0].mxu0
      %v3041 = vpop.f32.mrb[0].mxu0
      %v3042 = vadd.f32 %v2881, %v3041
      %v3043 = vpop.f32.mrb[0].mxu0
      %3044 = vdwg.mxu0
      %s3045 = scalar_lea.vmem %s2, 768
      %v3046 = vld [vmem:[%s3045] sm:$0xf]
      %v3047 = vld [vmem:[%s3045 + $0x4] sm:$0xf]
      %v3048 = vld [vmem:[%s3045 + $0x8] sm:$0xf]
      %v3049 = vld [vmem:[%s3045 + $0xc] sm:$0xf]
      %v3050 = vld [vmem:[%s3045 + $0x10] sm:$0xf]
      %v3051 = vld [vmem:[%s3045 + $0x14] sm:$0xf]
      %v3052 = vld [vmem:[%s3045 + $0x18] sm:$0xf]
      %v3053 = vld [vmem:[%s3045 + $0x1c] sm:$0xf]
      %v3054 = vld [vmem:[%s3045 + $0x20] sm:$0xf]
      %v3055 = vld [vmem:[%s3045 + $0x24] sm:$0xf]
      %v3056 = vld [vmem:[%s3045 + $0x28] sm:$0xf]
      %v3057 = vld [vmem:[%s3045 + $0x2c] sm:$0xf]
      %v3058 = vld [vmem:[%s3045 + $0x30] sm:$0xf]
      %v3059 = vld [vmem:[%s3045 + $0x34] sm:$0xf]
      %v3060 = vld [vmem:[%s3045 + $0x38] sm:$0xf]
      %v3061 = vld [vmem:[%s3045 + $0x3c] sm:$0xf]
      %v3062 = vld [vmem:[%s3045 + $0x40] sm:$0xf]
      %v3063 = vld [vmem:[%s3045 + $0x44] sm:$0xf]
      %v3064 = vld [vmem:[%s3045 + $0x48] sm:$0xf]
      %v3065 = vld [vmem:[%s3045 + $0x4c] sm:$0xf]
      %v3066 = vld [vmem:[%s3045 + $0x50] sm:$0xf]
      %v3067 = vld [vmem:[%s3045 + $0x54] sm:$0xf]
      %v3068 = vld [vmem:[%s3045 + $0x58] sm:$0xf]
      %v3069 = vld [vmem:[%s3045 + $0x5c] sm:$0xf]
      %v3070 = vld [vmem:[%s3045 + $0x60] sm:$0xf]
      %v3071 = vld [vmem:[%s3045 + $0x64] sm:$0xf]
      %v3072 = vld [vmem:[%s3045 + $0x68] sm:$0xf]
      %v3073 = vld [vmem:[%s3045 + $0x6c] sm:$0xf]
      %v3074 = vld [vmem:[%s3045 + $0x70] sm:$0xf]
      %v3075 = vld [vmem:[%s3045 + $0x74] sm:$0xf]
      %v3076 = vld [vmem:[%s3045 + $0x78] sm:$0xf]
      %v3077 = vld [vmem:[%s3045 + $0x7c] sm:$0xf]
      %v3078 = vld [vmem:[%s3045 + $0x80] sm:$0xf]
      %v3079 = vld [vmem:[%s3045 + $0x84] sm:$0xf]
      %v3080 = vld [vmem:[%s3045 + $0x88] sm:$0xf]
      %v3081 = vld [vmem:[%s3045 + $0x8c] sm:$0xf]
      %v3082 = vld [vmem:[%s3045 + $0x90] sm:$0xf]
      %v3083 = vld [vmem:[%s3045 + $0x94] sm:$0xf]
      %v3084 = vld [vmem:[%s3045 + $0x98] sm:$0xf]
      %v3085 = vld [vmem:[%s3045 + $0x9c] sm:$0xf]
      %v3086 = vld [vmem:[%s3045 + $0xa0] sm:$0xf]
      %v3087 = vld [vmem:[%s3045 + $0xa4] sm:$0xf]
      %v3088 = vld [vmem:[%s3045 + $0xa8] sm:$0xf]
      %v3089 = vld [vmem:[%s3045 + $0xac] sm:$0xf]
      %v3090 = vld [vmem:[%s3045 + $0xb0] sm:$0xf]
      %v3091 = vld [vmem:[%s3045 + $0xb4] sm:$0xf]
      %v3092 = vld [vmem:[%s3045 + $0xb8] sm:$0xf]
      %v3093 = vld [vmem:[%s3045 + $0xbc] sm:$0xf]
      %v3094 = vld [vmem:[%s3045 + $0xc0] sm:$0xf]
      %v3095 = vld [vmem:[%s3045 + $0xc4] sm:$0xf]
      %v3096 = vld [vmem:[%s3045 + $0xc8] sm:$0xf]
      %v3097 = vld [vmem:[%s3045 + $0xcc] sm:$0xf]
      %v3098 = vld [vmem:[%s3045 + $0xd0] sm:$0xf]
      %v3099 = vld [vmem:[%s3045 + $0xd4] sm:$0xf]
      %v3100 = vld [vmem:[%s3045 + $0xd8] sm:$0xf]
      %v3101 = vld [vmem:[%s3045 + $0xdc] sm:$0xf]
      %v3102 = vld [vmem:[%s3045 + $0xe0] sm:$0xf]
      %v3103 = vld [vmem:[%s3045 + $0xe4] sm:$0xf]
      %v3104 = vld [vmem:[%s3045 + $0xe8] sm:$0xf]
      %v3105 = vld [vmem:[%s3045 + $0xec] sm:$0xf]
      %v3106 = vld [vmem:[%s3045 + $0xf0] sm:$0xf]
      %v3107 = vld [vmem:[%s3045 + $0xf4] sm:$0xf]
      %v3108 = vld [vmem:[%s3045 + $0xf8] sm:$0xf]
      %v3109 = vld [vmem:[%s3045 + $0xfc] sm:$0xf]
      %v3110 = vld [vmem:[%s3045 + $0x100] sm:$0xf]
      %v3111 = vld [vmem:[%s3045 + $0x104] sm:$0xf]
      %v3112 = vld [vmem:[%s3045 + $0x108] sm:$0xf]
      %v3113 = vld [vmem:[%s3045 + $0x10c] sm:$0xf]
      %v3114 = vld [vmem:[%s3045 + $0x110] sm:$0xf]
      %v3115 = vld [vmem:[%s3045 + $0x114] sm:$0xf]
      %v3116 = vld [vmem:[%s3045 + $0x118] sm:$0xf]
      %v3117 = vld [vmem:[%s3045 + $0x11c] sm:$0xf]
      %v3118 = vld [vmem:[%s3045 + $0x120] sm:$0xf]
      %v3119 = vld [vmem:[%s3045 + $0x124] sm:$0xf]
      %v3120 = vld [vmem:[%s3045 + $0x128] sm:$0xf]
      %v3121 = vld [vmem:[%s3045 + $0x12c] sm:$0xf]
      %v3122 = vld [vmem:[%s3045 + $0x130] sm:$0xf]
      %v3123 = vld [vmem:[%s3045 + $0x134] sm:$0xf]
      %v3124 = vld [vmem:[%s3045 + $0x138] sm:$0xf]
      %v3125 = vld [vmem:[%s3045 + $0x13c] sm:$0xf]
      %v3126 = vld [vmem:[%s3045 + $0x140] sm:$0xf]
      %v3127 = vld [vmem:[%s3045 + $0x144] sm:$0xf]
      %v3128 = vld [vmem:[%s3045 + $0x148] sm:$0xf]
      %v3129 = vld [vmem:[%s3045 + $0x14c] sm:$0xf]
      %v3130 = vld [vmem:[%s3045 + $0x150] sm:$0xf]
      %v3131 = vld [vmem:[%s3045 + $0x154] sm:$0xf]
      %v3132 = vld [vmem:[%s3045 + $0x158] sm:$0xf]
      %v3133 = vld [vmem:[%s3045 + $0x15c] sm:$0xf]
      %v3134 = vld [vmem:[%s3045 + $0x160] sm:$0xf]
      %v3135 = vld [vmem:[%s3045 + $0x164] sm:$0xf]
      %v3136 = vld [vmem:[%s3045 + $0x168] sm:$0xf]
      %v3137 = vld [vmem:[%s3045 + $0x16c] sm:$0xf]
      %v3138 = vld [vmem:[%s3045 + $0x170] sm:$0xf]
      %v3139 = vld [vmem:[%s3045 + $0x174] sm:$0xf]
      %v3140 = vld [vmem:[%s3045 + $0x178] sm:$0xf]
      %v3141 = vld [vmem:[%s3045 + $0x17c] sm:$0xf]
      %v3238 = vunpack.c.l.b16 %v3046
      %v3239 = vunpack.c.l.b16 %v3047
      %v3240 = vunpack.c.l.b16 %v3048
      %v3241 = vunpack.c.l.b16 %v3049
      %v3242 = vunpack.c.l.b16 %v3050
      %v3243 = vunpack.c.l.b16 %v3051
      %v3244 = vunpack.c.l.b16 %v3052
      %v3245 = vunpack.c.l.b16 %v3053
      %v3246 = vunpack.c.l.b16 %v3054
      %v3247 = vunpack.c.l.b16 %v3055
      %v3248 = vunpack.c.l.b16 %v3056
      %v3249 = vunpack.c.l.b16 %v3057
      %v3250 = vunpack.c.l.b16 %v3058
      %v3251 = vunpack.c.l.b16 %v3059
      %v3252 = vunpack.c.l.b16 %v3060
      %v3253 = vunpack.c.l.b16 %v3061
      %v3254 = vunpack.c.l.b16 %v3062
      %v3255 = vunpack.c.l.b16 %v3063
      %v3256 = vunpack.c.l.b16 %v3064
      %v3257 = vunpack.c.l.b16 %v3065
      %v3258 = vunpack.c.l.b16 %v3066
      %v3259 = vunpack.c.l.b16 %v3067
      %v3260 = vunpack.c.l.b16 %v3068
      %v3261 = vunpack.c.l.b16 %v3069
      %v3262 = vunpack.c.l.b16 %v3070
      %v3263 = vunpack.c.l.b16 %v3071
      %v3264 = vunpack.c.l.b16 %v3072
      %v3265 = vunpack.c.l.b16 %v3073
      %v3266 = vunpack.c.l.b16 %v3074
      %v3267 = vunpack.c.l.b16 %v3075
      %v3268 = vunpack.c.l.b16 %v3076
      %v3269 = vunpack.c.l.b16 %v3077
      %v3270 = vunpack.c.l.b16 %v3078
      %v3271 = vunpack.c.l.b16 %v3079
      %v3272 = vunpack.c.l.b16 %v3080
      %v3273 = vunpack.c.l.b16 %v3081
      %v3274 = vunpack.c.l.b16 %v3082
      %v3275 = vunpack.c.l.b16 %v3083
      %v3276 = vunpack.c.l.b16 %v3084
      %v3277 = vunpack.c.l.b16 %v3085
      %v3278 = vunpack.c.l.b16 %v3086
      %v3279 = vunpack.c.l.b16 %v3087
      %v3280 = vunpack.c.l.b16 %v3088
      %v3281 = vunpack.c.l.b16 %v3089
      %v3282 = vunpack.c.l.b16 %v3090
      %v3283 = vunpack.c.l.b16 %v3091
      %v3284 = vunpack.c.l.b16 %v3092
      %v3285 = vunpack.c.l.b16 %v3093
      %v3286 = vunpack.c.l.b16 %v3094
      %v3287 = vunpack.c.l.b16 %v3095
      %v3288 = vunpack.c.l.b16 %v3096
      %v3289 = vunpack.c.l.b16 %v3097
      %v3290 = vunpack.c.l.b16 %v3098
      %v3291 = vunpack.c.l.b16 %v3099
      %v3292 = vunpack.c.l.b16 %v3100
      %v3293 = vunpack.c.l.b16 %v3101
      %v3294 = vunpack.c.l.b16 %v3102
      %v3295 = vunpack.c.l.b16 %v3103
      %v3296 = vunpack.c.l.b16 %v3104
      %v3297 = vunpack.c.l.b16 %v3105
      %v3298 = vunpack.c.l.b16 %v3106
      %v3299 = vunpack.c.l.b16 %v3107
      %v3300 = vunpack.c.l.b16 %v3108
      %v3301 = vunpack.c.l.b16 %v3109
      %v3302 = vunpack.c.l.b16 %v3110
      %v3303 = vunpack.c.l.b16 %v3111
      %v3304 = vunpack.c.l.b16 %v3112
      %v3305 = vunpack.c.l.b16 %v3113
      %v3306 = vunpack.c.l.b16 %v3114
      %v3307 = vunpack.c.l.b16 %v3115
      %v3308 = vunpack.c.l.b16 %v3116
      %v3309 = vunpack.c.l.b16 %v3117
      %v3310 = vunpack.c.l.b16 %v3118
      %v3311 = vunpack.c.l.b16 %v3119
      %v3312 = vunpack.c.l.b16 %v3120
      %v3313 = vunpack.c.l.b16 %v3121
      %v3314 = vunpack.c.l.b16 %v3122
      %v3315 = vunpack.c.l.b16 %v3123
      %v3316 = vunpack.c.l.b16 %v3124
      %v3317 = vunpack.c.l.b16 %v3125
      %v3318 = vunpack.c.l.b16 %v3126
      %v3319 = vunpack.c.l.b16 %v3127
      %v3320 = vunpack.c.l.b16 %v3128
      %v3321 = vunpack.c.l.b16 %v3129
      %v3322 = vunpack.c.l.b16 %v3130
      %v3323 = vunpack.c.l.b16 %v3131
      %v3324 = vunpack.c.l.b16 %v3132
      %v3325 = vunpack.c.l.b16 %v3133
      %v3326 = vunpack.c.l.b16 %v3134
      %v3327 = vunpack.c.l.b16 %v3135
      %v3328 = vunpack.c.l.b16 %v3136
      %v3329 = vunpack.c.l.b16 %v3137
      %v3330 = vunpack.c.l.b16 %v3138
      %v3331 = vunpack.c.l.b16 %v3139
      %v3332 = vunpack.c.l.b16 %v3140
      %v3333 = vunpack.c.l.b16 %v3141
      %v3334 = vpack.c.b16 %v3239, %v3238
      %v3335 = vpack.c.b16 %v3241, %v3240
      %v3336 = vpack.c.b16 %v3243, %v3242
      %v3337 = vpack.c.b16 %v3245, %v3244
      %v3338 = vpack.c.b16 %v3247, %v3246
      %v3339 = vpack.c.b16 %v3249, %v3248
      %v3340 = vpack.c.b16 %v3251, %v3250
      %v3341 = vpack.c.b16 %v3253, %v3252
      %v3342 = vpack.c.b16 %v3255, %v3254
      %v3343 = vpack.c.b16 %v3257, %v3256
      %v3344 = vpack.c.b16 %v3259, %v3258
      %v3345 = vpack.c.b16 %v3261, %v3260
      %v3346 = vpack.c.b16 %v3263, %v3262
      %v3347 = vpack.c.b16 %v3265, %v3264
      %v3348 = vpack.c.b16 %v3267, %v3266
      %v3349 = vpack.c.b16 %v3269, %v3268
      %v3350 = vpack.c.b16 %v3271, %v3270
      %v3351 = vpack.c.b16 %v3273, %v3272
      %v3352 = vpack.c.b16 %v3275, %v3274
      %v3353 = vpack.c.b16 %v3277, %v3276
      %v3354 = vpack.c.b16 %v3279, %v3278
      %v3355 = vpack.c.b16 %v3281, %v3280
      %v3356 = vpack.c.b16 %v3283, %v3282
      %v3357 = vpack.c.b16 %v3285, %v3284
      %v3358 = vpack.c.b16 %v3287, %v3286
      %v3359 = vpack.c.b16 %v3289, %v3288
      %v3360 = vpack.c.b16 %v3291, %v3290
      %v3361 = vpack.c.b16 %v3293, %v3292
      %v3362 = vpack.c.b16 %v3295, %v3294
      %v3363 = vpack.c.b16 %v3297, %v3296
      %v3364 = vpack.c.b16 %v3299, %v3298
      %v3365 = vpack.c.b16 %v3301, %v3300
      %v3366 = vpack.c.b16 %v3303, %v3302
      %v3367 = vpack.c.b16 %v3305, %v3304
      %v3368 = vpack.c.b16 %v3307, %v3306
      %v3369 = vpack.c.b16 %v3309, %v3308
      %v3370 = vpack.c.b16 %v3311, %v3310
      %v3371 = vpack.c.b16 %v3313, %v3312
      %v3372 = vpack.c.b16 %v3315, %v3314
      %v3373 = vpack.c.b16 %v3317, %v3316
      %v3374 = vpack.c.b16 %v3319, %v3318
      %v3375 = vpack.c.b16 %v3321, %v3320
      %v3376 = vpack.c.b16 %v3323, %v3322
      %v3377 = vpack.c.b16 %v3325, %v3324
      %v3378 = vpack.c.b16 %v3327, %v3326
      %v3379 = vpack.c.b16 %v3329, %v3328
      %v3380 = vpack.c.b16 %v3331, %v3330
      %v3381 = vpack.c.b16 %v3333, %v3332
      %3430 = vmatprep.subr.bf16.mxu0 0
      %3431 = vmatpush1.bf16.msra.mxu0 %v3334
      %3432 = vmatprep.subr.bf16.mxu0 0
      %3433 = vmatpush1.bf16.msra.mxu0 %v3335
      %3434 = vmatprep.subr.bf16.mxu0 0
      %3435 = vmatpush1.bf16.msra.mxu0 %v3336
      %3436 = vmatprep.subr.bf16.mxu0 0
      %3437 = vmatpush1.bf16.msra.mxu0 %v3337
      %3438 = vmatprep.subr.bf16.mxu0 0
      %3439 = vmatpush1.bf16.msra.mxu0 %v3338
      %3440 = vmatprep.subr.bf16.mxu0 0
      %3441 = vmatpush1.bf16.msra.mxu0 %v3339
      %3442 = vmatprep.subr.bf16.mxu0 0
      %3443 = vmatpush1.bf16.msra.mxu0 %v3340
      %3444 = vmatprep.subr.bf16.mxu0 0
      %3445 = vmatpush1.bf16.msra.mxu0 %v3341
      %3446 = vmatprep.subr.bf16.mxu0 0
      %3447 = vmatpush1.bf16.msra.mxu0 %v3342
      %3448 = vmatprep.subr.bf16.mxu0 0
      %3449 = vmatpush1.bf16.msra.mxu0 %v3343
      %3450 = vmatprep.subr.bf16.mxu0 0
      %3451 = vmatpush1.bf16.msra.mxu0 %v3344
      %3452 = vmatprep.subr.bf16.mxu0 0
      %3453 = vmatpush1.bf16.msra.mxu0 %v3345
      %3454 = vmatprep.subr.bf16.mxu0 0
      %3455 = vmatpush1.bf16.msra.mxu0 %v3346
      %3456 = vmatprep.subr.bf16.mxu0 0
      %3457 = vmatpush1.bf16.msra.mxu0 %v3347
      %3458 = vmatprep.subr.bf16.mxu0 0
      %3459 = vmatpush1.bf16.msra.mxu0 %v3348
      %3460 = vmatprep.subr.bf16.mxu0 0
      %3461 = vmatpush1.bf16.msra.mxu0 %v3349
      %3462 = vmatprep.mubr.bf16.mxu0 %v539
      %3463 = vmatmul.mubr.bf16.gmra.mrb[0].mxu0 %v538
      %v3464 = vpop.f32.mrb[0].mxu0
      %v3465 = vadd.f32 0.0, %v3464
      %v3466 = vpop.f32.mrb[0].mxu0
      %v3467 = vpop.f32.mrb[0].mxu0
      %v3468 = vadd.f32 0.0, %v3467
      %v3469 = vpop.f32.mrb[0].mxu0
      %3470 = vmatprep.mubr.bf16.mxu0 %v541
      %3471 = vmatmul.mubr.bf16.gmra.mrb[0].mxu0 %v540
      %v3472 = vpop.f32.mrb[0].mxu0
      %v3473 = vadd.f32 0.0, %v3472
      %v3474 = vpop.f32.mrb[0].mxu0
      %v3475 = vpop.f32.mrb[0].mxu0
      %v3476 = vadd.f32 0.0, %v3475
      %v3477 = vpop.f32.mrb[0].mxu0
      %3478 = vmatprep.mubr.bf16.mxu0 %v543
      %3479 = vmatmul.mubr.bf16.gmra.mrb[0].mxu0 %v542
      %v3480 = vpop.f32.mrb[0].mxu0
      %v3481 = vadd.f32 0.0, %v3480
      %v3482 = vpop.f32.mrb[0].mxu0
      %v3483 = vpop.f32.mrb[0].mxu0
      %v3484 = vadd.f32 0.0, %v3483
      %v3485 = vpop.f32.mrb[0].mxu0
      %3486 = vmatprep.mubr.bf16.mxu0 %v545
      %3487 = vmatmul.mubr.bf16.gmra.mrb[0].mxu0 %v544
      %v3488 = vpop.f32.mrb[0].mxu0
      %v3489 = vadd.f32 0.0, %v3488
      %v3490 = vpop.f32.mrb[0].mxu0
      %v3491 = vpop.f32.mrb[0].mxu0
      %v3492 = vadd.f32 0.0, %v3491
      %v3493 = vpop.f32.mrb[0].mxu0
      %3494 = vmatprep.mubr.bf16.mxu0 %v547
      %3495 = vmatmul.mubr.bf16.gmra.mrb[0].mxu0 %v546
      %v3496 = vpop.f32.mrb[0].mxu0
      %v3497 = vadd.f32 0.0, %v3496
      %v3498 = vpop.f32.mrb[0].mxu0
      %v3499 = vpop.f32.mrb[0].mxu0
      %v3500 = vadd.f32 0.0, %v3499
      %v3501 = vpop.f32.mrb[0].mxu0
      %3502 = vmatprep.mubr.bf16.mxu0 %v549
      %3503 = vmatmul.mubr.bf16.gmra.mrb[0].mxu0 %v548
      %v3504 = vpop.f32.mrb[0].mxu0
      %v3505 = vadd.f32 0.0, %v3504
      %v3506 = vpop.f32.mrb[0].mxu0
      %v3507 = vpop.f32.mrb[0].mxu0
      %v3508 = vadd.f32 0.0, %v3507
      %v3509 = vpop.f32.mrb[0].mxu0
      %3510 = vmatprep.mubr.bf16.mxu0 %v551
      %3511 = vmatmul.mubr.bf16.gmra.mrb[0].mxu0 %v550
      %v3512 = vpop.f32.mrb[0].mxu0
      %v3513 = vadd.f32 0.0, %v3512
      %v3514 = vpop.f32.mrb[0].mxu0
      %v3515 = vpop.f32.mrb[0].mxu0
      %v3516 = vadd.f32 0.0, %v3515
      %v3517 = vpop.f32.mrb[0].mxu0
      %3518 = vmatprep.mubr.bf16.mxu0 %v553
      %3519 = vmatmul.mubr.bf16.gmra.mrb[0].mxu0 %v552
      %v3520 = vpop.f32.mrb[0].mxu0
      %v3521 = vadd.f32 0.0, %v3520
      %v3522 = vpop.f32.mrb[0].mxu0
      %v3523 = vpop.f32.mrb[0].mxu0
      %v3524 = vadd.f32 0.0, %v3523
      %v3525 = vpop.f32.mrb[0].mxu0
      %3526 = vmatprep.mubr.bf16.mxu0 %v555
      %3527 = vmatmul.mubr.bf16.gmra.mrb[0].mxu0 %v554
      %v3528 = vpop.f32.mrb[0].mxu0
      %v3529 = vadd.f32 0.0, %v3528
      %v3530 = vpop.f32.mrb[0].mxu0
      %v3531 = vpop.f32.mrb[0].mxu0
      %v3532 = vadd.f32 0.0, %v3531
      %v3533 = vpop.f32.mrb[0].mxu0
      %3534 = vmatprep.mubr.bf16.mxu0 %v557
      %3535 = vmatmul.mubr.bf16.gmra.mrb[0].mxu0 %v556
      %v3536 = vpop.f32.mrb[0].mxu0
      %v3537 = vadd.f32 0.0, %v3536
      %v3538 = vpop.f32.mrb[0].mxu0
      %v3539 = vpop.f32.mrb[0].mxu0
      %v3540 = vadd.f32 0.0, %v3539
      %v3541 = vpop.f32.mrb[0].mxu0
      %3542 = vmatprep.mubr.bf16.mxu0 %v559
      %3543 = vmatmul.mubr.bf16.gmra.mrb[0].mxu0 %v558
      %v3544 = vpop.f32.mrb[0].mxu0
      %v3545 = vadd.f32 0.0, %v3544
      %v3546 = vpop.f32.mrb[0].mxu0
      %v3547 = vpop.f32.mrb[0].mxu0
      %v3548 = vadd.f32 0.0, %v3547
      %v3549 = vpop.f32.mrb[0].mxu0
      %3550 = vmatprep.mubr.bf16.mxu0 %v561
      %3551 = vmatmul.mubr.bf16.gmra.mrb[0].mxu0 %v560
      %v3552 = vpop.f32.mrb[0].mxu0
      %v3553 = vadd.f32 0.0, %v3552
      %v3554 = vpop.f32.mrb[0].mxu0
      %v3555 = vpop.f32.mrb[0].mxu0
      %v3556 = vadd.f32 0.0, %v3555
      %v3557 = vpop.f32.mrb[0].mxu0
      %3558 = vmatprep.mubr.bf16.mxu0 %v563
      %3559 = vmatmul.mubr.bf16.gmra.mrb[0].mxu0 %v562
      %v3560 = vpop.f32.mrb[0].mxu0
      %v3561 = vadd.f32 0.0, %v3560
      %v3562 = vpop.f32.mrb[0].mxu0
      %v3563 = vpop.f32.mrb[0].mxu0
      %v3564 = vadd.f32 0.0, %v3563
      %v3565 = vpop.f32.mrb[0].mxu0
      %3566 = vmatprep.mubr.bf16.mxu0 %v565
      %3567 = vmatmul.mubr.bf16.gmra.mrb[0].mxu0 %v564
      %v3568 = vpop.f32.mrb[0].mxu0
      %v3569 = vadd.f32 0.0, %v3568
      %v3570 = vpop.f32.mrb[0].mxu0
      %v3571 = vpop.f32.mrb[0].mxu0
      %v3572 = vadd.f32 0.0, %v3571
      %v3573 = vpop.f32.mrb[0].mxu0
      %3574 = vmatprep.mubr.bf16.mxu0 %v567
      %3575 = vmatmul.mubr.bf16.gmra.mrb[0].mxu0 %v566
      %v3576 = vpop.f32.mrb[0].mxu0
      %v3577 = vadd.f32 0.0, %v3576
      %v3578 = vpop.f32.mrb[0].mxu0
      %v3579 = vpop.f32.mrb[0].mxu0
      %v3580 = vadd.f32 0.0, %v3579
      %v3581 = vpop.f32.mrb[0].mxu0
      %3582 = vmatprep.mubr.bf16.mxu0 %v569
      %3583 = vmatmul.mubr.bf16.gmra.mrb[0].mxu0 %v568
      %v3584 = vpop.f32.mrb[0].mxu0
      %v3585 = vadd.f32 0.0, %v3584
      %v3586 = vpop.f32.mrb[0].mxu0
      %v3587 = vpop.f32.mrb[0].mxu0
      %v3588 = vadd.f32 0.0, %v3587
      %v3589 = vpop.f32.mrb[0].mxu0
      %3590 = vdwg.mxu0
      %3591 = vmatprep.subr.bf16.mxu0 0
      %3592 = vmatpush1.bf16.msra.mxu0 %v3350
      %3593 = vmatprep.subr.bf16.mxu0 0
      %3594 = vmatpush1.bf16.msra.mxu0 %v3351
      %3595 = vmatprep.subr.bf16.mxu0 0
      %3596 = vmatpush1.bf16.msra.mxu0 %v3352
      %3597 = vmatprep.subr.bf16.mxu0 0
      %3598 = vmatpush1.bf16.msra.mxu0 %v3353
      %3599 = vmatprep.subr.bf16.mxu0 0
      %3600 = vmatpush1.bf16.msra.mxu0 %v3354
      %3601 = vmatprep.subr.bf16.mxu0 0
      %3602 = vmatpush1.bf16.msra.mxu0 %v3355
      %3603 = vmatprep.subr.bf16.mxu0 0
      %3604 = vmatpush1.bf16.msra.mxu0 %v3356
      %3605 = vmatprep.subr.bf16.mxu0 0
      %3606 = vmatpush1.bf16.msra.mxu0 %v3357
      %3607 = vmatprep.subr.bf16.mxu0 0
      %3608 = vmatpush1.bf16.msra.mxu0 %v3358
      %3609 = vmatprep.subr.bf16.mxu0 0
      %3610 = vmatpush1.bf16.msra.mxu0 %v3359
      %3611 = vmatprep.subr.bf16.mxu0 0
      %3612 = vmatpush1.bf16.msra.mxu0 %v3360
      %3613 = vmatprep.subr.bf16.mxu0 0
      %3614 = vmatpush1.bf16.msra.mxu0 %v3361
      %3615 = vmatprep.subr.bf16.mxu0 0
      %3616 = vmatpush1.bf16.msra.mxu0 %v3362
      %3617 = vmatprep.subr.bf16.mxu0 0
      %3618 = vmatpush1.bf16.msra.mxu0 %v3363
      %3619 = vmatprep.subr.bf16.mxu0 0
      %3620 = vmatpush1.bf16.msra.mxu0 %v3364
      %3621 = vmatprep.subr.bf16.mxu0 0
      %3622 = vmatpush1.bf16.msra.mxu0 %v3365
      %3623 = vmatprep.mubr.bf16.mxu0 %v768
      %3624 = vmatmul.mubr.bf16.gmra.mrb[0].mxu0 %v756
      %v3625 = vpop.f32.mrb[0].mxu0
      %v3626 = vadd.f32 %v3465, %v3625
      %v3627 = vpop.f32.mrb[0].mxu0
      %v3628 = vpop.f32.mrb[0].mxu0
      %v3629 = vadd.f32 %v3468, %v3628
      %v3630 = vpop.f32.mrb[0].mxu0
      %3631 = vmatprep.mubr.bf16.mxu0 %v792
      %3632 = vmatmul.mubr.bf16.gmra.mrb[0].mxu0 %v780
      %v3633 = vpop.f32.mrb[0].mxu0
      %v3634 = vadd.f32 %v3473, %v3633
      %v3635 = vpop.f32.mrb[0].mxu0
      %v3636 = vpop.f32.mrb[0].mxu0
      %v3637 = vadd.f32 %v3476, %v3636
      %v3638 = vpop.f32.mrb[0].mxu0
      %3639 = vmatprep.mubr.bf16.mxu0 %v816
      %3640 = vmatmul.mubr.bf16.gmra.mrb[0].mxu0 %v804
      %v3641 = vpop.f32.mrb[0].mxu0
      %v3642 = vadd.f32 %v3481, %v3641
      %v3643 = vpop.f32.mrb[0].mxu0
      %v3644 = vpop.f32.mrb[0].mxu0
      %v3645 = vadd.f32 %v3484, %v3644
      %v3646 = vpop.f32.mrb[0].mxu0
      %3647 = vmatprep.mubr.bf16.mxu0 %v840
      %3648 = vmatmul.mubr.bf16.gmra.mrb[0].mxu0 %v828
      %v3649 = vpop.f32.mrb[0].mxu0
      %v3650 = vadd.f32 %v3489, %v3649
      %v3651 = vpop.f32.mrb[0].mxu0
      %v3652 = vpop.f32.mrb[0].mxu0
      %v3653 = vadd.f32 %v3492, %v3652
      %v3654 = vpop.f32.mrb[0].mxu0
      %3655 = vmatprep.mubr.bf16.mxu0 %v864
      %3656 = vmatmul.mubr.bf16.gmra.mrb[0].mxu0 %v852
      %v3657 = vpop.f32.mrb[0].mxu0
      %v3658 = vadd.f32 %v3497, %v3657
      %v3659 = vpop.f32.mrb[0].mxu0
      %v3660 = vpop.f32.mrb[0].mxu0
      %v3661 = vadd.f32 %v3500, %v3660
      %v3662 = vpop.f32.mrb[0].mxu0
      %3663 = vmatprep.mubr.bf16.mxu0 %v888
      %3664 = vmatmul.mubr.bf16.gmra.mrb[0].mxu0 %v876
      %v3665 = vpop.f32.mrb[0].mxu0
      %v3666 = vadd.f32 %v3505, %v3665
      %v3667 = vpop.f32.mrb[0].mxu0
      %v3668 = vpop.f32.mrb[0].mxu0
      %v3669 = vadd.f32 %v3508, %v3668
      %v3670 = vpop.f32.mrb[0].mxu0
      %3671 = vmatprep.mubr.bf16.mxu0 %v912
      %3672 = vmatmul.mubr.bf16.gmra.mrb[0].mxu0 %v900
      %v3673 = vpop.f32.mrb[0].mxu0
      %v3674 = vadd.f32 %v3513, %v3673
      %v3675 = vpop.f32.mrb[0].mxu0
      %v3676 = vpop.f32.mrb[0].mxu0
      %v3677 = vadd.f32 %v3516, %v3676
      %v3678 = vpop.f32.mrb[0].mxu0
      %3679 = vmatprep.mubr.bf16.mxu0 %v936
      %3680 = vmatmul.mubr.bf16.gmra.mrb[0].mxu0 %v924
      %v3681 = vpop.f32.mrb[0].mxu0
      %v3682 = vadd.f32 %v3521, %v3681
      %v3683 = vpop.f32.mrb[0].mxu0
      %v3684 = vpop.f32.mrb[0].mxu0
      %v3685 = vadd.f32 %v3524, %v3684
      %v3686 = vpop.f32.mrb[0].mxu0
      %3687 = vmatprep.mubr.bf16.mxu0 %v960
      %3688 = vmatmul.mubr.bf16.gmra.mrb[0].mxu0 %v948
      %v3689 = vpop.f32.mrb[0].mxu0
      %v3690 = vadd.f32 %v3529, %v3689
      %v3691 = vpop.f32.mrb[0].mxu0
      %v3692 = vpop.f32.mrb[0].mxu0
      %v3693 = vadd.f32 %v3532, %v3692
      %v3694 = vpop.f32.mrb[0].mxu0
      %3695 = vmatprep.mubr.bf16.mxu0 %v984
      %3696 = vmatmul.mubr.bf16.gmra.mrb[0].mxu0 %v972
      %v3697 = vpop.f32.mrb[0].mxu0
      %v3698 = vadd.f32 %v3537, %v3697
      %v3699 = vpop.f32.mrb[0].mxu0
      %v3700 = vpop.f32.mrb[0].mxu0
      %v3701 = vadd.f32 %v3540, %v3700
      %v3702 = vpop.f32.mrb[0].mxu0
      %3703 = vmatprep.mubr.bf16.mxu0 %v1008
      %3704 = vmatmul.mubr.bf16.gmra.mrb[0].mxu0 %v996
      %v3705 = vpop.f32.mrb[0].mxu0
      %v3706 = vadd.f32 %v3545, %v3705
      %v3707 = vpop.f32.mrb[0].mxu0
      %v3708 = vpop.f32.mrb[0].mxu0
      %v3709 = vadd.f32 %v3548, %v3708
      %v3710 = vpop.f32.mrb[0].mxu0
      %3711 = vmatprep.mubr.bf16.mxu0 %v1032
      %3712 = vmatmul.mubr.bf16.gmra.mrb[0].mxu0 %v1020
      %v3713 = vpop.f32.mrb[0].mxu0
      %v3714 = vadd.f32 %v3553, %v3713
      %v3715 = vpop.f32.mrb[0].mxu0
      %v3716 = vpop.f32.mrb[0].mxu0
      %v3717 = vadd.f32 %v3556, %v3716
      %v3718 = vpop.f32.mrb[0].mxu0
      %3719 = vmatprep.mubr.bf16.mxu0 %v1056
      %3720 = vmatmul.mubr.bf16.gmra.mrb[0].mxu0 %v1044
      %v3721 = vpop.f32.mrb[0].mxu0
      %v3722 = vadd.f32 %v3561, %v3721
      %v3723 = vpop.f32.mrb[0].mxu0
      %v3724 = vpop.f32.mrb[0].mxu0
      %v3725 = vadd.f32 %v3564, %v3724
      %v3726 = vpop.f32.mrb[0].mxu0
      %3727 = vmatprep.mubr.bf16.mxu0 %v1080
      %3728 = vmatmul.mubr.bf16.gmra.mrb[0].mxu0 %v1068
      %v3729 = vpop.f32.mrb[0].mxu0
      %v3730 = vadd.f32 %v3569, %v3729
      %v3731 = vpop.f32.mrb[0].mxu0
      %v3732 = vpop.f32.mrb[0].mxu0
      %v3733 = vadd.f32 %v3572, %v3732
      %v3734 = vpop.f32.mrb[0].mxu0
      %3735 = vmatprep.mubr.bf16.mxu0 %v1104
      %3736 = vmatmul.mubr.bf16.gmra.mrb[0].mxu0 %v1092
      %v3737 = vpop.f32.mrb[0].mxu0
      %v3738 = vadd.f32 %v3577, %v3737
      %v3739 = vpop.f32.mrb[0].mxu0
      %v3740 = vpop.f32.mrb[0].mxu0
      %v3741 = vadd.f32 %v3580, %v3740
      %v3742 = vpop.f32.mrb[0].mxu0
      %3743 = vmatprep.mubr.bf16.mxu0 %v1128
      %3744 = vmatmul.mubr.bf16.gmra.mrb[0].mxu0 %v1116
      %v3745 = vpop.f32.mrb[0].mxu0
      %v3746 = vadd.f32 %v3585, %v3745
      %v3747 = vpop.f32.mrb[0].mxu0
      %v3748 = vpop.f32.mrb[0].mxu0
      %v3749 = vadd.f32 %v3588, %v3748
      %v3750 = vpop.f32.mrb[0].mxu0
      %3751 = vdwg.mxu0
      %3752 = vmatprep.subr.bf16.mxu0 0
      %3753 = vmatpush1.bf16.msra.mxu0 %v3366
      %3754 = vmatprep.subr.bf16.mxu0 0
      %3755 = vmatpush1.bf16.msra.mxu0 %v3367
      %3756 = vmatprep.subr.bf16.mxu0 0
      %3757 = vmatpush1.bf16.msra.mxu0 %v3368
      %3758 = vmatprep.subr.bf16.mxu0 0
      %3759 = vmatpush1.bf16.msra.mxu0 %v3369
      %3760 = vmatprep.subr.bf16.mxu0 0
      %3761 = vmatpush1.bf16.msra.mxu0 %v3370
      %3762 = vmatprep.subr.bf16.mxu0 0
      %3763 = vmatpush1.bf16.msra.mxu0 %v3371
      %3764 = vmatprep.subr.bf16.mxu0 0
      %3765 = vmatpush1.bf16.msra.mxu0 %v3372
      %3766 = vmatprep.subr.bf16.mxu0 0
      %3767 = vmatpush1.bf16.msra.mxu0 %v3373
      %3768 = vmatprep.subr.bf16.mxu0 0
      %3769 = vmatpush1.bf16.msra.mxu0 %v3374
      %3770 = vmatprep.subr.bf16.mxu0 0
      %3771 = vmatpush1.bf16.msra.mxu0 %v3375
      %3772 = vmatprep.subr.bf16.mxu0 0
      %3773 = vmatpush1.bf16.msra.mxu0 %v3376
      %3774 = vmatprep.subr.bf16.mxu0 0
      %3775 = vmatpush1.bf16.msra.mxu0 %v3377
      %3776 = vmatprep.subr.bf16.mxu0 0
      %3777 = vmatpush1.bf16.msra.mxu0 %v3378
      %3778 = vmatprep.subr.bf16.mxu0 0
      %3779 = vmatpush1.bf16.msra.mxu0 %v3379
      %3780 = vmatprep.subr.bf16.mxu0 0
      %3781 = vmatpush1.bf16.msra.mxu0 %v3380
      %3782 = vmatprep.subr.bf16.mxu0 0
      %3783 = vmatpush1.bf16.msra.mxu0 %v3381
      %3784 = vmatprep.mubr.bf16.mxu0 %v1183
      %3785 = vmatmul.mubr.bf16.gmra.mrb[0].mxu0 %v1180
      %v3786 = vpop.f32.mrb[0].mxu0
      %v3787 = vadd.f32 %v3626, %v3786
      %v3788 = vpop.f32.mrb[0].mxu0
      %v3789 = vpop.f32.mrb[0].mxu0
      %v3790 = vadd.f32 %v3629, %v3789
      %v3791 = vpop.f32.mrb[0].mxu0
      %3792 = vmatprep.mubr.bf16.mxu0 %v1189
      %3793 = vmatmul.mubr.bf16.gmra.mrb[0].mxu0 %v1186
      %v3794 = vpop.f32.mrb[0].mxu0
      %v3795 = vadd.f32 %v3634, %v3794
      %v3796 = vpop.f32.mrb[0].mxu0
      %v3797 = vpop.f32.mrb[0].mxu0
      %v3798 = vadd.f32 %v3637, %v3797
      %v3799 = vpop.f32.mrb[0].mxu0
      %3800 = vmatprep.mubr.bf16.mxu0 %v1195
      %3801 = vmatmul.mubr.bf16.gmra.mrb[0].mxu0 %v1192
      %v3802 = vpop.f32.mrb[0].mxu0
      %v3803 = vadd.f32 %v3642, %v3802
      %v3804 = vpop.f32.mrb[0].mxu0
      %v3805 = vpop.f32.mrb[0].mxu0
      %v3806 = vadd.f32 %v3645, %v3805
      %v3807 = vpop.f32.mrb[0].mxu0
      %3808 = vmatprep.mubr.bf16.mxu0 %v1201
      %3809 = vmatmul.mubr.bf16.gmra.mrb[0].mxu0 %v1198
      %v3810 = vpop.f32.mrb[0].mxu0
      %v3811 = vadd.f32 %v3650, %v3810
      %v3812 = vpop.f32.mrb[0].mxu0
      %v3813 = vpop.f32.mrb[0].mxu0
      %v3814 = vadd.f32 %v3653, %v3813
      %v3815 = vpop.f32.mrb[0].mxu0
      %3816 = vmatprep.mubr.bf16.mxu0 %v1207
      %3817 = vmatmul.mubr.bf16.gmra.mrb[0].mxu0 %v1204
      %v3818 = vpop.f32.mrb[0].mxu0
      %v3819 = vadd.f32 %v3658, %v3818
      %v3820 = vpop.f32.mrb[0].mxu0
      %v3821 = vpop.f32.mrb[0].mxu0
      %v3822 = vadd.f32 %v3661, %v3821
      %v3823 = vpop.f32.mrb[0].mxu0
      %3824 = vmatprep.mubr.bf16.mxu0 %v1213
      %3825 = vmatmul.mubr.bf16.gmra.mrb[0].mxu0 %v1210
      %v3826 = vpop.f32.mrb[0].mxu0
      %v3827 = vadd.f32 %v3666, %v3826
      %v3828 = vpop.f32.mrb[0].mxu0
      %v3829 = vpop.f32.mrb[0].mxu0
      %v3830 = vadd.f32 %v3669, %v3829
      %v3831 = vpop.f32.mrb[0].mxu0
      %3832 = vmatprep.mubr.bf16.mxu0 %v1219
      %3833 = vmatmul.mubr.bf16.gmra.mrb[0].mxu0 %v1216
      %v3834 = vpop.f32.mrb[0].mxu0
      %v3835 = vadd.f32 %v3674, %v3834
      %v3836 = vpop.f32.mrb[0].mxu0
      %v3837 = vpop.f32.mrb[0].mxu0
      %v3838 = vadd.f32 %v3677, %v3837
      %v3839 = vpop.f32.mrb[0].mxu0
      %3840 = vmatprep.mubr.bf16.mxu0 %v1225
      %3841 = vmatmul.mubr.bf16.gmra.mrb[0].mxu0 %v1222
      %v3842 = vpop.f32.mrb[0].mxu0
      %v3843 = vadd.f32 %v3682, %v3842
      %v3844 = vpop.f32.mrb[0].mxu0
      %v3845 = vpop.f32.mrb[0].mxu0
      %v3846 = vadd.f32 %v3685, %v3845
      %v3847 = vpop.f32.mrb[0].mxu0
      %3848 = vmatprep.mubr.bf16.mxu0 %v1231
      %3849 = vmatmul.mubr.bf16.gmra.mrb[0].mxu0 %v1228
      %v3850 = vpop.f32.mrb[0].mxu0
      %v3851 = vadd.f32 %v3690, %v3850
      %v3852 = vpop.f32.mrb[0].mxu0
      %v3853 = vpop.f32.mrb[0].mxu0
      %v3854 = vadd.f32 %v3693, %v3853
      %v3855 = vpop.f32.mrb[0].mxu0
      %3856 = vmatprep.mubr.bf16.mxu0 %v1237
      %3857 = vmatmul.mubr.bf16.gmra.mrb[0].mxu0 %v1234
      %v3858 = vpop.f32.mrb[0].mxu0
      %v3859 = vadd.f32 %v3698, %v3858
      %v3860 = vpop.f32.mrb[0].mxu0
      %v3861 = vpop.f32.mrb[0].mxu0
      %v3862 = vadd.f32 %v3701, %v3861
      %v3863 = vpop.f32.mrb[0].mxu0
      %3864 = vmatprep.mubr.bf16.mxu0 %v1243
      %3865 = vmatmul.mubr.bf16.gmra.mrb[0].mxu0 %v1240
      %v3866 = vpop.f32.mrb[0].mxu0
      %v3867 = vadd.f32 %v3706, %v3866
      %v3868 = vpop.f32.mrb[0].mxu0
      %v3869 = vpop.f32.mrb[0].mxu0
      %v3870 = vadd.f32 %v3709, %v3869
      %v3871 = vpop.f32.mrb[0].mxu0
      %3872 = vmatprep.mubr.bf16.mxu0 %v1249
      %3873 = vmatmul.mubr.bf16.gmra.mrb[0].mxu0 %v1246
      %v3874 = vpop.f32.mrb[0].mxu0
      %v3875 = vadd.f32 %v3714, %v3874
      %v3876 = vpop.f32.mrb[0].mxu0
      %v3877 = vpop.f32.mrb[0].mxu0
      %v3878 = vadd.f32 %v3717, %v3877
      %v3879 = vpop.f32.mrb[0].mxu0
      %3880 = vmatprep.mubr.bf16.mxu0 %v1255
      %3881 = vmatmul.mubr.bf16.gmra.mrb[0].mxu0 %v1252
      %v3882 = vpop.f32.mrb[0].mxu0
      %v3883 = vadd.f32 %v3722, %v3882
      %v3884 = vpop.f32.mrb[0].mxu0
      %v3885 = vpop.f32.mrb[0].mxu0
      %v3886 = vadd.f32 %v3725, %v3885
      %v3887 = vpop.f32.mrb[0].mxu0
      %3888 = vmatprep.mubr.bf16.mxu0 %v1261
      %3889 = vmatmul.mubr.bf16.gmra.mrb[0].mxu0 %v1258
      %v3890 = vpop.f32.mrb[0].mxu0
      %v3891 = vadd.f32 %v3730, %v3890
      %v3892 = vpop.f32.mrb[0].mxu0
      %v3893 = vpop.f32.mrb[0].mxu0
      %v3894 = vadd.f32 %v3733, %v3893
      %v3895 = vpop.f32.mrb[0].mxu0
      %3896 = vmatprep.mubr.bf16.mxu0 %v1267
      %3897 = vmatmul.mubr.bf16.gmra.mrb[0].mxu0 %v1264
      %v3898 = vpop.f32.mrb[0].mxu0
      %v3899 = vadd.f32 %v3738, %v3898
      %v3900 = vpop.f32.mrb[0].mxu0
      %v3901 = vpop.f32.mrb[0].mxu0
      %v3902 = vadd.f32 %v3741, %v3901
      %v3903 = vpop.f32.mrb[0].mxu0
      %3904 = vmatprep.mubr.bf16.mxu0 %v1273
      %3905 = vmatmul.mubr.bf16.gmra.mrb[0].mxu0 %v1270
      %v3906 = vpop.f32.mrb[0].mxu0
      %v3907 = vadd.f32 %v3746, %v3906
      %v3908 = vpop.f32.mrb[0].mxu0
      %v3909 = vpop.f32.mrb[0].mxu0
      %v3910 = vadd.f32 %v3749, %v3909
      %v3911 = vpop.f32.mrb[0].mxu0
      %3912 = vdwg.mxu0
      %v3913 = vadd.f32 %v2919, %v3787
      %v3914 = vadd.f32 %v2922, %v3790
      %v3915 = vadd.f32 %v2927, %v3795
      %v3916 = vadd.f32 %v2930, %v3798
      %v3917 = vadd.f32 %v2935, %v3803
      %v3918 = vadd.f32 %v2938, %v3806
      %v3919 = vadd.f32 %v2943, %v3811
      %v3920 = vadd.f32 %v2946, %v3814
      %v3921 = vadd.f32 %v2951, %v3819
      %v3922 = vadd.f32 %v2954, %v3822
      %v3923 = vadd.f32 %v2959, %v3827
      %v3924 = vadd.f32 %v2962, %v3830
      %v3925 = vadd.f32 %v2967, %v3835
      %v3926 = vadd.f32 %v2970, %v3838
      %v3927 = vadd.f32 %v2975, %v3843
      %v3928 = vadd.f32 %v2978, %v3846
      %v3929 = vadd.f32 %v2983, %v3851
      %v3930 = vadd.f32 %v2986, %v3854
      %v3931 = vadd.f32 %v2991, %v3859
      %v3932 = vadd.f32 %v2994, %v3862
      %v3933 = vadd.f32 %v2999, %v3867
      %v3934 = vadd.f32 %v3002, %v3870
      %v3935 = vadd.f32 %v3007, %v3875
      %v3936 = vadd.f32 %v3010, %v3878
      %v3937 = vadd.f32 %v3015, %v3883
      %v3938 = vadd.f32 %v3018, %v3886
      %v3939 = vadd.f32 %v3023, %v3891
      %v3940 = vadd.f32 %v3026, %v3894
      %v3941 = vadd.f32 %v3031, %v3899
      %v3942 = vadd.f32 %v3034, %v3902
      %v3943 = vadd.f32 %v3039, %v3907
      %v3944 = vadd.f32 %v3042, %v3910
      %v3945 = vld [vmem:[%s3] sm:$0x1]
      %v3947 = vlaneseq
      %v3948 = vshrl.u32 %v3947, 7
      %v3949 = vsub.s32 0, %v3948
      %v3950 = vrot.slane %v3945, %v3949
      %v3952 = vadd.f32 %v3913, %v3950
      %v3953 = vadd.f32 %v3914, %v3950
      %v3954 = vadd.f32 %v3915, %v3950
      %v3955 = vadd.f32 %v3916, %v3950
      %v3956 = vadd.f32 %v3917, %v3950
      %v3957 = vadd.f32 %v3918, %v3950
      %v3958 = vadd.f32 %v3919, %v3950
      %v3959 = vadd.f32 %v3920, %v3950
      %v3960 = vadd.f32 %v3921, %v3950
      %v3961 = vadd.f32 %v3922, %v3950
      %v3962 = vadd.f32 %v3923, %v3950
      %v3963 = vadd.f32 %v3924, %v3950
      %v3964 = vadd.f32 %v3925, %v3950
      %v3965 = vadd.f32 %v3926, %v3950
      %v3966 = vadd.f32 %v3927, %v3950
      %v3967 = vadd.f32 %v3928, %v3950
      %v3968 = vadd.f32 %v3929, %v3950
      %v3969 = vadd.f32 %v3930, %v3950
      %v3970 = vadd.f32 %v3931, %v3950
      %v3971 = vadd.f32 %v3932, %v3950
      %v3972 = vadd.f32 %v3933, %v3950
      %v3973 = vadd.f32 %v3934, %v3950
      %v3974 = vadd.f32 %v3935, %v3950
      %v3975 = vadd.f32 %v3936, %v3950
      %v3976 = vadd.f32 %v3937, %v3950
      %v3977 = vadd.f32 %v3938, %v3950
      %v3978 = vadd.f32 %v3939, %v3950
      %v3979 = vadd.f32 %v3940, %v3950
      %v3980 = vadd.f32 %v3941, %v3950
      %v3981 = vadd.f32 %v3942, %v3950
      %v3982 = vadd.f32 %v3943, %v3950
      %v3983 = vadd.f32 %v3944, %v3950
      %v3984 = vmax.f32 %v3952, 0.0
      %v3985 = vmax.f32 %v3953, 0.0
      %v3986 = vmax.f32 %v3954, 0.0
      %v3987 = vmax.f32 %v3955, 0.0
      %v3988 = vmax.f32 %v3956, 0.0
      %v3989 = vmax.f32 %v3957, 0.0
      %v3990 = vmax.f32 %v3958, 0.0
      %v3991 = vmax.f32 %v3959, 0.0
      %v3992 = vmax.f32 %v3960, 0.0
      %v3993 = vmax.f32 %v3961, 0.0
      %v3994 = vmax.f32 %v3962, 0.0
      %v3995 = vmax.f32 %v3963, 0.0
      %v3996 = vmax.f32 %v3964, 0.0
      %v3997 = vmax.f32 %v3965, 0.0
      %v3998 = vmax.f32 %v3966, 0.0
      %v3999 = vmax.f32 %v3967, 0.0
      %v4000 = vmax.f32 %v3968, 0.0
      %v4001 = vmax.f32 %v3969, 0.0
      %v4002 = vmax.f32 %v3970, 0.0
      %v4003 = vmax.f32 %v3971, 0.0
      %v4004 = vmax.f32 %v3972, 0.0
      %v4005 = vmax.f32 %v3973, 0.0
      %v4006 = vmax.f32 %v3974, 0.0
      %v4007 = vmax.f32 %v3975, 0.0
      %v4008 = vmax.f32 %v3976, 0.0
      %v4009 = vmax.f32 %v3977, 0.0
      %v4010 = vmax.f32 %v3978, 0.0
      %v4011 = vmax.f32 %v3979, 0.0
      %v4012 = vmax.f32 %v3980, 0.0
      %v4013 = vmax.f32 %v3981, 0.0
      %v4014 = vmax.f32 %v3982, 0.0
      %v4015 = vmax.f32 %v3983, 0.0
      %v4016 = vpack.c.bf16 %v3985, %v3984
      %v4017 = vpack.c.bf16 %v3987, %v3986
      %v4018 = vpack.c.bf16 %v3989, %v3988
      %v4019 = vpack.c.bf16 %v3991, %v3990
      %v4020 = vpack.c.bf16 %v3993, %v3992
      %v4021 = vpack.c.bf16 %v3995, %v3994
      %v4022 = vpack.c.bf16 %v3997, %v3996
      %v4023 = vpack.c.bf16 %v3999, %v3998
      %v4024 = vpack.c.bf16 %v4001, %v4000
      %v4025 = vpack.c.bf16 %v4003, %v4002
      %v4026 = vpack.c.bf16 %v4005, %v4004
      %v4027 = vpack.c.bf16 %v4007, %v4006
      %v4028 = vpack.c.bf16 %v4009, %v4008
      %v4029 = vpack.c.bf16 %v4011, %v4010
      %v4030 = vpack.c.bf16 %v4013, %v4012
      %v4031 = vpack.c.bf16 %v4015, %v4014
      %v4048 = vunpack.c.l.b16 %v4016
      %v4049 = vunpack.c.h.b16 %v4016
      %v4050 = vunpack.c.l.b16 %v4017
      %v4051 = vunpack.c.h.b16 %v4017
      %v4052 = vunpack.c.l.b16 %v4018
      %v4053 = vunpack.c.h.b16 %v4018
      %v4054 = vunpack.c.l.b16 %v4019
      %v4055 = vunpack.c.h.b16 %v4019
      %v4056 = vunpack.c.l.b16 %v4020
      %v4057 = vunpack.c.h.b16 %v4020
      %v4058 = vunpack.c.l.b16 %v4021
      %v4059 = vunpack.c.h.b16 %v4021
      %v4060 = vunpack.c.l.b16 %v4022
      %v4061 = vunpack.c.h.b16 %v4022
      %v4062 = vunpack.c.l.b16 %v4023
      %v4063 = vunpack.c.h.b16 %v4023
      %v4064 = vunpack.c.l.b16 %v4024
      %v4065 = vunpack.c.h.b16 %v4024
      %v4066 = vunpack.c.l.b16 %v4025
      %v4067 = vunpack.c.h.b16 %v4025
      %v4068 = vunpack.c.l.b16 %v4026
      %v4069 = vunpack.c.h.b16 %v4026
      %v4070 = vunpack.c.l.b16 %v4027
      %v4071 = vunpack.c.h.b16 %v4027
      %v4072 = vunpack.c.l.b16 %v4028
      %v4073 = vunpack.c.h.b16 %v4028
      %v4074 = vunpack.c.l.b16 %v4029
      %v4075 = vunpack.c.h.b16 %v4029
      %v4076 = vunpack.c.l.b16 %v4030
      %v4077 = vunpack.c.h.b16 %v4030
      %v4078 = vunpack.c.l.b16 %v4031
      %v4079 = vunpack.c.h.b16 %v4031
      %v4080 = vpack.c.b16 %v4048, %v4048
      %v4081 = vpack.c.b16 %v4049, %v4049
      %v4082 = vpack.c.b16 %v4050, %v4050
      %v4083 = vpack.c.b16 %v4051, %v4051
      %v4084 = vpack.c.b16 %v4052, %v4052
      %v4085 = vpack.c.b16 %v4053, %v4053
      %v4086 = vpack.c.b16 %v4054, %v4054
      %v4087 = vpack.c.b16 %v4055, %v4055
      %v4088 = vpack.c.b16 %v4056, %v4056
      %v4089 = vpack.c.b16 %v4057, %v4057
      %v4090 = vpack.c.b16 %v4058, %v4058
      %v4091 = vpack.c.b16 %v4059, %v4059
      %v4092 = vpack.c.b16 %v4060, %v4060
      %v4093 = vpack.c.b16 %v4061, %v4061
      %v4094 = vpack.c.b16 %v4062, %v4062
      %v4095 = vpack.c.b16 %v4063, %v4063
      %v4096 = vpack.c.b16 %v4064, %v4064
      %v4097 = vpack.c.b16 %v4065, %v4065
      %v4098 = vpack.c.b16 %v4066, %v4066
      %v4099 = vpack.c.b16 %v4067, %v4067
      %v4100 = vpack.c.b16 %v4068, %v4068
      %v4101 = vpack.c.b16 %v4069, %v4069
      %v4102 = vpack.c.b16 %v4070, %v4070
      %v4103 = vpack.c.b16 %v4071, %v4071
      %v4104 = vpack.c.b16 %v4072, %v4072
      %v4105 = vpack.c.b16 %v4073, %v4073
      %v4106 = vpack.c.b16 %v4074, %v4074
      %v4107 = vpack.c.b16 %v4075, %v4075
      %v4108 = vpack.c.b16 %v4076, %v4076
      %v4109 = vpack.c.b16 %v4077, %v4077
      %v4110 = vpack.c.b16 %v4078, %v4078
      %v4111 = vpack.c.b16 %v4079, %v4079
      %4144 = vst [vmem:[%s362] sm:$0xf] %v4080
      %4145 = vst [vmem:[%s362 + $0x4] sm:$0xf] %v4081
      %4146 = vst [vmem:[%s362 + $0x8] sm:$0xf] %v4082
      %4147 = vst [vmem:[%s362 + $0xc] sm:$0xf] %v4083
      %4148 = vst [vmem:[%s362 + $0x10] sm:$0xf] %v4084
      %4149 = vst [vmem:[%s362 + $0x14] sm:$0xf] %v4085
      %4150 = vst [vmem:[%s362 + $0x18] sm:$0xf] %v4086
      %4151 = vst [vmem:[%s362 + $0x1c] sm:$0xf] %v4087
      %4152 = vst [vmem:[%s362 + $0x20] sm:$0xf] %v4088
      %4153 = vst [vmem:[%s362 + $0x24] sm:$0xf] %v4089
      %4154 = vst [vmem:[%s362 + $0x28] sm:$0xf] %v4090
      %4155 = vst [vmem:[%s362 + $0x2c] sm:$0xf] %v4091
      %4156 = vst [vmem:[%s362 + $0x30] sm:$0xf] %v4092
      %4157 = vst [vmem:[%s362 + $0x34] sm:$0xf] %v4093
      %4158 = vst [vmem:[%s362 + $0x38] sm:$0xf] %v4094
      %4159 = vst [vmem:[%s362 + $0x3c] sm:$0xf] %v4095
      %4160 = vst [vmem:[%s362 + $0x40] sm:$0xf] %v4096
      %4161 = vst [vmem:[%s362 + $0x44] sm:$0xf] %v4097
      %4162 = vst [vmem:[%s362 + $0x48] sm:$0xf] %v4098
      %4163 = vst [vmem:[%s362 + $0x4c] sm:$0xf] %v4099
      %4164 = vst [vmem:[%s362 + $0x50] sm:$0xf] %v4100
      %4165 = vst [vmem:[%s362 + $0x54] sm:$0xf] %v4101
      %4166 = vst [vmem:[%s362 + $0x58] sm:$0xf] %v4102
      %4167 = vst [vmem:[%s362 + $0x5c] sm:$0xf] %v4103
      %4168 = vst [vmem:[%s362 + $0x60] sm:$0xf] %v4104
      %4169 = vst [vmem:[%s362 + $0x64] sm:$0xf] %v4105
      %4170 = vst [vmem:[%s362 + $0x68] sm:$0xf] %v4106
      %4171 = vst [vmem:[%s362 + $0x6c] sm:$0xf] %v4107
      %4172 = vst [vmem:[%s362 + $0x70] sm:$0xf] %v4108
      %4173 = vst [vmem:[%s362 + $0x74] sm:$0xf] %v4109
      %4174 = vst [vmem:[%s362 + $0x78] sm:$0xf] %v4110
      %4175 = vst [vmem:[%s362 + $0x7c] sm:$0xf] %v4111
      %p4176 = scmp.lt.s32.totalorder %s22, 0
      // Predicated region
      $region37: #{conv_up_block.5} parent=35 // pred_check
        %p4177 = pneg %p4176
      $region38: #{conv_up_block.5} parent=35 // pred_check_branch
        %4179 = sbr.rel (%p4177) target = $region40
      $region39: #{conv_up_block.5} parent=35 // pred_region
        %v4180 = vadd.f32 %v3984, %v3985
        %v4181 = vadd.f32 %v4180, %v3986
        %v4182 = vadd.f32 %v4181, %v3987
        %v4183 = vadd.f32 %v4182, %v3988
        %v4184 = vadd.f32 %v4183, %v3989
        %v4185 = vadd.f32 %v4184, %v3990
        %v4186 = vadd.f32 %v4185, %v3991
        %v4187 = vadd.f32 %v4186, %v3992
        %v4188 = vadd.f32 %v4187, %v3993
        %v4189 = vadd.f32 %v4188, %v3994
        %v4190 = vadd.f32 %v4189, %v3995
        %v4191 = vadd.f32 %v4190, %v3996
        %v4192 = vadd.f32 %v4191, %v3997
        %v4193 = vadd.f32 %v4192, %v3998
        %v4194 = vadd.f32 %v4193, %v3999
        %v4195 = vadd.f32 %v4194, %v4000
        %v4196 = vadd.f32 %v4195, %v4001
        %v4197 = vadd.f32 %v4196, %v4002
        %v4198 = vadd.f32 %v4197, %v4003
        %v4199 = vadd.f32 %v4198, %v4004
        %v4200 = vadd.f32 %v4199, %v4005
        %v4201 = vadd.f32 %v4200, %v4006
        %v4202 = vadd.f32 %v4201, %v4007
        %v4203 = vadd.f32 %v4202, %v4008
        %v4204 = vadd.f32 %v4203, %v4009
        %v4205 = vadd.f32 %v4204, %v4010
        %v4206 = vadd.f32 %v4205, %v4011
        %v4207 = vadd.f32 %v4206, %v4012
        %v4208 = vadd.f32 %v4207, %v4013
        %v4209 = vadd.f32 %v4208, %v4014
        %v4210 = vadd.f32 %v4209, %v4015
        %v4211 = vrot.slane %v4210, 4
        %v4212 = vadd.f32 %v4210, %v4211
        %v4213 = vrot.slane %v4212, 2
        %v4214 = vadd.f32 %v4212, %v4213
        %v4215 = vrot.slane %v4214, 1
        %v4216 = vadd.f32 %v4214, %v4215
        %4217 = vst [vmem:[%s370] sm:$0x1] %v4216
        %v4218 = vmul.f32 %v3984, %v3984
        %v4219 = vmul.f32 %v3985, %v3985
        %v4220 = vmul.f32 %v3986, %v3986
        %v4221 = vmul.f32 %v3987, %v3987
        %v4222 = vmul.f32 %v3988, %v3988
        %v4223 = vmul.f32 %v3989, %v3989
        %v4224 = vmul.f32 %v3990, %v3990
        %v4225 = vmul.f32 %v3991, %v3991
        %v4226 = vmul.f32 %v3992, %v3992
        %v4227 = vmul.f32 %v3993, %v3993
        %v4228 = vmul.f32 %v3994, %v3994
        %v4229 = vmul.f32 %v3995, %v3995
        %v4230 = vmul.f32 %v3996, %v3996
        %v4231 = vmul.f32 %v3997, %v3997
        %v4232 = vmul.f32 %v3998, %v3998
        %v4233 = vmul.f32 %v3999, %v3999
        %v4234 = vmul.f32 %v4000, %v4000
        %v4235 = vmul.f32 %v4001, %v4001
        %v4236 = vmul.f32 %v4002, %v4002
        %v4237 = vmul.f32 %v4003, %v4003
        %v4238 = vmul.f32 %v4004, %v4004
        %v4239 = vmul.f32 %v4005, %v4005
        %v4240 = vmul.f32 %v4006, %v4006
        %v4241 = vmul.f32 %v4007, %v4007
        %v4242 = vmul.f32 %v4008, %v4008
        %v4243 = vmul.f32 %v4009, %v4009
        %v4244 = vmul.f32 %v4010, %v4010
        %v4245 = vmul.f32 %v4011, %v4011
        %v4246 = vmul.f32 %v4012, %v4012
        %v4247 = vmul.f32 %v4013, %v4013
        %v4248 = vmul.f32 %v4014, %v4014
        %v4249 = vmul.f32 %v4015, %v4015
        %v4250 = vadd.f32 %v4218, %v4219
        %v4251 = vadd.f32 %v4250, %v4220
        %v4252 = vadd.f32 %v4251, %v4221
        %v4253 = vadd.f32 %v4252, %v4222
        %v4254 = vadd.f32 %v4253, %v4223
        %v4255 = vadd.f32 %v4254, %v4224
        %v4256 = vadd.f32 %v4255, %v4225
        %v4257 = vadd.f32 %v4256, %v4226
        %v4258 = vadd.f32 %v4257, %v4227
        %v4259 = vadd.f32 %v4258, %v4228
        %v4260 = vadd.f32 %v4259, %v4229
        %v4261 = vadd.f32 %v4260, %v4230
        %v4262 = vadd.f32 %v4261, %v4231
        %v4263 = vadd.f32 %v4262, %v4232
        %v4264 = vadd.f32 %v4263, %v4233
        %v4265 = vadd.f32 %v4264, %v4234
        %v4266 = vadd.f32 %v4265, %v4235
        %v4267 = vadd.f32 %v4266, %v4236
        %v4268 = vadd.f32 %v4267, %v4237
        %v4269 = vadd.f32 %v4268, %v4238
        %v4270 = vadd.f32 %v4269, %v4239
        %v4271 = vadd.f32 %v4270, %v4240
        %v4272 = vadd.f32 %v4271, %v4241
        %v4273 = vadd.f32 %v4272, %v4242
        %v4274 = vadd.f32 %v4273, %v4243
        %v4275 = vadd.f32 %v4274, %v4244
        %v4276 = vadd.f32 %v4275, %v4245
        %v4277 = vadd.f32 %v4276, %v4246
        %v4278 = vadd.f32 %v4277, %v4247
        %v4279 = vadd.f32 %v4278, %v4248
        %v4280 = vadd.f32 %v4279, %v4249
        %v4281 = vrot.slane %v4280, 4
        %v4282 = vadd.f32 %v4280, %v4281
        %v4283 = vrot.slane %v4282, 2
        %v4284 = vadd.f32 %v4282, %v4283
        %v4285 = vrot.slane %v4284, 1
        %v4286 = vadd.f32 %v4284, %v4285
        %4287 = vst [vmem:[%s370 + $0x1] sm:$0x1] %v4286
      $region40: #{conv_up_block.5} parent=35 // pred_fallthru
        _
      %p4288 = scmp.eq.s32.totalorder %s22, 0
      // Predicated region
      $region41: #{conv_up_block.5} parent=35 // pred_check
        %p4289 = pneg %p4288
      $region42: #{conv_up_block.5} parent=35 // pred_check_branch
        %4291 = sbr.rel (%p4289) target = $region44
      $region43: #{conv_up_block.5} parent=35 // pred_region
        %v4292 = vlaneseq
        %v4293 = vshrl.u32 %v4292, 7
        %v4294 = vadd.s32 %v4293, 8
        %v4295 = vadd.s32 %v4293, 16
        %v4296 = vadd.s32 %v4293, 24
        %v4297 = vadd.s32 %v4293, 32
        %v4298 = vadd.s32 %v4293, 40
        %v4299 = vadd.s32 %v4293, 48
        %v4300 = vadd.s32 %v4293, 56
        %v4301 = vadd.s32 %v4293, 64
        %v4302 = vadd.s32 %v4293, 72
        %v4303 = vadd.s32 %v4293, 80
        %v4304 = vadd.s32 %v4293, 88
        %v4305 = vadd.s32 %v4293, 96
        %v4306 = vadd.s32 %v4293, 104
        %v4307 = vadd.s32 %v4293, 112
        %v4308 = vadd.s32 %v4293, 120
        %v4309 = vadd.s32 %v4293, 128
        %v4310 = vadd.s32 %v4293, 136
        %v4311 = vadd.s32 %v4293, 144
        %v4312 = vadd.s32 %v4293, 152
        %v4313 = vadd.s32 %v4293, 160
        %v4314 = vadd.s32 %v4293, 168
        %v4315 = vadd.s32 %v4293, 176
        %v4316 = vadd.s32 %v4293, 184
        %v4317 = vadd.s32 %v4293, 192
        %v4318 = vadd.s32 %v4293, 200
        %v4319 = vadd.s32 %v4293, 208
        %v4320 = vadd.s32 %v4293, 216
        %v4321 = vadd.s32 %v4293, 224
        %v4322 = vadd.s32 %v4293, 232
        %v4323 = vadd.s32 %v4293, 240
        %v4324 = vadd.s32 %v4293, 248
        %s4325 = smul.u32 %s22, 16
        %s4326 = ssub.s32 16, %s4325
        %s4327 = smul.u32 %s4326, 16
        %v4328 = vstv %s4327
        %vm4329 = vcmp.lt.s32.totalorder %v4293, %v4328
        %vm4330 = vcmp.lt.s32.totalorder %v4294, %v4328
        %vm4331 = vcmp.lt.s32.totalorder %v4295, %v4328
        %vm4332 = vcmp.lt.s32.totalorder %v4296, %v4328
        %vm4333 = vcmp.lt.s32.totalorder %v4297, %v4328
        %vm4334 = vcmp.lt.s32.totalorder %v4298, %v4328
        %vm4335 = vcmp.lt.s32.totalorder %v4299, %v4328
        %vm4336 = vcmp.lt.s32.totalorder %v4300, %v4328
        %vm4337 = vcmp.lt.s32.totalorder %v4301, %v4328
        %vm4338 = vcmp.lt.s32.totalorder %v4302, %v4328
        %vm4339 = vcmp.lt.s32.totalorder %v4303, %v4328
        %vm4340 = vcmp.lt.s32.totalorder %v4304, %v4328
        %vm4341 = vcmp.lt.s32.totalorder %v4305, %v4328
        %vm4342 = vcmp.lt.s32.totalorder %v4306, %v4328
        %vm4343 = vcmp.lt.s32.totalorder %v4307, %v4328
        %vm4344 = vcmp.lt.s32.totalorder %v4308, %v4328
        %vm4345 = vcmp.lt.s32.totalorder %v4309, %v4328
        %vm4346 = vcmp.lt.s32.totalorder %v4310, %v4328
        %vm4347 = vcmp.lt.s32.totalorder %v4311, %v4328
        %vm4348 = vcmp.lt.s32.totalorder %v4312, %v4328
        %vm4349 = vcmp.lt.s32.totalorder %v4313, %v4328
        %vm4350 = vcmp.lt.s32.totalorder %v4314, %v4328
        %vm4351 = vcmp.lt.s32.totalorder %v4315, %v4328
        %vm4352 = vcmp.lt.s32.totalorder %v4316, %v4328
        %vm4353 = vcmp.lt.s32.totalorder %v4317, %v4328
        %vm4354 = vcmp.lt.s32.totalorder %v4318, %v4328
        %vm4355 = vcmp.lt.s32.totalorder %v4319, %v4328
        %vm4356 = vcmp.lt.s32.totalorder %v4320, %v4328
        %vm4357 = vcmp.lt.s32.totalorder %v4321, %v4328
        %vm4358 = vcmp.lt.s32.totalorder %v4322, %v4328
        %vm4359 = vcmp.lt.s32.totalorder %v4323, %v4328
        %vm4360 = vcmp.lt.s32.totalorder %v4324, %v4328
        %v4361 = vsel %vm4329, %v3984, 0.0
        %v4362 = vsel %vm4330, %v3985, 0.0
        %v4363 = vsel %vm4331, %v3986, 0.0
        %v4364 = vsel %vm4332, %v3987, 0.0
        %v4365 = vsel %vm4333, %v3988, 0.0
        %v4366 = vsel %vm4334, %v3989, 0.0
        %v4367 = vsel %vm4335, %v3990, 0.0
        %v4368 = vsel %vm4336, %v3991, 0.0
        %v4369 = vsel %vm4337, %v3992, 0.0
        %v4370 = vsel %vm4338, %v3993, 0.0
        %v4371 = vsel %vm4339, %v3994, 0.0
        %v4372 = vsel %vm4340, %v3995, 0.0
        %v4373 = vsel %vm4341, %v3996, 0.0
        %v4374 = vsel %vm4342, %v3997, 0.0
        %v4375 = vsel %vm4343, %v3998, 0.0
        %v4376 = vsel %vm4344, %v3999, 0.0
        %v4377 = vsel %vm4345, %v4000, 0.0
        %v4378 = vsel %vm4346, %v4001, 0.0
        %v4379 = vsel %vm4347, %v4002, 0.0
        %v4380 = vsel %vm4348, %v4003, 0.0
        %v4381 = vsel %vm4349, %v4004, 0.0
        %v4382 = vsel %vm4350, %v4005, 0.0
        %v4383 = vsel %vm4351, %v4006, 0.0
        %v4384 = vsel %vm4352, %v4007, 0.0
        %v4385 = vsel %vm4353, %v4008, 0.0
        %v4386 = vsel %vm4354, %v4009, 0.0
        %v4387 = vsel %vm4355, %v4010, 0.0
        %v4388 = vsel %vm4356, %v4011, 0.0
        %v4389 = vsel %vm4357, %v4012, 0.0
        %v4390 = vsel %vm4358, %v4013, 0.0
        %v4391 = vsel %vm4359, %v4014, 0.0
        %v4392 = vsel %vm4360, %v4015, 0.0
        %v4393 = vadd.f32 %v4361, %v4362
        %v4394 = vadd.f32 %v4393, %v4363
        %v4395 = vadd.f32 %v4394, %v4364
        %v4396 = vadd.f32 %v4395, %v4365
        %v4397 = vadd.f32 %v4396, %v4366
        %v4398 = vadd.f32 %v4397, %v4367
        %v4399 = vadd.f32 %v4398, %v4368
        %v4400 = vadd.f32 %v4399, %v4369
        %v4401 = vadd.f32 %v4400, %v4370
        %v4402 = vadd.f32 %v4401, %v4371
        %v4403 = vadd.f32 %v4402, %v4372
        %v4404 = vadd.f32 %v4403, %v4373
        %v4405 = vadd.f32 %v4404, %v4374
        %v4406 = vadd.f32 %v4405, %v4375
        %v4407 = vadd.f32 %v4406, %v4376
        %v4408 = vadd.f32 %v4407, %v4377
        %v4409 = vadd.f32 %v4408, %v4378
        %v4410 = vadd.f32 %v4409, %v4379
        %v4411 = vadd.f32 %v4410, %v4380
        %v4412 = vadd.f32 %v4411, %v4381
        %v4413 = vadd.f32 %v4412, %v4382
        %v4414 = vadd.f32 %v4413, %v4383
        %v4415 = vadd.f32 %v4414, %v4384
        %v4416 = vadd.f32 %v4415, %v4385
        %v4417 = vadd.f32 %v4416, %v4386
        %v4418 = vadd.f32 %v4417, %v4387
        %v4419 = vadd.f32 %v4418, %v4388
        %v4420 = vadd.f32 %v4419, %v4389
        %v4421 = vadd.f32 %v4420, %v4390
        %v4422 = vadd.f32 %v4421, %v4391
        %v4423 = vadd.f32 %v4422, %v4392
        %v4424 = vrot.slane %v4423, 4
        %v4425 = vadd.f32 %v4423, %v4424
        %v4426 = vrot.slane %v4425, 2
        %v4427 = vadd.f32 %v4425, %v4426
        %v4428 = vrot.slane %v4427, 1
        %v4429 = vadd.f32 %v4427, %v4428
        %4430 = vst [vmem:[%s370] sm:$0x1] %v4429
        %v4431 = vmul.f32 %v4361, %v4361
        %v4432 = vmul.f32 %v4362, %v4362
        %v4433 = vmul.f32 %v4363, %v4363
        %v4434 = vmul.f32 %v4364, %v4364
        %v4435 = vmul.f32 %v4365, %v4365
        %v4436 = vmul.f32 %v4366, %v4366
        %v4437 = vmul.f32 %v4367, %v4367
        %v4438 = vmul.f32 %v4368, %v4368
        %v4439 = vmul.f32 %v4369, %v4369
        %v4440 = vmul.f32 %v4370, %v4370
        %v4441 = vmul.f32 %v4371, %v4371
        %v4442 = vmul.f32 %v4372, %v4372
        %v4443 = vmul.f32 %v4373, %v4373
        %v4444 = vmul.f32 %v4374, %v4374
        %v4445 = vmul.f32 %v4375, %v4375
        %v4446 = vmul.f32 %v4376, %v4376
        %v4447 = vmul.f32 %v4377, %v4377
        %v4448 = vmul.f32 %v4378, %v4378
        %v4449 = vmul.f32 %v4379, %v4379
        %v4450 = vmul.f32 %v4380, %v4380
        %v4451 = vmul.f32 %v4381, %v4381
        %v4452 = vmul.f32 %v4382, %v4382
        %v4453 = vmul.f32 %v4383, %v4383
        %v4454 = vmul.f32 %v4384, %v4384
        %v4455 = vmul.f32 %v4385, %v4385
        %v4456 = vmul.f32 %v4386, %v4386
        %v4457 = vmul.f32 %v4387, %v4387
        %v4458 = vmul.f32 %v4388, %v4388
        %v4459 = vmul.f32 %v4389, %v4389
        %v4460 = vmul.f32 %v4390, %v4390
        %v4461 = vmul.f32 %v4391, %v4391
        %v4462 = vmul.f32 %v4392, %v4392
        %v4463 = vadd.f32 %v4431, %v4432
        %v4464 = vadd.f32 %v4463, %v4433
        %v4465 = vadd.f32 %v4464, %v4434
        %v4466 = vadd.f32 %v4465, %v4435
        %v4467 = vadd.f32 %v4466, %v4436
        %v4468 = vadd.f32 %v4467, %v4437
        %v4469 = vadd.f32 %v4468, %v4438
        %v4470 = vadd.f32 %v4469, %v4439
        %v4471 = vadd.f32 %v4470, %v4440
        %v4472 = vadd.f32 %v4471, %v4441
        %v4473 = vadd.f32 %v4472, %v4442
        %v4474 = vadd.f32 %v4473, %v4443
        %v4475 = vadd.f32 %v4474, %v4444
        %v4476 = vadd.f32 %v4475, %v4445
        %v4477 = vadd.f32 %v4476, %v4446
        %v4478 = vadd.f32 %v4477, %v4447
        %v4479 = vadd.f32 %v4478, %v4448
        %v4480 = vadd.f32 %v4479, %v4449
        %v4481 = vadd.f32 %v4480, %v4450
        %v4482 = vadd.f32 %v4481, %v4451
        %v4483 = vadd.f32 %v4482, %v4452
        %v4484 = vadd.f32 %v4483, %v4453
        %v4485 = vadd.f32 %v4484, %v4454
        %v4486 = vadd.f32 %v4485, %v4455
        %v4487 = vadd.f32 %v4486, %v4456
        %v4488 = vadd.f32 %v4487, %v4457
        %v4489 = vadd.f32 %v4488, %v4458
        %v4490 = vadd.f32 %v4489, %v4459
        %v4491 = vadd.f32 %v4490, %v4460
        %v4492 = vadd.f32 %v4491, %v4461
        %v4493 = vadd.f32 %v4492, %v4462
        %v4494 = vrot.slane %v4493, 4
        %v4495 = vadd.f32 %v4493, %v4494
        %v4496 = vrot.slane %v4495, 2
        %v4497 = vadd.f32 %v4495, %v4496
        %v4498 = vrot.slane %v4497, 1
        %v4499 = vadd.f32 %v4497, %v4498
        %4500 = vst [vmem:[%s370 + $0x1] sm:$0x1] %v4499
      $region44: #{conv_up_block.5} parent=35 // pred_fallthru
        _
      %s4501 = smul.u32 16, %s22
      %p4502 = scmp.lt.s32.totalorder %s21, 1
      %s4503 = scalar_select %p4502, %s21, 1
      %p4504 = scmp.lt.s32.totalorder %s4501, 15
      %s4505 = scalar_select %p4504, %s4501, 15
      %s4506 = smul.addr %s4505, 2
      %s4507 = smul.addr %s4503, 32
      %s4508 = sadd.s32 %s4506, %s4507
      %s4509 = smul.addr %s4508, 4
      %s4510 = scalar_lea.vmem %s4, %s4509
      %p4511 = scmp.lt.s32.totalorder %s21, 1
      %s4512 = scalar_select %p4511, %s21, 1
      %p4513 = scmp.lt.s32.totalorder %s22, 0
      %s4514 = scalar_select %p4513, %s22, 0
      %s4515 = sadd.s32 %s4514, %s4512
      %s4516 = smul.addr %s4515, 2
      %s4517 = scalar_lea.vmem %s5, %s4516
      // Predicated region
      $region45: #{conv_up_block.5} parent=35 // pred_check
        %p4518 = pneg %p151
      $region46: #{conv_up_block.5} parent=35 // pred_check_branch
        %4520 = sbr.rel (%p4518) target = $region48
      $region47: #{conv_up_block.5} parent=35 // pred_region
        %s4521 = smul.u32 16, %s22
      $region48: #{conv_up_block.5} parent=35 // pred_fallthru
        _
      // Predicated region
      $region49: #{conv_up_block.5} parent=35 // pred_check
        %p4522 = pneg %p179
      $region50: #{conv_up_block.5} parent=35 // pred_check_branch
        %4524 = sbr.rel (%p4522) target = $region52
      $region51: #{conv_up_block.5} parent=35 // pred_region
        _
      $region52: #{conv_up_block.5} parent=35 // pred_fallthru
        _
    $region36: #{conv_up_block.5} parent=5 // pred_fallthru
      _
    %p4525 = scmp.le.s32.totalorder 2, %s12
    // Predicated region
    $region53: #{conv_up_block.5} parent=5 // pred_check
      %p4526 = pneg %p4525
    $region54: #{conv_up_block.5} parent=5 // pred_check_branch
      %4528 = sbr.rel (%p4526) target = $region56
    $region55: #{conv_up_block.5} parent=5 // pred_region
      %s4529 = ssub.s32 %s12, 2
      // Predicated region
      $region57: #{conv_up_block.5} parent=55 // pred_check
        %p4530 = pneg %p157
      $region58: #{conv_up_block.5} parent=55 // pred_check_branch
        %4532 = sbr.rel (%p4530) target = $region60
      $region59: #{conv_up_block.5} parent=55 // pred_region
        %s4533 = smul.u32 16, %s24
        %p4534 = scmp.lt.s32.totalorder %s23, 1
        %s4535 = scalar_select %p4534, %s23, 1
        %p4536 = scmp.lt.s32.totalorder %s4533, 15
        %s4537 = scalar_select %p4536, %s4533, 15
        %s4538 = smul.addr %s4537, 2
        %s4539 = smul.addr %s4535, 32
        %s4540 = sadd.s32 %s4538, %s4539
        %s4541 = smul.addr %s4540, 4
        %s4542 = scalar_lea.vmem %s4, %s4541
      $region60: #{conv_up_block.5} parent=55 // pred_fallthru
        _
      // Predicated region
      $region61: #{conv_up_block.5} parent=55 // pred_check
        %p4543 = pneg %p185
      $region62: #{conv_up_block.5} parent=55 // pred_check_branch
        %4545 = sbr.rel (%p4543) target = $region64
      $region63: #{conv_up_block.5} parent=55 // pred_region
        %p4546 = scmp.lt.s32.totalorder %s23, 1
        %s4547 = scalar_select %p4546, %s23, 1
        %p4548 = scmp.lt.s32.totalorder %s24, 0
        %s4549 = scalar_select %p4548, %s24, 0
        %s4550 = sadd.s32 %s4549, %s4547
        %s4551 = smul.addr %s4550, 2
        %s4552 = scalar_lea.vmem %s5, %s4551
      $region64: #{conv_up_block.5} parent=55 // pred_fallthru
        _
    $region56: #{conv_up_block.5} parent=5 // pred_fallthru
      _
  $region6: #{conv_up_block.5} parent=0 // loop_footer
    %s16 = sadd.s32 1, %s12
  $region7: #{conv_up_block.5} parent=0 // loop_footer_branch
    %11 = sbr.rel target = $region3
  $region8: #{conv_up_block.5} parent=0 // loop_exit
    _

// kernel: conv_up_block.6
$region0: #{conv_up_block.6}
  #allocation0 [shape = 'u32[]', space=smem, size = 0x4, offset = 0x4, fixed_abs, tag = 'smem constant byte address 0x4 - core index']
  #allocation1 [shape = 'u32[144,128]{1,0:T(1,128)}', space=vmem, size = 0x12000, scoped, tag = 'internal scratch']
  %s0 = inlined_call_operand.vmem [shape: bf16[2,18,18,128], index: 0, kind: input, shape index: {}, may-alias: {0,1}]
  %s1 = inlined_call_operand.vmem [shape: bf16[2,18,18,128], index: 1, kind: input, shape index: {}, may-alias: {0,1}]
  %s2 = inlined_call_operand.vmem [shape: bf16[3,384,128], index: 2, kind: input, shape index: {}]
  %s3 = inlined_call_operand.vmem [shape: f32[1,128], index: 3, kind: input, shape index: {}]
  %s4 = inlined_call_operand.vmem [shape: bf16[2,16,16,128], index: 4, kind: output, shape index: {0}]
  %s5 = inlined_call_operand.vmem [shape: f32[2,1,2,128], index: 5, kind: output, shape index: {1}]
  %6 = xla_tuple %s4, %s5
  %s7 = sld [smem:[#allocation0]]
  $region65: #{conv_up_block.6} parent=0
    _
  %s9 = ssub.s32 1, %s7
  %s10 = scalar_select 0, %s9, %s7
  loop: start=0, step=1, limit=4
  $region2: #{conv_up_block.6} parent=0 // loop_pre_header
    _
  $region3: #{conv_up_block.6} parent=0 // loop_header
    %s12 = sphi 0, %s16
    %p13 = scmp.ge.s32.totalorder %s12, 4
    %s19 = sphi 0, %s31
    %s20 = sphi 0, %s27
    %s21 = sphi 0, %s19
    %s22 = sphi 0, %s20
    %s23 = sphi 0, %s21
    %s24 = sphi 0, %s22
    %s36 = sphi 0, %s38
    %s39 = sphi 0, %s36
    %s40 = sphi 0, %s39
    %s56 = sphi 0, %s40
    %s68 = sphi 0, %s70
    %s71 = sphi 0, %s68
    %s72 = sphi 0, %s71
    %s88 = sphi 0, %s72
    %s92 = sphi 0, %s92
    %s94 = sphi 0, %s92
    %s95 = sphi 0, %s94
    %s109 = sphi 0, %s95
    %s113 = sphi 0, %s113
    %s115 = sphi 0, %s113
    %s116 = sphi 0, %s115
    %s130 = sphi 0, %s116
    %s138 = sphi 0, %s140
    %s141 = sphi 0, %s138
    %s142 = sphi 0, %s141
    %s158 = sphi 0, %s142
    %s166 = sphi 0, %s168
    %s169 = sphi 0, %s166
    %s170 = sphi 0, %s169
    %s186 = sphi 0, %s170
  $region4: #{conv_up_block.6} parent=0 // loop_header_branch
    %15 = sbr.rel (%p13) target = $region8
  $region5: #{conv_up_block.6} parent=0 // loop_body
    %s17 = ssub.s32 %s12, 1
    %s18 = ssub.s32 %s12, 2
    %s25 = sadd.s32 1, %s20
    %p26 = scmp.ge.s32.totalorder %s25, 1
    %s27 = scalar_select %p26, 0, %s25
    %s28 = sadd.s32 1, %s19
    %s29 = scalar_select %p26, %s28, %s19
    %p30 = scmp.ge.s32.totalorder %s29, 2
    %s31 = scalar_select %p30, 0, %s29
    %s32 = ssub.s32 %s19, %s31
    %s33 = ssub.s32 %s20, %s27
    %s34 = sor.u32 %s32, %s33
    %p35 = scmp.eq.s32.totalorder %s34, 0
    %s37 = sadd.s32 %s36, 1
    %s38 = scalar_select %p35, %s36, %s37
    %p41 = pneg %p35
    %p42 = scmp.eq.s32.totalorder %s12, 1
    %p43 = por %p41, %p42
    %p44 = scmp.ne.s32.totalorder %s36, %s39
    %p45 = scmp.eq.s32.totalorder %s12, 0
    %p46 = por %p44, %p45
    %p47 = scmp.ne.s32.totalorder %s36, %s39
    %p48 = scmp.eq.s32.totalorder %s17, 1
    %p49 = por %p47, %p48
    %p50 = scmp.ne.s32.totalorder %s39, %s40
    %p51 = scmp.eq.s32.totalorder %s17, 0
    %p52 = por %p50, %p51
    %p53 = scmp.ne.s32.totalorder %s39, %s40
    %p54 = scmp.eq.s32.totalorder %s18, 1
    %p55 = por %p53, %p54
    %p57 = scmp.ne.s32.totalorder %s40, %s56
    %p58 = scmp.eq.s32.totalorder %s18, 0
    %p59 = por %p57, %p58
    %s60 = sadd.s32 %s20, 1
    %s61 = smul.u32 %s60, 8
    %s62 = sadd.s32 %s27, 1
    %s63 = smul.u32 %s62, 8
    %s64 = ssub.s32 %s19, %s31
    %s65 = ssub.s32 %s61, %s63
    %s66 = sor.u32 %s64, %s65
    %p67 = scmp.eq.s32.totalorder %s66, 0
    %s69 = sadd.s32 %s68, 1
    %s70 = scalar_select %p67, %s68, %s69
    %p73 = pneg %p67
    %p74 = scmp.eq.s32.totalorder %s12, 1
    %p75 = por %p73, %p74
    %p76 = scmp.ne.s32.totalorder %s68, %s71
    %p77 = scmp.eq.s32.totalorder %s12, 0
    %p78 = por %p76, %p77
    %p79 = scmp.ne.s32.totalorder %s68, %s71
    %p80 = scmp.eq.s32.totalorder %s17, 1
    %p81 = por %p79, %p80
    %p82 = scmp.ne.s32.totalorder %s71, %s72
    %p83 = scmp.eq.s32.totalorder %s17, 0
    %p84 = por %p82, %p83
    %p85 = scmp.ne.s32.totalorder %s71, %s72
    %p86 = scmp.eq.s32.totalorder %s18, 1
    %p87 = por %p85, %p86
    %p89 = scmp.ne.s32.totalorder %s72, %s88
    %p90 = scmp.eq.s32.totalorder %s18, 0
    %p91 = por %p89, %p90
    %s93 = sadd.s32 %s92, 1
    %p96 = scmp.eq.s32.totalorder %s12, 1
    %p97 = scmp.ne.s32.totalorder %s92, %s94
    %p98 = scmp.eq.s32.totalorder %s12, 0
    %p99 = por %p97, %p98
    %p100 = scmp.ne.s32.totalorder %s92, %s94
    %p101 = scmp.eq.s32.totalorder %s17, 1
    %p102 = por %p100, %p101
    %p103 = scmp.ne.s32.totalorder %s94, %s95
    %p104 = scmp.eq.s32.totalorder %s17, 0
    %p105 = por %p103, %p104
    %p106 = scmp.ne.s32.totalorder %s94, %s95
    %p107 = scmp.eq.s32.totalorder %s18, 1
    %p108 = por %p106, %p107
    %p110 = scmp.ne.s32.totalorder %s95, %s109
    %p111 = scmp.eq.s32.totalorder %s18, 0
    %p112 = por %p110, %p111
    %s114 = sadd.s32 %s113, 1
    %p117 = scmp.eq.s32.totalorder %s12, 1
    %p118 = scmp.ne.s32.totalorder %s113, %s115
    %p119 = scmp.eq.s32.totalorder %s12, 0
    %p120 = por %p118, %p119
    %p121 = scmp.ne.s32.totalorder %s113, %s115
    %p122 = scmp.eq.s32.totalorder %s17, 1
    %p123 = por %p121, %p122
    %p124 = scmp.ne.s32.totalorder %s115, %s116
    %p125 = scmp.eq.s32.totalorder %s17, 0
    %p126 = por %p124, %p125
    %p127 = scmp.ne.s32.totalorder %s115, %s116
    %p128 = scmp.eq.s32.totalorder %s18, 1
    %p129 = por %p127, %p128
    %p131 = scmp.ne.s32.totalorder %s116, %s130
    %p132 = scmp.eq.s32.totalorder %s18, 0
    %p133 = por %p131, %p132
    %s134 = ssub.s32 %s19, %s31
    %s135 = ssub.s32 %s20, %s27
    %s136 = sor.u32 %s134, %s135
    %p137 = scmp.eq.s32.totalorder %s136, 0
    %s139 = sadd.s32 %s138, 1
    %s140 = scalar_select %p137, %s138, %s139
    %p143 = pneg %p137
    %p144 = scmp.eq.s32.totalorder %s12, 1
    %p145 = por %p143, %p144
    %p146 = scmp.ne.s32.totalorder %s138, %s141
    %p147 = scmp.eq.s32.totalorder %s12, 0
    %p148 = por %p146, %p147
    %p149 = scmp.ne.s32.totalorder %s138, %s141
    %p150 = scmp.eq.s32.totalorder %s17, 1
    %p151 = por %p149, %p150
    %p152 = scmp.ne.s32.totalorder %s141, %s142
    %p153 = scmp.eq.s32.totalorder %s17, 0
    %p154 = por %p152, %p153
    %p155 = scmp.ne.s32.totalorder %s141, %s142
    %p156 = scmp.eq.s32.totalorder %s18, 1
    %p157 = por %p155, %p156
    %p159 = scmp.ne.s32.totalorder %s142, %s158
    %p160 = scmp.eq.s32.totalorder %s18, 0
    %p161 = por %p159, %p160
    %s162 = ssub.s32 %s19, %s31
    %s163 = ssub.s32 %s20, %s27
    %s164 = sor.u32 %s162, %s163
    %p165 = scmp.eq.s32.totalorder %s164, 0
    %s167 = sadd.s32 %s166, 1
    %s168 = scalar_select %p165, %s166, %s167
    %p171 = pneg %p165
    %p172 = scmp.eq.s32.totalorder %s12, 1
    %p173 = por %p171, %p172
    %p174 = scmp.ne.s32.totalorder %s166, %s169
    %p175 = scmp.eq.s32.totalorder %s12, 0
    %p176 = por %p174, %p175
    %p177 = scmp.ne.s32.totalorder %s166, %s169
    %p178 = scmp.eq.s32.totalorder %s17, 1
    %p179 = por %p177, %p178
    %p180 = scmp.ne.s32.totalorder %s169, %s170
    %p181 = scmp.eq.s32.totalorder %s17, 0
    %p182 = por %p180, %p181
    %p183 = scmp.ne.s32.totalorder %s169, %s170
    %p184 = scmp.eq.s32.totalorder %s18, 1
    %p185 = por %p183, %p184
    %p187 = scmp.ne.s32.totalorder %s170, %s186
    %p188 = scmp.eq.s32.totalorder %s18, 0
    %p189 = por %p187, %p188
    %p190 = scmp.le.s32.totalorder 1, %s12
    %p191 = scmp.lt.s32.totalorder %s12, 3
    %p192 = pnand %p190, %p191
    %p193 = pneg %p192
    // Predicated region
    $region9: #{conv_up_block.6} parent=5 // pred_check
      _
    $region10: #{conv_up_block.6} parent=5 // pred_check_branch
      %195 = sbr.rel (%p192) target = $region12
    $region11: #{conv_up_block.6} parent=5 // pred_region
      %s196 = ssub.s32 %s12, 1
      // Predicated region
      $region13: #{conv_up_block.6} parent=11 // pred_check
        %p197 = pneg %p105
      $region14: #{conv_up_block.6} parent=11 // pred_check_branch
        %199 = sbr.rel (%p197) target = $region16
      $region15: #{conv_up_block.6} parent=11 // pred_region
        _
      $region16: #{conv_up_block.6} parent=11 // pred_fallthru
        _
      // Predicated region
      $region17: #{conv_up_block.6} parent=11 // pred_check
        %p200 = pneg %p126
      $region18: #{conv_up_block.6} parent=11 // pred_check_branch
        %202 = sbr.rel (%p200) target = $region20
      $region19: #{conv_up_block.6} parent=11 // pred_region
        _
      $region20: #{conv_up_block.6} parent=11 // pred_fallthru
        _
    $region12: #{conv_up_block.6} parent=5 // pred_fallthru
      _
    %p203 = scmp.lt.s32.totalorder %s12, 2
    // Predicated region
    $region21: #{conv_up_block.6} parent=5 // pred_check
      %p204 = pneg %p203
    $region22: #{conv_up_block.6} parent=5 // pred_check_branch
      %206 = sbr.rel (%p204) target = $region24
    $region23: #{conv_up_block.6} parent=5 // pred_region
      // Predicated region
      $region25: #{conv_up_block.6} parent=23 // pred_check
        %p207 = pneg %p46
      $region26: #{conv_up_block.6} parent=23 // pred_check_branch
        %209 = sbr.rel (%p207) target = $region28
      $region27: #{conv_up_block.6} parent=23 // pred_region
        %s210 = smul.u32 16, %s20
        %s211 = ssub.s32 18, %s210
        %p212 = scmp.lt.s32.totalorder %s211, 16
        %s213 = scalar_select %p212, %s211, 16
        %s214 = smul.u32 64, %s213
        %s215 = smul.u32 %s214, 3
        %p216 = scmp.lt.s32.totalorder %s19, 1
        %s217 = scalar_select %p216, %s19, 1
        %p218 = scmp.lt.s32.totalorder %s210, 17
        %s219 = scalar_select %p218, %s210, 17
        %s220 = smul.addr %s219, 3
        %s221 = smul.addr %s217, 54
        %s222 = sadd.s32 %s220, %s221
        %s223 = smul.addr %s222, 4
        %s224 = scalar_lea.vmem %s0, %s223
        %s225 = smul.u32 16, %s20
        %s226 = ssub.s32 18, %s225
        %p227 = scmp.lt.s32.totalorder %s226, 16
        %s228 = scalar_select %p227, %s226, 16
        %s229 = smul.u32 64, %s228
        %s230 = smul.u32 %s229, 3
      $region28: #{conv_up_block.6} parent=23 // pred_fallthru
        _
      // Predicated region
      $region29: #{conv_up_block.6} parent=23 // pred_check
        %p231 = pneg %p78
      $region30: #{conv_up_block.6} parent=23 // pred_check_branch
        %233 = sbr.rel (%p231) target = $region32
      $region31: #{conv_up_block.6} parent=23 // pred_region
        %s234 = sadd.s32 %s20, 1
        %s235 = smul.u32 %s234, 8
        %s236 = smul.u32 2, %s235
        %p237 = scmp.lt.s32.totalorder %s19, 1
        %s238 = scalar_select %p237, %s19, 1
        %p239 = scmp.lt.s32.totalorder %s236, 17
        %s240 = scalar_select %p239, %s236, 17
        %s241 = smul.addr %s240, 3
        %s242 = smul.addr %s238, 54
        %s243 = sadd.s32 %s241, %s242
        %s244 = smul.addr %s243, 4
        %s245 = scalar_lea.vmem %s1, %s244
        %s246 = sadd.s32 %s20, 1
        %s247 = smul.u32 %s246, 8
        %s248 = smul.u32 2, %s247
      $region32: #{conv_up_block.6} parent=23 // pred_fallthru
        _
    $region24: #{conv_up_block.6} parent=5 // pred_fallthru
      _
    %p249 = scmp.le.s32.totalorder 1, %s12
    %p250 = scmp.lt.s32.totalorder %s12, 3
    %p251 = pnand %p249, %p250
    %p252 = pneg %p251
    // Predicated region
    $region33: #{conv_up_block.6} parent=5 // pred_check
      _
    $region34: #{conv_up_block.6} parent=5 // pred_check_branch
      %254 = sbr.rel (%p251) target = $region36
    $region35: #{conv_up_block.6} parent=5 // pred_region
      %s255 = ssub.s32 %s12, 1
      %s256 = smul.u32 16, %s22
      %s257 = ssub.s32 18, %s256
      %p258 = scmp.lt.s32.totalorder %s257, 16
      %s259 = scalar_select %p258, %s257, 16
      %s260 = smul.u32 64, %s259
      %s261 = smul.u32 %s260, 3
      %p262 = scmp.lt.s32.totalorder %s21, 1
      %s263 = scalar_select %p262, %s21, 1
      %p264 = scmp.lt.s32.totalorder %s256, 17
      %s265 = scalar_select %p264, %s256, 17
      %s266 = smul.addr %s265, 3
      %s267 = smul.addr %s263, 54
      %s268 = sadd.s32 %s266, %s267
      %s269 = smul.addr %s268, 4
      %s270 = scalar_lea.vmem %s0, %s269
      %p271 = pneg %p52
      %p272 = pneg %p49
      %s273 = sadd.s32 %s22, 1
      %s274 = smul.u32 %s273, 8
      %s275 = smul.u32 2, %s274
      %p276 = scmp.lt.s32.totalorder %s21, 1
      %s277 = scalar_select %p276, %s21, 1
      %p278 = scmp.lt.s32.totalorder %s275, 17
      %s279 = scalar_select %p278, %s275, 17
      %s280 = smul.addr %s279, 3
      %s281 = smul.addr %s277, 54
      %s282 = sadd.s32 %s280, %s281
      %s283 = smul.addr %s282, 4
      %s284 = scalar_lea.vmem %s1, %s283
      %p285 = pneg %p84
      %p286 = pneg %p81
      %p287 = pneg %p105
      %p288 = pneg %p102
      %p289 = pneg %p126
      %p290 = pneg %p123
      %p291 = pneg %p154
      %p292 = pneg %p151
      %s293 = smul.u32 16, %s22
      %p294 = scmp.lt.s32.totalorder %s21, 1
      %s295 = scalar_select %p294, %s21, 1
      %p296 = scmp.lt.s32.totalorder %s293, 15
      %s297 = scalar_select %p296, %s293, 15
      %s298 = smul.addr %s297, 2
      %s299 = smul.addr %s295, 32
      %s300 = sadd.s32 %s298, %s299
      %s301 = smul.addr %s300, 4
      %s302 = scalar_lea.vmem %s4, %s301
      %p303 = pneg %p182
      %p304 = pneg %p179
      %p305 = scmp.lt.s32.totalorder %s21, 1
      %s306 = scalar_select %p305, %s21, 1
      %p307 = scmp.lt.s32.totalorder %s22, 0
      %s308 = scalar_select %p307, %s22, 0
      %s309 = sadd.s32 %s308, %s306
      %s310 = smul.addr %s309, 2
      %s311 = scalar_lea.vmem %s5, %s310
      %s312 = smul.u32 16, %s22
      %s313 = ssub.s32 18, %s312
      %p314 = scmp.lt.s32.totalorder %s313, 16
      %s315 = scalar_select %p314, %s313, 16
      %s316 = smul.u32 64, %s315
      %s317 = smul.u32 %s316, 3
      %p318 = scmp.lt.s32.totalorder %s21, 1
      %s319 = scalar_select %p318, %s21, 1
      %p320 = scmp.lt.s32.totalorder %s312, 17
      %s321 = scalar_select %p320, %s312, 17
      %s322 = smul.addr %s321, 3
      %s323 = smul.addr %s319, 54
      %s324 = sadd.s32 %s322, %s323
      %s325 = smul.addr %s324, 4
      %s326 = scalar_lea.vmem %s0, %s325
      %s327 = smul.u32 16, %s22
      %s328 = ssub.s32 18, %s327
      %p329 = scmp.lt.s32.totalorder %s328, 16
      %s330 = scalar_select %p329, %s328, 16
      %s331 = smul.u32 64, %s330
      %s332 = smul.u32 %s331, 3
      %s333 = sadd.s32 %s22, 1
      %s334 = smul.u32 %s333, 8
      %s335 = smul.u32 2, %s334
      %p336 = scmp.lt.s32.totalorder %s21, 1
      %s337 = scalar_select %p336, %s21, 1
      %p338 = scmp.lt.s32.totalorder %s335, 17
      %s339 = scalar_select %p338, %s335, 17
      %s340 = smul.addr %s339, 3
      %s341 = smul.addr %s337, 54
      %s342 = sadd.s32 %s340, %s341
      %s343 = smul.addr %s342, 4
      %s344 = scalar_lea.vmem %s1, %s343
      %s345 = sadd.s32 %s22, 1
      %s346 = smul.u32 %s345, 8
      %s347 = smul.u32 2, %s346
      %s348 = smul.u32 16, %s22
      %p349 = scmp.lt.s32.totalorder %s21, 1
      %s350 = scalar_select %p349, %s21, 1
      %p351 = scmp.lt.s32.totalorder %s348, 15
      %s352 = scalar_select %p351, %s348, 15
      %s353 = smul.addr %s352, 2
      %s354 = smul.addr %s350, 32
      %s355 = sadd.s32 %s353, %s354
      %s356 = smul.addr %s355, 4
      %s357 = scalar_lea.vmem %s4, %s356
      %s358 = smul.u32 16, %s22
      %p359 = scmp.lt.s32.totalorder %s21, 1
      %s360 = scalar_select %p359, %s21, 1
      %p361 = scmp.lt.s32.totalorder %s22, 0
      %s362 = scalar_select %p361, %s22, 0
      %s363 = sadd.s32 %s362, %s360
      %s364 = smul.addr %s363, 2
      %s365 = scalar_lea.vmem %s5, %s364
      %v367 = vld [vmem:[%s326] sm:$0xf]
      %v368 = vld [vmem:[%s326 + $0x4] sm:$0xf]
      %v369 = vld [vmem:[%s326 + $0x8] sm:$0x1]
      %v370 = vld [vmem:[%s326 + $0xc] sm:$0xf]
      %v371 = vld [vmem:[%s326 + $0x10] sm:$0xf]
      %v372 = vld [vmem:[%s326 + $0x14] sm:$0x1]
      %v373 = vld [vmem:[%s326 + $0x18] sm:$0xf]
      %v374 = vld [vmem:[%s326 + $0x1c] sm:$0xf]
      %v375 = vld [vmem:[%s326 + $0x20] sm:$0x1]
      %v376 = vld [vmem:[%s326 + $0x24] sm:$0xf]
      %v377 = vld [vmem:[%s326 + $0x28] sm:$0xf]
      %v378 = vld [vmem:[%s326 + $0x2c] sm:$0x1]
      %v379 = vld [vmem:[%s326 + $0x30] sm:$0xf]
      %v380 = vld [vmem:[%s326 + $0x34] sm:$0xf]
      %v381 = vld [vmem:[%s326 + $0x38] sm:$0x1]
      %v382 = vld [vmem:[%s326 + $0x3c] sm:$0xf]
      %v383 = vld [vmem:[%s326 + $0x40] sm:$0xf]
      %v384 = vld [vmem:[%s326 + $0x44] sm:$0x1]
      %v385 = vld [vmem:[%s326 + $0x48] sm:$0xf]
      %v386 = vld [vmem:[%s326 + $0x4c] sm:$0xf]
      %v387 = vld [vmem:[%s326 + $0x50] sm:$0x1]
      %v388 = vld [vmem:[%s326 + $0x54] sm:$0xf]
      %v389 = vld [vmem:[%s326 + $0x58] sm:$0xf]
      %v390 = vld [vmem:[%s326 + $0x5c] sm:$0x1]
      %v391 = vld [vmem:[%s326 + $0x60] sm:$0xf]
      %v392 = vld [vmem:[%s326 + $0x64] sm:$0xf]
      %v393 = vld [vmem:[%s326 + $0x68] sm:$0x1]
      %v394 = vld [vmem:[%s326 + $0x6c] sm:$0xf]
      %v395 = vld [vmem:[%s326 + $0x70] sm:$0xf]
      %v396 = vld [vmem:[%s326 + $0x74] sm:$0x1]
      %v397 = vld [vmem:[%s326 + $0x78] sm:$0xf]
      %v398 = vld [vmem:[%s326 + $0x7c] sm:$0xf]
      %v399 = vld [vmem:[%s326 + $0x80] sm:$0x1]
      %v400 = vld [vmem:[%s326 + $0x84] sm:$0xf]
      %v401 = vld [vmem:[%s326 + $0x88] sm:$0xf]
      %v402 = vld [vmem:[%s326 + $0x8c] sm:$0x1]
      %v403 = vld [vmem:[%s326 + $0x90] sm:$0xf]
      %v404 = vld [vmem:[%s326 + $0x94] sm:$0xf]
      %v405 = vld [vmem:[%s326 + $0x98] sm:$0x1]
      %v406 = vld [vmem:[%s326 + $0x9c] sm:$0xf]
      %v407 = vld [vmem:[%s326 + $0xa0] sm:$0xf]
      %v408 = vld [vmem:[%s326 + $0xa4] sm:$0x1]
      %v409 = vld [vmem:[%s326 + $0xa8] sm:$0xf]
      %v410 = vld [vmem:[%s326 + $0xac] sm:$0xf]
      %v411 = vld [vmem:[%s326 + $0xb0] sm:$0x1]
      %v412 = vld [vmem:[%s326 + $0xb4] sm:$0xf]
      %v413 = vld [vmem:[%s326 + $0xb8] sm:$0xf]
      %v414 = vld [vmem:[%s326 + $0xbc] sm:$0x1]
      %v415 = vld [vmem:[%s344] sm:$0xf]
      %v416 = vld [vmem:[%s344 + $0x4] sm:$0xf]
      %v417 = vld [vmem:[%s344 + $0x8] sm:$0x1]
      %v418 = vld [vmem:[%s344 + $0xc] sm:$0xf]
      %v419 = vld [vmem:[%s344 + $0x10] sm:$0xf]
      %v420 = vld [vmem:[%s344 + $0x14] sm:$0x1]
      %v457 = vunpack.c.l.b16 %v367
      %v458 = vunpack.c.l.b16 %v368
      %v459 = vunpack.c.l.b16 %v370
      %v460 = vunpack.c.l.b16 %v371
      %v461 = vunpack.c.l.b16 %v373
      %v462 = vunpack.c.l.b16 %v374
      %v463 = vunpack.c.l.b16 %v376
      %v464 = vunpack.c.l.b16 %v377
      %v465 = vunpack.c.l.b16 %v379
      %v466 = vunpack.c.l.b16 %v380
      %v467 = vunpack.c.l.b16 %v382
      %v468 = vunpack.c.l.b16 %v383
      %v469 = vunpack.c.l.b16 %v385
      %v470 = vunpack.c.l.b16 %v386
      %v471 = vunpack.c.l.b16 %v388
      %v472 = vunpack.c.l.b16 %v389
      %v473 = vunpack.c.l.b16 %v391
      %v474 = vunpack.c.l.b16 %v392
      %v475 = vunpack.c.l.b16 %v394
      %v476 = vunpack.c.l.b16 %v395
      %v477 = vunpack.c.l.b16 %v397
      %v478 = vunpack.c.l.b16 %v398
      %v479 = vunpack.c.l.b16 %v400
      %v480 = vunpack.c.l.b16 %v401
      %v481 = vunpack.c.l.b16 %v403
      %v482 = vunpack.c.l.b16 %v404
      %v483 = vunpack.c.l.b16 %v406
      %v484 = vunpack.c.l.b16 %v407
      %v485 = vunpack.c.l.b16 %v409
      %v486 = vunpack.c.l.b16 %v410
      %v487 = vunpack.c.l.b16 %v412
      %v488 = vunpack.c.l.b16 %v413
      %v489 = vunpack.c.l.b16 %v415
      %v490 = vunpack.c.l.b16 %v416
      %v491 = vunpack.c.l.b16 %v418
      %v492 = vunpack.c.l.b16 %v419
      %v493 = vpack.c.b16 %v458, %v457
      %v494 = vpack.c.b16 %v460, %v459
      %v495 = vpack.c.b16 %v462, %v461
      %v496 = vpack.c.b16 %v464, %v463
      %v497 = vpack.c.b16 %v466, %v465
      %v498 = vpack.c.b16 %v468, %v467
      %v499 = vpack.c.b16 %v470, %v469
      %v500 = vpack.c.b16 %v472, %v471
      %v501 = vpack.c.b16 %v474, %v473
      %v502 = vpack.c.b16 %v476, %v475
      %v503 = vpack.c.b16 %v478, %v477
      %v504 = vpack.c.b16 %v480, %v479
      %v505 = vpack.c.b16 %v482, %v481
      %v506 = vpack.c.b16 %v484, %v483
      %v507 = vpack.c.b16 %v486, %v485
      %v508 = vpack.c.b16 %v488, %v487
      %v509 = vpack.c.b16 %v490, %v489
      %v510 = vpack.c.b16 %v492, %v491
      %v547 = vunpack.c.l.b16 %v369
      %v548 = vunpack.c.l.b16 %v372
      %v549 = vunpack.c.l.b16 %v375
      %v550 = vunpack.c.l.b16 %v378
      %v551 = vunpack.c.l.b16 %v381
      %v552 = vunpack.c.l.b16 %v384
      %v553 = vunpack.c.l.b16 %v387
      %v554 = vunpack.c.l.b16 %v390
      %v555 = vunpack.c.l.b16 %v393
      %v556 = vunpack.c.l.b16 %v396
      %v557 = vunpack.c.l.b16 %v399
      %v558 = vunpack.c.l.b16 %v402
      %v559 = vunpack.c.l.b16 %v405
      %v560 = vunpack.c.l.b16 %v408
      %v561 = vunpack.c.l.b16 %v411
      %v562 = vunpack.c.l.b16 %v414
      %v563 = vunpack.c.l.b16 %v417
      %v564 = vunpack.c.l.b16 %v420
      %v565 = vpack.c.b16 %v547, %v547
      %v566 = vpack.c.b16 %v548, %v548
      %v567 = vpack.c.b16 %v549, %v549
      %v568 = vpack.c.b16 %v550, %v550
      %v569 = vpack.c.b16 %v551, %v551
      %v570 = vpack.c.b16 %v552, %v552
      %v571 = vpack.c.b16 %v553, %v553
      %v572 = vpack.c.b16 %v554, %v554
      %v573 = vpack.c.b16 %v555, %v555
      %v574 = vpack.c.b16 %v556, %v556
      %v575 = vpack.c.b16 %v557, %v557
      %v576 = vpack.c.b16 %v558, %v558
      %v577 = vpack.c.b16 %v559, %v559
      %v578 = vpack.c.b16 %v560, %v560
      %v579 = vpack.c.b16 %v561, %v561
      %v580 = vpack.c.b16 %v562, %v562
      %v581 = vpack.c.b16 %v563, %v563
      %v582 = vpack.c.b16 %v564, %v564
      %vm583 = vsmask.f32 7424
      %v585 = vshrl.u32 %v493, 16
      %v587 = vshll.u32 %v493, 16
      %v589 = vrot.slane %v587, 1
      %v590 = vor.u32 %v585, %v589
      %v592 = vshll.u32 %v565, 16
      %v594 = vrot.slane %v592, 1
      %v595 = vsel %vm583, %v590, %v594
      %v597 = vshrl.u32 %v494, 16
      %v599 = vshll.u32 %v494, 16
      %v601 = vrot.slane %v599, 1
      %v602 = vor.u32 %v597, %v601
      %v604 = vshll.u32 %v566, 16
      %v606 = vrot.slane %v604, 1
      %v607 = vsel %vm583, %v602, %v606
      %v609 = vshrl.u32 %v495, 16
      %v611 = vshll.u32 %v495, 16
      %v613 = vrot.slane %v611, 1
      %v614 = vor.u32 %v609, %v613
      %v616 = vshll.u32 %v567, 16
      %v618 = vrot.slane %v616, 1
      %v619 = vsel %vm583, %v614, %v618
      %v621 = vshrl.u32 %v496, 16
      %v623 = vshll.u32 %v496, 16
      %v625 = vrot.slane %v623, 1
      %v626 = vor.u32 %v621, %v625
      %v628 = vshll.u32 %v568, 16
      %v630 = vrot.slane %v628, 1
      %v631 = vsel %vm583, %v626, %v630
      %v633 = vshrl.u32 %v497, 16
      %v635 = vshll.u32 %v497, 16
      %v637 = vrot.slane %v635, 1
      %v638 = vor.u32 %v633, %v637
      %v640 = vshll.u32 %v569, 16
      %v642 = vrot.slane %v640, 1
      %v643 = vsel %vm583, %v638, %v642
      %v645 = vshrl.u32 %v498, 16
      %v647 = vshll.u32 %v498, 16
      %v649 = vrot.slane %v647, 1
      %v650 = vor.u32 %v645, %v649
      %v652 = vshll.u32 %v570, 16
      %v654 = vrot.slane %v652, 1
      %v655 = vsel %vm583, %v650, %v654
      %v657 = vshrl.u32 %v499, 16
      %v659 = vshll.u32 %v499, 16
      %v661 = vrot.slane %v659, 1
      %v662 = vor.u32 %v657, %v661
      %v664 = vshll.u32 %v571, 16
      %v666 = vrot.slane %v664, 1
      %v667 = vsel %vm583, %v662, %v666
      %v669 = vshrl.u32 %v500, 16
      %v671 = vshll.u32 %v500, 16
      %v673 = vrot.slane %v671, 1
      %v674 = vor.u32 %v669, %v673
      %v676 = vshll.u32 %v572, 16
      %v678 = vrot.slane %v676, 1
      %v679 = vsel %vm583, %v674, %v678
      %v681 = vshrl.u32 %v501, 16
      %v683 = vshll.u32 %v501, 16
      %v685 = vrot.slane %v683, 1
      %v686 = vor.u32 %v681, %v685
      %v688 = vshll.u32 %v573, 16
      %v690 = vrot.slane %v688, 1
      %v691 = vsel %vm583, %v686, %v690
      %v693 = vshrl.u32 %v502, 16
      %v695 = vshll.u32 %v502, 16
      %v697 = vrot.slane %v695, 1
      %v698 = vor.u32 %v693, %v697
      %v700 = vshll.u32 %v574, 16
      %v702 = vrot.slane %v700, 1
      %v703 = vsel %vm583, %v698, %v702
      %v705 = vshrl.u32 %v503, 16
      %v707 = vshll.u32 %v503, 16
      %v709 = vrot.slane %v707, 1
      %v710 = vor.u32 %v705, %v709
      %v712 = vshll.u32 %v575, 16
      %v714 = vrot.slane %v712, 1
      %v715 = vsel %vm583, %v710, %v714
      %v717 = vshrl.u32 %v504, 16
      %v719 = vshll.u32 %v504, 16
      %v721 = vrot.slane %v719, 1
      %v722 = vor.u32 %v717, %v721
      %v724 = vshll.u32 %v576, 16
      %v726 = vrot.slane %v724, 1
      %v727 = vsel %vm583, %v722, %v726
      %v729 = vshrl.u32 %v505, 16
      %v731 = vshll.u32 %v505, 16
      %v733 = vrot.slane %v731, 1
      %v734 = vor.u32 %v729, %v733
      %v736 = vshll.u32 %v577, 16
      %v738 = vrot.slane %v736, 1
      %v739 = vsel %vm583, %v734, %v738
      %v741 = vshrl.u32 %v506, 16
      %v743 = vshll.u32 %v506, 16
      %v745 = vrot.slane %v743, 1
      %v746 = vor.u32 %v741, %v745
      %v748 = vshll.u32 %v578, 16
      %v750 = vrot.slane %v748, 1
      %v751 = vsel %vm583, %v746, %v750
      %v753 = vshrl.u32 %v507, 16
      %v755 = vshll.u32 %v507, 16
      %v757 = vrot.slane %v755, 1
      %v758 = vor.u32 %v753, %v757
      %v760 = vshll.u32 %v579, 16
      %v762 = vrot.slane %v760, 1
      %v763 = vsel %vm583, %v758, %v762
      %v765 = vshrl.u32 %v508, 16
      %v767 = vshll.u32 %v508, 16
      %v769 = vrot.slane %v767, 1
      %v770 = vor.u32 %v765, %v769
      %v772 = vshll.u32 %v580, 16
      %v774 = vrot.slane %v772, 1
      %v775 = vsel %vm583, %v770, %v774
      %v777 = vshrl.u32 %v509, 16
      %v779 = vshll.u32 %v509, 16
      %v781 = vrot.slane %v779, 1
      %v782 = vor.u32 %v777, %v781
      %v784 = vshll.u32 %v581, 16
      %v786 = vrot.slane %v784, 1
      %v787 = vsel %vm583, %v782, %v786
      %v789 = vshrl.u32 %v510, 16
      %v791 = vshll.u32 %v510, 16
      %v793 = vrot.slane %v791, 1
      %v794 = vor.u32 %v789, %v793
      %v796 = vshll.u32 %v582, 16
      %v798 = vrot.slane %v796, 1
      %v799 = vsel %vm583, %v794, %v798
      %vm818 = vcmask 1046528
      %v819 = vrot.slane %v493, 1
      %v820 = vrot.slane %v565, 1
      %v821 = vsel %vm818, %v819, %v820
      %v822 = vrot.slane %v494, 1
      %v823 = vrot.slane %v566, 1
      %v824 = vsel %vm818, %v822, %v823
      %v825 = vrot.slane %v495, 1
      %v826 = vrot.slane %v567, 1
      %v827 = vsel %vm818, %v825, %v826
      %v828 = vrot.slane %v496, 1
      %v829 = vrot.slane %v568, 1
      %v830 = vsel %vm818, %v828, %v829
      %v831 = vrot.slane %v497, 1
      %v832 = vrot.slane %v569, 1
      %v833 = vsel %vm818, %v831, %v832
      %v834 = vrot.slane %v498, 1
      %v835 = vrot.slane %v570, 1
      %v836 = vsel %vm818, %v834, %v835
      %v837 = vrot.slane %v499, 1
      %v838 = vrot.slane %v571, 1
      %v839 = vsel %vm818, %v837, %v838
      %v840 = vrot.slane %v500, 1
      %v841 = vrot.slane %v572, 1
      %v842 = vsel %vm818, %v840, %v841
      %v843 = vrot.slane %v501, 1
      %v844 = vrot.slane %v573, 1
      %v845 = vsel %vm818, %v843, %v844
      %v846 = vrot.slane %v502, 1
      %v847 = vrot.slane %v574, 1
      %v848 = vsel %vm818, %v846, %v847
      %v849 = vrot.slane %v503, 1
      %v850 = vrot.slane %v575, 1
      %v851 = vsel %vm818, %v849, %v850
      %v852 = vrot.slane %v504, 1
      %v853 = vrot.slane %v576, 1
      %v854 = vsel %vm818, %v852, %v853
      %v855 = vrot.slane %v505, 1
      %v856 = vrot.slane %v577, 1
      %v857 = vsel %vm818, %v855, %v856
      %v858 = vrot.slane %v506, 1
      %v859 = vrot.slane %v578, 1
      %v860 = vsel %vm818, %v858, %v859
      %v861 = vrot.slane %v507, 1
      %v862 = vrot.slane %v579, 1
      %v863 = vsel %vm818, %v861, %v862
      %v864 = vrot.slane %v508, 1
      %v865 = vrot.slane %v580, 1
      %v866 = vsel %vm818, %v864, %v865
      %v867 = vrot.slane %v509, 1
      %v868 = vrot.slane %v581, 1
      %v869 = vsel %vm818, %v867, %v868
      %v870 = vrot.slane %v510, 1
      %v871 = vrot.slane %v582, 1
      %v872 = vsel %vm818, %v870, %v871
      %v891 = vld [vmem:[%s2] sm:$0xf]
      %v892 = vld [vmem:[%s2 + $0x4] sm:$0xf]
      %v893 = vld [vmem:[%s2 + $0x8] sm:$0xf]
      %v894 = vld [vmem:[%s2 + $0xc] sm:$0xf]
      %v895 = vld [vmem:[%s2 + $0x10] sm:$0xf]
      %v896 = vld [vmem:[%s2 + $0x14] sm:$0xf]
      %v897 = vld [vmem:[%s2 + $0x18] sm:$0xf]
      %v898 = vld [vmem:[%s2 + $0x1c] sm:$0xf]
      %v899 = vld [vmem:[%s2 + $0x20] sm:$0xf]
      %v900 = vld [vmem:[%s2 + $0x24] sm:$0xf]
      %v901 = vld [vmem:[%s2 + $0x28] sm:$0xf]
      %v902 = vld [vmem:[%s2 + $0x2c] sm:$0xf]
      %v903 = vld [vmem:[%s2 + $0x30] sm:$0xf]
      %v904 = vld [vmem:[%s2 + $0x34] sm:$0xf]
      %v905 = vld [vmem:[%s2 + $0x38] sm:$0xf]
      %v906 = vld [vmem:[%s2 + $0x3c] sm:$0xf]
      %v907 = vld [vmem:[%s2 + $0x40] sm:$0xf]
      %v908 = vld [vmem:[%s2 + $0x44] sm:$0xf]
      %v909 = vld [vmem:[%s2 + $0x48] sm:$0xf]
      %v910 = vld [vmem:[%s2 + $0x4c] sm:$0xf]
      %v911 = vld [vmem:[%s2 + $0x50] sm:$0xf]
      %v912 = vld [vmem:[%s2 + $0x54] sm:$0xf]
      %v913 = vld [vmem:[%s2 + $0x58] sm:$0xf]
      %v914 = vld [vmem:[%s2 + $0x5c] sm:$0xf]
      %v915 = vld [vmem:[%s2 + $0x60] sm:$0xf]
      %v916 = vld [vmem:[%s2 + $0x64] sm:$0xf]
      %v917 = vld [vmem:[%s2 + $0x68] sm:$0xf]
      %v918 = vld [vmem:[%s2 + $0x6c] sm:$0xf]
      %v919 = vld [vmem:[%s2 + $0x70] sm:$0xf]
      %v920 = vld [vmem:[%s2 + $0x74] sm:$0xf]
      %v921 = vld [vmem:[%s2 + $0x78] sm:$0xf]
      %v922 = vld [vmem:[%s2 + $0x7c] sm:$0xf]
      %v923 = vld [vmem:[%s2 + $0x80] sm:$0xf]
      %v924 = vld [vmem:[%s2 + $0x84] sm:$0xf]
      %v925 = vld [vmem:[%s2 + $0x88] sm:$0xf]
      %v926 = vld [vmem:[%s2 + $0x8c] sm:$0xf]
      %v927 = vld [vmem:[%s2 + $0x90] sm:$0xf]
      %v928 = vld [vmem:[%s2 + $0x94] sm:$0xf]
      %v929 = vld [vmem:[%s2 + $0x98] sm:$0xf]
      %v930 = vld [vmem:[%s2 + $0x9c] sm:$0xf]
      %v931 = vld [vmem:[%s2 + $0xa0] sm:$0xf]
      %v932 = vld [vmem:[%s2 + $0xa4] sm:$0xf]
      %v933 = vld [vmem:[%s2 + $0xa8] sm:$0xf]
      %v934 = vld [vmem:[%s2 + $0xac] sm:$0xf]
      %v935 = vld [vmem:[%s2 + $0xb0] sm:$0xf]
      %v936 = vld [vmem:[%s2 + $0xb4] sm:$0xf]
      %v937 = vld [vmem:[%s2 + $0xb8] sm:$0xf]
      %v938 = vld [vmem:[%s2 + $0xbc] sm:$0xf]
      %s939 = scalar_lea.vmem %s2, 192
      %v940 = vld [vmem:[%s939] sm:$0xf]
      %v941 = vld [vmem:[%s939 + $0x4] sm:$0xf]
      %v942 = vld [vmem:[%s939 + $0x8] sm:$0xf]
      %v943 = vld [vmem:[%s939 + $0xc] sm:$0xf]
      %v944 = vld [vmem:[%s939 + $0x10] sm:$0xf]
      %v945 = vld [vmem:[%s939 + $0x14] sm:$0xf]
      %v946 = vld [vmem:[%s939 + $0x18] sm:$0xf]
      %v947 = vld [vmem:[%s939 + $0x1c] sm:$0xf]
      %v948 = vld [vmem:[%s939 + $0x20] sm:$0xf]
      %v949 = vld [vmem:[%s939 + $0x24] sm:$0xf]
      %v950 = vld [vmem:[%s939 + $0x28] sm:$0xf]
      %v951 = vld [vmem:[%s939 + $0x2c] sm:$0xf]
      %v952 = vld [vmem:[%s939 + $0x30] sm:$0xf]
      %v953 = vld [vmem:[%s939 + $0x34] sm:$0xf]
      %v954 = vld [vmem:[%s939 + $0x38] sm:$0xf]
      %v955 = vld [vmem:[%s939 + $0x3c] sm:$0xf]
      %v956 = vld [vmem:[%s939 + $0x40] sm:$0xf]
      %v957 = vld [vmem:[%s939 + $0x44] sm:$0xf]
      %v958 = vld [vmem:[%s939 + $0x48] sm:$0xf]
      %v959 = vld [vmem:[%s939 + $0x4c] sm:$0xf]
      %v960 = vld [vmem:[%s939 + $0x50] sm:$0xf]
      %v961 = vld [vmem:[%s939 + $0x54] sm:$0xf]
      %v962 = vld [vmem:[%s939 + $0x58] sm:$0xf]
      %v963 = vld [vmem:[%s939 + $0x5c] sm:$0xf]
      %v964 = vld [vmem:[%s939 + $0x60] sm:$0xf]
      %v965 = vld [vmem:[%s939 + $0x64] sm:$0xf]
      %v966 = vld [vmem:[%s939 + $0x68] sm:$0xf]
      %v967 = vld [vmem:[%s939 + $0x6c] sm:$0xf]
      %v968 = vld [vmem:[%s939 + $0x70] sm:$0xf]
      %v969 = vld [vmem:[%s939 + $0x74] sm:$0xf]
      %v970 = vld [vmem:[%s939 + $0x78] sm:$0xf]
      %v971 = vld [vmem:[%s939 + $0x7c] sm:$0xf]
      %v972 = vld [vmem:[%s939 + $0x80] sm:$0xf]
      %v973 = vld [vmem:[%s939 + $0x84] sm:$0xf]
      %v974 = vld [vmem:[%s939 + $0x88] sm:$0xf]
      %v975 = vld [vmem:[%s939 + $0x8c] sm:$0xf]
      %v976 = vld [vmem:[%s939 + $0x90] sm:$0xf]
      %v977 = vld [vmem:[%s939 + $0x94] sm:$0xf]
      %v978 = vld [vmem:[%s939 + $0x98] sm:$0xf]
      %v979 = vld [vmem:[%s939 + $0x9c] sm:$0xf]
      %v980 = vld [vmem:[%s939 + $0xa0] sm:$0xf]
      %v981 = vld [vmem:[%s939 + $0xa4] sm:$0xf]
      %v982 = vld [vmem:[%s939 + $0xa8] sm:$0xf]
      %v983 = vld [vmem:[%s939 + $0xac] sm:$0xf]
      %v984 = vld [vmem:[%s939 + $0xb0] sm:$0xf]
      %v985 = vld [vmem:[%s939 + $0xb4] sm:$0xf]
      %v986 = vld [vmem:[%s939 + $0xb8] sm:$0xf]
      %v987 = vld [vmem:[%s939 + $0xbc] sm:$0xf]
      %v1036 = vunpack.c.l.b16 %v940
      %v1037 = vunpack.c.l.b16 %v941
      %v1038 = vunpack.c.l.b16 %v942
      %v1039 = vunpack.c.l.b16 %v943
      %v1040 = vunpack.c.l.b16 %v944
      %v1041 = vunpack.c.l.b16 %v945
      %v1042 = vunpack.c.l.b16 %v946
      %v1043 = vunpack.c.l.b16 %v947
      %v1044 = vunpack.c.l.b16 %v948
      %v1045 = vunpack.c.l.b16 %v949
      %v1046 = vunpack.c.l.b16 %v950
      %v1047 = vunpack.c.l.b16 %v951
      %v1048 = vunpack.c.l.b16 %v952
      %v1049 = vunpack.c.l.b16 %v953
      %v1050 = vunpack.c.l.b16 %v954
      %v1051 = vunpack.c.l.b16 %v955
      %v1052 = vunpack.c.l.b16 %v956
      %v1053 = vunpack.c.l.b16 %v957
      %v1054 = vunpack.c.l.b16 %v958
      %v1055 = vunpack.c.l.b16 %v959
      %v1056 = vunpack.c.l.b16 %v960
      %v1057 = vunpack.c.l.b16 %v961
      %v1058 = vunpack.c.l.b16 %v962
      %v1059 = vunpack.c.l.b16 %v963
      %v1060 = vunpack.c.l.b16 %v964
      %v1061 = vunpack.c.l.b16 %v965
      %v1062 = vunpack.c.l.b16 %v966
      %v1063 = vunpack.c.l.b16 %v967
      %v1064 = vunpack.c.l.b16 %v968
      %v1065 = vunpack.c.l.b16 %v969
      %v1066 = vunpack.c.l.b16 %v970
      %v1067 = vunpack.c.l.b16 %v971
      %v1068 = vunpack.c.l.b16 %v972
      %v1069 = vunpack.c.l.b16 %v973
      %v1070 = vunpack.c.l.b16 %v974
      %v1071 = vunpack.c.l.b16 %v975
      %v1072 = vunpack.c.l.b16 %v976
      %v1073 = vunpack.c.l.b16 %v977
      %v1074 = vunpack.c.l.b16 %v978
      %v1075 = vunpack.c.l.b16 %v979
      %v1076 = vunpack.c.l.b16 %v980
      %v1077 = vunpack.c.l.b16 %v981
      %v1078 = vunpack.c.l.b16 %v982
      %v1079 = vunpack.c.l.b16 %v983
      %v1080 = vunpack.c.l.b16 %v984
      %v1081 = vunpack.c.l.b16 %v985
      %v1082 = vunpack.c.l.b16 %v986
      %v1083 = vunpack.c.l.b16 %v987
      %v1084 = vpack.c.b16 %v1037, %v1036
      %v1085 = vpack.c.b16 %v1039, %v1038
      %v1086 = vpack.c.b16 %v1041, %v1040
      %v1087 = vpack.c.b16 %v1043, %v1042
      %v1088 = vpack.c.b16 %v1045, %v1044
      %v1089 = vpack.c.b16 %v1047, %v1046
      %v1090 = vpack.c.b16 %v1049, %v1048
      %v1091 = vpack.c.b16 %v1051, %v1050
      %v1092 = vpack.c.b16 %v1053, %v1052
      %v1093 = vpack.c.b16 %v1055, %v1054
      %v1094 = vpack.c.b16 %v1057, %v1056
      %v1095 = vpack.c.b16 %v1059, %v1058
      %v1096 = vpack.c.b16 %v1061, %v1060
      %v1097 = vpack.c.b16 %v1063, %v1062
      %v1098 = vpack.c.b16 %v1065, %v1064
      %v1099 = vpack.c.b16 %v1067, %v1066
      %v1100 = vpack.c.b16 %v1069, %v1068
      %v1101 = vpack.c.b16 %v1071, %v1070
      %v1102 = vpack.c.b16 %v1073, %v1072
      %v1103 = vpack.c.b16 %v1075, %v1074
      %v1104 = vpack.c.b16 %v1077, %v1076
      %v1105 = vpack.c.b16 %v1079, %v1078
      %v1106 = vpack.c.b16 %v1081, %v1080
      %v1107 = vpack.c.b16 %v1083, %v1082
      %1132 = vmatprep.subr.bf16.mxu0 0
      %1133 = vmatpush1.bf16.msra.mxu0 %v1084
      %1134 = vmatprep.subr.bf16.mxu0 0
      %1135 = vmatpush1.bf16.msra.mxu0 %v1085
      %1136 = vmatprep.subr.bf16.mxu0 0
      %1137 = vmatpush1.bf16.msra.mxu0 %v1086
      %1138 = vmatprep.subr.bf16.mxu0 0
      %1139 = vmatpush1.bf16.msra.mxu0 %v1087
      %1140 = vmatprep.subr.bf16.mxu0 0
      %1141 = vmatpush1.bf16.msra.mxu0 %v1088
      %1142 = vmatprep.subr.bf16.mxu0 0
      %1143 = vmatpush1.bf16.msra.mxu0 %v1089
      %1144 = vmatprep.subr.bf16.mxu0 0
      %1145 = vmatpush1.bf16.msra.mxu0 %v1090
      %1146 = vmatprep.subr.bf16.mxu0 0
      %1147 = vmatpush1.bf16.msra.mxu0 %v1091
      %1148 = vmatprep.subr.bf16.mxu0 0
      %1149 = vmatpush1.bf16.msra.mxu0 %v1092
      %1150 = vmatprep.subr.bf16.mxu0 0
      %1151 = vmatpush1.bf16.msra.mxu0 %v1093
      %1152 = vmatprep.subr.bf16.mxu0 0
      %1153 = vmatpush1.bf16.msra.mxu0 %v1094
      %1154 = vmatprep.subr.bf16.mxu0 0
      %1155 = vmatpush1.bf16.msra.mxu0 %v1095
      %1156 = vmatprep.subr.bf16.mxu0 0
      %1157 = vmatpush1.bf16.msra.mxu0 %v1096
      %1158 = vmatprep.subr.bf16.mxu0 0
      %1159 = vmatpush1.bf16.msra.mxu0 %v1097
      %1160 = vmatprep.subr.bf16.mxu0 0
      %1161 = vmatpush1.bf16.msra.mxu0 %v1098
      %1162 = vmatprep.subr.bf16.mxu0 0
      %1163 = vmatpush1.bf16.msra.mxu0 %v1099
      %1164 = vmatprep.mubr.bf16.mxu0 %v607
      %1165 = vmatmul.mubr.bf16.gmra.mrb[0].mxu0 %v494
      %v1166 = vpop.f32.mrb[0].mxu0
      %v1167 = vadd.f32 0.0, %v1166
      %v1168 = vpop.f32.mrb[0].mxu0
      %v1169 = vpop.f32.mrb[0].mxu0
      %v1170 = vadd.f32 0.0, %v1169
      %v1171 = vpop.f32.mrb[0].mxu0
      %1172 = vmatprep.mubr.bf16.mxu0 %v619
      %1173 = vmatmul.mubr.bf16.gmra.mrb[0].mxu0 %v495
      %v1174 = vpop.f32.mrb[0].mxu0
      %v1175 = vadd.f32 0.0, %v1174
      %v1176 = vpop.f32.mrb[0].mxu0
      %v1177 = vpop.f32.mrb[0].mxu0
      %v1178 = vadd.f32 0.0, %v1177
      %v1179 = vpop.f32.mrb[0].mxu0
      %1180 = vmatprep.mubr.bf16.mxu0 %v631
      %1181 = vmatmul.mubr.bf16.gmra.mrb[0].mxu0 %v496
      %v1182 = vpop.f32.mrb[0].mxu0
      %v1183 = vadd.f32 0.0, %v1182
      %v1184 = vpop.f32.mrb[0].mxu0
      %v1185 = vpop.f32.mrb[0].mxu0
      %v1186 = vadd.f32 0.0, %v1185
      %v1187 = vpop.f32.mrb[0].mxu0
      %1188 = vmatprep.mubr.bf16.mxu0 %v643
      %1189 = vmatmul.mubr.bf16.gmra.mrb[0].mxu0 %v497
      %v1190 = vpop.f32.mrb[0].mxu0
      %v1191 = vadd.f32 0.0, %v1190
      %v1192 = vpop.f32.mrb[0].mxu0
      %v1193 = vpop.f32.mrb[0].mxu0
      %v1194 = vadd.f32 0.0, %v1193
      %v1195 = vpop.f32.mrb[0].mxu0
      %1196 = vmatprep.mubr.bf16.mxu0 %v655
      %1197 = vmatmul.mubr.bf16.gmra.mrb[0].mxu0 %v498
      %v1198 = vpop.f32.mrb[0].mxu0
      %v1199 = vadd.f32 0.0, %v1198
      %v1200 = vpop.f32.mrb[0].mxu0
      %v1201 = vpop.f32.mrb[0].mxu0
      %v1202 = vadd.f32 0.0, %v1201
      %v1203 = vpop.f32.mrb[0].mxu0
      %1204 = vmatprep.mubr.bf16.mxu0 %v667
      %1205 = vmatmul.mubr.bf16.gmra.mrb[0].mxu0 %v499
      %v1206 = vpop.f32.mrb[0].mxu0
      %v1207 = vadd.f32 0.0, %v1206
      %v1208 = vpop.f32.mrb[0].mxu0
      %v1209 = vpop.f32.mrb[0].mxu0
      %v1210 = vadd.f32 0.0, %v1209
      %v1211 = vpop.f32.mrb[0].mxu0
      %1212 = vmatprep.mubr.bf16.mxu0 %v679
      %1213 = vmatmul.mubr.bf16.gmra.mrb[0].mxu0 %v500
      %v1214 = vpop.f32.mrb[0].mxu0
      %v1215 = vadd.f32 0.0, %v1214
      %v1216 = vpop.f32.mrb[0].mxu0
      %v1217 = vpop.f32.mrb[0].mxu0
      %v1218 = vadd.f32 0.0, %v1217
      %v1219 = vpop.f32.mrb[0].mxu0
      %1220 = vmatprep.mubr.bf16.mxu0 %v691
      %1221 = vmatmul.mubr.bf16.gmra.mrb[0].mxu0 %v501
      %v1222 = vpop.f32.mrb[0].mxu0
      %v1223 = vadd.f32 0.0, %v1222
      %v1224 = vpop.f32.mrb[0].mxu0
      %v1225 = vpop.f32.mrb[0].mxu0
      %v1226 = vadd.f32 0.0, %v1225
      %v1227 = vpop.f32.mrb[0].mxu0
      %1228 = vmatprep.mubr.bf16.mxu0 %v703
      %1229 = vmatmul.mubr.bf16.gmra.mrb[0].mxu0 %v502
      %v1230 = vpop.f32.mrb[0].mxu0
      %v1231 = vadd.f32 0.0, %v1230
      %v1232 = vpop.f32.mrb[0].mxu0
      %v1233 = vpop.f32.mrb[0].mxu0
      %v1234 = vadd.f32 0.0, %v1233
      %v1235 = vpop.f32.mrb[0].mxu0
      %1236 = vmatprep.mubr.bf16.mxu0 %v715
      %1237 = vmatmul.mubr.bf16.gmra.mrb[0].mxu0 %v503
      %v1238 = vpop.f32.mrb[0].mxu0
      %v1239 = vadd.f32 0.0, %v1238
      %v1240 = vpop.f32.mrb[0].mxu0
      %v1241 = vpop.f32.mrb[0].mxu0
      %v1242 = vadd.f32 0.0, %v1241
      %v1243 = vpop.f32.mrb[0].mxu0
      %1244 = vmatprep.mubr.bf16.mxu0 %v727
      %1245 = vmatmul.mubr.bf16.gmra.mrb[0].mxu0 %v504
      %v1246 = vpop.f32.mrb[0].mxu0
      %v1247 = vadd.f32 0.0, %v1246
      %v1248 = vpop.f32.mrb[0].mxu0
      %v1249 = vpop.f32.mrb[0].mxu0
      %v1250 = vadd.f32 0.0, %v1249
      %v1251 = vpop.f32.mrb[0].mxu0
      %1252 = vmatprep.mubr.bf16.mxu0 %v739
      %1253 = vmatmul.mubr.bf16.gmra.mrb[0].mxu0 %v505
      %v1254 = vpop.f32.mrb[0].mxu0
      %v1255 = vadd.f32 0.0, %v1254
      %v1256 = vpop.f32.mrb[0].mxu0
      %v1257 = vpop.f32.mrb[0].mxu0
      %v1258 = vadd.f32 0.0, %v1257
      %v1259 = vpop.f32.mrb[0].mxu0
      %1260 = vmatprep.mubr.bf16.mxu0 %v751
      %1261 = vmatmul.mubr.bf16.gmra.mrb[0].mxu0 %v506
      %v1262 = vpop.f32.mrb[0].mxu0
      %v1263 = vadd.f32 0.0, %v1262
      %v1264 = vpop.f32.mrb[0].mxu0
      %v1265 = vpop.f32.mrb[0].mxu0
      %v1266 = vadd.f32 0.0, %v1265
      %v1267 = vpop.f32.mrb[0].mxu0
      %1268 = vmatprep.mubr.bf16.mxu0 %v763
      %1269 = vmatmul.mubr.bf16.gmra.mrb[0].mxu0 %v507
      %v1270 = vpop.f32.mrb[0].mxu0
      %v1271 = vadd.f32 0.0, %v1270
      %v1272 = vpop.f32.mrb[0].mxu0
      %v1273 = vpop.f32.mrb[0].mxu0
      %v1274 = vadd.f32 0.0, %v1273
      %v1275 = vpop.f32.mrb[0].mxu0
      %1276 = vmatprep.mubr.bf16.mxu0 %v775
      %1277 = vmatmul.mubr.bf16.gmra.mrb[0].mxu0 %v508
      %v1278 = vpop.f32.mrb[0].mxu0
      %v1279 = vadd.f32 0.0, %v1278
      %v1280 = vpop.f32.mrb[0].mxu0
      %v1281 = vpop.f32.mrb[0].mxu0
      %v1282 = vadd.f32 0.0, %v1281
      %v1283 = vpop.f32.mrb[0].mxu0
      %1284 = vmatprep.mubr.bf16.mxu0 %v787
      %1285 = vmatmul.mubr.bf16.gmra.mrb[0].mxu0 %v509
      %v1286 = vpop.f32.mrb[0].mxu0
      %v1287 = vadd.f32 0.0, %v1286
      %v1288 = vpop.f32.mrb[0].mxu0
      %v1289 = vpop.f32.mrb[0].mxu0
      %v1290 = vadd.f32 0.0, %v1289
      %v1291 = vpop.f32.mrb[0].mxu0
      %1292 = vdwg.mxu0
      %1293 = vmatprep.subr.bf16.mxu0 0
      %1294 = vmatpush1.bf16.msra.mxu0 %v1100
      %1295 = vmatprep.subr.bf16.mxu0 0
      %1296 = vmatpush1.bf16.msra.mxu0 %v1101
      %1297 = vmatprep.subr.bf16.mxu0 0
      %1298 = vmatpush1.bf16.msra.mxu0 %v1102
      %1299 = vmatprep.subr.bf16.mxu0 0
      %1300 = vmatpush1.bf16.msra.mxu0 %v1103
      %1301 = vmatprep.subr.bf16.mxu0 0
      %1302 = vmatpush1.bf16.msra.mxu0 %v1104
      %1303 = vmatprep.subr.bf16.mxu0 0
      %1304 = vmatpush1.bf16.msra.mxu0 %v1105
      %1305 = vmatprep.subr.bf16.mxu0 0
      %1306 = vmatpush1.bf16.msra.mxu0 %v1106
      %1307 = vmatprep.subr.bf16.mxu0 0
      %1308 = vmatpush1.bf16.msra.mxu0 %v1107
      %1309 = vmatprep.subr.bf16.mxu0 0
      %1310 = vmatpush1.bf16.msra.mxu0 0
      %1311 = vmatprep.subr.bf16.mxu0 0
      %1312 = vmatpush1.bf16.msra.mxu0 0
      %1313 = vmatprep.subr.bf16.mxu0 0
      %1314 = vmatpush1.bf16.msra.mxu0 0
      %1315 = vmatprep.subr.bf16.mxu0 0
      %1316 = vmatpush1.bf16.msra.mxu0 0
      %1317 = vmatprep.subr.bf16.mxu0 0
      %1318 = vmatpush1.bf16.msra.mxu0 0
      %1319 = vmatprep.subr.bf16.mxu0 0
      %1320 = vmatpush1.bf16.msra.mxu0 0
      %1321 = vmatprep.subr.bf16.mxu0 0
      %1322 = vmatpush1.bf16.msra.mxu0 0
      %1323 = vmatprep.subr.bf16.mxu0 0
      %1324 = vmatpush1.bf16.msra.mxu0 0
      %1325 = vmatprep.mubr.bf16.mxu0 0
      %1326 = vmatmul.mubr.bf16.gmra.mrb[0].mxu0 %v824
      %v1327 = vpop.f32.mrb[0].mxu0
      %v1328 = vadd.f32 %v1167, %v1327
      %v1329 = vpop.f32.mrb[0].mxu0
      %v1330 = vpop.f32.mrb[0].mxu0
      %v1331 = vadd.f32 %v1170, %v1330
      %v1332 = vpop.f32.mrb[0].mxu0
      %1333 = vmatprep.mubr.bf16.mxu0 0
      %1334 = vmatmul.mubr.bf16.gmra.mrb[0].mxu0 %v827
      %v1335 = vpop.f32.mrb[0].mxu0
      %v1336 = vadd.f32 %v1175, %v1335
      %v1337 = vpop.f32.mrb[0].mxu0
      %v1338 = vpop.f32.mrb[0].mxu0
      %v1339 = vadd.f32 %v1178, %v1338
      %v1340 = vpop.f32.mrb[0].mxu0
      %1341 = vmatprep.mubr.bf16.mxu0 0
      %1342 = vmatmul.mubr.bf16.gmra.mrb[0].mxu0 %v830
      %v1343 = vpop.f32.mrb[0].mxu0
      %v1344 = vadd.f32 %v1183, %v1343
      %v1345 = vpop.f32.mrb[0].mxu0
      %v1346 = vpop.f32.mrb[0].mxu0
      %v1347 = vadd.f32 %v1186, %v1346
      %v1348 = vpop.f32.mrb[0].mxu0
      %1349 = vmatprep.mubr.bf16.mxu0 0
      %1350 = vmatmul.mubr.bf16.gmra.mrb[0].mxu0 %v833
      %v1351 = vpop.f32.mrb[0].mxu0
      %v1352 = vadd.f32 %v1191, %v1351
      %v1353 = vpop.f32.mrb[0].mxu0
      %v1354 = vpop.f32.mrb[0].mxu0
      %v1355 = vadd.f32 %v1194, %v1354
      %v1356 = vpop.f32.mrb[0].mxu0
      %1357 = vmatprep.mubr.bf16.mxu0 0
      %1358 = vmatmul.mubr.bf16.gmra.mrb[0].mxu0 %v836
      %v1359 = vpop.f32.mrb[0].mxu0
      %v1360 = vadd.f32 %v1199, %v1359
      %v1361 = vpop.f32.mrb[0].mxu0
      %v1362 = vpop.f32.mrb[0].mxu0
      %v1363 = vadd.f32 %v1202, %v1362
      %v1364 = vpop.f32.mrb[0].mxu0
      %1365 = vmatprep.mubr.bf16.mxu0 0
      %1366 = vmatmul.mubr.bf16.gmra.mrb[0].mxu0 %v839
      %v1367 = vpop.f32.mrb[0].mxu0
      %v1368 = vadd.f32 %v1207, %v1367
      %v1369 = vpop.f32.mrb[0].mxu0
      %v1370 = vpop.f32.mrb[0].mxu0
      %v1371 = vadd.f32 %v1210, %v1370
      %v1372 = vpop.f32.mrb[0].mxu0
      %1373 = vmatprep.mubr.bf16.mxu0 0
      %1374 = vmatmul.mubr.bf16.gmra.mrb[0].mxu0 %v842
      %v1375 = vpop.f32.mrb[0].mxu0
      %v1376 = vadd.f32 %v1215, %v1375
      %v1377 = vpop.f32.mrb[0].mxu0
      %v1378 = vpop.f32.mrb[0].mxu0
      %v1379 = vadd.f32 %v1218, %v1378
      %v1380 = vpop.f32.mrb[0].mxu0
      %1381 = vmatprep.mubr.bf16.mxu0 0
      %1382 = vmatmul.mubr.bf16.gmra.mrb[0].mxu0 %v845
      %v1383 = vpop.f32.mrb[0].mxu0
      %v1384 = vadd.f32 %v1223, %v1383
      %v1385 = vpop.f32.mrb[0].mxu0
      %v1386 = vpop.f32.mrb[0].mxu0
      %v1387 = vadd.f32 %v1226, %v1386
      %v1388 = vpop.f32.mrb[0].mxu0
      %1389 = vmatprep.mubr.bf16.mxu0 0
      %1390 = vmatmul.mubr.bf16.gmra.mrb[0].mxu0 %v848
      %v1391 = vpop.f32.mrb[0].mxu0
      %v1392 = vadd.f32 %v1231, %v1391
      %v1393 = vpop.f32.mrb[0].mxu0
      %v1394 = vpop.f32.mrb[0].mxu0
      %v1395 = vadd.f32 %v1234, %v1394
      %v1396 = vpop.f32.mrb[0].mxu0
      %1397 = vmatprep.mubr.bf16.mxu0 0
      %1398 = vmatmul.mubr.bf16.gmra.mrb[0].mxu0 %v851
      %v1399 = vpop.f32.mrb[0].mxu0
      %v1400 = vadd.f32 %v1239, %v1399
      %v1401 = vpop.f32.mrb[0].mxu0
      %v1402 = vpop.f32.mrb[0].mxu0
      %v1403 = vadd.f32 %v1242, %v1402
      %v1404 = vpop.f32.mrb[0].mxu0
      %1405 = vmatprep.mubr.bf16.mxu0 0
      %1406 = vmatmul.mubr.bf16.gmra.mrb[0].mxu0 %v854
      %v1407 = vpop.f32.mrb[0].mxu0
      %v1408 = vadd.f32 %v1247, %v1407
      %v1409 = vpop.f32.mrb[0].mxu0
      %v1410 = vpop.f32.mrb[0].mxu0
      %v1411 = vadd.f32 %v1250, %v1410
      %v1412 = vpop.f32.mrb[0].mxu0
      %1413 = vmatprep.mubr.bf16.mxu0 0
      %1414 = vmatmul.mubr.bf16.gmra.mrb[0].mxu0 %v857
      %v1415 = vpop.f32.mrb[0].mxu0
      %v1416 = vadd.f32 %v1255, %v1415
      %v1417 = vpop.f32.mrb[0].mxu0
      %v1418 = vpop.f32.mrb[0].mxu0
      %v1419 = vadd.f32 %v1258, %v1418
      %v1420 = vpop.f32.mrb[0].mxu0
      %1421 = vmatprep.mubr.bf16.mxu0 0
      %1422 = vmatmul.mubr.bf16.gmra.mrb[0].mxu0 %v860
      %v1423 = vpop.f32.mrb[0].mxu0
      %v1424 = vadd.f32 %v1263, %v1423
      %v1425 = vpop.f32.mrb[0].mxu0
      %v1426 = vpop.f32.mrb[0].mxu0
      %v1427 = vadd.f32 %v1266, %v1426
      %v1428 = vpop.f32.mrb[0].mxu0
      %1429 = vmatprep.mubr.bf16.mxu0 0
      %1430 = vmatmul.mubr.bf16.gmra.mrb[0].mxu0 %v863
      %v1431 = vpop.f32.mrb[0].mxu0
      %v1432 = vadd.f32 %v1271, %v1431
      %v1433 = vpop.f32.mrb[0].mxu0
      %v1434 = vpop.f32.mrb[0].mxu0
      %v1435 = vadd.f32 %v1274, %v1434
      %v1436 = vpop.f32.mrb[0].mxu0
      %1437 = vmatprep.mubr.bf16.mxu0 0
      %1438 = vmatmul.mubr.bf16.gmra.mrb[0].mxu0 %v866
      %v1439 = vpop.f32.mrb[0].mxu0
      %v1440 = vadd.f32 %v1279, %v1439
      %v1441 = vpop.f32.mrb[0].mxu0
      %v1442 = vpop.f32.mrb[0].mxu0
      %v1443 = vadd.f32 %v1282, %v1442
      %v1444 = vpop.f32.mrb[0].mxu0
      %1445 = vmatprep.mubr.bf16.mxu0 0
      %1446 = vmatmul.mubr.bf16.gmra.mrb[0].mxu0 %v869
      %v1447 = vpop.f32.mrb[0].mxu0
      %v1448 = vadd.f32 %v1287, %v1447
      %v1449 = vpop.f32.mrb[0].mxu0
      %v1450 = vpop.f32.mrb[0].mxu0
      %v1451 = vadd.f32 %v1290, %v1450
      %v1452 = vpop.f32.mrb[0].mxu0
      %1453 = vdwg.mxu0
      %v1502 = vunpack.c.l.b16 %v891
      %v1503 = vunpack.c.l.b16 %v892
      %v1504 = vunpack.c.l.b16 %v893
      %v1505 = vunpack.c.l.b16 %v894
      %v1506 = vunpack.c.l.b16 %v895
      %v1507 = vunpack.c.l.b16 %v896
      %v1508 = vunpack.c.l.b16 %v897
      %v1509 = vunpack.c.l.b16 %v898
      %v1510 = vunpack.c.l.b16 %v899
      %v1511 = vunpack.c.l.b16 %v900
      %v1512 = vunpack.c.l.b16 %v901
      %v1513 = vunpack.c.l.b16 %v902
      %v1514 = vunpack.c.l.b16 %v903
      %v1515 = vunpack.c.l.b16 %v904
      %v1516 = vunpack.c.l.b16 %v905
      %v1517 = vunpack.c.l.b16 %v906
      %v1518 = vunpack.c.l.b16 %v907
      %v1519 = vunpack.c.l.b16 %v908
      %v1520 = vunpack.c.l.b16 %v909
      %v1521 = vunpack.c.l.b16 %v910
      %v1522 = vunpack.c.l.b16 %v911
      %v1523 = vunpack.c.l.b16 %v912
      %v1524 = vunpack.c.l.b16 %v913
      %v1525 = vunpack.c.l.b16 %v914
      %v1526 = vunpack.c.l.b16 %v915
      %v1527 = vunpack.c.l.b16 %v916
      %v1528 = vunpack.c.l.b16 %v917
      %v1529 = vunpack.c.l.b16 %v918
      %v1530 = vunpack.c.l.b16 %v919
      %v1531 = vunpack.c.l.b16 %v920
      %v1532 = vunpack.c.l.b16 %v921
      %v1533 = vunpack.c.l.b16 %v922
      %v1534 = vunpack.c.l.b16 %v923
      %v1535 = vunpack.c.l.b16 %v924
      %v1536 = vunpack.c.l.b16 %v925
      %v1537 = vunpack.c.l.b16 %v926
      %v1538 = vunpack.c.l.b16 %v927
      %v1539 = vunpack.c.l.b16 %v928
      %v1540 = vunpack.c.l.b16 %v929
      %v1541 = vunpack.c.l.b16 %v930
      %v1542 = vunpack.c.l.b16 %v931
      %v1543 = vunpack.c.l.b16 %v932
      %v1544 = vunpack.c.l.b16 %v933
      %v1545 = vunpack.c.l.b16 %v934
      %v1546 = vunpack.c.l.b16 %v935
      %v1547 = vunpack.c.l.b16 %v936
      %v1548 = vunpack.c.l.b16 %v937
      %v1549 = vunpack.c.l.b16 %v938
      %v1550 = vpack.c.b16 %v1503, %v1502
      %v1551 = vpack.c.b16 %v1505, %v1504
      %v1552 = vpack.c.b16 %v1507, %v1506
      %v1553 = vpack.c.b16 %v1509, %v1508
      %v1554 = vpack.c.b16 %v1511, %v1510
      %v1555 = vpack.c.b16 %v1513, %v1512
      %v1556 = vpack.c.b16 %v1515, %v1514
      %v1557 = vpack.c.b16 %v1517, %v1516
      %v1558 = vpack.c.b16 %v1519, %v1518
      %v1559 = vpack.c.b16 %v1521, %v1520
      %v1560 = vpack.c.b16 %v1523, %v1522
      %v1561 = vpack.c.b16 %v1525, %v1524
      %v1562 = vpack.c.b16 %v1527, %v1526
      %v1563 = vpack.c.b16 %v1529, %v1528
      %v1564 = vpack.c.b16 %v1531, %v1530
      %v1565 = vpack.c.b16 %v1533, %v1532
      %v1566 = vpack.c.b16 %v1535, %v1534
      %v1567 = vpack.c.b16 %v1537, %v1536
      %v1568 = vpack.c.b16 %v1539, %v1538
      %v1569 = vpack.c.b16 %v1541, %v1540
      %v1570 = vpack.c.b16 %v1543, %v1542
      %v1571 = vpack.c.b16 %v1545, %v1544
      %v1572 = vpack.c.b16 %v1547, %v1546
      %v1573 = vpack.c.b16 %v1549, %v1548
      %1598 = vmatprep.subr.bf16.mxu0 0
      %1599 = vmatpush1.bf16.msra.mxu0 %v1550
      %1600 = vmatprep.subr.bf16.mxu0 0
      %1601 = vmatpush1.bf16.msra.mxu0 %v1551
      %1602 = vmatprep.subr.bf16.mxu0 0
      %1603 = vmatpush1.bf16.msra.mxu0 %v1552
      %1604 = vmatprep.subr.bf16.mxu0 0
      %1605 = vmatpush1.bf16.msra.mxu0 %v1553
      %1606 = vmatprep.subr.bf16.mxu0 0
      %1607 = vmatpush1.bf16.msra.mxu0 %v1554
      %1608 = vmatprep.subr.bf16.mxu0 0
      %1609 = vmatpush1.bf16.msra.mxu0 %v1555
      %1610 = vmatprep.subr.bf16.mxu0 0
      %1611 = vmatpush1.bf16.msra.mxu0 %v1556
      %1612 = vmatprep.subr.bf16.mxu0 0
      %1613 = vmatpush1.bf16.msra.mxu0 %v1557
      %1614 = vmatprep.subr.bf16.mxu0 0
      %1615 = vmatpush1.bf16.msra.mxu0 %v1558
      %1616 = vmatprep.subr.bf16.mxu0 0
      %1617 = vmatpush1.bf16.msra.mxu0 %v1559
      %1618 = vmatprep.subr.bf16.mxu0 0
      %1619 = vmatpush1.bf16.msra.mxu0 %v1560
      %1620 = vmatprep.subr.bf16.mxu0 0
      %1621 = vmatpush1.bf16.msra.mxu0 %v1561
      %1622 = vmatprep.subr.bf16.mxu0 0
      %1623 = vmatpush1.bf16.msra.mxu0 %v1562
      %1624 = vmatprep.subr.bf16.mxu0 0
      %1625 = vmatpush1.bf16.msra.mxu0 %v1563
      %1626 = vmatprep.subr.bf16.mxu0 0
      %1627 = vmatpush1.bf16.msra.mxu0 %v1564
      %1628 = vmatprep.subr.bf16.mxu0 0
      %1629 = vmatpush1.bf16.msra.mxu0 %v1565
      %1630 = vmatprep.mubr.bf16.mxu0 %v595
      %1631 = vmatmul.mubr.bf16.gmra.mrb[0].mxu0 %v493
      %v1632 = vpop.f32.mrb[0].mxu0
      %v1633 = vadd.f32 %v1328, %v1632
      %v1634 = vpop.f32.mrb[0].mxu0
      %v1635 = vpop.f32.mrb[0].mxu0
      %v1636 = vadd.f32 %v1331, %v1635
      %v1637 = vpop.f32.mrb[0].mxu0
      %1638 = vmatprep.mubr.bf16.mxu0 %v607
      %1639 = vmatmul.mubr.bf16.gmra.mrb[0].mxu0 %v494
      %v1640 = vpop.f32.mrb[0].mxu0
      %v1641 = vadd.f32 %v1336, %v1640
      %v1642 = vpop.f32.mrb[0].mxu0
      %v1643 = vpop.f32.mrb[0].mxu0
      %v1644 = vadd.f32 %v1339, %v1643
      %v1645 = vpop.f32.mrb[0].mxu0
      %1646 = vmatprep.mubr.bf16.mxu0 %v619
      %1647 = vmatmul.mubr.bf16.gmra.mrb[0].mxu0 %v495
      %v1648 = vpop.f32.mrb[0].mxu0
      %v1649 = vadd.f32 %v1344, %v1648
      %v1650 = vpop.f32.mrb[0].mxu0
      %v1651 = vpop.f32.mrb[0].mxu0
      %v1652 = vadd.f32 %v1347, %v1651
      %v1653 = vpop.f32.mrb[0].mxu0
      %1654 = vmatprep.mubr.bf16.mxu0 %v631
      %1655 = vmatmul.mubr.bf16.gmra.mrb[0].mxu0 %v496
      %v1656 = vpop.f32.mrb[0].mxu0
      %v1657 = vadd.f32 %v1352, %v1656
      %v1658 = vpop.f32.mrb[0].mxu0
      %v1659 = vpop.f32.mrb[0].mxu0
      %v1660 = vadd.f32 %v1355, %v1659
      %v1661 = vpop.f32.mrb[0].mxu0
      %1662 = vmatprep.mubr.bf16.mxu0 %v643
      %1663 = vmatmul.mubr.bf16.gmra.mrb[0].mxu0 %v497
      %v1664 = vpop.f32.mrb[0].mxu0
      %v1665 = vadd.f32 %v1360, %v1664
      %v1666 = vpop.f32.mrb[0].mxu0
      %v1667 = vpop.f32.mrb[0].mxu0
      %v1668 = vadd.f32 %v1363, %v1667
      %v1669 = vpop.f32.mrb[0].mxu0
      %1670 = vmatprep.mubr.bf16.mxu0 %v655
      %1671 = vmatmul.mubr.bf16.gmra.mrb[0].mxu0 %v498
      %v1672 = vpop.f32.mrb[0].mxu0
      %v1673 = vadd.f32 %v1368, %v1672
      %v1674 = vpop.f32.mrb[0].mxu0
      %v1675 = vpop.f32.mrb[0].mxu0
      %v1676 = vadd.f32 %v1371, %v1675
      %v1677 = vpop.f32.mrb[0].mxu0
      %1678 = vmatprep.mubr.bf16.mxu0 %v667
      %1679 = vmatmul.mubr.bf16.gmra.mrb[0].mxu0 %v499
      %v1680 = vpop.f32.mrb[0].mxu0
      %v1681 = vadd.f32 %v1376, %v1680
      %v1682 = vpop.f32.mrb[0].mxu0
      %v1683 = vpop.f32.mrb[0].mxu0
      %v1684 = vadd.f32 %v1379, %v1683
      %v1685 = vpop.f32.mrb[0].mxu0
      %1686 = vmatprep.mubr.bf16.mxu0 %v679
      %1687 = vmatmul.mubr.bf16.gmra.mrb[0].mxu0 %v500
      %v1688 = vpop.f32.mrb[0].mxu0
      %v1689 = vadd.f32 %v1384, %v1688
      %v1690 = vpop.f32.mrb[0].mxu0
      %v1691 = vpop.f32.mrb[0].mxu0
      %v1692 = vadd.f32 %v1387, %v1691
      %v1693 = vpop.f32.mrb[0].mxu0
      %1694 = vmatprep.mubr.bf16.mxu0 %v691
      %1695 = vmatmul.mubr.bf16.gmra.mrb[0].mxu0 %v501
      %v1696 = vpop.f32.mrb[0].mxu0
      %v1697 = vadd.f32 %v1392, %v1696
      %v1698 = vpop.f32.mrb[0].mxu0
      %v1699 = vpop.f32.mrb[0].mxu0
      %v1700 = vadd.f32 %v1395, %v1699
      %v1701 = vpop.f32.mrb[0].mxu0
      %1702 = vmatprep.mubr.bf16.mxu0 %v703
      %1703 = vmatmul.mubr.bf16.gmra.mrb[0].mxu0 %v502
      %v1704 = vpop.f32.mrb[0].mxu0
      %v1705 = vadd.f32 %v1400, %v1704
      %v1706 = vpop.f32.mrb[0].mxu0
      %v1707 = vpop.f32.mrb[0].mxu0
      %v1708 = vadd.f32 %v1403, %v1707
      %v1709 = vpop.f32.mrb[0].mxu0
      %1710 = vmatprep.mubr.bf16.mxu0 %v715
      %1711 = vmatmul.mubr.bf16.gmra.mrb[0].mxu0 %v503
      %v1712 = vpop.f32.mrb[0].mxu0
      %v1713 = vadd.f32 %v1408, %v1712
      %v1714 = vpop.f32.mrb[0].mxu0
      %v1715 = vpop.f32.mrb[0].mxu0
      %v1716 = vadd.f32 %v1411, %v1715
      %v1717 = vpop.f32.mrb[0].mxu0
      %1718 = vmatprep.mubr.bf16.mxu0 %v727
      %1719 = vmatmul.mubr.bf16.gmra.mrb[0].mxu0 %v504
      %v1720 = vpop.f32.mrb[0].mxu0
      %v1721 = vadd.f32 %v1416, %v1720
      %v1722 = vpop.f32.mrb[0].mxu0
      %v1723 = vpop.f32.mrb[0].mxu0
      %v1724 = vadd.f32 %v1419, %v1723
      %v1725 = vpop.f32.mrb[0].mxu0
      %1726 = vmatprep.mubr.bf16.mxu0 %v739
      %1727 = vmatmul.mubr.bf16.gmra.mrb[0].mxu0 %v505
      %v1728 = vpop.f32.mrb[0].mxu0
      %v1729 = vadd.f32 %v1424, %v1728
      %v1730 = vpop.f32.mrb[0].mxu0
      %v1731 = vpop.f32.mrb[0].mxu0
      %v1732 = vadd.f32 %v1427, %v1731
      %v1733 = vpop.f32.mrb[0].mxu0
      %1734 = vmatprep.mubr.bf16.mxu0 %v751
      %1735 = vmatmul.mubr.bf16.gmra.mrb[0].mxu0 %v506
      %v1736 = vpop.f32.mrb[0].mxu0
      %v1737 = vadd.f32 %v1432, %v1736
      %v1738 = vpop.f32.mrb[0].mxu0
      %v1739 = vpop.f32.mrb[0].mxu0
      %v1740 = vadd.f32 %v1435, %v1739
      %v1741 = vpop.f32.mrb[0].mxu0
      %1742 = vmatprep.mubr.bf16.mxu0 %v763
      %1743 = vmatmul.mubr.bf16.gmra.mrb[0].mxu0 %v507
      %v1744 = vpop.f32.mrb[0].mxu0
      %v1745 = vadd.f32 %v1440, %v1744
      %v1746 = vpop.f32.mrb[0].mxu0
      %v1747 = vpop.f32.mrb[0].mxu0
      %v1748 = vadd.f32 %v1443, %v1747
      %v1749 = vpop.f32.mrb[0].mxu0
      %1750 = vmatprep.mubr.bf16.mxu0 %v775
      %1751 = vmatmul.mubr.bf16.gmra.mrb[0].mxu0 %v508
      %v1752 = vpop.f32.mrb[0].mxu0
      %v1753 = vadd.f32 %v1448, %v1752
      %v1754 = vpop.f32.mrb[0].mxu0
      %v1755 = vpop.f32.mrb[0].mxu0
      %v1756 = vadd.f32 %v1451, %v1755
      %v1757 = vpop.f32.mrb[0].mxu0
      %1758 = vdwg.mxu0
      %1759 = vmatprep.subr.bf16.mxu0 0
      %1760 = vmatpush1.bf16.msra.mxu0 %v1566
      %1761 = vmatprep.subr.bf16.mxu0 0
      %1762 = vmatpush1.bf16.msra.mxu0 %v1567
      %1763 = vmatprep.subr.bf16.mxu0 0
      %1764 = vmatpush1.bf16.msra.mxu0 %v1568
      %1765 = vmatprep.subr.bf16.mxu0 0
      %1766 = vmatpush1.bf16.msra.mxu0 %v1569
      %1767 = vmatprep.subr.bf16.mxu0 0
      %1768 = vmatpush1.bf16.msra.mxu0 %v1570
      %1769 = vmatprep.subr.bf16.mxu0 0
      %1770 = vmatpush1.bf16.msra.mxu0 %v1571
      %1771 = vmatprep.subr.bf16.mxu0 0
      %1772 = vmatpush1.bf16.msra.mxu0 %v1572
      %1773 = vmatprep.subr.bf16.mxu0 0
      %1774 = vmatpush1.bf16.msra.mxu0 %v1573
      %1775 = vmatprep.subr.bf16.mxu0 0
      %1776 = vmatpush1.bf16.msra.mxu0 0
      %1777 = vmatprep.subr.bf16.mxu0 0
      %1778 = vmatpush1.bf16.msra.mxu0 0
      %1779 = vmatprep.subr.bf16.mxu0 0
      %1780 = vmatpush1.bf16.msra.mxu0 0
      %1781 = vmatprep.subr.bf16.mxu0 0
      %1782 = vmatpush1.bf16.msra.mxu0 0
      %1783 = vmatprep.subr.bf16.mxu0 0
      %1784 = vmatpush1.bf16.msra.mxu0 0
      %1785 = vmatprep.subr.bf16.mxu0 0
      %1786 = vmatpush1.bf16.msra.mxu0 0
      %1787 = vmatprep.subr.bf16.mxu0 0
      %1788 = vmatpush1.bf16.msra.mxu0 0
      %1789 = vmatprep.subr.bf16.mxu0 0
      %1790 = vmatpush1.bf16.msra.mxu0 0
      %1791 = vmatprep.mubr.bf16.mxu0 0
      %1792 = vmatmul.mubr.bf16.gmra.mrb[0].mxu0 %v821
      %v1793 = vpop.f32.mrb[0].mxu0
      %v1794 = vadd.f32 %v1633, %v1793
      %v1795 = vpop.f32.mrb[0].mxu0
      %v1796 = vpop.f32.mrb[0].mxu0
      %v1797 = vadd.f32 %v1636, %v1796
      %v1798 = vpop.f32.mrb[0].mxu0
      %1799 = vmatprep.mubr.bf16.mxu0 0
      %1800 = vmatmul.mubr.bf16.gmra.mrb[0].mxu0 %v824
      %v1801 = vpop.f32.mrb[0].mxu0
      %v1802 = vadd.f32 %v1641, %v1801
      %v1803 = vpop.f32.mrb[0].mxu0
      %v1804 = vpop.f32.mrb[0].mxu0
      %v1805 = vadd.f32 %v1644, %v1804
      %v1806 = vpop.f32.mrb[0].mxu0
      %1807 = vmatprep.mubr.bf16.mxu0 0
      %1808 = vmatmul.mubr.bf16.gmra.mrb[0].mxu0 %v827
      %v1809 = vpop.f32.mrb[0].mxu0
      %v1810 = vadd.f32 %v1649, %v1809
      %v1811 = vpop.f32.mrb[0].mxu0
      %v1812 = vpop.f32.mrb[0].mxu0
      %v1813 = vadd.f32 %v1652, %v1812
      %v1814 = vpop.f32.mrb[0].mxu0
      %1815 = vmatprep.mubr.bf16.mxu0 0
      %1816 = vmatmul.mubr.bf16.gmra.mrb[0].mxu0 %v830
      %v1817 = vpop.f32.mrb[0].mxu0
      %v1818 = vadd.f32 %v1657, %v1817
      %v1819 = vpop.f32.mrb[0].mxu0
      %v1820 = vpop.f32.mrb[0].mxu0
      %v1821 = vadd.f32 %v1660, %v1820
      %v1822 = vpop.f32.mrb[0].mxu0
      %1823 = vmatprep.mubr.bf16.mxu0 0
      %1824 = vmatmul.mubr.bf16.gmra.mrb[0].mxu0 %v833
      %v1825 = vpop.f32.mrb[0].mxu0
      %v1826 = vadd.f32 %v1665, %v1825
      %v1827 = vpop.f32.mrb[0].mxu0
      %v1828 = vpop.f32.mrb[0].mxu0
      %v1829 = vadd.f32 %v1668, %v1828
      %v1830 = vpop.f32.mrb[0].mxu0
      %1831 = vmatprep.mubr.bf16.mxu0 0
      %1832 = vmatmul.mubr.bf16.gmra.mrb[0].mxu0 %v836
      %v1833 = vpop.f32.mrb[0].mxu0
      %v1834 = vadd.f32 %v1673, %v1833
      %v1835 = vpop.f32.mrb[0].mxu0
      %v1836 = vpop.f32.mrb[0].mxu0
      %v1837 = vadd.f32 %v1676, %v1836
      %v1838 = vpop.f32.mrb[0].mxu0
      %1839 = vmatprep.mubr.bf16.mxu0 0
      %1840 = vmatmul.mubr.bf16.gmra.mrb[0].mxu0 %v839
      %v1841 = vpop.f32.mrb[0].mxu0
      %v1842 = vadd.f32 %v1681, %v1841
      %v1843 = vpop.f32.mrb[0].mxu0
      %v1844 = vpop.f32.mrb[0].mxu0
      %v1845 = vadd.f32 %v1684, %v1844
      %v1846 = vpop.f32.mrb[0].mxu0
      %1847 = vmatprep.mubr.bf16.mxu0 0
      %1848 = vmatmul.mubr.bf16.gmra.mrb[0].mxu0 %v842
      %v1849 = vpop.f32.mrb[0].mxu0
      %v1850 = vadd.f32 %v1689, %v1849
      %v1851 = vpop.f32.mrb[0].mxu0
      %v1852 = vpop.f32.mrb[0].mxu0
      %v1853 = vadd.f32 %v1692, %v1852
      %v1854 = vpop.f32.mrb[0].mxu0
      %1855 = vmatprep.mubr.bf16.mxu0 0
      %1856 = vmatmul.mubr.bf16.gmra.mrb[0].mxu0 %v845
      %v1857 = vpop.f32.mrb[0].mxu0
      %v1858 = vadd.f32 %v1697, %v1857
      %v1859 = vpop.f32.mrb[0].mxu0
      %v1860 = vpop.f32.mrb[0].mxu0
      %v1861 = vadd.f32 %v1700, %v1860
      %v1862 = vpop.f32.mrb[0].mxu0
      %1863 = vmatprep.mubr.bf16.mxu0 0
      %1864 = vmatmul.mubr.bf16.gmra.mrb[0].mxu0 %v848
      %v1865 = vpop.f32.mrb[0].mxu0
      %v1866 = vadd.f32 %v1705, %v1865
      %v1867 = vpop.f32.mrb[0].mxu0
      %v1868 = vpop.f32.mrb[0].mxu0
      %v1869 = vadd.f32 %v1708, %v1868
      %v1870 = vpop.f32.mrb[0].mxu0
      %1871 = vmatprep.mubr.bf16.mxu0 0
      %1872 = vmatmul.mubr.bf16.gmra.mrb[0].mxu0 %v851
      %v1873 = vpop.f32.mrb[0].mxu0
      %v1874 = vadd.f32 %v1713, %v1873
      %v1875 = vpop.f32.mrb[0].mxu0
      %v1876 = vpop.f32.mrb[0].mxu0
      %v1877 = vadd.f32 %v1716, %v1876
      %v1878 = vpop.f32.mrb[0].mxu0
      %1879 = vmatprep.mubr.bf16.mxu0 0
      %1880 = vmatmul.mubr.bf16.gmra.mrb[0].mxu0 %v854
      %v1881 = vpop.f32.mrb[0].mxu0
      %v1882 = vadd.f32 %v1721, %v1881
      %v1883 = vpop.f32.mrb[0].mxu0
      %v1884 = vpop.f32.mrb[0].mxu0
      %v1885 = vadd.f32 %v1724, %v1884
      %v1886 = vpop.f32.mrb[0].mxu0
      %1887 = vmatprep.mubr.bf16.mxu0 0
      %1888 = vmatmul.mubr.bf16.gmra.mrb[0].mxu0 %v857
      %v1889 = vpop.f32.mrb[0].mxu0
      %v1890 = vadd.f32 %v1729, %v1889
      %v1891 = vpop.f32.mrb[0].mxu0
      %v1892 = vpop.f32.mrb[0].mxu0
      %v1893 = vadd.f32 %v1732, %v1892
      %v1894 = vpop.f32.mrb[0].mxu0
      %1895 = vmatprep.mubr.bf16.mxu0 0
      %1896 = vmatmul.mubr.bf16.gmra.mrb[0].mxu0 %v860
      %v1897 = vpop.f32.mrb[0].mxu0
      %v1898 = vadd.f32 %v1737, %v1897
      %v1899 = vpop.f32.mrb[0].mxu0
      %v1900 = vpop.f32.mrb[0].mxu0
      %v1901 = vadd.f32 %v1740, %v1900
      %v1902 = vpop.f32.mrb[0].mxu0
      %1903 = vmatprep.mubr.bf16.mxu0 0
      %1904 = vmatmul.mubr.bf16.gmra.mrb[0].mxu0 %v863
      %v1905 = vpop.f32.mrb[0].mxu0
      %v1906 = vadd.f32 %v1745, %v1905
      %v1907 = vpop.f32.mrb[0].mxu0
      %v1908 = vpop.f32.mrb[0].mxu0
      %v1909 = vadd.f32 %v1748, %v1908
      %v1910 = vpop.f32.mrb[0].mxu0
      %1911 = vmatprep.mubr.bf16.mxu0 0
      %1912 = vmatmul.mubr.bf16.gmra.mrb[0].mxu0 %v866
      %v1913 = vpop.f32.mrb[0].mxu0
      %v1914 = vadd.f32 %v1753, %v1913
      %v1915 = vpop.f32.mrb[0].mxu0
      %v1916 = vpop.f32.mrb[0].mxu0
      %v1917 = vadd.f32 %v1756, %v1916
      %v1918 = vpop.f32.mrb[0].mxu0
      %1919 = vdwg.mxu0
      %s1920 = scalar_lea.vmem %s2, 384
      %v1921 = vld [vmem:[%s1920] sm:$0xf]
      %v1922 = vld [vmem:[%s1920 + $0x4] sm:$0xf]
      %v1923 = vld [vmem:[%s1920 + $0x8] sm:$0xf]
      %v1924 = vld [vmem:[%s1920 + $0xc] sm:$0xf]
      %v1925 = vld [vmem:[%s1920 + $0x10] sm:$0xf]
      %v1926 = vld [vmem:[%s1920 + $0x14] sm:$0xf]
      %v1927 = vld [vmem:[%s1920 + $0x18] sm:$0xf]
      %v1928 = vld [vmem:[%s1920 + $0x1c] sm:$0xf]
      %v1929 = vld [vmem:[%s1920 + $0x20] sm:$0xf]
      %v1930 = vld [vmem:[%s1920 + $0x24] sm:$0xf]
      %v1931 = vld [vmem:[%s1920 + $0x28] sm:$0xf]
      %v1932 = vld [vmem:[%s1920 + $0x2c] sm:$0xf]
      %v1933 = vld [vmem:[%s1920 + $0x30] sm:$0xf]
      %v1934 = vld [vmem:[%s1920 + $0x34] sm:$0xf]
      %v1935 = vld [vmem:[%s1920 + $0x38] sm:$0xf]
      %v1936 = vld [vmem:[%s1920 + $0x3c] sm:$0xf]
      %v1937 = vld [vmem:[%s1920 + $0x40] sm:$0xf]
      %v1938 = vld [vmem:[%s1920 + $0x44] sm:$0xf]
      %v1939 = vld [vmem:[%s1920 + $0x48] sm:$0xf]
      %v1940 = vld [vmem:[%s1920 + $0x4c] sm:$0xf]
      %v1941 = vld [vmem:[%s1920 + $0x50] sm:$0xf]
      %v1942 = vld [vmem:[%s1920 + $0x54] sm:$0xf]
      %v1943 = vld [vmem:[%s1920 + $0x58] sm:$0xf]
      %v1944 = vld [vmem:[%s1920 + $0x5c] sm:$0xf]
      %v1945 = vld [vmem:[%s1920 + $0x60] sm:$0xf]
      %v1946 = vld [vmem:[%s1920 + $0x64] sm:$0xf]
      %v1947 = vld [vmem:[%s1920 + $0x68] sm:$0xf]
      %v1948 = vld [vmem:[%s1920 + $0x6c] sm:$0xf]
      %v1949 = vld [vmem:[%s1920 + $0x70] sm:$0xf]
      %v1950 = vld [vmem:[%s1920 + $0x74] sm:$0xf]
      %v1951 = vld [vmem:[%s1920 + $0x78] sm:$0xf]
      %v1952 = vld [vmem:[%s1920 + $0x7c] sm:$0xf]
      %v1953 = vld [vmem:[%s1920 + $0x80] sm:$0xf]
      %v1954 = vld [vmem:[%s1920 + $0x84] sm:$0xf]
      %v1955 = vld [vmem:[%s1920 + $0x88] sm:$0xf]
      %v1956 = vld [vmem:[%s1920 + $0x8c] sm:$0xf]
      %v1957 = vld [vmem:[%s1920 + $0x90] sm:$0xf]
      %v1958 = vld [vmem:[%s1920 + $0x94] sm:$0xf]
      %v1959 = vld [vmem:[%s1920 + $0x98] sm:$0xf]
      %v1960 = vld [vmem:[%s1920 + $0x9c] sm:$0xf]
      %v1961 = vld [vmem:[%s1920 + $0xa0] sm:$0xf]
      %v1962 = vld [vmem:[%s1920 + $0xa4] sm:$0xf]
      %v1963 = vld [vmem:[%s1920 + $0xa8] sm:$0xf]
      %v1964 = vld [vmem:[%s1920 + $0xac] sm:$0xf]
      %v1965 = vld [vmem:[%s1920 + $0xb0] sm:$0xf]
      %v1966 = vld [vmem:[%s1920 + $0xb4] sm:$0xf]
      %v1967 = vld [vmem:[%s1920 + $0xb8] sm:$0xf]
      %v1968 = vld [vmem:[%s1920 + $0xbc] sm:$0xf]
      %v2017 = vunpack.c.l.b16 %v1921
      %v2018 = vunpack.c.l.b16 %v1922
      %v2019 = vunpack.c.l.b16 %v1923
      %v2020 = vunpack.c.l.b16 %v1924
      %v2021 = vunpack.c.l.b16 %v1925
      %v2022 = vunpack.c.l.b16 %v1926
      %v2023 = vunpack.c.l.b16 %v1927
      %v2024 = vunpack.c.l.b16 %v1928
      %v2025 = vunpack.c.l.b16 %v1929
      %v2026 = vunpack.c.l.b16 %v1930
      %v2027 = vunpack.c.l.b16 %v1931
      %v2028 = vunpack.c.l.b16 %v1932
      %v2029 = vunpack.c.l.b16 %v1933
      %v2030 = vunpack.c.l.b16 %v1934
      %v2031 = vunpack.c.l.b16 %v1935
      %v2032 = vunpack.c.l.b16 %v1936
      %v2033 = vunpack.c.l.b16 %v1937
      %v2034 = vunpack.c.l.b16 %v1938
      %v2035 = vunpack.c.l.b16 %v1939
      %v2036 = vunpack.c.l.b16 %v1940
      %v2037 = vunpack.c.l.b16 %v1941
      %v2038 = vunpack.c.l.b16 %v1942
      %v2039 = vunpack.c.l.b16 %v1943
      %v2040 = vunpack.c.l.b16 %v1944
      %v2041 = vunpack.c.l.b16 %v1945
      %v2042 = vunpack.c.l.b16 %v1946
      %v2043 = vunpack.c.l.b16 %v1947
      %v2044 = vunpack.c.l.b16 %v1948
      %v2045 = vunpack.c.l.b16 %v1949
      %v2046 = vunpack.c.l.b16 %v1950
      %v2047 = vunpack.c.l.b16 %v1951
      %v2048 = vunpack.c.l.b16 %v1952
      %v2049 = vunpack.c.l.b16 %v1953
      %v2050 = vunpack.c.l.b16 %v1954
      %v2051 = vunpack.c.l.b16 %v1955
      %v2052 = vunpack.c.l.b16 %v1956
      %v2053 = vunpack.c.l.b16 %v1957
      %v2054 = vunpack.c.l.b16 %v1958
      %v2055 = vunpack.c.l.b16 %v1959
      %v2056 = vunpack.c.l.b16 %v1960
      %v2057 = vunpack.c.l.b16 %v1961
      %v2058 = vunpack.c.l.b16 %v1962
      %v2059 = vunpack.c.l.b16 %v1963
      %v2060 = vunpack.c.l.b16 %v1964
      %v2061 = vunpack.c.l.b16 %v1965
      %v2062 = vunpack.c.l.b16 %v1966
      %v2063 = vunpack.c.l.b16 %v1967
      %v2064 = vunpack.c.l.b16 %v1968
      %v2065 = vpack.c.b16 %v2018, %v2017
      %v2066 = vpack.c.b16 %v2020, %v2019
      %v2067 = vpack.c.b16 %v2022, %v2021
      %v2068 = vpack.c.b16 %v2024, %v2023
      %v2069 = vpack.c.b16 %v2026, %v2025
      %v2070 = vpack.c.b16 %v2028, %v2027
      %v2071 = vpack.c.b16 %v2030, %v2029
      %v2072 = vpack.c.b16 %v2032, %v2031
      %v2073 = vpack.c.b16 %v2034, %v2033
      %v2074 = vpack.c.b16 %v2036, %v2035
      %v2075 = vpack.c.b16 %v2038, %v2037
      %v2076 = vpack.c.b16 %v2040, %v2039
      %v2077 = vpack.c.b16 %v2042, %v2041
      %v2078 = vpack.c.b16 %v2044, %v2043
      %v2079 = vpack.c.b16 %v2046, %v2045
      %v2080 = vpack.c.b16 %v2048, %v2047
      %v2081 = vpack.c.b16 %v2050, %v2049
      %v2082 = vpack.c.b16 %v2052, %v2051
      %v2083 = vpack.c.b16 %v2054, %v2053
      %v2084 = vpack.c.b16 %v2056, %v2055
      %v2085 = vpack.c.b16 %v2058, %v2057
      %v2086 = vpack.c.b16 %v2060, %v2059
      %v2087 = vpack.c.b16 %v2062, %v2061
      %v2088 = vpack.c.b16 %v2064, %v2063
      %2113 = vmatprep.subr.bf16.mxu0 0
      %2114 = vmatpush1.bf16.msra.mxu0 %v2065
      %2115 = vmatprep.subr.bf16.mxu0 0
      %2116 = vmatpush1.bf16.msra.mxu0 %v2066
      %2117 = vmatprep.subr.bf16.mxu0 0
      %2118 = vmatpush1.bf16.msra.mxu0 %v2067
      %2119 = vmatprep.subr.bf16.mxu0 0
      %2120 = vmatpush1.bf16.msra.mxu0 %v2068
      %2121 = vmatprep.subr.bf16.mxu0 0
      %2122 = vmatpush1.bf16.msra.mxu0 %v2069
      %2123 = vmatprep.subr.bf16.mxu0 0
      %2124 = vmatpush1.bf16.msra.mxu0 %v2070
      %2125 = vmatprep.subr.bf16.mxu0 0
      %2126 = vmatpush1.bf16.msra.mxu0 %v2071
      %2127 = vmatprep.subr.bf16.mxu0 0
      %2128 = vmatpush1.bf16.msra.mxu0 %v2072
      %2129 = vmatprep.subr.bf16.mxu0 0
      %2130 = vmatpush1.bf16.msra.mxu0 %v2073
      %2131 = vmatprep.subr.bf16.mxu0 0
      %2132 = vmatpush1.bf16.msra.mxu0 %v2074
      %2133 = vmatprep.subr.bf16.mxu0 0
      %2134 = vmatpush1.bf16.msra.mxu0 %v2075
      %2135 = vmatprep.subr.bf16.mxu0 0
      %2136 = vmatpush1.bf16.msra.mxu0 %v2076
      %2137 = vmatprep.subr.bf16.mxu0 0
      %2138 = vmatpush1.bf16.msra.mxu0 %v2077
      %2139 = vmatprep.subr.bf16.mxu0 0
      %2140 = vmatpush1.bf16.msra.mxu0 %v2078
      %2141 = vmatprep.subr.bf16.mxu0 0
      %2142 = vmatpush1.bf16.msra.mxu0 %v2079
      %2143 = vmatprep.subr.bf16.mxu0 0
      %2144 = vmatpush1.bf16.msra.mxu0 %v2080
      %2145 = vmatprep.mubr.bf16.mxu0 %v619
      %2146 = vmatmul.mubr.bf16.gmra.mrb[0].mxu0 %v495
      %v2147 = vpop.f32.mrb[0].mxu0
      %v2148 = vadd.f32 0.0, %v2147
      %v2149 = vpop.f32.mrb[0].mxu0
      %v2150 = vpop.f32.mrb[0].mxu0
      %v2151 = vadd.f32 0.0, %v2150
      %v2152 = vpop.f32.mrb[0].mxu0
      %2153 = vmatprep.mubr.bf16.mxu0 %v631
      %2154 = vmatmul.mubr.bf16.gmra.mrb[0].mxu0 %v496
      %v2155 = vpop.f32.mrb[0].mxu0
      %v2156 = vadd.f32 0.0, %v2155
      %v2157 = vpop.f32.mrb[0].mxu0
      %v2158 = vpop.f32.mrb[0].mxu0
      %v2159 = vadd.f32 0.0, %v2158
      %v2160 = vpop.f32.mrb[0].mxu0
      %2161 = vmatprep.mubr.bf16.mxu0 %v643
      %2162 = vmatmul.mubr.bf16.gmra.mrb[0].mxu0 %v497
      %v2163 = vpop.f32.mrb[0].mxu0
      %v2164 = vadd.f32 0.0, %v2163
      %v2165 = vpop.f32.mrb[0].mxu0
      %v2166 = vpop.f32.mrb[0].mxu0
      %v2167 = vadd.f32 0.0, %v2166
      %v2168 = vpop.f32.mrb[0].mxu0
      %2169 = vmatprep.mubr.bf16.mxu0 %v655
      %2170 = vmatmul.mubr.bf16.gmra.mrb[0].mxu0 %v498
      %v2171 = vpop.f32.mrb[0].mxu0
      %v2172 = vadd.f32 0.0, %v2171
      %v2173 = vpop.f32.mrb[0].mxu0
      %v2174 = vpop.f32.mrb[0].mxu0
      %v2175 = vadd.f32 0.0, %v2174
      %v2176 = vpop.f32.mrb[0].mxu0
      %2177 = vmatprep.mubr.bf16.mxu0 %v667
      %2178 = vmatmul.mubr.bf16.gmra.mrb[0].mxu0 %v499
      %v2179 = vpop.f32.mrb[0].mxu0
      %v2180 = vadd.f32 0.0, %v2179
      %v2181 = vpop.f32.mrb[0].mxu0
      %v2182 = vpop.f32.mrb[0].mxu0
      %v2183 = vadd.f32 0.0, %v2182
      %v2184 = vpop.f32.mrb[0].mxu0
      %2185 = vmatprep.mubr.bf16.mxu0 %v679
      %2186 = vmatmul.mubr.bf16.gmra.mrb[0].mxu0 %v500
      %v2187 = vpop.f32.mrb[0].mxu0
      %v2188 = vadd.f32 0.0, %v2187
      %v2189 = vpop.f32.mrb[0].mxu0
      %v2190 = vpop.f32.mrb[0].mxu0
      %v2191 = vadd.f32 0.0, %v2190
      %v2192 = vpop.f32.mrb[0].mxu0
      %2193 = vmatprep.mubr.bf16.mxu0 %v691
      %2194 = vmatmul.mubr.bf16.gmra.mrb[0].mxu0 %v501
      %v2195 = vpop.f32.mrb[0].mxu0
      %v2196 = vadd.f32 0.0, %v2195
      %v2197 = vpop.f32.mrb[0].mxu0
      %v2198 = vpop.f32.mrb[0].mxu0
      %v2199 = vadd.f32 0.0, %v2198
      %v2200 = vpop.f32.mrb[0].mxu0
      %2201 = vmatprep.mubr.bf16.mxu0 %v703
      %2202 = vmatmul.mubr.bf16.gmra.mrb[0].mxu0 %v502
      %v2203 = vpop.f32.mrb[0].mxu0
      %v2204 = vadd.f32 0.0, %v2203
      %v2205 = vpop.f32.mrb[0].mxu0
      %v2206 = vpop.f32.mrb[0].mxu0
      %v2207 = vadd.f32 0.0, %v2206
      %v2208 = vpop.f32.mrb[0].mxu0
      %2209 = vmatprep.mubr.bf16.mxu0 %v715
      %2210 = vmatmul.mubr.bf16.gmra.mrb[0].mxu0 %v503
      %v2211 = vpop.f32.mrb[0].mxu0
      %v2212 = vadd.f32 0.0, %v2211
      %v2213 = vpop.f32.mrb[0].mxu0
      %v2214 = vpop.f32.mrb[0].mxu0
      %v2215 = vadd.f32 0.0, %v2214
      %v2216 = vpop.f32.mrb[0].mxu0
      %2217 = vmatprep.mubr.bf16.mxu0 %v727
      %2218 = vmatmul.mubr.bf16.gmra.mrb[0].mxu0 %v504
      %v2219 = vpop.f32.mrb[0].mxu0
      %v2220 = vadd.f32 0.0, %v2219
      %v2221 = vpop.f32.mrb[0].mxu0
      %v2222 = vpop.f32.mrb[0].mxu0
      %v2223 = vadd.f32 0.0, %v2222
      %v2224 = vpop.f32.mrb[0].mxu0
      %2225 = vmatprep.mubr.bf16.mxu0 %v739
      %2226 = vmatmul.mubr.bf16.gmra.mrb[0].mxu0 %v505
      %v2227 = vpop.f32.mrb[0].mxu0
      %v2228 = vadd.f32 0.0, %v2227
      %v2229 = vpop.f32.mrb[0].mxu0
      %v2230 = vpop.f32.mrb[0].mxu0
      %v2231 = vadd.f32 0.0, %v2230
      %v2232 = vpop.f32.mrb[0].mxu0
      %2233 = vmatprep.mubr.bf16.mxu0 %v751
      %2234 = vmatmul.mubr.bf16.gmra.mrb[0].mxu0 %v506
      %v2235 = vpop.f32.mrb[0].mxu0
      %v2236 = vadd.f32 0.0, %v2235
      %v2237 = vpop.f32.mrb[0].mxu0
      %v2238 = vpop.f32.mrb[0].mxu0
      %v2239 = vadd.f32 0.0, %v2238
      %v2240 = vpop.f32.mrb[0].mxu0
      %2241 = vmatprep.mubr.bf16.mxu0 %v763
      %2242 = vmatmul.mubr.bf16.gmra.mrb[0].mxu0 %v507
      %v2243 = vpop.f32.mrb[0].mxu0
      %v2244 = vadd.f32 0.0, %v2243
      %v2245 = vpop.f32.mrb[0].mxu0
      %v2246 = vpop.f32.mrb[0].mxu0
      %v2247 = vadd.f32 0.0, %v2246
      %v2248 = vpop.f32.mrb[0].mxu0
      %2249 = vmatprep.mubr.bf16.mxu0 %v775
      %2250 = vmatmul.mubr.bf16.gmra.mrb[0].mxu0 %v508
      %v2251 = vpop.f32.mrb[0].mxu0
      %v2252 = vadd.f32 0.0, %v2251
      %v2253 = vpop.f32.mrb[0].mxu0
      %v2254 = vpop.f32.mrb[0].mxu0
      %v2255 = vadd.f32 0.0, %v2254
      %v2256 = vpop.f32.mrb[0].mxu0
      %2257 = vmatprep.mubr.bf16.mxu0 %v787
      %2258 = vmatmul.mubr.bf16.gmra.mrb[0].mxu0 %v509
      %v2259 = vpop.f32.mrb[0].mxu0
      %v2260 = vadd.f32 0.0, %v2259
      %v2261 = vpop.f32.mrb[0].mxu0
      %v2262 = vpop.f32.mrb[0].mxu0
      %v2263 = vadd.f32 0.0, %v2262
      %v2264 = vpop.f32.mrb[0].mxu0
      %2265 = vmatprep.mubr.bf16.mxu0 %v799
      %2266 = vmatmul.mubr.bf16.gmra.mrb[0].mxu0 %v510
      %v2267 = vpop.f32.mrb[0].mxu0
      %v2268 = vadd.f32 0.0, %v2267
      %v2269 = vpop.f32.mrb[0].mxu0
      %v2270 = vpop.f32.mrb[0].mxu0
      %v2271 = vadd.f32 0.0, %v2270
      %v2272 = vpop.f32.mrb[0].mxu0
      %2273 = vdwg.mxu0
      %2274 = vmatprep.subr.bf16.mxu0 0
      %2275 = vmatpush1.bf16.msra.mxu0 %v2081
      %2276 = vmatprep.subr.bf16.mxu0 0
      %2277 = vmatpush1.bf16.msra.mxu0 %v2082
      %2278 = vmatprep.subr.bf16.mxu0 0
      %2279 = vmatpush1.bf16.msra.mxu0 %v2083
      %2280 = vmatprep.subr.bf16.mxu0 0
      %2281 = vmatpush1.bf16.msra.mxu0 %v2084
      %2282 = vmatprep.subr.bf16.mxu0 0
      %2283 = vmatpush1.bf16.msra.mxu0 %v2085
      %2284 = vmatprep.subr.bf16.mxu0 0
      %2285 = vmatpush1.bf16.msra.mxu0 %v2086
      %2286 = vmatprep.subr.bf16.mxu0 0
      %2287 = vmatpush1.bf16.msra.mxu0 %v2087
      %2288 = vmatprep.subr.bf16.mxu0 0
      %2289 = vmatpush1.bf16.msra.mxu0 %v2088
      %2290 = vmatprep.subr.bf16.mxu0 0
      %2291 = vmatpush1.bf16.msra.mxu0 0
      %2292 = vmatprep.subr.bf16.mxu0 0
      %2293 = vmatpush1.bf16.msra.mxu0 0
      %2294 = vmatprep.subr.bf16.mxu0 0
      %2295 = vmatpush1.bf16.msra.mxu0 0
      %2296 = vmatprep.subr.bf16.mxu0 0
      %2297 = vmatpush1.bf16.msra.mxu0 0
      %2298 = vmatprep.subr.bf16.mxu0 0
      %2299 = vmatpush1.bf16.msra.mxu0 0
      %2300 = vmatprep.subr.bf16.mxu0 0
      %2301 = vmatpush1.bf16.msra.mxu0 0
      %2302 = vmatprep.subr.bf16.mxu0 0
      %2303 = vmatpush1.bf16.msra.mxu0 0
      %2304 = vmatprep.subr.bf16.mxu0 0
      %2305 = vmatpush1.bf16.msra.mxu0 0
      %2306 = vmatprep.mubr.bf16.mxu0 0
      %2307 = vmatmul.mubr.bf16.gmra.mrb[0].mxu0 %v827
      %v2308 = vpop.f32.mrb[0].mxu0
      %v2309 = vadd.f32 %v2148, %v2308
      %v2310 = vpop.f32.mrb[0].mxu0
      %v2311 = vpop.f32.mrb[0].mxu0
      %v2312 = vadd.f32 %v2151, %v2311
      %v2313 = vpop.f32.mrb[0].mxu0
      %2314 = vmatprep.mubr.bf16.mxu0 0
      %2315 = vmatmul.mubr.bf16.gmra.mrb[0].mxu0 %v830
      %v2316 = vpop.f32.mrb[0].mxu0
      %v2317 = vadd.f32 %v2156, %v2316
      %v2318 = vpop.f32.mrb[0].mxu0
      %v2319 = vpop.f32.mrb[0].mxu0
      %v2320 = vadd.f32 %v2159, %v2319
      %v2321 = vpop.f32.mrb[0].mxu0
      %2322 = vmatprep.mubr.bf16.mxu0 0
      %2323 = vmatmul.mubr.bf16.gmra.mrb[0].mxu0 %v833
      %v2324 = vpop.f32.mrb[0].mxu0
      %v2325 = vadd.f32 %v2164, %v2324
      %v2326 = vpop.f32.mrb[0].mxu0
      %v2327 = vpop.f32.mrb[0].mxu0
      %v2328 = vadd.f32 %v2167, %v2327
      %v2329 = vpop.f32.mrb[0].mxu0
      %2330 = vmatprep.mubr.bf16.mxu0 0
      %2331 = vmatmul.mubr.bf16.gmra.mrb[0].mxu0 %v836
      %v2332 = vpop.f32.mrb[0].mxu0
      %v2333 = vadd.f32 %v2172, %v2332
      %v2334 = vpop.f32.mrb[0].mxu0
      %v2335 = vpop.f32.mrb[0].mxu0
      %v2336 = vadd.f32 %v2175, %v2335
      %v2337 = vpop.f32.mrb[0].mxu0
      %2338 = vmatprep.mubr.bf16.mxu0 0
      %2339 = vmatmul.mubr.bf16.gmra.mrb[0].mxu0 %v839
      %v2340 = vpop.f32.mrb[0].mxu0
      %v2341 = vadd.f32 %v2180, %v2340
      %v2342 = vpop.f32.mrb[0].mxu0
      %v2343 = vpop.f32.mrb[0].mxu0
      %v2344 = vadd.f32 %v2183, %v2343
      %v2345 = vpop.f32.mrb[0].mxu0
      %2346 = vmatprep.mubr.bf16.mxu0 0
      %2347 = vmatmul.mubr.bf16.gmra.mrb[0].mxu0 %v842
      %v2348 = vpop.f32.mrb[0].mxu0
      %v2349 = vadd.f32 %v2188, %v2348
      %v2350 = vpop.f32.mrb[0].mxu0
      %v2351 = vpop.f32.mrb[0].mxu0
      %v2352 = vadd.f32 %v2191, %v2351
      %v2353 = vpop.f32.mrb[0].mxu0
      %2354 = vmatprep.mubr.bf16.mxu0 0
      %2355 = vmatmul.mubr.bf16.gmra.mrb[0].mxu0 %v845
      %v2356 = vpop.f32.mrb[0].mxu0
      %v2357 = vadd.f32 %v2196, %v2356
      %v2358 = vpop.f32.mrb[0].mxu0
      %v2359 = vpop.f32.mrb[0].mxu0
      %v2360 = vadd.f32 %v2199, %v2359
      %v2361 = vpop.f32.mrb[0].mxu0
      %2362 = vmatprep.mubr.bf16.mxu0 0
      %2363 = vmatmul.mubr.bf16.gmra.mrb[0].mxu0 %v848
      %v2364 = vpop.f32.mrb[0].mxu0
      %v2365 = vadd.f32 %v2204, %v2364
      %v2366 = vpop.f32.mrb[0].mxu0
      %v2367 = vpop.f32.mrb[0].mxu0
      %v2368 = vadd.f32 %v2207, %v2367
      %v2369 = vpop.f32.mrb[0].mxu0
      %2370 = vmatprep.mubr.bf16.mxu0 0
      %2371 = vmatmul.mubr.bf16.gmra.mrb[0].mxu0 %v851
      %v2372 = vpop.f32.mrb[0].mxu0
      %v2373 = vadd.f32 %v2212, %v2372
      %v2374 = vpop.f32.mrb[0].mxu0
      %v2375 = vpop.f32.mrb[0].mxu0
      %v2376 = vadd.f32 %v2215, %v2375
      %v2377 = vpop.f32.mrb[0].mxu0
      %2378 = vmatprep.mubr.bf16.mxu0 0
      %2379 = vmatmul.mubr.bf16.gmra.mrb[0].mxu0 %v854
      %v2380 = vpop.f32.mrb[0].mxu0
      %v2381 = vadd.f32 %v2220, %v2380
      %v2382 = vpop.f32.mrb[0].mxu0
      %v2383 = vpop.f32.mrb[0].mxu0
      %v2384 = vadd.f32 %v2223, %v2383
      %v2385 = vpop.f32.mrb[0].mxu0
      %2386 = vmatprep.mubr.bf16.mxu0 0
      %2387 = vmatmul.mubr.bf16.gmra.mrb[0].mxu0 %v857
      %v2388 = vpop.f32.mrb[0].mxu0
      %v2389 = vadd.f32 %v2228, %v2388
      %v2390 = vpop.f32.mrb[0].mxu0
      %v2391 = vpop.f32.mrb[0].mxu0
      %v2392 = vadd.f32 %v2231, %v2391
      %v2393 = vpop.f32.mrb[0].mxu0
      %2394 = vmatprep.mubr.bf16.mxu0 0
      %2395 = vmatmul.mubr.bf16.gmra.mrb[0].mxu0 %v860
      %v2396 = vpop.f32.mrb[0].mxu0
      %v2397 = vadd.f32 %v2236, %v2396
      %v2398 = vpop.f32.mrb[0].mxu0
      %v2399 = vpop.f32.mrb[0].mxu0
      %v2400 = vadd.f32 %v2239, %v2399
      %v2401 = vpop.f32.mrb[0].mxu0
      %2402 = vmatprep.mubr.bf16.mxu0 0
      %2403 = vmatmul.mubr.bf16.gmra.mrb[0].mxu0 %v863
      %v2404 = vpop.f32.mrb[0].mxu0
      %v2405 = vadd.f32 %v2244, %v2404
      %v2406 = vpop.f32.mrb[0].mxu0
      %v2407 = vpop.f32.mrb[0].mxu0
      %v2408 = vadd.f32 %v2247, %v2407
      %v2409 = vpop.f32.mrb[0].mxu0
      %2410 = vmatprep.mubr.bf16.mxu0 0
      %2411 = vmatmul.mubr.bf16.gmra.mrb[0].mxu0 %v866
      %v2412 = vpop.f32.mrb[0].mxu0
      %v2413 = vadd.f32 %v2252, %v2412
      %v2414 = vpop.f32.mrb[0].mxu0
      %v2415 = vpop.f32.mrb[0].mxu0
      %v2416 = vadd.f32 %v2255, %v2415
      %v2417 = vpop.f32.mrb[0].mxu0
      %2418 = vmatprep.mubr.bf16.mxu0 0
      %2419 = vmatmul.mubr.bf16.gmra.mrb[0].mxu0 %v869
      %v2420 = vpop.f32.mrb[0].mxu0
      %v2421 = vadd.f32 %v2260, %v2420
      %v2422 = vpop.f32.mrb[0].mxu0
      %v2423 = vpop.f32.mrb[0].mxu0
      %v2424 = vadd.f32 %v2263, %v2423
      %v2425 = vpop.f32.mrb[0].mxu0
      %2426 = vmatprep.mubr.bf16.mxu0 0
      %2427 = vmatmul.mubr.bf16.gmra.mrb[0].mxu0 %v872
      %v2428 = vpop.f32.mrb[0].mxu0
      %v2429 = vadd.f32 %v2268, %v2428
      %v2430 = vpop.f32.mrb[0].mxu0
      %v2431 = vpop.f32.mrb[0].mxu0
      %v2432 = vadd.f32 %v2271, %v2431
      %v2433 = vpop.f32.mrb[0].mxu0
      %2434 = vdwg.mxu0
      %v2435 = vadd.f32 %v1794, %v2309
      %v2436 = vadd.f32 %v1797, %v2312
      %v2437 = vadd.f32 %v1802, %v2317
      %v2438 = vadd.f32 %v1805, %v2320
      %v2439 = vadd.f32 %v1810, %v2325
      %v2440 = vadd.f32 %v1813, %v2328
      %v2441 = vadd.f32 %v1818, %v2333
      %v2442 = vadd.f32 %v1821, %v2336
      %v2443 = vadd.f32 %v1826, %v2341
      %v2444 = vadd.f32 %v1829, %v2344
      %v2445 = vadd.f32 %v1834, %v2349
      %v2446 = vadd.f32 %v1837, %v2352
      %v2447 = vadd.f32 %v1842, %v2357
      %v2448 = vadd.f32 %v1845, %v2360
      %v2449 = vadd.f32 %v1850, %v2365
      %v2450 = vadd.f32 %v1853, %v2368
      %v2451 = vadd.f32 %v1858, %v2373
      %v2452 = vadd.f32 %v1861, %v2376
      %v2453 = vadd.f32 %v1866, %v2381
      %v2454 = vadd.f32 %v1869, %v2384
      %v2455 = vadd.f32 %v1874, %v2389
      %v2456 = vadd.f32 %v1877, %v2392
      %v2457 = vadd.f32 %v1882, %v2397
      %v2458 = vadd.f32 %v1885, %v2400
      %v2459 = vadd.f32 %v1890, %v2405
      %v2460 = vadd.f32 %v1893, %v2408
      %v2461 = vadd.f32 %v1898, %v2413
      %v2462 = vadd.f32 %v1901, %v2416
      %v2463 = vadd.f32 %v1906, %v2421
      %v2464 = vadd.f32 %v1909, %v2424
      %v2465 = vadd.f32 %v1914, %v2429
      %v2466 = vadd.f32 %v1917, %v2432
      %v2467 = vld [vmem:[%s3] sm:$0x1]
      %v2469 = vlaneseq
      %v2470 = vshrl.u32 %v2469, 7
      %v2471 = vsub.s32 0, %v2470
      %v2472 = vrot.slane %v2467, %v2471
      %v2474 = vadd.f32 %v2435, %v2472
      %v2475 = vadd.f32 %v2436, %v2472
      %v2476 = vadd.f32 %v2437, %v2472
      %v2477 = vadd.f32 %v2438, %v2472
      %v2478 = vadd.f32 %v2439, %v2472
      %v2479 = vadd.f32 %v2440, %v2472
      %v2480 = vadd.f32 %v2441, %v2472
      %v2481 = vadd.f32 %v2442, %v2472
      %v2482 = vadd.f32 %v2443, %v2472
      %v2483 = vadd.f32 %v2444, %v2472
      %v2484 = vadd.f32 %v2445, %v2472
      %v2485 = vadd.f32 %v2446, %v2472
      %v2486 = vadd.f32 %v2447, %v2472
      %v2487 = vadd.f32 %v2448, %v2472
      %v2488 = vadd.f32 %v2449, %v2472
      %v2489 = vadd.f32 %v2450, %v2472
      %v2490 = vadd.f32 %v2451, %v2472
      %v2491 = vadd.f32 %v2452, %v2472
      %v2492 = vadd.f32 %v2453, %v2472
      %v2493 = vadd.f32 %v2454, %v2472
      %v2494 = vadd.f32 %v2455, %v2472
      %v2495 = vadd.f32 %v2456, %v2472
      %v2496 = vadd.f32 %v2457, %v2472
      %v2497 = vadd.f32 %v2458, %v2472
      %v2498 = vadd.f32 %v2459, %v2472
      %v2499 = vadd.f32 %v2460, %v2472
      %v2500 = vadd.f32 %v2461, %v2472
      %v2501 = vadd.f32 %v2462, %v2472
      %v2502 = vadd.f32 %v2463, %v2472
      %v2503 = vadd.f32 %v2464, %v2472
      %v2504 = vadd.f32 %v2465, %v2472
      %v2505 = vadd.f32 %v2466, %v2472
      %v2506 = vmax.f32 %v2474, 0.0
      %v2507 = vmax.f32 %v2475, 0.0
      %v2508 = vmax.f32 %v2476, 0.0
      %v2509 = vmax.f32 %v2477, 0.0
      %v2510 = vmax.f32 %v2478, 0.0
      %v2511 = vmax.f32 %v2479, 0.0
      %v2512 = vmax.f32 %v2480, 0.0
      %v2513 = vmax.f32 %v2481, 0.0
      %v2514 = vmax.f32 %v2482, 0.0
      %v2515 = vmax.f32 %v2483, 0.0
      %v2516 = vmax.f32 %v2484, 0.0
      %v2517 = vmax.f32 %v2485, 0.0
      %v2518 = vmax.f32 %v2486, 0.0
      %v2519 = vmax.f32 %v2487, 0.0
      %v2520 = vmax.f32 %v2488, 0.0
      %v2521 = vmax.f32 %v2489, 0.0
      %v2522 = vmax.f32 %v2490, 0.0
      %v2523 = vmax.f32 %v2491, 0.0
      %v2524 = vmax.f32 %v2492, 0.0
      %v2525 = vmax.f32 %v2493, 0.0
      %v2526 = vmax.f32 %v2494, 0.0
      %v2527 = vmax.f32 %v2495, 0.0
      %v2528 = vmax.f32 %v2496, 0.0
      %v2529 = vmax.f32 %v2497, 0.0
      %v2530 = vmax.f32 %v2498, 0.0
      %v2531 = vmax.f32 %v2499, 0.0
      %v2532 = vmax.f32 %v2500, 0.0
      %v2533 = vmax.f32 %v2501, 0.0
      %v2534 = vmax.f32 %v2502, 0.0
      %v2535 = vmax.f32 %v2503, 0.0
      %v2536 = vmax.f32 %v2504, 0.0
      %v2537 = vmax.f32 %v2505, 0.0
      %v2538 = vpack.c.bf16 %v2507, %v2506
      %v2539 = vpack.c.bf16 %v2509, %v2508
      %v2540 = vpack.c.bf16 %v2511, %v2510
      %v2541 = vpack.c.bf16 %v2513, %v2512
      %v2542 = vpack.c.bf16 %v2515, %v2514
      %v2543 = vpack.c.bf16 %v2517, %v2516
      %v2544 = vpack.c.bf16 %v2519, %v2518
      %v2545 = vpack.c.bf16 %v2521, %v2520
      %v2546 = vpack.c.bf16 %v2523, %v2522
      %v2547 = vpack.c.bf16 %v2525, %v2524
      %v2548 = vpack.c.bf16 %v2527, %v2526
      %v2549 = vpack.c.bf16 %v2529, %v2528
      %v2550 = vpack.c.bf16 %v2531, %v2530
      %v2551 = vpack.c.bf16 %v2533, %v2532
      %v2552 = vpack.c.bf16 %v2535, %v2534
      %v2553 = vpack.c.bf16 %v2537, %v2536
      %v2570 = vunpack.c.l.b16 %v2538
      %v2571 = vunpack.c.h.b16 %v2538
      %v2572 = vunpack.c.l.b16 %v2539
      %v2573 = vunpack.c.h.b16 %v2539
      %v2574 = vunpack.c.l.b16 %v2540
      %v2575 = vunpack.c.h.b16 %v2540
      %v2576 = vunpack.c.l.b16 %v2541
      %v2577 = vunpack.c.h.b16 %v2541
      %v2578 = vunpack.c.l.b16 %v2542
      %v2579 = vunpack.c.h.b16 %v2542
      %v2580 = vunpack.c.l.b16 %v2543
      %v2581 = vunpack.c.h.b16 %v2543
      %v2582 = vunpack.c.l.b16 %v2544
      %v2583 = vunpack.c.h.b16 %v2544
      %v2584 = vunpack.c.l.b16 %v2545
      %v2585 = vunpack.c.h.b16 %v2545
      %v2586 = vunpack.c.l.b16 %v2546
      %v2587 = vunpack.c.h.b16 %v2546
      %v2588 = vunpack.c.l.b16 %v2547
      %v2589 = vunpack.c.h.b16 %v2547
      %v2590 = vunpack.c.l.b16 %v2548
      %v2591 = vunpack.c.h.b16 %v2548
      %v2592 = vunpack.c.l.b16 %v2549
      %v2593 = vunpack.c.h.b16 %v2549
      %v2594 = vunpack.c.l.b16 %v2550
      %v2595 = vunpack.c.h.b16 %v2550
      %v2596 = vunpack.c.l.b16 %v2551
      %v2597 = vunpack.c.h.b16 %v2551
      %v2598 = vunpack.c.l.b16 %v2552
      %v2599 = vunpack.c.h.b16 %v2552
      %v2600 = vunpack.c.l.b16 %v2553
      %v2601 = vunpack.c.h.b16 %v2553
      %v2602 = vpack.c.b16 %v2570, %v2570
      %v2603 = vpack.c.b16 %v2571, %v2571
      %v2604 = vpack.c.b16 %v2572, %v2572
      %v2605 = vpack.c.b16 %v2573, %v2573
      %v2606 = vpack.c.b16 %v2574, %v2574
      %v2607 = vpack.c.b16 %v2575, %v2575
      %v2608 = vpack.c.b16 %v2576, %v2576
      %v2609 = vpack.c.b16 %v2577, %v2577
      %v2610 = vpack.c.b16 %v2578, %v2578
      %v2611 = vpack.c.b16 %v2579, %v2579
      %v2612 = vpack.c.b16 %v2580, %v2580
      %v2613 = vpack.c.b16 %v2581, %v2581
      %v2614 = vpack.c.b16 %v2582, %v2582
      %v2615 = vpack.c.b16 %v2583, %v2583
      %v2616 = vpack.c.b16 %v2584, %v2584
      %v2617 = vpack.c.b16 %v2585, %v2585
      %v2618 = vpack.c.b16 %v2586, %v2586
      %v2619 = vpack.c.b16 %v2587, %v2587
      %v2620 = vpack.c.b16 %v2588, %v2588
      %v2621 = vpack.c.b16 %v2589, %v2589
      %v2622 = vpack.c.b16 %v2590, %v2590
      %v2623 = vpack.c.b16 %v2591, %v2591
      %v2624 = vpack.c.b16 %v2592, %v2592
      %v2625 = vpack.c.b16 %v2593, %v2593
      %v2626 = vpack.c.b16 %v2594, %v2594
      %v2627 = vpack.c.b16 %v2595, %v2595
      %v2628 = vpack.c.b16 %v2596, %v2596
      %v2629 = vpack.c.b16 %v2597, %v2597
      %v2630 = vpack.c.b16 %v2598, %v2598
      %v2631 = vpack.c.b16 %v2599, %v2599
      %v2632 = vpack.c.b16 %v2600, %v2600
      %v2633 = vpack.c.b16 %v2601, %v2601
      %2666 = vst [vmem:[%s357] sm:$0xf] %v2602
      %2667 = vst [vmem:[%s357 + $0x4] sm:$0xf] %v2603
      %2668 = vst [vmem:[%s357 + $0x8] sm:$0xf] %v2604
      %2669 = vst [vmem:[%s357 + $0xc] sm:$0xf] %v2605
      %2670 = vst [vmem:[%s357 + $0x10] sm:$0xf] %v2606
      %2671 = vst [vmem:[%s357 + $0x14] sm:$0xf] %v2607
      %2672 = vst [vmem:[%s357 + $0x18] sm:$0xf] %v2608
      %2673 = vst [vmem:[%s357 + $0x1c] sm:$0xf] %v2609
      %2674 = vst [vmem:[%s357 + $0x20] sm:$0xf] %v2610
      %2675 = vst [vmem:[%s357 + $0x24] sm:$0xf] %v2611
      %2676 = vst [vmem:[%s357 + $0x28] sm:$0xf] %v2612
      %2677 = vst [vmem:[%s357 + $0x2c] sm:$0xf] %v2613
      %2678 = vst [vmem:[%s357 + $0x30] sm:$0xf] %v2614
      %2679 = vst [vmem:[%s357 + $0x34] sm:$0xf] %v2615
      %2680 = vst [vmem:[%s357 + $0x38] sm:$0xf] %v2616
      %2681 = vst [vmem:[%s357 + $0x3c] sm:$0xf] %v2617
      %2682 = vst [vmem:[%s357 + $0x40] sm:$0xf] %v2618
      %2683 = vst [vmem:[%s357 + $0x44] sm:$0xf] %v2619
      %2684 = vst [vmem:[%s357 + $0x48] sm:$0xf] %v2620
      %2685 = vst [vmem:[%s357 + $0x4c] sm:$0xf] %v2621
      %2686 = vst [vmem:[%s357 + $0x50] sm:$0xf] %v2622
      %2687 = vst [vmem:[%s357 + $0x54] sm:$0xf] %v2623
      %2688 = vst [vmem:[%s357 + $0x58] sm:$0xf] %v2624
      %2689 = vst [vmem:[%s357 + $0x5c] sm:$0xf] %v2625
      %2690 = vst [vmem:[%s357 + $0x60] sm:$0xf] %v2626
      %2691 = vst [vmem:[%s357 + $0x64] sm:$0xf] %v2627
      %2692 = vst [vmem:[%s357 + $0x68] sm:$0xf] %v2628
      %2693 = vst [vmem:[%s357 + $0x6c] sm:$0xf] %v2629
      %2694 = vst [vmem:[%s357 + $0x70] sm:$0xf] %v2630
      %2695 = vst [vmem:[%s357 + $0x74] sm:$0xf] %v2631
      %2696 = vst [vmem:[%s357 + $0x78] sm:$0xf] %v2632
      %2697 = vst [vmem:[%s357 + $0x7c] sm:$0xf] %v2633
      %p2698 = scmp.lt.s32.totalorder %s22, 0
      // Predicated region
      $region37: #{conv_up_block.6} parent=35 // pred_check
        %p2699 = pneg %p2698
      $region38: #{conv_up_block.6} parent=35 // pred_check_branch
        %2701 = sbr.rel (%p2699) target = $region40
      $region39: #{conv_up_block.6} parent=35 // pred_region
        %v2702 = vadd.f32 %v2506, %v2507
        %v2703 = vadd.f32 %v2702, %v2508
        %v2704 = vadd.f32 %v2703, %v2509
        %v2705 = vadd.f32 %v2704, %v2510
        %v2706 = vadd.f32 %v2705, %v2511
        %v2707 = vadd.f32 %v2706, %v2512
        %v2708 = vadd.f32 %v2707, %v2513
        %v2709 = vadd.f32 %v2708, %v2514
        %v2710 = vadd.f32 %v2709, %v2515
        %v2711 = vadd.f32 %v2710, %v2516
        %v2712 = vadd.f32 %v2711, %v2517
        %v2713 = vadd.f32 %v2712, %v2518
        %v2714 = vadd.f32 %v2713, %v2519
        %v2715 = vadd.f32 %v2714, %v2520
        %v2716 = vadd.f32 %v2715, %v2521
        %v2717 = vadd.f32 %v2716, %v2522
        %v2718 = vadd.f32 %v2717, %v2523
        %v2719 = vadd.f32 %v2718, %v2524
        %v2720 = vadd.f32 %v2719, %v2525
        %v2721 = vadd.f32 %v2720, %v2526
        %v2722 = vadd.f32 %v2721, %v2527
        %v2723 = vadd.f32 %v2722, %v2528
        %v2724 = vadd.f32 %v2723, %v2529
        %v2725 = vadd.f32 %v2724, %v2530
        %v2726 = vadd.f32 %v2725, %v2531
        %v2727 = vadd.f32 %v2726, %v2532
        %v2728 = vadd.f32 %v2727, %v2533
        %v2729 = vadd.f32 %v2728, %v2534
        %v2730 = vadd.f32 %v2729, %v2535
        %v2731 = vadd.f32 %v2730, %v2536
        %v2732 = vadd.f32 %v2731, %v2537
        %v2733 = vrot.slane %v2732, 4
        %v2734 = vadd.f32 %v2732, %v2733
        %v2735 = vrot.slane %v2734, 2
        %v2736 = vadd.f32 %v2734, %v2735
        %v2737 = vrot.slane %v2736, 1
        %v2738 = vadd.f32 %v2736, %v2737
        %2739 = vst [vmem:[%s365] sm:$0x1] %v2738
        %v2740 = vmul.f32 %v2506, %v2506
        %v2741 = vmul.f32 %v2507, %v2507
        %v2742 = vmul.f32 %v2508, %v2508
        %v2743 = vmul.f32 %v2509, %v2509
        %v2744 = vmul.f32 %v2510, %v2510
        %v2745 = vmul.f32 %v2511, %v2511
        %v2746 = vmul.f32 %v2512, %v2512
        %v2747 = vmul.f32 %v2513, %v2513
        %v2748 = vmul.f32 %v2514, %v2514
        %v2749 = vmul.f32 %v2515, %v2515
        %v2750 = vmul.f32 %v2516, %v2516
        %v2751 = vmul.f32 %v2517, %v2517
        %v2752 = vmul.f32 %v2518, %v2518
        %v2753 = vmul.f32 %v2519, %v2519
        %v2754 = vmul.f32 %v2520, %v2520
        %v2755 = vmul.f32 %v2521, %v2521
        %v2756 = vmul.f32 %v2522, %v2522
        %v2757 = vmul.f32 %v2523, %v2523
        %v2758 = vmul.f32 %v2524, %v2524
        %v2759 = vmul.f32 %v2525, %v2525
        %v2760 = vmul.f32 %v2526, %v2526
        %v2761 = vmul.f32 %v2527, %v2527
        %v2762 = vmul.f32 %v2528, %v2528
        %v2763 = vmul.f32 %v2529, %v2529
        %v2764 = vmul.f32 %v2530, %v2530
        %v2765 = vmul.f32 %v2531, %v2531
        %v2766 = vmul.f32 %v2532, %v2532
        %v2767 = vmul.f32 %v2533, %v2533
        %v2768 = vmul.f32 %v2534, %v2534
        %v2769 = vmul.f32 %v2535, %v2535
        %v2770 = vmul.f32 %v2536, %v2536
        %v2771 = vmul.f32 %v2537, %v2537
        %v2772 = vadd.f32 %v2740, %v2741
        %v2773 = vadd.f32 %v2772, %v2742
        %v2774 = vadd.f32 %v2773, %v2743
        %v2775 = vadd.f32 %v2774, %v2744
        %v2776 = vadd.f32 %v2775, %v2745
        %v2777 = vadd.f32 %v2776, %v2746
        %v2778 = vadd.f32 %v2777, %v2747
        %v2779 = vadd.f32 %v2778, %v2748
        %v2780 = vadd.f32 %v2779, %v2749
        %v2781 = vadd.f32 %v2780, %v2750
        %v2782 = vadd.f32 %v2781, %v2751
        %v2783 = vadd.f32 %v2782, %v2752
        %v2784 = vadd.f32 %v2783, %v2753
        %v2785 = vadd.f32 %v2784, %v2754
        %v2786 = vadd.f32 %v2785, %v2755
        %v2787 = vadd.f32 %v2786, %v2756
        %v2788 = vadd.f32 %v2787, %v2757
        %v2789 = vadd.f32 %v2788, %v2758
        %v2790 = vadd.f32 %v2789, %v2759
        %v2791 = vadd.f32 %v2790, %v2760
        %v2792 = vadd.f32 %v2791, %v2761
        %v2793 = vadd.f32 %v2792, %v2762
        %v2794 = vadd.f32 %v2793, %v2763
        %v2795 = vadd.f32 %v2794, %v2764
        %v2796 = vadd.f32 %v2795, %v2765
        %v2797 = vadd.f32 %v2796, %v2766
        %v2798 = vadd.f32 %v2797, %v2767
        %v2799 = vadd.f32 %v2798, %v2768
        %v2800 = vadd.f32 %v2799, %v2769
        %v2801 = vadd.f32 %v2800, %v2770
        %v2802 = vadd.f32 %v2801, %v2771
        %v2803 = vrot.slane %v2802, 4
        %v2804 = vadd.f32 %v2802, %v2803
        %v2805 = vrot.slane %v2804, 2
        %v2806 = vadd.f32 %v2804, %v2805
        %v2807 = vrot.slane %v2806, 1
        %v2808 = vadd.f32 %v2806, %v2807
        %2809 = vst [vmem:[%s365 + $0x1] sm:$0x1] %v2808
      $region40: #{conv_up_block.6} parent=35 // pred_fallthru
        _
      %p2810 = scmp.eq.s32.totalorder %s22, 0
      // Predicated region
      $region41: #{conv_up_block.6} parent=35 // pred_check
        %p2811 = pneg %p2810
      $region42: #{conv_up_block.6} parent=35 // pred_check_branch
        %2813 = sbr.rel (%p2811) target = $region44
      $region43: #{conv_up_block.6} parent=35 // pred_region
        %v2814 = vlaneseq
        %v2815 = vshrl.u32 %v2814, 7
        %v2816 = vadd.s32 %v2815, 8
        %v2817 = vadd.s32 %v2815, 16
        %v2818 = vadd.s32 %v2815, 24
        %v2819 = vadd.s32 %v2815, 32
        %v2820 = vadd.s32 %v2815, 40
        %v2821 = vadd.s32 %v2815, 48
        %v2822 = vadd.s32 %v2815, 56
        %v2823 = vadd.s32 %v2815, 64
        %v2824 = vadd.s32 %v2815, 72
        %v2825 = vadd.s32 %v2815, 80
        %v2826 = vadd.s32 %v2815, 88
        %v2827 = vadd.s32 %v2815, 96
        %v2828 = vadd.s32 %v2815, 104
        %v2829 = vadd.s32 %v2815, 112
        %v2830 = vadd.s32 %v2815, 120
        %v2831 = vadd.s32 %v2815, 128
        %v2832 = vadd.s32 %v2815, 136
        %v2833 = vadd.s32 %v2815, 144
        %v2834 = vadd.s32 %v2815, 152
        %v2835 = vadd.s32 %v2815, 160
        %v2836 = vadd.s32 %v2815, 168
        %v2837 = vadd.s32 %v2815, 176
        %v2838 = vadd.s32 %v2815, 184
        %v2839 = vadd.s32 %v2815, 192
        %v2840 = vadd.s32 %v2815, 200
        %v2841 = vadd.s32 %v2815, 208
        %v2842 = vadd.s32 %v2815, 216
        %v2843 = vadd.s32 %v2815, 224
        %v2844 = vadd.s32 %v2815, 232
        %v2845 = vadd.s32 %v2815, 240
        %v2846 = vadd.s32 %v2815, 248
        %s2847 = smul.u32 %s22, 16
        %s2848 = ssub.s32 16, %s2847
        %s2849 = smul.u32 %s2848, 16
        %v2850 = vstv %s2849
        %vm2851 = vcmp.lt.s32.totalorder %v2815, %v2850
        %vm2852 = vcmp.lt.s32.totalorder %v2816, %v2850
        %vm2853 = vcmp.lt.s32.totalorder %v2817, %v2850
        %vm2854 = vcmp.lt.s32.totalorder %v2818, %v2850
        %vm2855 = vcmp.lt.s32.totalorder %v2819, %v2850
        %vm2856 = vcmp.lt.s32.totalorder %v2820, %v2850
        %vm2857 = vcmp.lt.s32.totalorder %v2821, %v2850
        %vm2858 = vcmp.lt.s32.totalorder %v2822, %v2850
        %vm2859 = vcmp.lt.s32.totalorder %v2823, %v2850
        %vm2860 = vcmp.lt.s32.totalorder %v2824, %v2850
        %vm2861 = vcmp.lt.s32.totalorder %v2825, %v2850
        %vm2862 = vcmp.lt.s32.totalorder %v2826, %v2850
        %vm2863 = vcmp.lt.s32.totalorder %v2827, %v2850
        %vm2864 = vcmp.lt.s32.totalorder %v2828, %v2850
        %vm2865 = vcmp.lt.s32.totalorder %v2829, %v2850
        %vm2866 = vcmp.lt.s32.totalorder %v2830, %v2850
        %vm2867 = vcmp.lt.s32.totalorder %v2831, %v2850
        %vm2868 = vcmp.lt.s32.totalorder %v2832, %v2850
        %vm2869 = vcmp.lt.s32.totalorder %v2833, %v2850
        %vm2870 = vcmp.lt.s32.totalorder %v2834, %v2850
        %vm2871 = vcmp.lt.s32.totalorder %v2835, %v2850
        %vm2872 = vcmp.lt.s32.totalorder %v2836, %v2850
        %vm2873 = vcmp.lt.s32.totalorder %v2837, %v2850
        %vm2874 = vcmp.lt.s32.totalorder %v2838, %v2850
        %vm2875 = vcmp.lt.s32.totalorder %v2839, %v2850
        %vm2876 = vcmp.lt.s32.totalorder %v2840, %v2850
        %vm2877 = vcmp.lt.s32.totalorder %v2841, %v2850
        %vm2878 = vcmp.lt.s32.totalorder %v2842, %v2850
        %vm2879 = vcmp.lt.s32.totalorder %v2843, %v2850
        %vm2880 = vcmp.lt.s32.totalorder %v2844, %v2850
        %vm2881 = vcmp.lt.s32.totalorder %v2845, %v2850
        %vm2882 = vcmp.lt.s32.totalorder %v2846, %v2850
        %v2883 = vsel %vm2851, %v2506, 0.0
        %v2884 = vsel %vm2852, %v2507, 0.0
        %v2885 = vsel %vm2853, %v2508, 0.0
        %v2886 = vsel %vm2854, %v2509, 0.0
        %v2887 = vsel %vm2855, %v2510, 0.0
        %v2888 = vsel %vm2856, %v2511, 0.0
        %v2889 = vsel %vm2857, %v2512, 0.0
        %v2890 = vsel %vm2858, %v2513, 0.0
        %v2891 = vsel %vm2859, %v2514, 0.0
        %v2892 = vsel %vm2860, %v2515, 0.0
        %v2893 = vsel %vm2861, %v2516, 0.0
        %v2894 = vsel %vm2862, %v2517, 0.0
        %v2895 = vsel %vm2863, %v2518, 0.0
        %v2896 = vsel %vm2864, %v2519, 0.0
        %v2897 = vsel %vm2865, %v2520, 0.0
        %v2898 = vsel %vm2866, %v2521, 0.0
        %v2899 = vsel %vm2867, %v2522, 0.0
        %v2900 = vsel %vm2868, %v2523, 0.0
        %v2901 = vsel %vm2869, %v2524, 0.0
        %v2902 = vsel %vm2870, %v2525, 0.0
        %v2903 = vsel %vm2871, %v2526, 0.0
        %v2904 = vsel %vm2872, %v2527, 0.0
        %v2905 = vsel %vm2873, %v2528, 0.0
        %v2906 = vsel %vm2874, %v2529, 0.0
        %v2907 = vsel %vm2875, %v2530, 0.0
        %v2908 = vsel %vm2876, %v2531, 0.0
        %v2909 = vsel %vm2877, %v2532, 0.0
        %v2910 = vsel %vm2878, %v2533, 0.0
        %v2911 = vsel %vm2879, %v2534, 0.0
        %v2912 = vsel %vm2880, %v2535, 0.0
        %v2913 = vsel %vm2881, %v2536, 0.0
        %v2914 = vsel %vm2882, %v2537, 0.0
        %v2915 = vadd.f32 %v2883, %v2884
        %v2916 = vadd.f32 %v2915, %v2885
        %v2917 = vadd.f32 %v2916, %v2886
        %v2918 = vadd.f32 %v2917, %v2887
        %v2919 = vadd.f32 %v2918, %v2888
        %v2920 = vadd.f32 %v2919, %v2889
        %v2921 = vadd.f32 %v2920, %v2890
        %v2922 = vadd.f32 %v2921, %v2891
        %v2923 = vadd.f32 %v2922, %v2892
        %v2924 = vadd.f32 %v2923, %v2893
        %v2925 = vadd.f32 %v2924, %v2894
        %v2926 = vadd.f32 %v2925, %v2895
        %v2927 = vadd.f32 %v2926, %v2896
        %v2928 = vadd.f32 %v2927, %v2897
        %v2929 = vadd.f32 %v2928, %v2898
        %v2930 = vadd.f32 %v2929, %v2899
        %v2931 = vadd.f32 %v2930, %v2900
        %v2932 = vadd.f32 %v2931, %v2901
        %v2933 = vadd.f32 %v2932, %v2902
        %v2934 = vadd.f32 %v2933, %v2903
        %v2935 = vadd.f32 %v2934, %v2904
        %v2936 = vadd.f32 %v2935, %v2905
        %v2937 = vadd.f32 %v2936, %v2906
        %v2938 = vadd.f32 %v2937, %v2907
        %v2939 = vadd.f32 %v2938, %v2908
        %v2940 = vadd.f32 %v2939, %v2909
        %v2941 = vadd.f32 %v2940, %v2910
        %v2942 = vadd.f32 %v2941, %v2911
        %v2943 = vadd.f32 %v2942, %v2912
        %v2944 = vadd.f32 %v2943, %v2913
        %v2945 = vadd.f32 %v2944, %v2914
        %v2946 = vrot.slane %v2945, 4
        %v2947 = vadd.f32 %v2945, %v2946
        %v2948 = vrot.slane %v2947, 2
        %v2949 = vadd.f32 %v2947, %v2948
        %v2950 = vrot.slane %v2949, 1
        %v2951 = vadd.f32 %v2949, %v2950
        %2952 = vst [vmem:[%s365] sm:$0x1] %v2951
        %v2953 = vmul.f32 %v2883, %v2883
        %v2954 = vmul.f32 %v2884, %v2884
        %v2955 = vmul.f32 %v2885, %v2885
        %v2956 = vmul.f32 %v2886, %v2886
        %v2957 = vmul.f32 %v2887, %v2887
        %v2958 = vmul.f32 %v2888, %v2888
        %v2959 = vmul.f32 %v2889, %v2889
        %v2960 = vmul.f32 %v2890, %v2890
        %v2961 = vmul.f32 %v2891, %v2891
        %v2962 = vmul.f32 %v2892, %v2892
        %v2963 = vmul.f32 %v2893, %v2893
        %v2964 = vmul.f32 %v2894, %v2894
        %v2965 = vmul.f32 %v2895, %v2895
        %v2966 = vmul.f32 %v2896, %v2896
        %v2967 = vmul.f32 %v2897, %v2897
        %v2968 = vmul.f32 %v2898, %v2898
        %v2969 = vmul.f32 %v2899, %v2899
        %v2970 = vmul.f32 %v2900, %v2900
        %v2971 = vmul.f32 %v2901, %v2901
        %v2972 = vmul.f32 %v2902, %v2902
        %v2973 = vmul.f32 %v2903, %v2903
        %v2974 = vmul.f32 %v2904, %v2904
        %v2975 = vmul.f32 %v2905, %v2905
        %v2976 = vmul.f32 %v2906, %v2906
        %v2977 = vmul.f32 %v2907, %v2907
        %v2978 = vmul.f32 %v2908, %v2908
        %v2979 = vmul.f32 %v2909, %v2909
        %v2980 = vmul.f32 %v2910, %v2910
        %v2981 = vmul.f32 %v2911, %v2911
        %v2982 = vmul.f32 %v2912, %v2912
        %v2983 = vmul.f32 %v2913, %v2913
        %v2984 = vmul.f32 %v2914, %v2914
        %v2985 = vadd.f32 %v2953, %v2954
        %v2986 = vadd.f32 %v2985, %v2955
        %v2987 = vadd.f32 %v2986, %v2956
        %v2988 = vadd.f32 %v2987, %v2957
        %v2989 = vadd.f32 %v2988, %v2958
        %v2990 = vadd.f32 %v2989, %v2959
        %v2991 = vadd.f32 %v2990, %v2960
        %v2992 = vadd.f32 %v2991, %v2961
        %v2993 = vadd.f32 %v2992, %v2962
        %v2994 = vadd.f32 %v2993, %v2963
        %v2995 = vadd.f32 %v2994, %v2964
        %v2996 = vadd.f32 %v2995, %v2965
        %v2997 = vadd.f32 %v2996, %v2966
        %v2998 = vadd.f32 %v2997, %v2967
        %v2999 = vadd.f32 %v2998, %v2968
        %v3000 = vadd.f32 %v2999, %v2969
        %v3001 = vadd.f32 %v3000, %v2970
        %v3002 = vadd.f32 %v3001, %v2971
        %v3003 = vadd.f32 %v3002, %v2972
        %v3004 = vadd.f32 %v3003, %v2973
        %v3005 = vadd.f32 %v3004, %v2974
        %v3006 = vadd.f32 %v3005, %v2975
        %v3007 = vadd.f32 %v3006, %v2976
        %v3008 = vadd.f32 %v3007, %v2977
        %v3009 = vadd.f32 %v3008, %v2978
        %v3010 = vadd.f32 %v3009, %v2979
        %v3011 = vadd.f32 %v3010, %v2980
        %v3012 = vadd.f32 %v3011, %v2981
        %v3013 = vadd.f32 %v3012, %v2982
        %v3014 = vadd.f32 %v3013, %v2983
        %v3015 = vadd.f32 %v3014, %v2984
        %v3016 = vrot.slane %v3015, 4
        %v3017 = vadd.f32 %v3015, %v3016
        %v3018 = vrot.slane %v3017, 2
        %v3019 = vadd.f32 %v3017, %v3018
        %v3020 = vrot.slane %v3019, 1
        %v3021 = vadd.f32 %v3019, %v3020
        %3022 = vst [vmem:[%s365 + $0x1] sm:$0x1] %v3021
      $region44: #{conv_up_block.6} parent=35 // pred_fallthru
        _
      %s3023 = smul.u32 16, %s22
      %p3024 = scmp.lt.s32.totalorder %s21, 1
      %s3025 = scalar_select %p3024, %s21, 1
      %p3026 = scmp.lt.s32.totalorder %s3023, 15
      %s3027 = scalar_select %p3026, %s3023, 15
      %s3028 = smul.addr %s3027, 2
      %s3029 = smul.addr %s3025, 32
      %s3030 = sadd.s32 %s3028, %s3029
      %s3031 = smul.addr %s3030, 4
      %s3032 = scalar_lea.vmem %s4, %s3031
      %p3033 = scmp.lt.s32.totalorder %s21, 1
      %s3034 = scalar_select %p3033, %s21, 1
      %p3035 = scmp.lt.s32.totalorder %s22, 0
      %s3036 = scalar_select %p3035, %s22, 0
      %s3037 = sadd.s32 %s3036, %s3034
      %s3038 = smul.addr %s3037, 2
      %s3039 = scalar_lea.vmem %s5, %s3038
      // Predicated region
      $region45: #{conv_up_block.6} parent=35 // pred_check
        %p3040 = pneg %p151
      $region46: #{conv_up_block.6} parent=35 // pred_check_branch
        %3042 = sbr.rel (%p3040) target = $region48
      $region47: #{conv_up_block.6} parent=35 // pred_region
        %s3043 = smul.u32 16, %s22
      $region48: #{conv_up_block.6} parent=35 // pred_fallthru
        _
      // Predicated region
      $region49: #{conv_up_block.6} parent=35 // pred_check
        %p3044 = pneg %p179
      $region50: #{conv_up_block.6} parent=35 // pred_check_branch
        %3046 = sbr.rel (%p3044) target = $region52
      $region51: #{conv_up_block.6} parent=35 // pred_region
        _
      $region52: #{conv_up_block.6} parent=35 // pred_fallthru
        _
    $region36: #{conv_up_block.6} parent=5 // pred_fallthru
      _
    %p3047 = scmp.le.s32.totalorder 2, %s12
    // Predicated region
    $region53: #{conv_up_block.6} parent=5 // pred_check
      %p3048 = pneg %p3047
    $region54: #{conv_up_block.6} parent=5 // pred_check_branch
      %3050 = sbr.rel (%p3048) target = $region56
    $region55: #{conv_up_block.6} parent=5 // pred_region
      %s3051 = ssub.s32 %s12, 2
      // Predicated region
      $region57: #{conv_up_block.6} parent=55 // pred_check
        %p3052 = pneg %p157
      $region58: #{conv_up_block.6} parent=55 // pred_check_branch
        %3054 = sbr.rel (%p3052) target = $region60
      $region59: #{conv_up_block.6} parent=55 // pred_region
        %s3055 = smul.u32 16, %s24
        %p3056 = scmp.lt.s32.totalorder %s23, 1
        %s3057 = scalar_select %p3056, %s23, 1
        %p3058 = scmp.lt.s32.totalorder %s3055, 15
        %s3059 = scalar_select %p3058, %s3055, 15
        %s3060 = smul.addr %s3059, 2
        %s3061 = smul.addr %s3057, 32
        %s3062 = sadd.s32 %s3060, %s3061
        %s3063 = smul.addr %s3062, 4
        %s3064 = scalar_lea.vmem %s4, %s3063
      $region60: #{conv_up_block.6} parent=55 // pred_fallthru
        _
      // Predicated region
      $region61: #{conv_up_block.6} parent=55 // pred_check
        %p3065 = pneg %p185
      $region62: #{conv_up_block.6} parent=55 // pred_check_branch
        %3067 = sbr.rel (%p3065) target = $region64
      $region63: #{conv_up_block.6} parent=55 // pred_region
        %p3068 = scmp.lt.s32.totalorder %s23, 1
        %s3069 = scalar_select %p3068, %s23, 1
        %p3070 = scmp.lt.s32.totalorder %s24, 0
        %s3071 = scalar_select %p3070, %s24, 0
        %s3072 = sadd.s32 %s3071, %s3069
        %s3073 = smul.addr %s3072, 2
        %s3074 = scalar_lea.vmem %s5, %s3073
      $region64: #{conv_up_block.6} parent=55 // pred_fallthru
        _
    $region56: #{conv_up_block.6} parent=5 // pred_fallthru
      _
  $region6: #{conv_up_block.6} parent=0 // loop_footer
    %s16 = sadd.s32 1, %s12
  $region7: #{conv_up_block.6} parent=0 // loop_footer_branch
    %11 = sbr.rel target = $region3
  $region8: #{conv_up_block.6} parent=0 // loop_exit
    _

</llo_original>
